<compile_context>
chip_gen: v7x
topology: tpu7x:2x2x1
jax: 0.10.0
libtpu: 0.0.40
codegen_flags: <defaults>
</compile_context>

<pallas_src>
import functools

import jax
import jax.numpy as jnp
from jax.experimental import pallas as pl
from jax.experimental.pallas import tpu as pltpu

EPS = 1e-5
NEG_SLOPE = 0.2


def _pick_c_blk(c_out):
    # Prefer a multiple-of-8 block that divides C_out and leaves >= 2 grid steps
    # (so both v7x TensorCores get work); otherwise do all of C_out in one step.
    for cand in (64, 32, 16, 8):
        if c_out % cand == 0 and c_out // cand >= 2:
            return cand
    return c_out


def _dec_block_kernel(x_ref, w_ref, g_ref, b_ref, o_ref, *,
                      H, W, HW, n_real_lanes, n_pad_lanes, inv_count):
    # x_ref : (C_in, LANES)      VMEM  channel-major, lane-flattened (n,h,w) input
    # w_ref : (9, c_blk, C_in)   VMEM  conv taps for this output-channel block
    # g_ref : (c_blk, 1)         VMEM  BN gamma for this block
    # b_ref : (c_blk, 1)         VMEM  BN beta  for this block
    # o_ref : (c_blk, LANES)     VMEM  output block (also used as the accumulator)
    LANES = x_ref.shape[1]
    x = x_ref[...]                                           # (C_in, LANES) f32

    # Per-tap boundary masks in the lane-flattened layout (computed once per step).
    pos = jax.lax.broadcasted_iota(jnp.int32, (1, LANES), 1)
    if (HW & (HW - 1)) == 0:
        sp = jnp.bitwise_and(pos, HW - 1)                    # position within image
    else:
        sp = jnp.remainder(pos, HW)
    if (W & (W - 1)) == 0:
        col = jnp.bitwise_and(sp, W - 1)
    else:
        col = jnp.remainder(sp, W)
    row_mask = {-1: sp >= W, 0: None, 1: sp < (H - 1) * W}
    col_mask = {-1: col >= 1, 0: None, 1: col <= W - 2}

    # Center tap: plain MXU matmul, no shift/mask; initializes the accumulator.
    # (f32 HIGHEST precision; production can cast x/w to bf16 for v6e/v7x MXUs.)
    o_ref[...] = jnp.dot(w_ref[4], x, preferred_element_type=jnp.float32,
                         precision=jax.lax.Precision.HIGHEST)

    # 8 neighbor taps: roll whole slab (XLU) -> matmul (MXU) -> mask partial (VPU).
    for dh in (-1, 0, 1):
        for dw in (-1, 0, 1):
            if dh == 0 and dw == 0:
                continue
            d = dh * W + dw
            tap = (dh + 1) * 3 + (dw + 1)
            xs = pltpu.roll(x, shift=(-d) % LANES, axis=1)   # xs[p] = x[p + d]
            part = jnp.dot(w_ref[tap], xs, preferred_element_type=jnp.float32,
                           precision=jax.lax.Precision.HIGHEST)
            m = row_mask[dh]
            if col_mask[dw] is not None:
                m = col_mask[dw] if m is None else jnp.logical_and(m, col_mask[dw])
            o_ref[...] += jnp.where(m, part, 0.0)

    # Fused BatchNorm (training-mode forward, biased var, two-pass) + LeakyReLU.
    y = o_ref[...]
    if n_pad_lanes:
        lane_valid = pos < n_real_lanes
        y = jnp.where(lane_valid, y, 0.0)
    mean = jnp.sum(y, axis=1, keepdims=True) * inv_count          # (c_blk, 1)
    centered = y - mean
    cm = jnp.where(lane_valid, centered, 0.0) if n_pad_lanes else centered
    var = jnp.sum(cm * cm, axis=1, keepdims=True) * inv_count     # biased variance
    scale = g_ref[...] * jax.lax.rsqrt(var + EPS)                 # (c_blk, 1)
    out = centered * scale + b_ref[...]
    o_ref[...] = jnp.maximum(out, NEG_SLOPE * out)                # LeakyReLU(0.2)


def dec_block_forward(x_nchw, weight, gamma, beta):
    """DecBlock forward: Conv3x3(pad=1, bias=False) -> BN(train) -> LeakyReLU(0.2).

    x_nchw: (N, C_in, H, W); weight: (C_out, C_in, 3, 3) (PyTorch OIHW);
    gamma/beta: (C_out,). Returns (N, C_out, H, W) float32.
    """
    N, C_in, H, W = x_nchw.shape
    C_out = weight.shape[0]
    assert weight.shape == (C_out, C_in, 3, 3)
    HW = H * W
    n_real = N * HW
    LANES = ((n_real + 127) // 128) * 128        # pad lane axis to a multiple of 128
    n_pad = LANES - n_real

    # One HBM-pass relayout in the wrapper: channel-major, lane-flattened (n,h,w).
    x = jnp.transpose(x_nchw.astype(jnp.float32), (1, 0, 2, 3)).reshape(C_in, n_real)
    if n_pad:
        x = jnp.pad(x, ((0, 0), (0, n_pad)))
    # Tap-major weights: w9[kh*3+kw, o, i] = weight[o, i, kh, kw].
    w9 = jnp.transpose(weight.astype(jnp.float32), (2, 3, 0, 1)).reshape(9, C_out, C_in)
    g = gamma.astype(jnp.float32).reshape(C_out, 1)
    b = beta.astype(jnp.float32).reshape(C_out, 1)

    c_blk = _pick_c_blk(C_out)
    grid = (C_out // c_blk,)

    kernel = functools.partial(
        _dec_block_kernel, H=H, W=W, HW=HW,
        n_real_lanes=n_real, n_pad_lanes=n_pad, inv_count=1.0 / float(n_real))

    # Explicit VMEM budget when the working set is non-trivial (v5e's default
    # scoped limit is only 16 MiB; v7x has 64 MiB physical).
    itemsize = 4
    x_bytes = C_in * LANES * itemsize
    o_blk_bytes = c_blk * LANES * itemsize
    w_bytes = 9 * max(c_blk, 8) * max(C_in, 128) * itemsize
    vmem_needed = 2 * (x_bytes + o_blk_bytes + w_bytes) + (2 << 20)
    cp = dict(dimension_semantics=("parallel",))
    if vmem_needed > (16 << 20):
        cp["vmem_limit_bytes"] = int(min(vmem_needed + (8 << 20), 96 << 20))
    # TODO(synk): for N*H*W too large for one lane block (esp. v7x's 64 MiB VMEM),
    # add spatial tiling with a two-pass BN (stats grid pass + normalize pass) and
    # single-buffer the grid-invariant x BlockSpec (pipeline_mode=pl.Buffered(1)).

    out = pl.pallas_call(
        kernel,
        out_shape=jax.ShapeDtypeStruct((C_out, LANES), jnp.float32),
        grid=grid,
        in_specs=[
            pl.BlockSpec((C_in, LANES), lambda o: (0, 0)),       # grid-invariant x
            pl.BlockSpec((9, c_blk, C_in), lambda o: (0, o, 0)),  # taps for this block
            pl.BlockSpec((c_blk, 1), lambda o: (o, 0)),          # gamma block
            pl.BlockSpec((c_blk, 1), lambda o: (o, 0)),          # beta block
        ],
        out_specs=pl.BlockSpec((c_blk, LANES), lambda o: (o, 0)),
        compiler_params=pltpu.CompilerParams(**cp),
    )(x, w9, g, b)

    out = out[:, :n_real].reshape(C_out, N, H, W)
    return jnp.transpose(out, (1, 0, 2, 3))


def _reference(x, weight, gamma, beta):
    """Pure-JAX reference (NCHW, PyTorch training-mode BN forward)."""
    y = jax.lax.conv_general_dilated(
        x.astype(jnp.float32), weight.astype(jnp.float32),
        window_strides=(1, 1), padding=((1, 1), (1, 1)),
        dimension_numbers=('NCHW', 'OIHW', 'NCHW'),
        precision=jax.lax.Precision.HIGHEST)
    mean = jnp.mean(y, axis=(0, 2, 3), keepdims=True)
    var = jnp.mean((y - mean) ** 2, axis=(0, 2, 3), keepdims=True)
    y = (y - mean) * jax.lax.rsqrt(var + EPS) * gamma.reshape(1, -1, 1, 1) \
        + beta.reshape(1, -1, 1, 1)
    return jnp.where(y >= 0, y, NEG_SLOPE * y)


if __name__ == "__main__":
    N, C_in, C_out, H, W = 2, 4, 4, 16, 16
    key = jax.random.PRNGKey(0)
    kx, kw, kg, kb = jax.random.split(key, 4)

    x = jax.random.normal(kx, (N, C_in, H, W), jnp.float32)
    # Conv2d(C_in, C_out, 3, stride=1, pad=1, bias=False) weights, OIHW layout.
    weight = jax.random.normal(kw, (C_out, C_in, 3, 3), jnp.float32) * 0.1
    # BatchNorm2d affine params (gamma near 1, beta near 0).
    gamma = 1.0 + 0.1 * jax.random.normal(kg, (C_out,), jnp.float32)
    beta = 0.1 * jax.random.normal(kb, (C_out,), jnp.float32)

    out = jax.block_until_ready(dec_block_forward(x, weight, gamma, beta))
    ref = jax.block_until_ready(_reference(x, weight, gamma, beta))

    assert out.shape == (N, C_out, H, W)
    err = float(jnp.max(jnp.abs(out - ref)))
    assert err < 1e-3, f"max abs err {err}"

    print("KERNEL_OK")
</pallas_src>

<mosaic_0001>
module attributes {stable_mosaic.version = 11 : i64} {
  func.func @_dec_block_kernel(%arg0: i32, %arg1: memref<4x512xf32, #tpu.memory_space<vmem>>, %arg2: memref<9x4x4xf32, #tpu.memory_space<vmem>>, %arg3: memref<4x1xf32, #tpu.memory_space<vmem>>, %arg4: memref<4x1xf32, #tpu.memory_space<vmem>>, %arg5: memref<4x512xf32, #tpu.memory_space<vmem>>) attributes {dimension_semantics = [#tpu.dimension_semantics<parallel>], iteration_bounds = array<i64: 1>, scalar_prefetch = 0 : i64, scratch_operands = 0 : i64, tpu.core_type = #tpu.core_type<tc>, window_params = [{pipeline_mode = #tpu.pipeline_mode<synchronous>, transform_indices = @transform_0, window_bounds = array<i64: 4, 512>}, {transform_indices = @transform_1, window_bounds = array<i64: 9, 4, 4>}, {transform_indices = @transform_2, window_bounds = array<i64: 4, 1>}, {transform_indices = @transform_3, window_bounds = array<i64: 4, 1>}, {transform_indices = @transform_4, window_bounds = array<i64: 4, 512>}]} {
    %c0 = arith.constant 0 : index
    %c0_0 = arith.constant 0 : index
    %0 = vector.load %arg1[%c0, %c0_0] : memref<4x512xf32, #tpu.memory_space<vmem>>, vector<4x512xf32>
    %1 = tpu.iota {dimensions = array<i32: 1>} : vector<1x512xi32>
    %c255_i32 = arith.constant 255 : i32
    %2 = vector.broadcast %c255_i32 : i32 to vector<1x512xi32>
    %3 = arith.andi %1, %2 : vector<1x512xi32>
    %c15_i32 = arith.constant 15 : i32
    %4 = vector.broadcast %c15_i32 : i32 to vector<1x512xi32>
    %5 = arith.andi %3, %4 : vector<1x512xi32>
    %c16_i32 = arith.constant 16 : i32
    %6 = vector.broadcast %c16_i32 : i32 to vector<1x512xi32>
    %7 = arith.cmpi sge, %3, %6 : vector<1x512xi32>
    %c240_i32 = arith.constant 240 : i32
    %8 = vector.broadcast %c240_i32 : i32 to vector<1x512xi32>
    %9 = arith.cmpi slt, %3, %8 : vector<1x512xi32>
    %c1_i32 = arith.constant 1 : i32
    %10 = vector.broadcast %c1_i32 : i32 to vector<1x512xi32>
    %11 = arith.cmpi sge, %5, %10 : vector<1x512xi32>
    %c14_i32 = arith.constant 14 : i32
    %12 = vector.broadcast %c14_i32 : i32 to vector<1x512xi32>
    %13 = arith.cmpi sle, %5, %12 : vector<1x512xi32>
    %c4 = arith.constant 4 : index
    %c0_1 = arith.constant 0 : index
    %c0_2 = arith.constant 0 : index
    %14 = vector.load %arg2[%c4, %c0_1, %c0_2] : memref<9x4x4xf32, #tpu.memory_space<vmem>>, vector<1x4x4xf32>
    %15 = vector.shape_cast %14 : vector<1x4x4xf32> to vector<4x4xf32>
    %cst = arith.constant dense<0.000000e+00> : vector<4x512xf32>
    %16 = tpu.matmul %15, %0, %cst {dimension_numbers = #tpu.dot_dimension_numbers<[1], [0], [0], [1], [0, 0, 1, 1], [], []>, precision = #tpu.contract_precision<fp32>} : vector<4x4xf32>, vector<4x512xf32>, vector<4x512xf32> -> vector<4x512xf32>
    %c0_3 = arith.constant 0 : index
    %c0_4 = arith.constant 0 : index
    %17 = vector.load %arg5[%c0_3, %c0_4] : memref<4x512xf32, #tpu.memory_space<vmem>>, vector<4x512xf32>
    tpu.vector_store %arg5[%c0_3, %c0_4], %16 {strides = array<i32>} : memref<4x512xf32, #tpu.memory_space<vmem>>, vector<4x512xf32>,
    %c17_i32 = arith.constant 17 : i32
    %18 = tpu.dynamic_rotate %0 by %c17_i32 dim 1 : vector<4x512xf32>, i32 -> vector<4x512xf32>
    %c0_5 = arith.constant 0 : index
    %c0_6 = arith.constant 0 : index
    %c0_7 = arith.constant 0 : index
    %19 = vector.load %arg2[%c0_5, %c0_6, %c0_7] : memref<9x4x4xf32, #tpu.memory_space<vmem>>, vector<1x4x4xf32>
    %20 = vector.shape_cast %19 : vector<1x4x4xf32> to vector<4x4xf32>
    %cst_8 = arith.constant dense<0.000000e+00> : vector<4x512xf32>
    %21 = tpu.matmul %20, %18, %cst_8 {dimension_numbers = #tpu.dot_dimension_numbers<[1], [0], [0], [1], [0, 0, 1, 1], [], []>, precision = #tpu.contract_precision<fp32>} : vector<4x4xf32>, vector<4x512xf32>, vector<4x512xf32> -> vector<4x512xf32>
    %22 = arith.andi %7, %11 : vector<1x512xi1>
    %c0_9 = arith.constant 0 : index
    %c0_10 = arith.constant 0 : index
    %23 = vector.load %arg5[%c0_9, %c0_10] : memref<4x512xf32, #tpu.memory_space<vmem>>, vector<4x512xf32>
    %cst_11 = arith.constant 0.000000e+00 : f32
    %24 = vector.shape_cast %22 : vector<1x512xi1> to vector<1x512xi1>
    %25 = vector.broadcast %24 : vector<1x512xi1> to vector<4x512xi1>
    %26 = vector.broadcast %cst_11 : f32 to vector<4x512xf32>
    %27 = arith.select %25, %21, %26 : vector<4x512xi1>, vector<4x512xf32>
    %28 = arith.addf %23, %27 : vector<4x512xf32>
    %c0_12 = arith.constant 0 : index
    %c0_13 = arith.constant 0 : index
    %29 = vector.load %arg5[%c0_12, %c0_13] : memref<4x512xf32, #tpu.memory_space<vmem>>, vector<4x512xf32>
    tpu.vector_store %arg5[%c0_12, %c0_13], %28 {strides = array<i32>} : memref<4x512xf32, #tpu.memory_space<vmem>>, vector<4x512xf32>,
    %c16_i32_14 = arith.constant 16 : i32
    %30 = tpu.dynamic_rotate %0 by %c16_i32_14 dim 1 : vector<4x512xf32>, i32 -> vector<4x512xf32>
    %c1 = arith.constant 1 : index
    %c0_15 = arith.constant 0 : index
    %c0_16 = arith.constant 0 : index
    %31 = vector.load %arg2[%c1, %c0_15, %c0_16] : memref<9x4x4xf32, #tpu.memory_space<vmem>>, vector<1x4x4xf32>
    %32 = vector.shape_cast %31 : vector<1x4x4xf32> to vector<4x4xf32>
    %cst_17 = arith.constant dense<0.000000e+00> : vector<4x512xf32>
    %33 = tpu.matmul %32, %30, %cst_17 {dimension_numbers = #tpu.dot_dimension_numbers<[1], [0], [0], [1], [0, 0, 1, 1], [], []>, precision = #tpu.contract_precision<fp32>} : vector<4x4xf32>, vector<4x512xf32>, vector<4x512xf32> -> vector<4x512xf32>
    %c0_18 = arith.constant 0 : index
    %c0_19 = arith.constant 0 : index
    %34 = vector.load %arg5[%c0_18, %c0_19] : memref<4x512xf32, #tpu.memory_space<vmem>>, vector<4x512xf32>
    %cst_20 = arith.constant 0.000000e+00 : f32
    %35 = vector.shape_cast %7 : vector<1x512xi1> to vector<1x512xi1>
    %36 = vector.broadcast %35 : vector<1x512xi1> to vector<4x512xi1>
    %37 = vector.broadcast %cst_20 : f32 to vector<4x512xf32>
    %38 = arith.select %36, %33, %37 : vector<4x512xi1>, vector<4x512xf32>
    %39 = arith.addf %34, %38 : vector<4x512xf32>
    %c0_21 = arith.constant 0 : index
    %c0_22 = arith.constant 0 : index
    %40 = vector.load %arg5[%c0_21, %c0_22] : memref<4x512xf32, #tpu.memory_space<vmem>>, vector<4x512xf32>
    tpu.vector_store %arg5[%c0_21, %c0_22], %39 {strides = array<i32>} : memref<4x512xf32, #tpu.memory_space<vmem>>, vector<4x512xf32>,
    %c15_i32_23 = arith.constant 15 : i32
    %41 = tpu.dynamic_rotate %0 by %c15_i32_23 dim 1 : vector<4x512xf32>, i32 -> vector<4x512xf32>
    %c2 = arith.constant 2 : index
    %c0_24 = arith.constant 0 : index
    %c0_25 = arith.constant 0 : index
    %42 = vector.load %arg2[%c2, %c0_24, %c0_25] : memref<9x4x4xf32, #tpu.memory_space<vmem>>, vector<1x4x4xf32>
    %43 = vector.shape_cast %42 : vector<1x4x4xf32> to vector<4x4xf32>
    %cst_26 = arith.constant dense<0.000000e+00> : vector<4x512xf32>
    %44 = tpu.matmul %43, %41, %cst_26 {dimension_numbers = #tpu.dot_dimension_numbers<[1], [0], [0], [1], [0, 0, 1, 1], [], []>, precision = #tpu.contract_precision<fp32>} : vector<4x4xf32>, vector<4x512xf32>, vector<4x512xf32> -> vector<4x512xf32>
    %45 = arith.andi %7, %13 : vector<1x512xi1>
    %c0_27 = arith.constant 0 : index
    %c0_28 = arith.constant 0 : index
    %46 = vector.load %arg5[%c0_27, %c0_28] : memref<4x512xf32, #tpu.memory_space<vmem>>, vector<4x512xf32>
    %cst_29 = arith.constant 0.000000e+00 : f32
    %47 = vector.shape_cast %45 : vector<1x512xi1> to vector<1x512xi1>
    %48 = vector.broadcast %47 : vector<1x512xi1> to vector<4x512xi1>
    %49 = vector.broadcast %cst_29 : f32 to vector<4x512xf32>
    %50 = arith.select %48, %44, %49 : vector<4x512xi1>, vector<4x512xf32>
    %51 = arith.addf %46, %50 : vector<4x512xf32>
    %c0_30 = arith.constant 0 : index
    %c0_31 = arith.constant 0 : index
    %52 = vector.load %arg5[%c0_30, %c0_31] : memref<4x512xf32, #tpu.memory_space<vmem>>, vector<4x512xf32>
    tpu.vector_store %arg5[%c0_30, %c0_31], %51 {strides = array<i32>} : memref<4x512xf32, #tpu.memory_space<vmem>>, vector<4x512xf32>,
    %c1_i32_32 = arith.constant 1 : i32
    %53 = tpu.dynamic_rotate %0 by %c1_i32_32 dim 1 : vector<4x512xf32>, i32 -> vector<4x512xf32>
    %c3 = arith.constant 3 : index
    %c0_33 = arith.constant 0 : index
    %c0_34 = arith.constant 0 : index
    %54 = vector.load %arg2[%c3, %c0_33, %c0_34] : memref<9x4x4xf32, #tpu.memory_space<vmem>>, vector<1x4x4xf32>
    %55 = vector.shape_cast %54 : vector<1x4x4xf32> to vector<4x4xf32>
    %cst_35 = arith.constant dense<0.000000e+00> : vector<4x512xf32>
    %56 = tpu.matmul %55, %53, %cst_35 {dimension_numbers = #tpu.dot_dimension_numbers<[1], [0], [0], [1], [0, 0, 1, 1], [], []>, precision = #tpu.contract_precision<fp32>} : vector<4x4xf32>, vector<4x512xf32>, vector<4x512xf32> -> vector<4x512xf32>
    %c0_36 = arith.constant 0 : index
    %c0_37 = arith.constant 0 : index
    %57 = vector.load %arg5[%c0_36, %c0_37] : memref<4x512xf32, #tpu.memory_space<vmem>>, vector<4x512xf32>
    %cst_38 = arith.constant 0.000000e+00 : f32
    %58 = vector.shape_cast %11 : vector<1x512xi1> to vector<1x512xi1>
    %59 = vector.broadcast %58 : vector<1x512xi1> to vector<4x512xi1>
    %60 = vector.broadcast %cst_38 : f32 to vector<4x512xf32>
    %61 = arith.select %59, %56, %60 : vector<4x512xi1>, vector<4x512xf32>
    %62 = arith.addf %57, %61 : vector<4x512xf32>
    %c0_39 = arith.constant 0 : index
    %c0_40 = arith.constant 0 : index
    %63 = vector.load %arg5[%c0_39, %c0_40] : memref<4x512xf32, #tpu.memory_space<vmem>>, vector<4x512xf32>
    tpu.vector_store %arg5[%c0_39, %c0_40], %62 {strides = array<i32>} : memref<4x512xf32, #tpu.memory_space<vmem>>, vector<4x512xf32>,
    %c511_i32 = arith.constant 511 : i32
    %64 = tpu.dynamic_rotate %0 by %c511_i32 dim 1 : vector<4x512xf32>, i32 -> vector<4x512xf32>
    %c5 = arith.constant 5 : index
    %c0_41 = arith.constant 0 : index
    %c0_42 = arith.constant 0 : index
    %65 = vector.load %arg2[%c5, %c0_41, %c0_42] : memref<9x4x4xf32, #tpu.memory_space<vmem>>, vector<1x4x4xf32>
    %66 = vector.shape_cast %65 : vector<1x4x4xf32> to vector<4x4xf32>
    %cst_43 = arith.constant dense<0.000000e+00> : vector<4x512xf32>
    %67 = tpu.matmul %66, %64, %cst_43 {dimension_numbers = #tpu.dot_dimension_numbers<[1], [0], [0], [1], [0, 0, 1, 1], [], []>, precision = #tpu.contract_precision<fp32>} : vector<4x4xf32>, vector<4x512xf32>, vector<4x512xf32> -> vector<4x512xf32>
    %c0_44 = arith.constant 0 : index
    %c0_45 = arith.constant 0 : index
    %68 = vector.load %arg5[%c0_44, %c0_45] : memref<4x512xf32, #tpu.memory_space<vmem>>, vector<4x512xf32>
    %cst_46 = arith.constant 0.000000e+00 : f32
    %69 = vector.shape_cast %13 : vector<1x512xi1> to vector<1x512xi1>
    %70 = vector.broadcast %69 : vector<1x512xi1> to vector<4x512xi1>
    %71 = vector.broadcast %cst_46 : f32 to vector<4x512xf32>
    %72 = arith.select %70, %67, %71 : vector<4x512xi1>, vector<4x512xf32>
    %73 = arith.addf %68, %72 : vector<4x512xf32>
    %c0_47 = arith.constant 0 : index
    %c0_48 = arith.constant 0 : index
    %74 = vector.load %arg5[%c0_47, %c0_48] : memref<4x512xf32, #tpu.memory_space<vmem>>, vector<4x512xf32>
    tpu.vector_store %arg5[%c0_47, %c0_48], %73 {strides = array<i32>} : memref<4x512xf32, #tpu.memory_space<vmem>>, vector<4x512xf32>,
    %c497_i32 = arith.constant 497 : i32
    %75 = tpu.dynamic_rotate %0 by %c497_i32 dim 1 : vector<4x512xf32>, i32 -> vector<4x512xf32>
    %c6 = arith.constant 6 : index
    %c0_49 = arith.constant 0 : index
    %c0_50 = arith.constant 0 : index
    %76 = vector.load %arg2[%c6, %c0_49, %c0_50] : memref<9x4x4xf32, #tpu.memory_space<vmem>>, vector<1x4x4xf32>
    %77 = vector.shape_cast %76 : vector<1x4x4xf32> to vector<4x4xf32>
    %cst_51 = arith.constant dense<0.000000e+00> : vector<4x512xf32>
    %78 = tpu.matmul %77, %75, %cst_51 {dimension_numbers = #tpu.dot_dimension_numbers<[1], [0], [0], [1], [0, 0, 1, 1], [], []>, precision = #tpu.contract_precision<fp32>} : vector<4x4xf32>, vector<4x512xf32>, vector<4x512xf32> -> vector<4x512xf32>
    %79 = arith.andi %9, %11 : vector<1x512xi1>
    %c0_52 = arith.constant 0 : index
    %c0_53 = arith.constant 0 : index
    %80 = vector.load %arg5[%c0_52, %c0_53] : memref<4x512xf32, #tpu.memory_space<vmem>>, vector<4x512xf32>
    %cst_54 = arith.constant 0.000000e+00 : f32
    %81 = vector.shape_cast %79 : vector<1x512xi1> to vector<1x512xi1>
    %82 = vector.broadcast %81 : vector<1x512xi1> to vector<4x512xi1>
    %83 = vector.broadcast %cst_54 : f32 to vector<4x512xf32>
    %84 = arith.select %82, %78, %83 : vector<4x512xi1>, vector<4x512xf32>
    %85 = arith.addf %80, %84 : vector<4x512xf32>
    %c0_55 = arith.constant 0 : index
    %c0_56 = arith.constant 0 : index
    %86 = vector.load %arg5[%c0_55, %c0_56] : memref<4x512xf32, #tpu.memory_space<vmem>>, vector<4x512xf32>
    tpu.vector_store %arg5[%c0_55, %c0_56], %85 {strides = array<i32>} : memref<4x512xf32, #tpu.memory_space<vmem>>, vector<4x512xf32>,
    %c496_i32 = arith.constant 496 : i32
    %87 = tpu.dynamic_rotate %0 by %c496_i32 dim 1 : vector<4x512xf32>, i32 -> vector<4x512xf32>
    %c7 = arith.constant 7 : index
    %c0_57 = arith.constant 0 : index
    %c0_58 = arith.constant 0 : index
    %88 = vector.load %arg2[%c7, %c0_57, %c0_58] : memref<9x4x4xf32, #tpu.memory_space<vmem>>, vector<1x4x4xf32>
    %89 = vector.shape_cast %88 : vector<1x4x4xf32> to vector<4x4xf32>
    %cst_59 = arith.constant dense<0.000000e+00> : vector<4x512xf32>
    %90 = tpu.matmul %89, %87, %cst_59 {dimension_numbers = #tpu.dot_dimension_numbers<[1], [0], [0], [1], [0, 0, 1, 1], [], []>, precision = #tpu.contract_precision<fp32>} : vector<4x4xf32>, vector<4x512xf32>, vector<4x512xf32> -> vector<4x512xf32>
    %c0_60 = arith.constant 0 : index
    %c0_61 = arith.constant 0 : index
    %91 = vector.load %arg5[%c0_60, %c0_61] : memref<4x512xf32, #tpu.memory_space<vmem>>, vector<4x512xf32>
    %cst_62 = arith.constant 0.000000e+00 : f32
    %92 = vector.shape_cast %9 : vector<1x512xi1> to vector<1x512xi1>
    %93 = vector.broadcast %92 : vector<1x512xi1> to vector<4x512xi1>
    %94 = vector.broadcast %cst_62 : f32 to vector<4x512xf32>
    %95 = arith.select %93, %90, %94 : vector<4x512xi1>, vector<4x512xf32>
    %96 = arith.addf %91, %95 : vector<4x512xf32>
    %c0_63 = arith.constant 0 : index
    %c0_64 = arith.constant 0 : index
    %97 = vector.load %arg5[%c0_63, %c0_64] : memref<4x512xf32, #tpu.memory_space<vmem>>, vector<4x512xf32>
    tpu.vector_store %arg5[%c0_63, %c0_64], %96 {strides = array<i32>} : memref<4x512xf32, #tpu.memory_space<vmem>>, vector<4x512xf32>,
    %c495_i32 = arith.constant 495 : i32
    %98 = tpu.dynamic_rotate %0 by %c495_i32 dim 1 : vector<4x512xf32>, i32 -> vector<4x512xf32>
    %c8 = arith.constant 8 : index
    %c0_65 = arith.constant 0 : index
    %c0_66 = arith.constant 0 : index
    %99 = vector.load %arg2[%c8, %c0_65, %c0_66] : memref<9x4x4xf32, #tpu.memory_space<vmem>>, vector<1x4x4xf32>
    %100 = vector.shape_cast %99 : vector<1x4x4xf32> to vector<4x4xf32>
    %cst_67 = arith.constant dense<0.000000e+00> : vector<4x512xf32>
    %101 = tpu.matmul %100, %98, %cst_67 {dimension_numbers = #tpu.dot_dimension_numbers<[1], [0], [0], [1], [0, 0, 1, 1], [], []>, precision = #tpu.contract_precision<fp32>} : vector<4x4xf32>, vector<4x512xf32>, vector<4x512xf32> -> vector<4x512xf32>
    %102 = arith.andi %9, %13 : vector<1x512xi1>
    %c0_68 = arith.constant 0 : index
    %c0_69 = arith.constant 0 : index
    %103 = vector.load %arg5[%c0_68, %c0_69] : memref<4x512xf32, #tpu.memory_space<vmem>>, vector<4x512xf32>
    %cst_70 = arith.constant 0.000000e+00 : f32
    %104 = vector.shape_cast %102 : vector<1x512xi1> to vector<1x512xi1>
    %105 = vector.broadcast %104 : vector<1x512xi1> to vector<4x512xi1>
    %106 = vector.broadcast %cst_70 : f32 to vector<4x512xf32>
    %107 = arith.select %105, %101, %106 : vector<4x512xi1>, vector<4x512xf32>
    %108 = arith.addf %103, %107 : vector<4x512xf32>
    %c0_71 = arith.constant 0 : index
    %c0_72 = arith.constant 0 : index
    %109 = vector.load %arg5[%c0_71, %c0_72] : memref<4x512xf32, #tpu.memory_space<vmem>>, vector<4x512xf32>
    tpu.vector_store %arg5[%c0_71, %c0_72], %108 {strides = array<i32>} : memref<4x512xf32, #tpu.memory_space<vmem>>, vector<4x512xf32>,
    %c0_73 = arith.constant 0 : index
    %c0_74 = arith.constant 0 : index
    %110 = vector.load %arg5[%c0_73, %c0_74] : memref<4x512xf32, #tpu.memory_space<vmem>>, vector<4x512xf32>
    %cst_75 = arith.constant dense<0.000000e+00> : vector<4xf32>
    %111 = vector.multi_reduction <add>, %110, %cst_75 [1] : vector<4x512xf32> to vector<4xf32>
    %112 = vector.shape_cast %111 : vector<4xf32> to vector<4x1xf32>
    %cst_76 = arith.constant 0.001953125 : f32
    %113 = vector.broadcast %cst_76 : f32 to vector<4x1xf32>
    %114 = arith.mulf %112, %113 : vector<4x1xf32>
    %115 = vector.broadcast %114 : vector<4x1xf32> to vector<4x512xf32>
    %116 = arith.subf %110, %115 : vector<4x512xf32>
    %117 = arith.mulf %116, %116 : vector<4x512xf32>
    %cst_77 = arith.constant dense<0.000000e+00> : vector<4xf32>
    %118 = vector.multi_reduction <add>, %117, %cst_77 [1] : vector<4x512xf32> to vector<4xf32>
    %119 = vector.shape_cast %118 : vector<4xf32> to vector<4x1xf32>
    %cst_78 = arith.constant 0.001953125 : f32
    %120 = vector.broadcast %cst_78 : f32 to vector<4x1xf32>
    %121 = arith.mulf %119, %120 : vector<4x1xf32>
    %c0_79 = arith.constant 0 : index
    %c0_80 = arith.constant 0 : index
    %122 = vector.load %arg3[%c0_79, %c0_80] : memref<4x1xf32, #tpu.memory_space<vmem>>, vector<4x1xf32>
    %cst_81 = arith.constant 9.99999974E-6 : f32
    %123 = vector.broadcast %cst_81 : f32 to vector<4x1xf32>
    %124 = arith.addf %121, %123 : vector<4x1xf32>
    %125 = math.rsqrt %124 : vector<4x1xf32>
    %126 = arith.mulf %122, %125 : vector<4x1xf32>
    %127 = vector.broadcast %126 : vector<4x1xf32> to vector<4x512xf32>
    %128 = arith.mulf %116, %127 : vector<4x512xf32>
    %c0_82 = arith.constant 0 : index
    %c0_83 = arith.constant 0 : index
    %129 = vector.load %arg4[%c0_82, %c0_83] : memref<4x1xf32, #tpu.memory_space<vmem>>, vector<4x1xf32>
    %130 = vector.broadcast %129 : vector<4x1xf32> to vector<4x512xf32>
    %131 = arith.addf %128, %130 : vector<4x512xf32>
    %cst_84 = arith.constant 2.000000e-01 : f32
    %132 = vector.broadcast %cst_84 : f32 to vector<4x512xf32>
    %133 = arith.mulf %132, %131 : vector<4x512xf32>
    %134 = arith.maximumf %131, %133 : vector<4x512xf32>
    %c0_85 = arith.constant 0 : index
    %c0_86 = arith.constant 0 : index
    %135 = vector.load %arg5[%c0_85, %c0_86] : memref<4x512xf32, #tpu.memory_space<vmem>>, vector<4x512xf32>
    tpu.vector_store %arg5[%c0_85, %c0_86], %134 {strides = array<i32>} : memref<4x512xf32, #tpu.memory_space<vmem>>, vector<4x512xf32>,
    return
  }
  func.func @transform_0(%arg0: i32) -> (i32, i32) {
    %c0_i32 = arith.constant 0 : i32
    %c0_i32_0 = arith.constant 0 : i32
    %c0_i32_1 = arith.constant 0 : i32
    return %c0_i32, %c0_i32_0 : i32, i32
  }
  func.func @transform_1(%arg0: i32) -> (i32, i32, i32) {
    %c0_i32 = arith.constant 0 : i32
    %c0_i32_0 = arith.constant 0 : i32
    %c0_i32_1 = arith.constant 0 : i32
    return %c0_i32, %arg0, %c0_i32_0 : i32, i32, i32
  }
  func.func @transform_2(%arg0: i32) -> (i32, i32) {
    %c0_i32 = arith.constant 0 : i32
    %c0_i32_0 = arith.constant 0 : i32
    return %arg0, %c0_i32 : i32, i32
  }
  func.func @transform_3(%arg0: i32) -> (i32, i32) {
    %c0_i32 = arith.constant 0 : i32
    %c0_i32_0 = arith.constant 0 : i32
    return %arg0, %c0_i32 : i32, i32
  }
  func.func @transform_4(%arg0: i32) -> (i32, i32) {
    %c0_i32 = arith.constant 0 : i32
    %c0_i32_0 = arith.constant 0 : i32
    return %arg0, %c0_i32 : i32, i32
  }
}

</mosaic_0001>

<llo_original>
// kernel: tpu_custom_call.1
$region0: #{tpu_custom_call.1}
  #allocation0 [shape = 'u32[]', space=smem, size = 0x4, offset = 0x4, fixed_abs, tag = 'smem constant byte address 0x4 - core index']
  #allocation1 [shape = 'u32[144,128]{1,0:T(1,128)}', space=vmem, size = 0x12000, scoped, tag = 'internal scratch']
  %s0 = inlined_call_operand.vmem [shape: f32[4,512], index: 0, kind: input, shape index: {}]
  %s1 = inlined_call_operand.vmem [shape: f32[9,4,4], index: 1, kind: input, shape index: {}]
  %s2 = inlined_call_operand.vmem [shape: f32[4,1], index: 2, kind: input, shape index: {}]
  %s3 = inlined_call_operand.vmem [shape: f32[4,1], index: 3, kind: input, shape index: {}]
  %s4 = inlined_call_operand.hbm [shape: f32[4,512], index: 4, kind: output, shape index: {}]
  %s5 = sld [smem:[#allocation0]]
  $region26: #{tpu_custom_call.1} parent=0
    _
  %s7 = ssub.s32 1, %s5
  %s8 = scalar_select 0, %s7, %s5
  $region1: #{tpu_custom_call.1} parent=0
    #allocation2 [shape = 'u8[8192]{0}', space=vmem, size = 0x2000, scoped, tag = 'output window, operand 0, single buffered']
    #allocation3 [shape = 's32[1]{0}', space=sflag, size = 0x4, scoped, tag = 'scoped memory for tpu_custom_call.1']
    %9 = vsyncpa [#allocation3], 0
    // Predicated region
    $region2: #{tpu_custom_call.1} parent=1 // pred_check
      _
    $region3: #{tpu_custom_call.1} parent=1 // pred_check_branch
      %11 = sbr.rel (0) target = $region5
    $region4: #{tpu_custom_call.1} parent=1 // pred_region
      _
    $region5: #{tpu_custom_call.1} parent=1 // pred_fallthru
      _
    // Predicated region
    $region6: #{tpu_custom_call.1} parent=1 // pred_check
      _
    $region7: #{tpu_custom_call.1} parent=1 // pred_check_branch
      %13 = sbr.rel (0) target = $region9
    $region8: #{tpu_custom_call.1} parent=1 // pred_region
      _
    $region9: #{tpu_custom_call.1} parent=1 // pred_fallthru
      _
    // Predicated region
    $region10: #{tpu_custom_call.1} parent=1 // pred_check
      _
    $region11: #{tpu_custom_call.1} parent=1 // pred_check_branch
      %15 = sbr.rel (0) target = $region13
    $region12: #{tpu_custom_call.1} parent=1 // pred_region
      _
    $region13: #{tpu_custom_call.1} parent=1 // pred_fallthru
      _
    // Predicated region
    $region14: #{tpu_custom_call.1} parent=1 // pred_check
      _
    $region15: #{tpu_custom_call.1} parent=1 // pred_check_branch
      %17 = sbr.rel (0) target = $region17
    $region16: #{tpu_custom_call.1} parent=1 // pred_region
      _
    $region17: #{tpu_custom_call.1} parent=1 // pred_fallthru
      _
    %v18 = vld [vmem:[%s0] sm:$0xff]
    %v19 = vld [vmem:[%s0 + $0x8] sm:$0xff]
    %v20 = vlaneseq
    %v21 = vand.u32 %v20, 127
    %v22 = vadd.s32 %v21, 128
    %v23 = vadd.s32 %v21, 256
    %v24 = vadd.s32 %v21, 384
    %v25 = vand.u32 %v21, 255
    %v26 = vand.u32 %v22, 255
    %v27 = vand.u32 %v23, 255
    %v28 = vand.u32 %v24, 255
    %v29 = vand.u32 %v25, 15
    %v30 = vand.u32 %v26, 15
    %v31 = vand.u32 %v27, 15
    %v32 = vand.u32 %v28, 15
    %vm33 = vcmp.ge.s32.totalorder %v25, 16
    %vm34 = vcmp.ge.s32.totalorder %v26, 16
    %vm35 = vcmp.ge.s32.totalorder %v27, 16
    %vm36 = vcmp.ge.s32.totalorder %v28, 16
    %vm37 = vcmp.lt.s32.totalorder %v25, 240
    %vm38 = vcmp.lt.s32.totalorder %v26, 240
    %vm39 = vcmp.lt.s32.totalorder %v27, 240
    %vm40 = vcmp.lt.s32.totalorder %v28, 240
    %vm41 = vcmp.ge.s32.totalorder %v29, 1
    %vm42 = vcmp.ge.s32.totalorder %v30, 1
    %vm43 = vcmp.ge.s32.totalorder %v31, 1
    %vm44 = vcmp.ge.s32.totalorder %v32, 1
    %vm45 = vcmp.le.s32.totalorder %v29, 14
    %vm46 = vcmp.le.s32.totalorder %v30, 14
    %vm47 = vcmp.le.s32.totalorder %v31, 14
    %vm48 = vcmp.le.s32.totalorder %v32, 14
    %s49 = scalar_lea.vmem %s1, 16
    %v50 = vld [vmem:[%s49] sm:$0xf]
    %v53 = vcombine.high %v18, %v18
    %v54 = vcombine.high %v19, %v19
    %vm55 = vcmask 31744
    %v57 = vsel %vm55, %v50, 0
    %vm59 = vcmask 1043456
    %v60 = vsel %vm59, %v18, 0
    %v62 = vsel %vm59, %v53, 0
    %v64 = vsel %vm59, %v19, 0
    %v66 = vsel %vm59, %v54, 0
    %v68 = vand.u32 %v62, 4294901760
    %69 = vmatprep.subr.mxu0 %v68
    %v70 = vand.u32 %v60, 4294901760
    %71 = vmatpush1.msra.mxu0 %v70
    %72 = vmatprep.subr.mxu0 0.0
    %73 = vmatpush1.msra.mxu0 0.0
    %74 = vmatprep.subr.mxu0 0.0
    %75 = vmatpush1.msra.mxu0 0.0
    %76 = vmatprep.subr.mxu0 0.0
    %77 = vmatpush1.msra.mxu0 0.0
    %78 = vmatprep.subr.mxu0 0.0
    %79 = vmatpush1.msra.mxu0 0.0
    %80 = vmatprep.subr.mxu0 0.0
    %81 = vmatpush1.msra.mxu0 0.0
    %82 = vmatprep.subr.mxu0 0.0
    %83 = vmatpush1.msra.mxu0 0.0
    %84 = vmatprep.subr.mxu0 0.0
    %85 = vmatpush1.msra.mxu0 0.0
    %86 = vmatprep.subr.mxu0 0.0
    %87 = vmatpush1.msra.mxu0 0.0
    %88 = vmatprep.subr.mxu0 0.0
    %89 = vmatpush1.msra.mxu0 0.0
    %90 = vmatprep.subr.mxu0 0.0
    %91 = vmatpush1.msra.mxu0 0.0
    %92 = vmatprep.subr.mxu0 0.0
    %93 = vmatpush1.msra.mxu0 0.0
    %94 = vmatprep.subr.mxu0 0.0
    %95 = vmatpush1.msra.mxu0 0.0
    %96 = vmatprep.subr.mxu0 0.0
    %97 = vmatpush1.msra.mxu0 0.0
    %98 = vmatprep.subr.mxu0 0.0
    %99 = vmatpush1.msra.mxu0 0.0
    %100 = vmatprep.subr.mxu0 0.0
    %101 = vmatpush1.msra.mxu0 0.0
    %102 = vmatprep.subr.mxu0 0.0
    %103 = vmatpush1.msra.mxu0 0.0
    %104 = vmatprep.subr.mxu0 0.0
    %105 = vmatpush1.msra.mxu0 0.0
    %106 = vmatprep.subr.mxu0 0.0
    %107 = vmatpush1.msra.mxu0 0.0
    %108 = vmatprep.subr.mxu0 0.0
    %109 = vmatpush1.msra.mxu0 0.0
    %110 = vmatprep.subr.mxu0 0.0
    %111 = vmatpush1.msra.mxu0 0.0
    %112 = vmatprep.subr.mxu0 0.0
    %113 = vmatpush1.msra.mxu0 0.0
    %114 = vmatprep.subr.mxu0 0.0
    %115 = vmatpush1.msra.mxu0 0.0
    %116 = vmatprep.subr.mxu0 0.0
    %117 = vmatpush1.msra.mxu0 0.0
    %118 = vmatprep.subr.mxu0 0.0
    %119 = vmatpush1.msra.mxu0 0.0
    %120 = vmatprep.subr.mxu0 0.0
    %121 = vmatpush1.msra.mxu0 0.0
    %122 = vmatprep.subr.mxu0 0.0
    %123 = vmatpush1.msra.mxu0 0.0
    %124 = vmatprep.subr.mxu0 0.0
    %125 = vmatpush1.msra.mxu0 0.0
    %126 = vmatprep.subr.mxu0 0.0
    %127 = vmatpush1.msra.mxu0 0.0
    %128 = vmatprep.subr.mxu0 0.0
    %129 = vmatpush1.msra.mxu0 0.0
    %130 = vmatprep.subr.mxu0 0.0
    %131 = vmatpush1.msra.mxu0 0.0
    %132 = vmatprep.subr.mxu0 0.0
    %133 = vmatpush1.msra.mxu0 0.0
    %134 = vmatprep.mubr.f32.mxu0 0.0
    %v135 = vand.u32 %v57, 4294901760
    %v136 = vsub.f32 %v57, %v135
    %v137 = vand.u32 %v136, 4294901760
    %v138 = vsub.f32 %v136, %v137
    %v139 = vand.u32 %v138, 4294901760
    %140 = vmatmul.mubr.f32.gmra.mrb[0].mxu0 %v139
    %v141 = vpop.f32.mrb[0].mxu0
    %v142 = vadd.f32 0.0, %v141
    %v143 = vpop.f32.mrb[0].mxu0
    %v144 = vadd.f32 0.0, %v143
    %145 = vdwg.mxu0
    %v146 = vand.u32 %v62, 4294901760
    %v147 = vsub.f32 %v62, %v146
    %v148 = vand.u32 %v147, 4294901760
    %v149 = vsub.f32 %v147, %v148
    %v150 = vand.u32 %v149, 4294901760
    %151 = vmatprep.subr.mxu0 %v150
    %v152 = vand.u32 %v60, 4294901760
    %v153 = vsub.f32 %v60, %v152
    %v154 = vand.u32 %v153, 4294901760
    %v155 = vsub.f32 %v153, %v154
    %v156 = vand.u32 %v155, 4294901760
    %157 = vmatpush1.msra.mxu0 %v156
    %158 = vmatprep.subr.mxu0 0.0
    %159 = vmatpush1.msra.mxu0 0.0
    %160 = vmatprep.subr.mxu0 0.0
    %161 = vmatpush1.msra.mxu0 0.0
    %162 = vmatprep.subr.mxu0 0.0
    %163 = vmatpush1.msra.mxu0 0.0
    %164 = vmatprep.subr.mxu0 0.0
    %165 = vmatpush1.msra.mxu0 0.0
    %166 = vmatprep.subr.mxu0 0.0
    %167 = vmatpush1.msra.mxu0 0.0
    %168 = vmatprep.subr.mxu0 0.0
    %169 = vmatpush1.msra.mxu0 0.0
    %170 = vmatprep.subr.mxu0 0.0
    %171 = vmatpush1.msra.mxu0 0.0
    %172 = vmatprep.subr.mxu0 0.0
    %173 = vmatpush1.msra.mxu0 0.0
    %174 = vmatprep.subr.mxu0 0.0
    %175 = vmatpush1.msra.mxu0 0.0
    %176 = vmatprep.subr.mxu0 0.0
    %177 = vmatpush1.msra.mxu0 0.0
    %178 = vmatprep.subr.mxu0 0.0
    %179 = vmatpush1.msra.mxu0 0.0
    %180 = vmatprep.subr.mxu0 0.0
    %181 = vmatpush1.msra.mxu0 0.0
    %182 = vmatprep.subr.mxu0 0.0
    %183 = vmatpush1.msra.mxu0 0.0
    %184 = vmatprep.subr.mxu0 0.0
    %185 = vmatpush1.msra.mxu0 0.0
    %186 = vmatprep.subr.mxu0 0.0
    %187 = vmatpush1.msra.mxu0 0.0
    %188 = vmatprep.subr.mxu0 0.0
    %189 = vmatpush1.msra.mxu0 0.0
    %190 = vmatprep.subr.mxu0 0.0
    %191 = vmatpush1.msra.mxu0 0.0
    %192 = vmatprep.subr.mxu0 0.0
    %193 = vmatpush1.msra.mxu0 0.0
    %194 = vmatprep.subr.mxu0 0.0
    %195 = vmatpush1.msra.mxu0 0.0
    %196 = vmatprep.subr.mxu0 0.0
    %197 = vmatpush1.msra.mxu0 0.0
    %198 = vmatprep.subr.mxu0 0.0
    %199 = vmatpush1.msra.mxu0 0.0
    %200 = vmatprep.subr.mxu0 0.0
    %201 = vmatpush1.msra.mxu0 0.0
    %202 = vmatprep.subr.mxu0 0.0
    %203 = vmatpush1.msra.mxu0 0.0
    %204 = vmatprep.subr.mxu0 0.0
    %205 = vmatpush1.msra.mxu0 0.0
    %206 = vmatprep.subr.mxu0 0.0
    %207 = vmatpush1.msra.mxu0 0.0
    %208 = vmatprep.subr.mxu0 0.0
    %209 = vmatpush1.msra.mxu0 0.0
    %210 = vmatprep.subr.mxu0 0.0
    %211 = vmatpush1.msra.mxu0 0.0
    %212 = vmatprep.subr.mxu0 0.0
    %213 = vmatpush1.msra.mxu0 0.0
    %214 = vmatprep.subr.mxu0 0.0
    %215 = vmatpush1.msra.mxu0 0.0
    %216 = vmatprep.subr.mxu0 0.0
    %217 = vmatpush1.msra.mxu0 0.0
    %218 = vmatprep.subr.mxu0 0.0
    %219 = vmatpush1.msra.mxu0 0.0
    %220 = vmatprep.mubr.f32.mxu0 0.0
    %v221 = vand.u32 %v57, 4294901760
    %222 = vmatmul.mubr.f32.gmra.mrb[0].mxu0 %v221
    %v223 = vpop.f32.mrb[0].mxu0
    %v224 = vadd.f32 %v142, %v223
    %v225 = vpop.f32.mrb[0].mxu0
    %v226 = vadd.f32 %v144, %v225
    %227 = vdwg.mxu0
    %v228 = vand.u32 %v62, 4294901760
    %v229 = vsub.f32 %v62, %v228
    %230 = vmatprep.subr.mxu0 %v229
    %v231 = vand.u32 %v60, 4294901760
    %v232 = vsub.f32 %v60, %v231
    %233 = vmatpush1.msra.mxu0 %v232
    %234 = vmatprep.subr.mxu0 0.0
    %235 = vmatpush1.msra.mxu0 0.0
    %236 = vmatprep.subr.mxu0 0.0
    %237 = vmatpush1.msra.mxu0 0.0
    %238 = vmatprep.subr.mxu0 0.0
    %239 = vmatpush1.msra.mxu0 0.0
    %240 = vmatprep.subr.mxu0 0.0
    %241 = vmatpush1.msra.mxu0 0.0
    %242 = vmatprep.subr.mxu0 0.0
    %243 = vmatpush1.msra.mxu0 0.0
    %244 = vmatprep.subr.mxu0 0.0
    %245 = vmatpush1.msra.mxu0 0.0
    %246 = vmatprep.subr.mxu0 0.0
    %247 = vmatpush1.msra.mxu0 0.0
    %248 = vmatprep.subr.mxu0 0.0
    %249 = vmatpush1.msra.mxu0 0.0
    %250 = vmatprep.subr.mxu0 0.0
    %251 = vmatpush1.msra.mxu0 0.0
    %252 = vmatprep.subr.mxu0 0.0
    %253 = vmatpush1.msra.mxu0 0.0
    %254 = vmatprep.subr.mxu0 0.0
    %255 = vmatpush1.msra.mxu0 0.0
    %256 = vmatprep.subr.mxu0 0.0
    %257 = vmatpush1.msra.mxu0 0.0
    %258 = vmatprep.subr.mxu0 0.0
    %259 = vmatpush1.msra.mxu0 0.0
    %260 = vmatprep.subr.mxu0 0.0
    %261 = vmatpush1.msra.mxu0 0.0
    %262 = vmatprep.subr.mxu0 0.0
    %263 = vmatpush1.msra.mxu0 0.0
    %264 = vmatprep.subr.mxu0 0.0
    %265 = vmatpush1.msra.mxu0 0.0
    %266 = vmatprep.subr.mxu0 0.0
    %267 = vmatpush1.msra.mxu0 0.0
    %268 = vmatprep.subr.mxu0 0.0
    %269 = vmatpush1.msra.mxu0 0.0
    %270 = vmatprep.subr.mxu0 0.0
    %271 = vmatpush1.msra.mxu0 0.0
    %272 = vmatprep.subr.mxu0 0.0
    %273 = vmatpush1.msra.mxu0 0.0
    %274 = vmatprep.subr.mxu0 0.0
    %275 = vmatpush1.msra.mxu0 0.0
    %276 = vmatprep.subr.mxu0 0.0
    %277 = vmatpush1.msra.mxu0 0.0
    %278 = vmatprep.subr.mxu0 0.0
    %279 = vmatpush1.msra.mxu0 0.0
    %280 = vmatprep.subr.mxu0 0.0
    %281 = vmatpush1.msra.mxu0 0.0
    %282 = vmatprep.subr.mxu0 0.0
    %283 = vmatpush1.msra.mxu0 0.0
    %284 = vmatprep.subr.mxu0 0.0
    %285 = vmatpush1.msra.mxu0 0.0
    %286 = vmatprep.subr.mxu0 0.0
    %287 = vmatpush1.msra.mxu0 0.0
    %288 = vmatprep.subr.mxu0 0.0
    %289 = vmatpush1.msra.mxu0 0.0
    %290 = vmatprep.subr.mxu0 0.0
    %291 = vmatpush1.msra.mxu0 0.0
    %292 = vmatprep.subr.mxu0 0.0
    %293 = vmatpush1.msra.mxu0 0.0
    %294 = vmatprep.subr.mxu0 0.0
    %295 = vmatpush1.msra.mxu0 0.0
    %296 = vmatprep.mubr.f32.mxu0 0.0
    %v297 = vand.u32 %v57, 4294901760
    %v298 = vsub.f32 %v57, %v297
    %299 = vmatmul.mubr.f32.gmra.mrb[0].mxu0 %v298
    %v300 = vpop.f32.mrb[0].mxu0
    %v301 = vadd.f32 %v224, %v300
    %v302 = vpop.f32.mrb[0].mxu0
    %v303 = vadd.f32 %v226, %v302
    %304 = vdwg.mxu0
    %v305 = vand.u32 %v62, 4294901760
    %306 = vmatprep.subr.mxu0 %v305
    %v307 = vand.u32 %v60, 4294901760
    %308 = vmatpush1.msra.mxu0 %v307
    %309 = vmatprep.subr.mxu0 0.0
    %310 = vmatpush1.msra.mxu0 0.0
    %311 = vmatprep.subr.mxu0 0.0
    %312 = vmatpush1.msra.mxu0 0.0
    %313 = vmatprep.subr.mxu0 0.0
    %314 = vmatpush1.msra.mxu0 0.0
    %315 = vmatprep.subr.mxu0 0.0
    %316 = vmatpush1.msra.mxu0 0.0
    %317 = vmatprep.subr.mxu0 0.0
    %318 = vmatpush1.msra.mxu0 0.0
    %319 = vmatprep.subr.mxu0 0.0
    %320 = vmatpush1.msra.mxu0 0.0
    %321 = vmatprep.subr.mxu0 0.0
    %322 = vmatpush1.msra.mxu0 0.0
    %323 = vmatprep.subr.mxu0 0.0
    %324 = vmatpush1.msra.mxu0 0.0
    %325 = vmatprep.subr.mxu0 0.0
    %326 = vmatpush1.msra.mxu0 0.0
    %327 = vmatprep.subr.mxu0 0.0
    %328 = vmatpush1.msra.mxu0 0.0
    %329 = vmatprep.subr.mxu0 0.0
    %330 = vmatpush1.msra.mxu0 0.0
    %331 = vmatprep.subr.mxu0 0.0
    %332 = vmatpush1.msra.mxu0 0.0
    %333 = vmatprep.subr.mxu0 0.0
    %334 = vmatpush1.msra.mxu0 0.0
    %335 = vmatprep.subr.mxu0 0.0
    %336 = vmatpush1.msra.mxu0 0.0
    %337 = vmatprep.subr.mxu0 0.0
    %338 = vmatpush1.msra.mxu0 0.0
    %339 = vmatprep.subr.mxu0 0.0
    %340 = vmatpush1.msra.mxu0 0.0
    %341 = vmatprep.subr.mxu0 0.0
    %342 = vmatpush1.msra.mxu0 0.0
    %343 = vmatprep.subr.mxu0 0.0
    %344 = vmatpush1.msra.mxu0 0.0
    %345 = vmatprep.subr.mxu0 0.0
    %346 = vmatpush1.msra.mxu0 0.0
    %347 = vmatprep.subr.mxu0 0.0
    %348 = vmatpush1.msra.mxu0 0.0
    %349 = vmatprep.subr.mxu0 0.0
    %350 = vmatpush1.msra.mxu0 0.0
    %351 = vmatprep.subr.mxu0 0.0
    %352 = vmatpush1.msra.mxu0 0.0
    %353 = vmatprep.subr.mxu0 0.0
    %354 = vmatpush1.msra.mxu0 0.0
    %355 = vmatprep.subr.mxu0 0.0
    %356 = vmatpush1.msra.mxu0 0.0
    %357 = vmatprep.subr.mxu0 0.0
    %358 = vmatpush1.msra.mxu0 0.0
    %359 = vmatprep.subr.mxu0 0.0
    %360 = vmatpush1.msra.mxu0 0.0
    %361 = vmatprep.subr.mxu0 0.0
    %362 = vmatpush1.msra.mxu0 0.0
    %363 = vmatprep.subr.mxu0 0.0
    %364 = vmatpush1.msra.mxu0 0.0
    %365 = vmatprep.subr.mxu0 0.0
    %366 = vmatpush1.msra.mxu0 0.0
    %367 = vmatprep.subr.mxu0 0.0
    %368 = vmatpush1.msra.mxu0 0.0
    %369 = vmatprep.subr.mxu0 0.0
    %370 = vmatpush1.msra.mxu0 0.0
    %371 = vmatprep.mubr.f32.mxu0 0.0
    %v372 = vand.u32 %v57, 4294901760
    %v373 = vsub.f32 %v57, %v372
    %v374 = vand.u32 %v373, 4294901760
    %375 = vmatmul.mubr.f32.gmra.mrb[0].mxu0 %v374
    %v376 = vpop.f32.mrb[0].mxu0
    %v377 = vadd.f32 %v301, %v376
    %v378 = vpop.f32.mrb[0].mxu0
    %v379 = vadd.f32 %v303, %v378
    %380 = vdwg.mxu0
    %v381 = vand.u32 %v62, 4294901760
    %v382 = vsub.f32 %v62, %v381
    %v383 = vand.u32 %v382, 4294901760
    %384 = vmatprep.subr.mxu0 %v383
    %v385 = vand.u32 %v60, 4294901760
    %v386 = vsub.f32 %v60, %v385
    %v387 = vand.u32 %v386, 4294901760
    %388 = vmatpush1.msra.mxu0 %v387
    %389 = vmatprep.subr.mxu0 0.0
    %390 = vmatpush1.msra.mxu0 0.0
    %391 = vmatprep.subr.mxu0 0.0
    %392 = vmatpush1.msra.mxu0 0.0
    %393 = vmatprep.subr.mxu0 0.0
    %394 = vmatpush1.msra.mxu0 0.0
    %395 = vmatprep.subr.mxu0 0.0
    %396 = vmatpush1.msra.mxu0 0.0
    %397 = vmatprep.subr.mxu0 0.0
    %398 = vmatpush1.msra.mxu0 0.0
    %399 = vmatprep.subr.mxu0 0.0
    %400 = vmatpush1.msra.mxu0 0.0
    %401 = vmatprep.subr.mxu0 0.0
    %402 = vmatpush1.msra.mxu0 0.0
    %403 = vmatprep.subr.mxu0 0.0
    %404 = vmatpush1.msra.mxu0 0.0
    %405 = vmatprep.subr.mxu0 0.0
    %406 = vmatpush1.msra.mxu0 0.0
    %407 = vmatprep.subr.mxu0 0.0
    %408 = vmatpush1.msra.mxu0 0.0
    %409 = vmatprep.subr.mxu0 0.0
    %410 = vmatpush1.msra.mxu0 0.0
    %411 = vmatprep.subr.mxu0 0.0
    %412 = vmatpush1.msra.mxu0 0.0
    %413 = vmatprep.subr.mxu0 0.0
    %414 = vmatpush1.msra.mxu0 0.0
    %415 = vmatprep.subr.mxu0 0.0
    %416 = vmatpush1.msra.mxu0 0.0
    %417 = vmatprep.subr.mxu0 0.0
    %418 = vmatpush1.msra.mxu0 0.0
    %419 = vmatprep.subr.mxu0 0.0
    %420 = vmatpush1.msra.mxu0 0.0
    %421 = vmatprep.subr.mxu0 0.0
    %422 = vmatpush1.msra.mxu0 0.0
    %423 = vmatprep.subr.mxu0 0.0
    %424 = vmatpush1.msra.mxu0 0.0
    %425 = vmatprep.subr.mxu0 0.0
    %426 = vmatpush1.msra.mxu0 0.0
    %427 = vmatprep.subr.mxu0 0.0
    %428 = vmatpush1.msra.mxu0 0.0
    %429 = vmatprep.subr.mxu0 0.0
    %430 = vmatpush1.msra.mxu0 0.0
    %431 = vmatprep.subr.mxu0 0.0
    %432 = vmatpush1.msra.mxu0 0.0
    %433 = vmatprep.subr.mxu0 0.0
    %434 = vmatpush1.msra.mxu0 0.0
    %435 = vmatprep.subr.mxu0 0.0
    %436 = vmatpush1.msra.mxu0 0.0
    %437 = vmatprep.subr.mxu0 0.0
    %438 = vmatpush1.msra.mxu0 0.0
    %439 = vmatprep.subr.mxu0 0.0
    %440 = vmatpush1.msra.mxu0 0.0
    %441 = vmatprep.subr.mxu0 0.0
    %442 = vmatpush1.msra.mxu0 0.0
    %443 = vmatprep.subr.mxu0 0.0
    %444 = vmatpush1.msra.mxu0 0.0
    %445 = vmatprep.subr.mxu0 0.0
    %446 = vmatpush1.msra.mxu0 0.0
    %447 = vmatprep.subr.mxu0 0.0
    %448 = vmatpush1.msra.mxu0 0.0
    %449 = vmatprep.subr.mxu0 0.0
    %450 = vmatpush1.msra.mxu0 0.0
    %451 = vmatprep.mubr.f32.mxu0 0.0
    %v452 = vand.u32 %v57, 4294901760
    %453 = vmatmul.mubr.f32.gmra.mrb[0].mxu0 %v452
    %v454 = vpop.f32.mrb[0].mxu0
    %v455 = vadd.f32 %v377, %v454
    %v456 = vpop.f32.mrb[0].mxu0
    %v457 = vadd.f32 %v379, %v456
    %458 = vdwg.mxu0
    %v459 = vand.u32 %v62, 4294901760
    %460 = vmatprep.subr.mxu0 %v459
    %v461 = vand.u32 %v60, 4294901760
    %462 = vmatpush1.msra.mxu0 %v461
    %463 = vmatprep.subr.mxu0 0.0
    %464 = vmatpush1.msra.mxu0 0.0
    %465 = vmatprep.subr.mxu0 0.0
    %466 = vmatpush1.msra.mxu0 0.0
    %467 = vmatprep.subr.mxu0 0.0
    %468 = vmatpush1.msra.mxu0 0.0
    %469 = vmatprep.subr.mxu0 0.0
    %470 = vmatpush1.msra.mxu0 0.0
    %471 = vmatprep.subr.mxu0 0.0
    %472 = vmatpush1.msra.mxu0 0.0
    %473 = vmatprep.subr.mxu0 0.0
    %474 = vmatpush1.msra.mxu0 0.0
    %475 = vmatprep.subr.mxu0 0.0
    %476 = vmatpush1.msra.mxu0 0.0
    %477 = vmatprep.subr.mxu0 0.0
    %478 = vmatpush1.msra.mxu0 0.0
    %479 = vmatprep.subr.mxu0 0.0
    %480 = vmatpush1.msra.mxu0 0.0
    %481 = vmatprep.subr.mxu0 0.0
    %482 = vmatpush1.msra.mxu0 0.0
    %483 = vmatprep.subr.mxu0 0.0
    %484 = vmatpush1.msra.mxu0 0.0
    %485 = vmatprep.subr.mxu0 0.0
    %486 = vmatpush1.msra.mxu0 0.0
    %487 = vmatprep.subr.mxu0 0.0
    %488 = vmatpush1.msra.mxu0 0.0
    %489 = vmatprep.subr.mxu0 0.0
    %490 = vmatpush1.msra.mxu0 0.0
    %491 = vmatprep.subr.mxu0 0.0
    %492 = vmatpush1.msra.mxu0 0.0
    %493 = vmatprep.subr.mxu0 0.0
    %494 = vmatpush1.msra.mxu0 0.0
    %495 = vmatprep.subr.mxu0 0.0
    %496 = vmatpush1.msra.mxu0 0.0
    %497 = vmatprep.subr.mxu0 0.0
    %498 = vmatpush1.msra.mxu0 0.0
    %499 = vmatprep.subr.mxu0 0.0
    %500 = vmatpush1.msra.mxu0 0.0
    %501 = vmatprep.subr.mxu0 0.0
    %502 = vmatpush1.msra.mxu0 0.0
    %503 = vmatprep.subr.mxu0 0.0
    %504 = vmatpush1.msra.mxu0 0.0
    %505 = vmatprep.subr.mxu0 0.0
    %506 = vmatpush1.msra.mxu0 0.0
    %507 = vmatprep.subr.mxu0 0.0
    %508 = vmatpush1.msra.mxu0 0.0
    %509 = vmatprep.subr.mxu0 0.0
    %510 = vmatpush1.msra.mxu0 0.0
    %511 = vmatprep.subr.mxu0 0.0
    %512 = vmatpush1.msra.mxu0 0.0
    %513 = vmatprep.subr.mxu0 0.0
    %514 = vmatpush1.msra.mxu0 0.0
    %515 = vmatprep.subr.mxu0 0.0
    %516 = vmatpush1.msra.mxu0 0.0
    %517 = vmatprep.subr.mxu0 0.0
    %518 = vmatpush1.msra.mxu0 0.0
    %519 = vmatprep.subr.mxu0 0.0
    %520 = vmatpush1.msra.mxu0 0.0
    %521 = vmatprep.subr.mxu0 0.0
    %522 = vmatpush1.msra.mxu0 0.0
    %523 = vmatprep.subr.mxu0 0.0
    %524 = vmatpush1.msra.mxu0 0.0
    %525 = vmatprep.mubr.f32.mxu0 0.0
    %v526 = vand.u32 %v57, 4294901760
    %527 = vmatmul.mubr.f32.gmra.mrb[0].mxu0 %v526
    %v528 = vpop.f32.mrb[0].mxu0
    %v529 = vadd.f32 %v455, %v528
    %v530 = vpop.f32.mrb[0].mxu0
    %v531 = vadd.f32 %v457, %v530
    %532 = vdwg.mxu0
    %v533 = vand.u32 %v66, 4294901760
    %534 = vmatprep.subr.mxu0 %v533
    %v535 = vand.u32 %v64, 4294901760
    %536 = vmatpush1.msra.mxu0 %v535
    %537 = vmatprep.subr.mxu0 0.0
    %538 = vmatpush1.msra.mxu0 0.0
    %539 = vmatprep.subr.mxu0 0.0
    %540 = vmatpush1.msra.mxu0 0.0
    %541 = vmatprep.subr.mxu0 0.0
    %542 = vmatpush1.msra.mxu0 0.0
    %543 = vmatprep.subr.mxu0 0.0
    %544 = vmatpush1.msra.mxu0 0.0
    %545 = vmatprep.subr.mxu0 0.0
    %546 = vmatpush1.msra.mxu0 0.0
    %547 = vmatprep.subr.mxu0 0.0
    %548 = vmatpush1.msra.mxu0 0.0
    %549 = vmatprep.subr.mxu0 0.0
    %550 = vmatpush1.msra.mxu0 0.0
    %551 = vmatprep.subr.mxu0 0.0
    %552 = vmatpush1.msra.mxu0 0.0
    %553 = vmatprep.subr.mxu0 0.0
    %554 = vmatpush1.msra.mxu0 0.0
    %555 = vmatprep.subr.mxu0 0.0
    %556 = vmatpush1.msra.mxu0 0.0
    %557 = vmatprep.subr.mxu0 0.0
    %558 = vmatpush1.msra.mxu0 0.0
    %559 = vmatprep.subr.mxu0 0.0
    %560 = vmatpush1.msra.mxu0 0.0
    %561 = vmatprep.subr.mxu0 0.0
    %562 = vmatpush1.msra.mxu0 0.0
    %563 = vmatprep.subr.mxu0 0.0
    %564 = vmatpush1.msra.mxu0 0.0
    %565 = vmatprep.subr.mxu0 0.0
    %566 = vmatpush1.msra.mxu0 0.0
    %567 = vmatprep.subr.mxu0 0.0
    %568 = vmatpush1.msra.mxu0 0.0
    %569 = vmatprep.subr.mxu0 0.0
    %570 = vmatpush1.msra.mxu0 0.0
    %571 = vmatprep.subr.mxu0 0.0
    %572 = vmatpush1.msra.mxu0 0.0
    %573 = vmatprep.subr.mxu0 0.0
    %574 = vmatpush1.msra.mxu0 0.0
    %575 = vmatprep.subr.mxu0 0.0
    %576 = vmatpush1.msra.mxu0 0.0
    %577 = vmatprep.subr.mxu0 0.0
    %578 = vmatpush1.msra.mxu0 0.0
    %579 = vmatprep.subr.mxu0 0.0
    %580 = vmatpush1.msra.mxu0 0.0
    %581 = vmatprep.subr.mxu0 0.0
    %582 = vmatpush1.msra.mxu0 0.0
    %583 = vmatprep.subr.mxu0 0.0
    %584 = vmatpush1.msra.mxu0 0.0
    %585 = vmatprep.subr.mxu0 0.0
    %586 = vmatpush1.msra.mxu0 0.0
    %587 = vmatprep.subr.mxu0 0.0
    %588 = vmatpush1.msra.mxu0 0.0
    %589 = vmatprep.subr.mxu0 0.0
    %590 = vmatpush1.msra.mxu0 0.0
    %591 = vmatprep.subr.mxu0 0.0
    %592 = vmatpush1.msra.mxu0 0.0
    %593 = vmatprep.subr.mxu0 0.0
    %594 = vmatpush1.msra.mxu0 0.0
    %595 = vmatprep.subr.mxu0 0.0
    %596 = vmatpush1.msra.mxu0 0.0
    %597 = vmatprep.subr.mxu0 0.0
    %598 = vmatpush1.msra.mxu0 0.0
    %599 = vmatprep.mubr.f32.mxu0 0.0
    %v600 = vand.u32 %v57, 4294901760
    %v601 = vsub.f32 %v57, %v600
    %v602 = vand.u32 %v601, 4294901760
    %v603 = vsub.f32 %v601, %v602
    %v604 = vand.u32 %v603, 4294901760
    %605 = vmatmul.mubr.f32.gmra.mrb[0].mxu0 %v604
    %v606 = vpop.f32.mrb[0].mxu0
    %v607 = vadd.f32 0.0, %v606
    %v608 = vpop.f32.mrb[0].mxu0
    %v609 = vadd.f32 0.0, %v608
    %610 = vdwg.mxu0
    %v611 = vand.u32 %v66, 4294901760
    %v612 = vsub.f32 %v66, %v611
    %v613 = vand.u32 %v612, 4294901760
    %v614 = vsub.f32 %v612, %v613
    %v615 = vand.u32 %v614, 4294901760
    %616 = vmatprep.subr.mxu0 %v615
    %v617 = vand.u32 %v64, 4294901760
    %v618 = vsub.f32 %v64, %v617
    %v619 = vand.u32 %v618, 4294901760
    %v620 = vsub.f32 %v618, %v619
    %v621 = vand.u32 %v620, 4294901760
    %622 = vmatpush1.msra.mxu0 %v621
    %623 = vmatprep.subr.mxu0 0.0
    %624 = vmatpush1.msra.mxu0 0.0
    %625 = vmatprep.subr.mxu0 0.0
    %626 = vmatpush1.msra.mxu0 0.0
    %627 = vmatprep.subr.mxu0 0.0
    %628 = vmatpush1.msra.mxu0 0.0
    %629 = vmatprep.subr.mxu0 0.0
    %630 = vmatpush1.msra.mxu0 0.0
    %631 = vmatprep.subr.mxu0 0.0
    %632 = vmatpush1.msra.mxu0 0.0
    %633 = vmatprep.subr.mxu0 0.0
    %634 = vmatpush1.msra.mxu0 0.0
    %635 = vmatprep.subr.mxu0 0.0
    %636 = vmatpush1.msra.mxu0 0.0
    %637 = vmatprep.subr.mxu0 0.0
    %638 = vmatpush1.msra.mxu0 0.0
    %639 = vmatprep.subr.mxu0 0.0
    %640 = vmatpush1.msra.mxu0 0.0
    %641 = vmatprep.subr.mxu0 0.0
    %642 = vmatpush1.msra.mxu0 0.0
    %643 = vmatprep.subr.mxu0 0.0
    %644 = vmatpush1.msra.mxu0 0.0
    %645 = vmatprep.subr.mxu0 0.0
    %646 = vmatpush1.msra.mxu0 0.0
    %647 = vmatprep.subr.mxu0 0.0
    %648 = vmatpush1.msra.mxu0 0.0
    %649 = vmatprep.subr.mxu0 0.0
    %650 = vmatpush1.msra.mxu0 0.0
    %651 = vmatprep.subr.mxu0 0.0
    %652 = vmatpush1.msra.mxu0 0.0
    %653 = vmatprep.subr.mxu0 0.0
    %654 = vmatpush1.msra.mxu0 0.0
    %655 = vmatprep.subr.mxu0 0.0
    %656 = vmatpush1.msra.mxu0 0.0
    %657 = vmatprep.subr.mxu0 0.0
    %658 = vmatpush1.msra.mxu0 0.0
    %659 = vmatprep.subr.mxu0 0.0
    %660 = vmatpush1.msra.mxu0 0.0
    %661 = vmatprep.subr.mxu0 0.0
    %662 = vmatpush1.msra.mxu0 0.0
    %663 = vmatprep.subr.mxu0 0.0
    %664 = vmatpush1.msra.mxu0 0.0
    %665 = vmatprep.subr.mxu0 0.0
    %666 = vmatpush1.msra.mxu0 0.0
    %667 = vmatprep.subr.mxu0 0.0
    %668 = vmatpush1.msra.mxu0 0.0
    %669 = vmatprep.subr.mxu0 0.0
    %670 = vmatpush1.msra.mxu0 0.0
    %671 = vmatprep.subr.mxu0 0.0
    %672 = vmatpush1.msra.mxu0 0.0
    %673 = vmatprep.subr.mxu0 0.0
    %674 = vmatpush1.msra.mxu0 0.0
    %675 = vmatprep.subr.mxu0 0.0
    %676 = vmatpush1.msra.mxu0 0.0
    %677 = vmatprep.subr.mxu0 0.0
    %678 = vmatpush1.msra.mxu0 0.0
    %679 = vmatprep.subr.mxu0 0.0
    %680 = vmatpush1.msra.mxu0 0.0
    %681 = vmatprep.subr.mxu0 0.0
    %682 = vmatpush1.msra.mxu0 0.0
    %683 = vmatprep.subr.mxu0 0.0
    %684 = vmatpush1.msra.mxu0 0.0
    %685 = vmatprep.mubr.f32.mxu0 0.0
    %v686 = vand.u32 %v57, 4294901760
    %687 = vmatmul.mubr.f32.gmra.mrb[0].mxu0 %v686
    %v688 = vpop.f32.mrb[0].mxu0
    %v689 = vadd.f32 %v607, %v688
    %v690 = vpop.f32.mrb[0].mxu0
    %v691 = vadd.f32 %v609, %v690
    %692 = vdwg.mxu0
    %v693 = vand.u32 %v66, 4294901760
    %v694 = vsub.f32 %v66, %v693
    %695 = vmatprep.subr.mxu0 %v694
    %v696 = vand.u32 %v64, 4294901760
    %v697 = vsub.f32 %v64, %v696
    %698 = vmatpush1.msra.mxu0 %v697
    %699 = vmatprep.subr.mxu0 0.0
    %700 = vmatpush1.msra.mxu0 0.0
    %701 = vmatprep.subr.mxu0 0.0
    %702 = vmatpush1.msra.mxu0 0.0
    %703 = vmatprep.subr.mxu0 0.0
    %704 = vmatpush1.msra.mxu0 0.0
    %705 = vmatprep.subr.mxu0 0.0
    %706 = vmatpush1.msra.mxu0 0.0
    %707 = vmatprep.subr.mxu0 0.0
    %708 = vmatpush1.msra.mxu0 0.0
    %709 = vmatprep.subr.mxu0 0.0
    %710 = vmatpush1.msra.mxu0 0.0
    %711 = vmatprep.subr.mxu0 0.0
    %712 = vmatpush1.msra.mxu0 0.0
    %713 = vmatprep.subr.mxu0 0.0
    %714 = vmatpush1.msra.mxu0 0.0
    %715 = vmatprep.subr.mxu0 0.0
    %716 = vmatpush1.msra.mxu0 0.0
    %717 = vmatprep.subr.mxu0 0.0
    %718 = vmatpush1.msra.mxu0 0.0
    %719 = vmatprep.subr.mxu0 0.0
    %720 = vmatpush1.msra.mxu0 0.0
    %721 = vmatprep.subr.mxu0 0.0
    %722 = vmatpush1.msra.mxu0 0.0
    %723 = vmatprep.subr.mxu0 0.0
    %724 = vmatpush1.msra.mxu0 0.0
    %725 = vmatprep.subr.mxu0 0.0
    %726 = vmatpush1.msra.mxu0 0.0
    %727 = vmatprep.subr.mxu0 0.0
    %728 = vmatpush1.msra.mxu0 0.0
    %729 = vmatprep.subr.mxu0 0.0
    %730 = vmatpush1.msra.mxu0 0.0
    %731 = vmatprep.subr.mxu0 0.0
    %732 = vmatpush1.msra.mxu0 0.0
    %733 = vmatprep.subr.mxu0 0.0
    %734 = vmatpush1.msra.mxu0 0.0
    %735 = vmatprep.subr.mxu0 0.0
    %736 = vmatpush1.msra.mxu0 0.0
    %737 = vmatprep.subr.mxu0 0.0
    %738 = vmatpush1.msra.mxu0 0.0
    %739 = vmatprep.subr.mxu0 0.0
    %740 = vmatpush1.msra.mxu0 0.0
    %741 = vmatprep.subr.mxu0 0.0
    %742 = vmatpush1.msra.mxu0 0.0
    %743 = vmatprep.subr.mxu0 0.0
    %744 = vmatpush1.msra.mxu0 0.0
    %745 = vmatprep.subr.mxu0 0.0
    %746 = vmatpush1.msra.mxu0 0.0
    %747 = vmatprep.subr.mxu0 0.0
    %748 = vmatpush1.msra.mxu0 0.0
    %749 = vmatprep.subr.mxu0 0.0
    %750 = vmatpush1.msra.mxu0 0.0
    %751 = vmatprep.subr.mxu0 0.0
    %752 = vmatpush1.msra.mxu0 0.0
    %753 = vmatprep.subr.mxu0 0.0
    %754 = vmatpush1.msra.mxu0 0.0
    %755 = vmatprep.subr.mxu0 0.0
    %756 = vmatpush1.msra.mxu0 0.0
    %757 = vmatprep.subr.mxu0 0.0
    %758 = vmatpush1.msra.mxu0 0.0
    %759 = vmatprep.subr.mxu0 0.0
    %760 = vmatpush1.msra.mxu0 0.0
    %761 = vmatprep.mubr.f32.mxu0 0.0
    %v762 = vand.u32 %v57, 4294901760
    %v763 = vsub.f32 %v57, %v762
    %764 = vmatmul.mubr.f32.gmra.mrb[0].mxu0 %v763
    %v765 = vpop.f32.mrb[0].mxu0
    %v766 = vadd.f32 %v689, %v765
    %v767 = vpop.f32.mrb[0].mxu0
    %v768 = vadd.f32 %v691, %v767
    %769 = vdwg.mxu0
    %v770 = vand.u32 %v66, 4294901760
    %771 = vmatprep.subr.mxu0 %v770
    %v772 = vand.u32 %v64, 4294901760
    %773 = vmatpush1.msra.mxu0 %v772
    %774 = vmatprep.subr.mxu0 0.0
    %775 = vmatpush1.msra.mxu0 0.0
    %776 = vmatprep.subr.mxu0 0.0
    %777 = vmatpush1.msra.mxu0 0.0
    %778 = vmatprep.subr.mxu0 0.0
    %779 = vmatpush1.msra.mxu0 0.0
    %780 = vmatprep.subr.mxu0 0.0
    %781 = vmatpush1.msra.mxu0 0.0
    %782 = vmatprep.subr.mxu0 0.0
    %783 = vmatpush1.msra.mxu0 0.0
    %784 = vmatprep.subr.mxu0 0.0
    %785 = vmatpush1.msra.mxu0 0.0
    %786 = vmatprep.subr.mxu0 0.0
    %787 = vmatpush1.msra.mxu0 0.0
    %788 = vmatprep.subr.mxu0 0.0
    %789 = vmatpush1.msra.mxu0 0.0
    %790 = vmatprep.subr.mxu0 0.0
    %791 = vmatpush1.msra.mxu0 0.0
    %792 = vmatprep.subr.mxu0 0.0
    %793 = vmatpush1.msra.mxu0 0.0
    %794 = vmatprep.subr.mxu0 0.0
    %795 = vmatpush1.msra.mxu0 0.0
    %796 = vmatprep.subr.mxu0 0.0
    %797 = vmatpush1.msra.mxu0 0.0
    %798 = vmatprep.subr.mxu0 0.0
    %799 = vmatpush1.msra.mxu0 0.0
    %800 = vmatprep.subr.mxu0 0.0
    %801 = vmatpush1.msra.mxu0 0.0
    %802 = vmatprep.subr.mxu0 0.0
    %803 = vmatpush1.msra.mxu0 0.0
    %804 = vmatprep.subr.mxu0 0.0
    %805 = vmatpush1.msra.mxu0 0.0
    %806 = vmatprep.subr.mxu0 0.0
    %807 = vmatpush1.msra.mxu0 0.0
    %808 = vmatprep.subr.mxu0 0.0
    %809 = vmatpush1.msra.mxu0 0.0
    %810 = vmatprep.subr.mxu0 0.0
    %811 = vmatpush1.msra.mxu0 0.0
    %812 = vmatprep.subr.mxu0 0.0
    %813 = vmatpush1.msra.mxu0 0.0
    %814 = vmatprep.subr.mxu0 0.0
    %815 = vmatpush1.msra.mxu0 0.0
    %816 = vmatprep.subr.mxu0 0.0
    %817 = vmatpush1.msra.mxu0 0.0
    %818 = vmatprep.subr.mxu0 0.0
    %819 = vmatpush1.msra.mxu0 0.0
    %820 = vmatprep.subr.mxu0 0.0
    %821 = vmatpush1.msra.mxu0 0.0
    %822 = vmatprep.subr.mxu0 0.0
    %823 = vmatpush1.msra.mxu0 0.0
    %824 = vmatprep.subr.mxu0 0.0
    %825 = vmatpush1.msra.mxu0 0.0
    %826 = vmatprep.subr.mxu0 0.0
    %827 = vmatpush1.msra.mxu0 0.0
    %828 = vmatprep.subr.mxu0 0.0
    %829 = vmatpush1.msra.mxu0 0.0
    %830 = vmatprep.subr.mxu0 0.0
    %831 = vmatpush1.msra.mxu0 0.0
    %832 = vmatprep.subr.mxu0 0.0
    %833 = vmatpush1.msra.mxu0 0.0
    %834 = vmatprep.subr.mxu0 0.0
    %835 = vmatpush1.msra.mxu0 0.0
    %836 = vmatprep.mubr.f32.mxu0 0.0
    %v837 = vand.u32 %v57, 4294901760
    %v838 = vsub.f32 %v57, %v837
    %v839 = vand.u32 %v838, 4294901760
    %840 = vmatmul.mubr.f32.gmra.mrb[0].mxu0 %v839
    %v841 = vpop.f32.mrb[0].mxu0
    %v842 = vadd.f32 %v766, %v841
    %v843 = vpop.f32.mrb[0].mxu0
    %v844 = vadd.f32 %v768, %v843
    %845 = vdwg.mxu0
    %v846 = vand.u32 %v66, 4294901760
    %v847 = vsub.f32 %v66, %v846
    %v848 = vand.u32 %v847, 4294901760
    %849 = vmatprep.subr.mxu0 %v848
    %v850 = vand.u32 %v64, 4294901760
    %v851 = vsub.f32 %v64, %v850
    %v852 = vand.u32 %v851, 4294901760
    %853 = vmatpush1.msra.mxu0 %v852
    %854 = vmatprep.subr.mxu0 0.0
    %855 = vmatpush1.msra.mxu0 0.0
    %856 = vmatprep.subr.mxu0 0.0
    %857 = vmatpush1.msra.mxu0 0.0
    %858 = vmatprep.subr.mxu0 0.0
    %859 = vmatpush1.msra.mxu0 0.0
    %860 = vmatprep.subr.mxu0 0.0
    %861 = vmatpush1.msra.mxu0 0.0
    %862 = vmatprep.subr.mxu0 0.0
    %863 = vmatpush1.msra.mxu0 0.0
    %864 = vmatprep.subr.mxu0 0.0
    %865 = vmatpush1.msra.mxu0 0.0
    %866 = vmatprep.subr.mxu0 0.0
    %867 = vmatpush1.msra.mxu0 0.0
    %868 = vmatprep.subr.mxu0 0.0
    %869 = vmatpush1.msra.mxu0 0.0
    %870 = vmatprep.subr.mxu0 0.0
    %871 = vmatpush1.msra.mxu0 0.0
    %872 = vmatprep.subr.mxu0 0.0
    %873 = vmatpush1.msra.mxu0 0.0
    %874 = vmatprep.subr.mxu0 0.0
    %875 = vmatpush1.msra.mxu0 0.0
    %876 = vmatprep.subr.mxu0 0.0
    %877 = vmatpush1.msra.mxu0 0.0
    %878 = vmatprep.subr.mxu0 0.0
    %879 = vmatpush1.msra.mxu0 0.0
    %880 = vmatprep.subr.mxu0 0.0
    %881 = vmatpush1.msra.mxu0 0.0
    %882 = vmatprep.subr.mxu0 0.0
    %883 = vmatpush1.msra.mxu0 0.0
    %884 = vmatprep.subr.mxu0 0.0
    %885 = vmatpush1.msra.mxu0 0.0
    %886 = vmatprep.subr.mxu0 0.0
    %887 = vmatpush1.msra.mxu0 0.0
    %888 = vmatprep.subr.mxu0 0.0
    %889 = vmatpush1.msra.mxu0 0.0
    %890 = vmatprep.subr.mxu0 0.0
    %891 = vmatpush1.msra.mxu0 0.0
    %892 = vmatprep.subr.mxu0 0.0
    %893 = vmatpush1.msra.mxu0 0.0
    %894 = vmatprep.subr.mxu0 0.0
    %895 = vmatpush1.msra.mxu0 0.0
    %896 = vmatprep.subr.mxu0 0.0
    %897 = vmatpush1.msra.mxu0 0.0
    %898 = vmatprep.subr.mxu0 0.0
    %899 = vmatpush1.msra.mxu0 0.0
    %900 = vmatprep.subr.mxu0 0.0
    %901 = vmatpush1.msra.mxu0 0.0
    %902 = vmatprep.subr.mxu0 0.0
    %903 = vmatpush1.msra.mxu0 0.0
    %904 = vmatprep.subr.mxu0 0.0
    %905 = vmatpush1.msra.mxu0 0.0
    %906 = vmatprep.subr.mxu0 0.0
    %907 = vmatpush1.msra.mxu0 0.0
    %908 = vmatprep.subr.mxu0 0.0
    %909 = vmatpush1.msra.mxu0 0.0
    %910 = vmatprep.subr.mxu0 0.0
    %911 = vmatpush1.msra.mxu0 0.0
    %912 = vmatprep.subr.mxu0 0.0
    %913 = vmatpush1.msra.mxu0 0.0
    %914 = vmatprep.subr.mxu0 0.0
    %915 = vmatpush1.msra.mxu0 0.0
    %916 = vmatprep.mubr.f32.mxu0 0.0
    %v917 = vand.u32 %v57, 4294901760
    %918 = vmatmul.mubr.f32.gmra.mrb[0].mxu0 %v917
    %v919 = vpop.f32.mrb[0].mxu0
    %v920 = vadd.f32 %v842, %v919
    %v921 = vpop.f32.mrb[0].mxu0
    %v922 = vadd.f32 %v844, %v921
    %923 = vdwg.mxu0
    %v924 = vand.u32 %v66, 4294901760
    %925 = vmatprep.subr.mxu0 %v924
    %v926 = vand.u32 %v64, 4294901760
    %927 = vmatpush1.msra.mxu0 %v926
    %928 = vmatprep.subr.mxu0 0.0
    %929 = vmatpush1.msra.mxu0 0.0
    %930 = vmatprep.subr.mxu0 0.0
    %931 = vmatpush1.msra.mxu0 0.0
    %932 = vmatprep.subr.mxu0 0.0
    %933 = vmatpush1.msra.mxu0 0.0
    %934 = vmatprep.subr.mxu0 0.0
    %935 = vmatpush1.msra.mxu0 0.0
    %936 = vmatprep.subr.mxu0 0.0
    %937 = vmatpush1.msra.mxu0 0.0
    %938 = vmatprep.subr.mxu0 0.0
    %939 = vmatpush1.msra.mxu0 0.0
    %940 = vmatprep.subr.mxu0 0.0
    %941 = vmatpush1.msra.mxu0 0.0
    %942 = vmatprep.subr.mxu0 0.0
    %943 = vmatpush1.msra.mxu0 0.0
    %944 = vmatprep.subr.mxu0 0.0
    %945 = vmatpush1.msra.mxu0 0.0
    %946 = vmatprep.subr.mxu0 0.0
    %947 = vmatpush1.msra.mxu0 0.0
    %948 = vmatprep.subr.mxu0 0.0
    %949 = vmatpush1.msra.mxu0 0.0
    %950 = vmatprep.subr.mxu0 0.0
    %951 = vmatpush1.msra.mxu0 0.0
    %952 = vmatprep.subr.mxu0 0.0
    %953 = vmatpush1.msra.mxu0 0.0
    %954 = vmatprep.subr.mxu0 0.0
    %955 = vmatpush1.msra.mxu0 0.0
    %956 = vmatprep.subr.mxu0 0.0
    %957 = vmatpush1.msra.mxu0 0.0
    %958 = vmatprep.subr.mxu0 0.0
    %959 = vmatpush1.msra.mxu0 0.0
    %960 = vmatprep.subr.mxu0 0.0
    %961 = vmatpush1.msra.mxu0 0.0
    %962 = vmatprep.subr.mxu0 0.0
    %963 = vmatpush1.msra.mxu0 0.0
    %964 = vmatprep.subr.mxu0 0.0
    %965 = vmatpush1.msra.mxu0 0.0
    %966 = vmatprep.subr.mxu0 0.0
    %967 = vmatpush1.msra.mxu0 0.0
    %968 = vmatprep.subr.mxu0 0.0
    %969 = vmatpush1.msra.mxu0 0.0
    %970 = vmatprep.subr.mxu0 0.0
    %971 = vmatpush1.msra.mxu0 0.0
    %972 = vmatprep.subr.mxu0 0.0
    %973 = vmatpush1.msra.mxu0 0.0
    %974 = vmatprep.subr.mxu0 0.0
    %975 = vmatpush1.msra.mxu0 0.0
    %976 = vmatprep.subr.mxu0 0.0
    %977 = vmatpush1.msra.mxu0 0.0
    %978 = vmatprep.subr.mxu0 0.0
    %979 = vmatpush1.msra.mxu0 0.0
    %980 = vmatprep.subr.mxu0 0.0
    %981 = vmatpush1.msra.mxu0 0.0
    %982 = vmatprep.subr.mxu0 0.0
    %983 = vmatpush1.msra.mxu0 0.0
    %984 = vmatprep.subr.mxu0 0.0
    %985 = vmatpush1.msra.mxu0 0.0
    %986 = vmatprep.subr.mxu0 0.0
    %987 = vmatpush1.msra.mxu0 0.0
    %988 = vmatprep.subr.mxu0 0.0
    %989 = vmatpush1.msra.mxu0 0.0
    %990 = vmatprep.mubr.f32.mxu0 0.0
    %v991 = vand.u32 %v57, 4294901760
    %992 = vmatmul.mubr.f32.gmra.mrb[0].mxu0 %v991
    %v993 = vpop.f32.mrb[0].mxu0
    %v994 = vadd.f32 %v920, %v993
    %v995 = vpop.f32.mrb[0].mxu0
    %v996 = vadd.f32 %v922, %v995
    %997 = vdwg.mxu0
    %v1002 = vcombine.low %v529, %v531
    %v1003 = vcombine.low %v994, %v996
    %1006 = vst [vmem:[#allocation2] sm:$0xff] %v1002
    %1007 = vst [vmem:[#allocation2 + $0x8] sm:$0xff] %v1003
    %1010 = vrot.lane.b32.xlu0 %v18, 17
    %v1011 = vpop.permute.xlu0 %1010
    %1012 = vrot.lane.b32.xlu0 %v53, 17
    %v1013 = vpop.permute.xlu0 %1012
    %1014 = vrot.lane.b32.xlu0 %v19, 17
    %v1015 = vpop.permute.xlu0 %1014
    %1016 = vrot.lane.b32.xlu0 %v54, 17
    %v1017 = vpop.permute.xlu0 %1016
    %vm1018 = vcmp.lt.s32.totalorder %v21, 17
    %v1019 = vsel %vm1018, %v1015, %v1017
    %v1020 = vsel %vm1018, %v1013, %v1015
    %v1021 = vsel %vm1018, %v1011, %v1013
    %v1022 = vsel %vm1018, %v1017, %v1011
    %v1023 = vld [vmem:[%s1] sm:$0xf]
    %v1025 = vsel %vm55, %v1023, 0
    %v1028 = vsel %vm59, %v1022, 0
    %v1031 = vsel %vm59, %v1021, 0
    %v1034 = vsel %vm59, %v1020, 0
    %v1037 = vsel %vm59, %v1019, 0
    %v1039 = vand.u32 %v1031, 4294901760
    %1040 = vmatprep.subr.mxu0 %v1039
    %v1041 = vand.u32 %v1028, 4294901760
    %1042 = vmatpush1.msra.mxu0 %v1041
    %1043 = vmatprep.subr.mxu0 0.0
    %1044 = vmatpush1.msra.mxu0 0.0
    %1045 = vmatprep.subr.mxu0 0.0
    %1046 = vmatpush1.msra.mxu0 0.0
    %1047 = vmatprep.subr.mxu0 0.0
    %1048 = vmatpush1.msra.mxu0 0.0
    %1049 = vmatprep.subr.mxu0 0.0
    %1050 = vmatpush1.msra.mxu0 0.0
    %1051 = vmatprep.subr.mxu0 0.0
    %1052 = vmatpush1.msra.mxu0 0.0
    %1053 = vmatprep.subr.mxu0 0.0
    %1054 = vmatpush1.msra.mxu0 0.0
    %1055 = vmatprep.subr.mxu0 0.0
    %1056 = vmatpush1.msra.mxu0 0.0
    %1057 = vmatprep.subr.mxu0 0.0
    %1058 = vmatpush1.msra.mxu0 0.0
    %1059 = vmatprep.subr.mxu0 0.0
    %1060 = vmatpush1.msra.mxu0 0.0
    %1061 = vmatprep.subr.mxu0 0.0
    %1062 = vmatpush1.msra.mxu0 0.0
    %1063 = vmatprep.subr.mxu0 0.0
    %1064 = vmatpush1.msra.mxu0 0.0
    %1065 = vmatprep.subr.mxu0 0.0
    %1066 = vmatpush1.msra.mxu0 0.0
    %1067 = vmatprep.subr.mxu0 0.0
    %1068 = vmatpush1.msra.mxu0 0.0
    %1069 = vmatprep.subr.mxu0 0.0
    %1070 = vmatpush1.msra.mxu0 0.0
    %1071 = vmatprep.subr.mxu0 0.0
    %1072 = vmatpush1.msra.mxu0 0.0
    %1073 = vmatprep.subr.mxu0 0.0
    %1074 = vmatpush1.msra.mxu0 0.0
    %1075 = vmatprep.subr.mxu0 0.0
    %1076 = vmatpush1.msra.mxu0 0.0
    %1077 = vmatprep.subr.mxu0 0.0
    %1078 = vmatpush1.msra.mxu0 0.0
    %1079 = vmatprep.subr.mxu0 0.0
    %1080 = vmatpush1.msra.mxu0 0.0
    %1081 = vmatprep.subr.mxu0 0.0
    %1082 = vmatpush1.msra.mxu0 0.0
    %1083 = vmatprep.subr.mxu0 0.0
    %1084 = vmatpush1.msra.mxu0 0.0
    %1085 = vmatprep.subr.mxu0 0.0
    %1086 = vmatpush1.msra.mxu0 0.0
    %1087 = vmatprep.subr.mxu0 0.0
    %1088 = vmatpush1.msra.mxu0 0.0
    %1089 = vmatprep.subr.mxu0 0.0
    %1090 = vmatpush1.msra.mxu0 0.0
    %1091 = vmatprep.subr.mxu0 0.0
    %1092 = vmatpush1.msra.mxu0 0.0
    %1093 = vmatprep.subr.mxu0 0.0
    %1094 = vmatpush1.msra.mxu0 0.0
    %1095 = vmatprep.subr.mxu0 0.0
    %1096 = vmatpush1.msra.mxu0 0.0
    %1097 = vmatprep.subr.mxu0 0.0
    %1098 = vmatpush1.msra.mxu0 0.0
    %1099 = vmatprep.subr.mxu0 0.0
    %1100 = vmatpush1.msra.mxu0 0.0
    %1101 = vmatprep.subr.mxu0 0.0
    %1102 = vmatpush1.msra.mxu0 0.0
    %1103 = vmatprep.subr.mxu0 0.0
    %1104 = vmatpush1.msra.mxu0 0.0
    %1105 = vmatprep.mubr.f32.mxu0 0.0
    %v1106 = vand.u32 %v1025, 4294901760
    %v1107 = vsub.f32 %v1025, %v1106
    %v1108 = vand.u32 %v1107, 4294901760
    %v1109 = vsub.f32 %v1107, %v1108
    %v1110 = vand.u32 %v1109, 4294901760
    %1111 = vmatmul.mubr.f32.gmra.mrb[0].mxu0 %v1110
    %v1112 = vpop.f32.mrb[0].mxu0
    %v1113 = vadd.f32 0.0, %v1112
    %v1114 = vpop.f32.mrb[0].mxu0
    %v1115 = vadd.f32 0.0, %v1114
    %1116 = vdwg.mxu0
    %v1117 = vand.u32 %v1031, 4294901760
    %v1118 = vsub.f32 %v1031, %v1117
    %v1119 = vand.u32 %v1118, 4294901760
    %v1120 = vsub.f32 %v1118, %v1119
    %v1121 = vand.u32 %v1120, 4294901760
    %1122 = vmatprep.subr.mxu0 %v1121
    %v1123 = vand.u32 %v1028, 4294901760
    %v1124 = vsub.f32 %v1028, %v1123
    %v1125 = vand.u32 %v1124, 4294901760
    %v1126 = vsub.f32 %v1124, %v1125
    %v1127 = vand.u32 %v1126, 4294901760
    %1128 = vmatpush1.msra.mxu0 %v1127
    %1129 = vmatprep.subr.mxu0 0.0
    %1130 = vmatpush1.msra.mxu0 0.0
    %1131 = vmatprep.subr.mxu0 0.0
    %1132 = vmatpush1.msra.mxu0 0.0
    %1133 = vmatprep.subr.mxu0 0.0
    %1134 = vmatpush1.msra.mxu0 0.0
    %1135 = vmatprep.subr.mxu0 0.0
    %1136 = vmatpush1.msra.mxu0 0.0
    %1137 = vmatprep.subr.mxu0 0.0
    %1138 = vmatpush1.msra.mxu0 0.0
    %1139 = vmatprep.subr.mxu0 0.0
    %1140 = vmatpush1.msra.mxu0 0.0
    %1141 = vmatprep.subr.mxu0 0.0
    %1142 = vmatpush1.msra.mxu0 0.0
    %1143 = vmatprep.subr.mxu0 0.0
    %1144 = vmatpush1.msra.mxu0 0.0
    %1145 = vmatprep.subr.mxu0 0.0
    %1146 = vmatpush1.msra.mxu0 0.0
    %1147 = vmatprep.subr.mxu0 0.0
    %1148 = vmatpush1.msra.mxu0 0.0
    %1149 = vmatprep.subr.mxu0 0.0
    %1150 = vmatpush1.msra.mxu0 0.0
    %1151 = vmatprep.subr.mxu0 0.0
    %1152 = vmatpush1.msra.mxu0 0.0
    %1153 = vmatprep.subr.mxu0 0.0
    %1154 = vmatpush1.msra.mxu0 0.0
    %1155 = vmatprep.subr.mxu0 0.0
    %1156 = vmatpush1.msra.mxu0 0.0
    %1157 = vmatprep.subr.mxu0 0.0
    %1158 = vmatpush1.msra.mxu0 0.0
    %1159 = vmatprep.subr.mxu0 0.0
    %1160 = vmatpush1.msra.mxu0 0.0
    %1161 = vmatprep.subr.mxu0 0.0
    %1162 = vmatpush1.msra.mxu0 0.0
    %1163 = vmatprep.subr.mxu0 0.0
    %1164 = vmatpush1.msra.mxu0 0.0
    %1165 = vmatprep.subr.mxu0 0.0
    %1166 = vmatpush1.msra.mxu0 0.0
    %1167 = vmatprep.subr.mxu0 0.0
    %1168 = vmatpush1.msra.mxu0 0.0
    %1169 = vmatprep.subr.mxu0 0.0
    %1170 = vmatpush1.msra.mxu0 0.0
    %1171 = vmatprep.subr.mxu0 0.0
    %1172 = vmatpush1.msra.mxu0 0.0
    %1173 = vmatprep.subr.mxu0 0.0
    %1174 = vmatpush1.msra.mxu0 0.0
    %1175 = vmatprep.subr.mxu0 0.0
    %1176 = vmatpush1.msra.mxu0 0.0
    %1177 = vmatprep.subr.mxu0 0.0
    %1178 = vmatpush1.msra.mxu0 0.0
    %1179 = vmatprep.subr.mxu0 0.0
    %1180 = vmatpush1.msra.mxu0 0.0
    %1181 = vmatprep.subr.mxu0 0.0
    %1182 = vmatpush1.msra.mxu0 0.0
    %1183 = vmatprep.subr.mxu0 0.0
    %1184 = vmatpush1.msra.mxu0 0.0
    %1185 = vmatprep.subr.mxu0 0.0
    %1186 = vmatpush1.msra.mxu0 0.0
    %1187 = vmatprep.subr.mxu0 0.0
    %1188 = vmatpush1.msra.mxu0 0.0
    %1189 = vmatprep.subr.mxu0 0.0
    %1190 = vmatpush1.msra.mxu0 0.0
    %1191 = vmatprep.mubr.f32.mxu0 0.0
    %v1192 = vand.u32 %v1025, 4294901760
    %1193 = vmatmul.mubr.f32.gmra.mrb[0].mxu0 %v1192
    %v1194 = vpop.f32.mrb[0].mxu0
    %v1195 = vadd.f32 %v1113, %v1194
    %v1196 = vpop.f32.mrb[0].mxu0
    %v1197 = vadd.f32 %v1115, %v1196
    %1198 = vdwg.mxu0
    %v1199 = vand.u32 %v1031, 4294901760
    %v1200 = vsub.f32 %v1031, %v1199
    %1201 = vmatprep.subr.mxu0 %v1200
    %v1202 = vand.u32 %v1028, 4294901760
    %v1203 = vsub.f32 %v1028, %v1202
    %1204 = vmatpush1.msra.mxu0 %v1203
    %1205 = vmatprep.subr.mxu0 0.0
    %1206 = vmatpush1.msra.mxu0 0.0
    %1207 = vmatprep.subr.mxu0 0.0
    %1208 = vmatpush1.msra.mxu0 0.0
    %1209 = vmatprep.subr.mxu0 0.0
    %1210 = vmatpush1.msra.mxu0 0.0
    %1211 = vmatprep.subr.mxu0 0.0
    %1212 = vmatpush1.msra.mxu0 0.0
    %1213 = vmatprep.subr.mxu0 0.0
    %1214 = vmatpush1.msra.mxu0 0.0
    %1215 = vmatprep.subr.mxu0 0.0
    %1216 = vmatpush1.msra.mxu0 0.0
    %1217 = vmatprep.subr.mxu0 0.0
    %1218 = vmatpush1.msra.mxu0 0.0
    %1219 = vmatprep.subr.mxu0 0.0
    %1220 = vmatpush1.msra.mxu0 0.0
    %1221 = vmatprep.subr.mxu0 0.0
    %1222 = vmatpush1.msra.mxu0 0.0
    %1223 = vmatprep.subr.mxu0 0.0
    %1224 = vmatpush1.msra.mxu0 0.0
    %1225 = vmatprep.subr.mxu0 0.0
    %1226 = vmatpush1.msra.mxu0 0.0
    %1227 = vmatprep.subr.mxu0 0.0
    %1228 = vmatpush1.msra.mxu0 0.0
    %1229 = vmatprep.subr.mxu0 0.0
    %1230 = vmatpush1.msra.mxu0 0.0
    %1231 = vmatprep.subr.mxu0 0.0
    %1232 = vmatpush1.msra.mxu0 0.0
    %1233 = vmatprep.subr.mxu0 0.0
    %1234 = vmatpush1.msra.mxu0 0.0
    %1235 = vmatprep.subr.mxu0 0.0
    %1236 = vmatpush1.msra.mxu0 0.0
    %1237 = vmatprep.subr.mxu0 0.0
    %1238 = vmatpush1.msra.mxu0 0.0
    %1239 = vmatprep.subr.mxu0 0.0
    %1240 = vmatpush1.msra.mxu0 0.0
    %1241 = vmatprep.subr.mxu0 0.0
    %1242 = vmatpush1.msra.mxu0 0.0
    %1243 = vmatprep.subr.mxu0 0.0
    %1244 = vmatpush1.msra.mxu0 0.0
    %1245 = vmatprep.subr.mxu0 0.0
    %1246 = vmatpush1.msra.mxu0 0.0
    %1247 = vmatprep.subr.mxu0 0.0
    %1248 = vmatpush1.msra.mxu0 0.0
    %1249 = vmatprep.subr.mxu0 0.0
    %1250 = vmatpush1.msra.mxu0 0.0
    %1251 = vmatprep.subr.mxu0 0.0
    %1252 = vmatpush1.msra.mxu0 0.0
    %1253 = vmatprep.subr.mxu0 0.0
    %1254 = vmatpush1.msra.mxu0 0.0
    %1255 = vmatprep.subr.mxu0 0.0
    %1256 = vmatpush1.msra.mxu0 0.0
    %1257 = vmatprep.subr.mxu0 0.0
    %1258 = vmatpush1.msra.mxu0 0.0
    %1259 = vmatprep.subr.mxu0 0.0
    %1260 = vmatpush1.msra.mxu0 0.0
    %1261 = vmatprep.subr.mxu0 0.0
    %1262 = vmatpush1.msra.mxu0 0.0
    %1263 = vmatprep.subr.mxu0 0.0
    %1264 = vmatpush1.msra.mxu0 0.0
    %1265 = vmatprep.subr.mxu0 0.0
    %1266 = vmatpush1.msra.mxu0 0.0
    %1267 = vmatprep.mubr.f32.mxu0 0.0
    %v1268 = vand.u32 %v1025, 4294901760
    %v1269 = vsub.f32 %v1025, %v1268
    %1270 = vmatmul.mubr.f32.gmra.mrb[0].mxu0 %v1269
    %v1271 = vpop.f32.mrb[0].mxu0
    %v1272 = vadd.f32 %v1195, %v1271
    %v1273 = vpop.f32.mrb[0].mxu0
    %v1274 = vadd.f32 %v1197, %v1273
    %1275 = vdwg.mxu0
    %v1276 = vand.u32 %v1031, 4294901760
    %1277 = vmatprep.subr.mxu0 %v1276
    %v1278 = vand.u32 %v1028, 4294901760
    %1279 = vmatpush1.msra.mxu0 %v1278
    %1280 = vmatprep.subr.mxu0 0.0
    %1281 = vmatpush1.msra.mxu0 0.0
    %1282 = vmatprep.subr.mxu0 0.0
    %1283 = vmatpush1.msra.mxu0 0.0
    %1284 = vmatprep.subr.mxu0 0.0
    %1285 = vmatpush1.msra.mxu0 0.0
    %1286 = vmatprep.subr.mxu0 0.0
    %1287 = vmatpush1.msra.mxu0 0.0
    %1288 = vmatprep.subr.mxu0 0.0
    %1289 = vmatpush1.msra.mxu0 0.0
    %1290 = vmatprep.subr.mxu0 0.0
    %1291 = vmatpush1.msra.mxu0 0.0
    %1292 = vmatprep.subr.mxu0 0.0
    %1293 = vmatpush1.msra.mxu0 0.0
    %1294 = vmatprep.subr.mxu0 0.0
    %1295 = vmatpush1.msra.mxu0 0.0
    %1296 = vmatprep.subr.mxu0 0.0
    %1297 = vmatpush1.msra.mxu0 0.0
    %1298 = vmatprep.subr.mxu0 0.0
    %1299 = vmatpush1.msra.mxu0 0.0
    %1300 = vmatprep.subr.mxu0 0.0
    %1301 = vmatpush1.msra.mxu0 0.0
    %1302 = vmatprep.subr.mxu0 0.0
    %1303 = vmatpush1.msra.mxu0 0.0
    %1304 = vmatprep.subr.mxu0 0.0
    %1305 = vmatpush1.msra.mxu0 0.0
    %1306 = vmatprep.subr.mxu0 0.0
    %1307 = vmatpush1.msra.mxu0 0.0
    %1308 = vmatprep.subr.mxu0 0.0
    %1309 = vmatpush1.msra.mxu0 0.0
    %1310 = vmatprep.subr.mxu0 0.0
    %1311 = vmatpush1.msra.mxu0 0.0
    %1312 = vmatprep.subr.mxu0 0.0
    %1313 = vmatpush1.msra.mxu0 0.0
    %1314 = vmatprep.subr.mxu0 0.0
    %1315 = vmatpush1.msra.mxu0 0.0
    %1316 = vmatprep.subr.mxu0 0.0
    %1317 = vmatpush1.msra.mxu0 0.0
    %1318 = vmatprep.subr.mxu0 0.0
    %1319 = vmatpush1.msra.mxu0 0.0
    %1320 = vmatprep.subr.mxu0 0.0
    %1321 = vmatpush1.msra.mxu0 0.0
    %1322 = vmatprep.subr.mxu0 0.0
    %1323 = vmatpush1.msra.mxu0 0.0
    %1324 = vmatprep.subr.mxu0 0.0
    %1325 = vmatpush1.msra.mxu0 0.0
    %1326 = vmatprep.subr.mxu0 0.0
    %1327 = vmatpush1.msra.mxu0 0.0
    %1328 = vmatprep.subr.mxu0 0.0
    %1329 = vmatpush1.msra.mxu0 0.0
    %1330 = vmatprep.subr.mxu0 0.0
    %1331 = vmatpush1.msra.mxu0 0.0
    %1332 = vmatprep.subr.mxu0 0.0
    %1333 = vmatpush1.msra.mxu0 0.0
    %1334 = vmatprep.subr.mxu0 0.0
    %1335 = vmatpush1.msra.mxu0 0.0
    %1336 = vmatprep.subr.mxu0 0.0
    %1337 = vmatpush1.msra.mxu0 0.0
    %1338 = vmatprep.subr.mxu0 0.0
    %1339 = vmatpush1.msra.mxu0 0.0
    %1340 = vmatprep.subr.mxu0 0.0
    %1341 = vmatpush1.msra.mxu0 0.0
    %1342 = vmatprep.mubr.f32.mxu0 0.0
    %v1343 = vand.u32 %v1025, 4294901760
    %v1344 = vsub.f32 %v1025, %v1343
    %v1345 = vand.u32 %v1344, 4294901760
    %1346 = vmatmul.mubr.f32.gmra.mrb[0].mxu0 %v1345
    %v1347 = vpop.f32.mrb[0].mxu0
    %v1348 = vadd.f32 %v1272, %v1347
    %v1349 = vpop.f32.mrb[0].mxu0
    %v1350 = vadd.f32 %v1274, %v1349
    %1351 = vdwg.mxu0
    %v1352 = vand.u32 %v1031, 4294901760
    %v1353 = vsub.f32 %v1031, %v1352
    %v1354 = vand.u32 %v1353, 4294901760
    %1355 = vmatprep.subr.mxu0 %v1354
    %v1356 = vand.u32 %v1028, 4294901760
    %v1357 = vsub.f32 %v1028, %v1356
    %v1358 = vand.u32 %v1357, 4294901760
    %1359 = vmatpush1.msra.mxu0 %v1358
    %1360 = vmatprep.subr.mxu0 0.0
    %1361 = vmatpush1.msra.mxu0 0.0
    %1362 = vmatprep.subr.mxu0 0.0
    %1363 = vmatpush1.msra.mxu0 0.0
    %1364 = vmatprep.subr.mxu0 0.0
    %1365 = vmatpush1.msra.mxu0 0.0
    %1366 = vmatprep.subr.mxu0 0.0
    %1367 = vmatpush1.msra.mxu0 0.0
    %1368 = vmatprep.subr.mxu0 0.0
    %1369 = vmatpush1.msra.mxu0 0.0
    %1370 = vmatprep.subr.mxu0 0.0
    %1371 = vmatpush1.msra.mxu0 0.0
    %1372 = vmatprep.subr.mxu0 0.0
    %1373 = vmatpush1.msra.mxu0 0.0
    %1374 = vmatprep.subr.mxu0 0.0
    %1375 = vmatpush1.msra.mxu0 0.0
    %1376 = vmatprep.subr.mxu0 0.0
    %1377 = vmatpush1.msra.mxu0 0.0
    %1378 = vmatprep.subr.mxu0 0.0
    %1379 = vmatpush1.msra.mxu0 0.0
    %1380 = vmatprep.subr.mxu0 0.0
    %1381 = vmatpush1.msra.mxu0 0.0
    %1382 = vmatprep.subr.mxu0 0.0
    %1383 = vmatpush1.msra.mxu0 0.0
    %1384 = vmatprep.subr.mxu0 0.0
    %1385 = vmatpush1.msra.mxu0 0.0
    %1386 = vmatprep.subr.mxu0 0.0
    %1387 = vmatpush1.msra.mxu0 0.0
    %1388 = vmatprep.subr.mxu0 0.0
    %1389 = vmatpush1.msra.mxu0 0.0
    %1390 = vmatprep.subr.mxu0 0.0
    %1391 = vmatpush1.msra.mxu0 0.0
    %1392 = vmatprep.subr.mxu0 0.0
    %1393 = vmatpush1.msra.mxu0 0.0
    %1394 = vmatprep.subr.mxu0 0.0
    %1395 = vmatpush1.msra.mxu0 0.0
    %1396 = vmatprep.subr.mxu0 0.0
    %1397 = vmatpush1.msra.mxu0 0.0
    %1398 = vmatprep.subr.mxu0 0.0
    %1399 = vmatpush1.msra.mxu0 0.0
    %1400 = vmatprep.subr.mxu0 0.0
    %1401 = vmatpush1.msra.mxu0 0.0
    %1402 = vmatprep.subr.mxu0 0.0
    %1403 = vmatpush1.msra.mxu0 0.0
    %1404 = vmatprep.subr.mxu0 0.0
    %1405 = vmatpush1.msra.mxu0 0.0
    %1406 = vmatprep.subr.mxu0 0.0
    %1407 = vmatpush1.msra.mxu0 0.0
    %1408 = vmatprep.subr.mxu0 0.0
    %1409 = vmatpush1.msra.mxu0 0.0
    %1410 = vmatprep.subr.mxu0 0.0
    %1411 = vmatpush1.msra.mxu0 0.0
    %1412 = vmatprep.subr.mxu0 0.0
    %1413 = vmatpush1.msra.mxu0 0.0
    %1414 = vmatprep.subr.mxu0 0.0
    %1415 = vmatpush1.msra.mxu0 0.0
    %1416 = vmatprep.subr.mxu0 0.0
    %1417 = vmatpush1.msra.mxu0 0.0
    %1418 = vmatprep.subr.mxu0 0.0
    %1419 = vmatpush1.msra.mxu0 0.0
    %1420 = vmatprep.subr.mxu0 0.0
    %1421 = vmatpush1.msra.mxu0 0.0
    %1422 = vmatprep.mubr.f32.mxu0 0.0
    %v1423 = vand.u32 %v1025, 4294901760
    %1424 = vmatmul.mubr.f32.gmra.mrb[0].mxu0 %v1423
    %v1425 = vpop.f32.mrb[0].mxu0
    %v1426 = vadd.f32 %v1348, %v1425
    %v1427 = vpop.f32.mrb[0].mxu0
    %v1428 = vadd.f32 %v1350, %v1427
    %1429 = vdwg.mxu0
    %v1430 = vand.u32 %v1031, 4294901760
    %1431 = vmatprep.subr.mxu0 %v1430
    %v1432 = vand.u32 %v1028, 4294901760
    %1433 = vmatpush1.msra.mxu0 %v1432
    %1434 = vmatprep.subr.mxu0 0.0
    %1435 = vmatpush1.msra.mxu0 0.0
    %1436 = vmatprep.subr.mxu0 0.0
    %1437 = vmatpush1.msra.mxu0 0.0
    %1438 = vmatprep.subr.mxu0 0.0
    %1439 = vmatpush1.msra.mxu0 0.0
    %1440 = vmatprep.subr.mxu0 0.0
    %1441 = vmatpush1.msra.mxu0 0.0
    %1442 = vmatprep.subr.mxu0 0.0
    %1443 = vmatpush1.msra.mxu0 0.0
    %1444 = vmatprep.subr.mxu0 0.0
    %1445 = vmatpush1.msra.mxu0 0.0
    %1446 = vmatprep.subr.mxu0 0.0
    %1447 = vmatpush1.msra.mxu0 0.0
    %1448 = vmatprep.subr.mxu0 0.0
    %1449 = vmatpush1.msra.mxu0 0.0
    %1450 = vmatprep.subr.mxu0 0.0
    %1451 = vmatpush1.msra.mxu0 0.0
    %1452 = vmatprep.subr.mxu0 0.0
    %1453 = vmatpush1.msra.mxu0 0.0
    %1454 = vmatprep.subr.mxu0 0.0
    %1455 = vmatpush1.msra.mxu0 0.0
    %1456 = vmatprep.subr.mxu0 0.0
    %1457 = vmatpush1.msra.mxu0 0.0
    %1458 = vmatprep.subr.mxu0 0.0
    %1459 = vmatpush1.msra.mxu0 0.0
    %1460 = vmatprep.subr.mxu0 0.0
    %1461 = vmatpush1.msra.mxu0 0.0
    %1462 = vmatprep.subr.mxu0 0.0
    %1463 = vmatpush1.msra.mxu0 0.0
    %1464 = vmatprep.subr.mxu0 0.0
    %1465 = vmatpush1.msra.mxu0 0.0
    %1466 = vmatprep.subr.mxu0 0.0
    %1467 = vmatpush1.msra.mxu0 0.0
    %1468 = vmatprep.subr.mxu0 0.0
    %1469 = vmatpush1.msra.mxu0 0.0
    %1470 = vmatprep.subr.mxu0 0.0
    %1471 = vmatpush1.msra.mxu0 0.0
    %1472 = vmatprep.subr.mxu0 0.0
    %1473 = vmatpush1.msra.mxu0 0.0
    %1474 = vmatprep.subr.mxu0 0.0
    %1475 = vmatpush1.msra.mxu0 0.0
    %1476 = vmatprep.subr.mxu0 0.0
    %1477 = vmatpush1.msra.mxu0 0.0
    %1478 = vmatprep.subr.mxu0 0.0
    %1479 = vmatpush1.msra.mxu0 0.0
    %1480 = vmatprep.subr.mxu0 0.0
    %1481 = vmatpush1.msra.mxu0 0.0
    %1482 = vmatprep.subr.mxu0 0.0
    %1483 = vmatpush1.msra.mxu0 0.0
    %1484 = vmatprep.subr.mxu0 0.0
    %1485 = vmatpush1.msra.mxu0 0.0
    %1486 = vmatprep.subr.mxu0 0.0
    %1487 = vmatpush1.msra.mxu0 0.0
    %1488 = vmatprep.subr.mxu0 0.0
    %1489 = vmatpush1.msra.mxu0 0.0
    %1490 = vmatprep.subr.mxu0 0.0
    %1491 = vmatpush1.msra.mxu0 0.0
    %1492 = vmatprep.subr.mxu0 0.0
    %1493 = vmatpush1.msra.mxu0 0.0
    %1494 = vmatprep.subr.mxu0 0.0
    %1495 = vmatpush1.msra.mxu0 0.0
    %1496 = vmatprep.mubr.f32.mxu0 0.0
    %v1497 = vand.u32 %v1025, 4294901760
    %1498 = vmatmul.mubr.f32.gmra.mrb[0].mxu0 %v1497
    %v1499 = vpop.f32.mrb[0].mxu0
    %v1500 = vadd.f32 %v1426, %v1499
    %v1501 = vpop.f32.mrb[0].mxu0
    %v1502 = vadd.f32 %v1428, %v1501
    %1503 = vdwg.mxu0
    %v1504 = vand.u32 %v1037, 4294901760
    %1505 = vmatprep.subr.mxu0 %v1504
    %v1506 = vand.u32 %v1034, 4294901760
    %1507 = vmatpush1.msra.mxu0 %v1506
    %1508 = vmatprep.subr.mxu0 0.0
    %1509 = vmatpush1.msra.mxu0 0.0
    %1510 = vmatprep.subr.mxu0 0.0
    %1511 = vmatpush1.msra.mxu0 0.0
    %1512 = vmatprep.subr.mxu0 0.0
    %1513 = vmatpush1.msra.mxu0 0.0
    %1514 = vmatprep.subr.mxu0 0.0
    %1515 = vmatpush1.msra.mxu0 0.0
    %1516 = vmatprep.subr.mxu0 0.0
    %1517 = vmatpush1.msra.mxu0 0.0
    %1518 = vmatprep.subr.mxu0 0.0
    %1519 = vmatpush1.msra.mxu0 0.0
    %1520 = vmatprep.subr.mxu0 0.0
    %1521 = vmatpush1.msra.mxu0 0.0
    %1522 = vmatprep.subr.mxu0 0.0
    %1523 = vmatpush1.msra.mxu0 0.0
    %1524 = vmatprep.subr.mxu0 0.0
    %1525 = vmatpush1.msra.mxu0 0.0
    %1526 = vmatprep.subr.mxu0 0.0
    %1527 = vmatpush1.msra.mxu0 0.0
    %1528 = vmatprep.subr.mxu0 0.0
    %1529 = vmatpush1.msra.mxu0 0.0
    %1530 = vmatprep.subr.mxu0 0.0
    %1531 = vmatpush1.msra.mxu0 0.0
    %1532 = vmatprep.subr.mxu0 0.0
    %1533 = vmatpush1.msra.mxu0 0.0
    %1534 = vmatprep.subr.mxu0 0.0
    %1535 = vmatpush1.msra.mxu0 0.0
    %1536 = vmatprep.subr.mxu0 0.0
    %1537 = vmatpush1.msra.mxu0 0.0
    %1538 = vmatprep.subr.mxu0 0.0
    %1539 = vmatpush1.msra.mxu0 0.0
    %1540 = vmatprep.subr.mxu0 0.0
    %1541 = vmatpush1.msra.mxu0 0.0
    %1542 = vmatprep.subr.mxu0 0.0
    %1543 = vmatpush1.msra.mxu0 0.0
    %1544 = vmatprep.subr.mxu0 0.0
    %1545 = vmatpush1.msra.mxu0 0.0
    %1546 = vmatprep.subr.mxu0 0.0
    %1547 = vmatpush1.msra.mxu0 0.0
    %1548 = vmatprep.subr.mxu0 0.0
    %1549 = vmatpush1.msra.mxu0 0.0
    %1550 = vmatprep.subr.mxu0 0.0
    %1551 = vmatpush1.msra.mxu0 0.0
    %1552 = vmatprep.subr.mxu0 0.0
    %1553 = vmatpush1.msra.mxu0 0.0
    %1554 = vmatprep.subr.mxu0 0.0
    %1555 = vmatpush1.msra.mxu0 0.0
    %1556 = vmatprep.subr.mxu0 0.0
    %1557 = vmatpush1.msra.mxu0 0.0
    %1558 = vmatprep.subr.mxu0 0.0
    %1559 = vmatpush1.msra.mxu0 0.0
    %1560 = vmatprep.subr.mxu0 0.0
    %1561 = vmatpush1.msra.mxu0 0.0
    %1562 = vmatprep.subr.mxu0 0.0
    %1563 = vmatpush1.msra.mxu0 0.0
    %1564 = vmatprep.subr.mxu0 0.0
    %1565 = vmatpush1.msra.mxu0 0.0
    %1566 = vmatprep.subr.mxu0 0.0
    %1567 = vmatpush1.msra.mxu0 0.0
    %1568 = vmatprep.subr.mxu0 0.0
    %1569 = vmatpush1.msra.mxu0 0.0
    %1570 = vmatprep.mubr.f32.mxu0 0.0
    %v1571 = vand.u32 %v1025, 4294901760
    %v1572 = vsub.f32 %v1025, %v1571
    %v1573 = vand.u32 %v1572, 4294901760
    %v1574 = vsub.f32 %v1572, %v1573
    %v1575 = vand.u32 %v1574, 4294901760
    %1576 = vmatmul.mubr.f32.gmra.mrb[0].mxu0 %v1575
    %v1577 = vpop.f32.mrb[0].mxu0
    %v1578 = vadd.f32 0.0, %v1577
    %v1579 = vpop.f32.mrb[0].mxu0
    %v1580 = vadd.f32 0.0, %v1579
    %1581 = vdwg.mxu0
    %v1582 = vand.u32 %v1037, 4294901760
    %v1583 = vsub.f32 %v1037, %v1582
    %v1584 = vand.u32 %v1583, 4294901760
    %v1585 = vsub.f32 %v1583, %v1584
    %v1586 = vand.u32 %v1585, 4294901760
    %1587 = vmatprep.subr.mxu0 %v1586
    %v1588 = vand.u32 %v1034, 4294901760
    %v1589 = vsub.f32 %v1034, %v1588
    %v1590 = vand.u32 %v1589, 4294901760
    %v1591 = vsub.f32 %v1589, %v1590
    %v1592 = vand.u32 %v1591, 4294901760
    %1593 = vmatpush1.msra.mxu0 %v1592
    %1594 = vmatprep.subr.mxu0 0.0
    %1595 = vmatpush1.msra.mxu0 0.0
    %1596 = vmatprep.subr.mxu0 0.0
    %1597 = vmatpush1.msra.mxu0 0.0
    %1598 = vmatprep.subr.mxu0 0.0
    %1599 = vmatpush1.msra.mxu0 0.0
    %1600 = vmatprep.subr.mxu0 0.0
    %1601 = vmatpush1.msra.mxu0 0.0
    %1602 = vmatprep.subr.mxu0 0.0
    %1603 = vmatpush1.msra.mxu0 0.0
    %1604 = vmatprep.subr.mxu0 0.0
    %1605 = vmatpush1.msra.mxu0 0.0
    %1606 = vmatprep.subr.mxu0 0.0
    %1607 = vmatpush1.msra.mxu0 0.0
    %1608 = vmatprep.subr.mxu0 0.0
    %1609 = vmatpush1.msra.mxu0 0.0
    %1610 = vmatprep.subr.mxu0 0.0
    %1611 = vmatpush1.msra.mxu0 0.0
    %1612 = vmatprep.subr.mxu0 0.0
    %1613 = vmatpush1.msra.mxu0 0.0
    %1614 = vmatprep.subr.mxu0 0.0
    %1615 = vmatpush1.msra.mxu0 0.0
    %1616 = vmatprep.subr.mxu0 0.0
    %1617 = vmatpush1.msra.mxu0 0.0
    %1618 = vmatprep.subr.mxu0 0.0
    %1619 = vmatpush1.msra.mxu0 0.0
    %1620 = vmatprep.subr.mxu0 0.0
    %1621 = vmatpush1.msra.mxu0 0.0
    %1622 = vmatprep.subr.mxu0 0.0
    %1623 = vmatpush1.msra.mxu0 0.0
    %1624 = vmatprep.subr.mxu0 0.0
    %1625 = vmatpush1.msra.mxu0 0.0
    %1626 = vmatprep.subr.mxu0 0.0
    %1627 = vmatpush1.msra.mxu0 0.0
    %1628 = vmatprep.subr.mxu0 0.0
    %1629 = vmatpush1.msra.mxu0 0.0
    %1630 = vmatprep.subr.mxu0 0.0
    %1631 = vmatpush1.msra.mxu0 0.0
    %1632 = vmatprep.subr.mxu0 0.0
    %1633 = vmatpush1.msra.mxu0 0.0
    %1634 = vmatprep.subr.mxu0 0.0
    %1635 = vmatpush1.msra.mxu0 0.0
    %1636 = vmatprep.subr.mxu0 0.0
    %1637 = vmatpush1.msra.mxu0 0.0
    %1638 = vmatprep.subr.mxu0 0.0
    %1639 = vmatpush1.msra.mxu0 0.0
    %1640 = vmatprep.subr.mxu0 0.0
    %1641 = vmatpush1.msra.mxu0 0.0
    %1642 = vmatprep.subr.mxu0 0.0
    %1643 = vmatpush1.msra.mxu0 0.0
    %1644 = vmatprep.subr.mxu0 0.0
    %1645 = vmatpush1.msra.mxu0 0.0
    %1646 = vmatprep.subr.mxu0 0.0
    %1647 = vmatpush1.msra.mxu0 0.0
    %1648 = vmatprep.subr.mxu0 0.0
    %1649 = vmatpush1.msra.mxu0 0.0
    %1650 = vmatprep.subr.mxu0 0.0
    %1651 = vmatpush1.msra.mxu0 0.0
    %1652 = vmatprep.subr.mxu0 0.0
    %1653 = vmatpush1.msra.mxu0 0.0
    %1654 = vmatprep.subr.mxu0 0.0
    %1655 = vmatpush1.msra.mxu0 0.0
    %1656 = vmatprep.mubr.f32.mxu0 0.0
    %v1657 = vand.u32 %v1025, 4294901760
    %1658 = vmatmul.mubr.f32.gmra.mrb[0].mxu0 %v1657
    %v1659 = vpop.f32.mrb[0].mxu0
    %v1660 = vadd.f32 %v1578, %v1659
    %v1661 = vpop.f32.mrb[0].mxu0
    %v1662 = vadd.f32 %v1580, %v1661
    %1663 = vdwg.mxu0
    %v1664 = vand.u32 %v1037, 4294901760
    %v1665 = vsub.f32 %v1037, %v1664
    %1666 = vmatprep.subr.mxu0 %v1665
    %v1667 = vand.u32 %v1034, 4294901760
    %v1668 = vsub.f32 %v1034, %v1667
    %1669 = vmatpush1.msra.mxu0 %v1668
    %1670 = vmatprep.subr.mxu0 0.0
    %1671 = vmatpush1.msra.mxu0 0.0
    %1672 = vmatprep.subr.mxu0 0.0
    %1673 = vmatpush1.msra.mxu0 0.0
    %1674 = vmatprep.subr.mxu0 0.0
    %1675 = vmatpush1.msra.mxu0 0.0
    %1676 = vmatprep.subr.mxu0 0.0
    %1677 = vmatpush1.msra.mxu0 0.0
    %1678 = vmatprep.subr.mxu0 0.0
    %1679 = vmatpush1.msra.mxu0 0.0
    %1680 = vmatprep.subr.mxu0 0.0
    %1681 = vmatpush1.msra.mxu0 0.0
    %1682 = vmatprep.subr.mxu0 0.0
    %1683 = vmatpush1.msra.mxu0 0.0
    %1684 = vmatprep.subr.mxu0 0.0
    %1685 = vmatpush1.msra.mxu0 0.0
    %1686 = vmatprep.subr.mxu0 0.0
    %1687 = vmatpush1.msra.mxu0 0.0
    %1688 = vmatprep.subr.mxu0 0.0
    %1689 = vmatpush1.msra.mxu0 0.0
    %1690 = vmatprep.subr.mxu0 0.0
    %1691 = vmatpush1.msra.mxu0 0.0
    %1692 = vmatprep.subr.mxu0 0.0
    %1693 = vmatpush1.msra.mxu0 0.0
    %1694 = vmatprep.subr.mxu0 0.0
    %1695 = vmatpush1.msra.mxu0 0.0
    %1696 = vmatprep.subr.mxu0 0.0
    %1697 = vmatpush1.msra.mxu0 0.0
    %1698 = vmatprep.subr.mxu0 0.0
    %1699 = vmatpush1.msra.mxu0 0.0
    %1700 = vmatprep.subr.mxu0 0.0
    %1701 = vmatpush1.msra.mxu0 0.0
    %1702 = vmatprep.subr.mxu0 0.0
    %1703 = vmatpush1.msra.mxu0 0.0
    %1704 = vmatprep.subr.mxu0 0.0
    %1705 = vmatpush1.msra.mxu0 0.0
    %1706 = vmatprep.subr.mxu0 0.0
    %1707 = vmatpush1.msra.mxu0 0.0
    %1708 = vmatprep.subr.mxu0 0.0
    %1709 = vmatpush1.msra.mxu0 0.0
    %1710 = vmatprep.subr.mxu0 0.0
    %1711 = vmatpush1.msra.mxu0 0.0
    %1712 = vmatprep.subr.mxu0 0.0
    %1713 = vmatpush1.msra.mxu0 0.0
    %1714 = vmatprep.subr.mxu0 0.0
    %1715 = vmatpush1.msra.mxu0 0.0
    %1716 = vmatprep.subr.mxu0 0.0
    %1717 = vmatpush1.msra.mxu0 0.0
    %1718 = vmatprep.subr.mxu0 0.0
    %1719 = vmatpush1.msra.mxu0 0.0
    %1720 = vmatprep.subr.mxu0 0.0
    %1721 = vmatpush1.msra.mxu0 0.0
    %1722 = vmatprep.subr.mxu0 0.0
    %1723 = vmatpush1.msra.mxu0 0.0
    %1724 = vmatprep.subr.mxu0 0.0
    %1725 = vmatpush1.msra.mxu0 0.0
    %1726 = vmatprep.subr.mxu0 0.0
    %1727 = vmatpush1.msra.mxu0 0.0
    %1728 = vmatprep.subr.mxu0 0.0
    %1729 = vmatpush1.msra.mxu0 0.0
    %1730 = vmatprep.subr.mxu0 0.0
    %1731 = vmatpush1.msra.mxu0 0.0
    %1732 = vmatprep.mubr.f32.mxu0 0.0
    %v1733 = vand.u32 %v1025, 4294901760
    %v1734 = vsub.f32 %v1025, %v1733
    %1735 = vmatmul.mubr.f32.gmra.mrb[0].mxu0 %v1734
    %v1736 = vpop.f32.mrb[0].mxu0
    %v1737 = vadd.f32 %v1660, %v1736
    %v1738 = vpop.f32.mrb[0].mxu0
    %v1739 = vadd.f32 %v1662, %v1738
    %1740 = vdwg.mxu0
    %v1741 = vand.u32 %v1037, 4294901760
    %1742 = vmatprep.subr.mxu0 %v1741
    %v1743 = vand.u32 %v1034, 4294901760
    %1744 = vmatpush1.msra.mxu0 %v1743
    %1745 = vmatprep.subr.mxu0 0.0
    %1746 = vmatpush1.msra.mxu0 0.0
    %1747 = vmatprep.subr.mxu0 0.0
    %1748 = vmatpush1.msra.mxu0 0.0
    %1749 = vmatprep.subr.mxu0 0.0
    %1750 = vmatpush1.msra.mxu0 0.0
    %1751 = vmatprep.subr.mxu0 0.0
    %1752 = vmatpush1.msra.mxu0 0.0
    %1753 = vmatprep.subr.mxu0 0.0
    %1754 = vmatpush1.msra.mxu0 0.0
    %1755 = vmatprep.subr.mxu0 0.0
    %1756 = vmatpush1.msra.mxu0 0.0
    %1757 = vmatprep.subr.mxu0 0.0
    %1758 = vmatpush1.msra.mxu0 0.0
    %1759 = vmatprep.subr.mxu0 0.0
    %1760 = vmatpush1.msra.mxu0 0.0
    %1761 = vmatprep.subr.mxu0 0.0
    %1762 = vmatpush1.msra.mxu0 0.0
    %1763 = vmatprep.subr.mxu0 0.0
    %1764 = vmatpush1.msra.mxu0 0.0
    %1765 = vmatprep.subr.mxu0 0.0
    %1766 = vmatpush1.msra.mxu0 0.0
    %1767 = vmatprep.subr.mxu0 0.0
    %1768 = vmatpush1.msra.mxu0 0.0
    %1769 = vmatprep.subr.mxu0 0.0
    %1770 = vmatpush1.msra.mxu0 0.0
    %1771 = vmatprep.subr.mxu0 0.0
    %1772 = vmatpush1.msra.mxu0 0.0
    %1773 = vmatprep.subr.mxu0 0.0
    %1774 = vmatpush1.msra.mxu0 0.0
    %1775 = vmatprep.subr.mxu0 0.0
    %1776 = vmatpush1.msra.mxu0 0.0
    %1777 = vmatprep.subr.mxu0 0.0
    %1778 = vmatpush1.msra.mxu0 0.0
    %1779 = vmatprep.subr.mxu0 0.0
    %1780 = vmatpush1.msra.mxu0 0.0
    %1781 = vmatprep.subr.mxu0 0.0
    %1782 = vmatpush1.msra.mxu0 0.0
    %1783 = vmatprep.subr.mxu0 0.0
    %1784 = vmatpush1.msra.mxu0 0.0
    %1785 = vmatprep.subr.mxu0 0.0
    %1786 = vmatpush1.msra.mxu0 0.0
    %1787 = vmatprep.subr.mxu0 0.0
    %1788 = vmatpush1.msra.mxu0 0.0
    %1789 = vmatprep.subr.mxu0 0.0
    %1790 = vmatpush1.msra.mxu0 0.0
    %1791 = vmatprep.subr.mxu0 0.0
    %1792 = vmatpush1.msra.mxu0 0.0
    %1793 = vmatprep.subr.mxu0 0.0
    %1794 = vmatpush1.msra.mxu0 0.0
    %1795 = vmatprep.subr.mxu0 0.0
    %1796 = vmatpush1.msra.mxu0 0.0
    %1797 = vmatprep.subr.mxu0 0.0
    %1798 = vmatpush1.msra.mxu0 0.0
    %1799 = vmatprep.subr.mxu0 0.0
    %1800 = vmatpush1.msra.mxu0 0.0
    %1801 = vmatprep.subr.mxu0 0.0
    %1802 = vmatpush1.msra.mxu0 0.0
    %1803 = vmatprep.subr.mxu0 0.0
    %1804 = vmatpush1.msra.mxu0 0.0
    %1805 = vmatprep.subr.mxu0 0.0
    %1806 = vmatpush1.msra.mxu0 0.0
    %1807 = vmatprep.mubr.f32.mxu0 0.0
    %v1808 = vand.u32 %v1025, 4294901760
    %v1809 = vsub.f32 %v1025, %v1808
    %v1810 = vand.u32 %v1809, 4294901760
    %1811 = vmatmul.mubr.f32.gmra.mrb[0].mxu0 %v1810
    %v1812 = vpop.f32.mrb[0].mxu0
    %v1813 = vadd.f32 %v1737, %v1812
    %v1814 = vpop.f32.mrb[0].mxu0
    %v1815 = vadd.f32 %v1739, %v1814
    %1816 = vdwg.mxu0
    %v1817 = vand.u32 %v1037, 4294901760
    %v1818 = vsub.f32 %v1037, %v1817
    %v1819 = vand.u32 %v1818, 4294901760
    %1820 = vmatprep.subr.mxu0 %v1819
    %v1821 = vand.u32 %v1034, 4294901760
    %v1822 = vsub.f32 %v1034, %v1821
    %v1823 = vand.u32 %v1822, 4294901760
    %1824 = vmatpush1.msra.mxu0 %v1823
    %1825 = vmatprep.subr.mxu0 0.0
    %1826 = vmatpush1.msra.mxu0 0.0
    %1827 = vmatprep.subr.mxu0 0.0
    %1828 = vmatpush1.msra.mxu0 0.0
    %1829 = vmatprep.subr.mxu0 0.0
    %1830 = vmatpush1.msra.mxu0 0.0
    %1831 = vmatprep.subr.mxu0 0.0
    %1832 = vmatpush1.msra.mxu0 0.0
    %1833 = vmatprep.subr.mxu0 0.0
    %1834 = vmatpush1.msra.mxu0 0.0
    %1835 = vmatprep.subr.mxu0 0.0
    %1836 = vmatpush1.msra.mxu0 0.0
    %1837 = vmatprep.subr.mxu0 0.0
    %1838 = vmatpush1.msra.mxu0 0.0
    %1839 = vmatprep.subr.mxu0 0.0
    %1840 = vmatpush1.msra.mxu0 0.0
    %1841 = vmatprep.subr.mxu0 0.0
    %1842 = vmatpush1.msra.mxu0 0.0
    %1843 = vmatprep.subr.mxu0 0.0
    %1844 = vmatpush1.msra.mxu0 0.0
    %1845 = vmatprep.subr.mxu0 0.0
    %1846 = vmatpush1.msra.mxu0 0.0
    %1847 = vmatprep.subr.mxu0 0.0
    %1848 = vmatpush1.msra.mxu0 0.0
    %1849 = vmatprep.subr.mxu0 0.0
    %1850 = vmatpush1.msra.mxu0 0.0
    %1851 = vmatprep.subr.mxu0 0.0
    %1852 = vmatpush1.msra.mxu0 0.0
    %1853 = vmatprep.subr.mxu0 0.0
    %1854 = vmatpush1.msra.mxu0 0.0
    %1855 = vmatprep.subr.mxu0 0.0
    %1856 = vmatpush1.msra.mxu0 0.0
    %1857 = vmatprep.subr.mxu0 0.0
    %1858 = vmatpush1.msra.mxu0 0.0
    %1859 = vmatprep.subr.mxu0 0.0
    %1860 = vmatpush1.msra.mxu0 0.0
    %1861 = vmatprep.subr.mxu0 0.0
    %1862 = vmatpush1.msra.mxu0 0.0
    %1863 = vmatprep.subr.mxu0 0.0
    %1864 = vmatpush1.msra.mxu0 0.0
    %1865 = vmatprep.subr.mxu0 0.0
    %1866 = vmatpush1.msra.mxu0 0.0
    %1867 = vmatprep.subr.mxu0 0.0
    %1868 = vmatpush1.msra.mxu0 0.0
    %1869 = vmatprep.subr.mxu0 0.0
    %1870 = vmatpush1.msra.mxu0 0.0
    %1871 = vmatprep.subr.mxu0 0.0
    %1872 = vmatpush1.msra.mxu0 0.0
    %1873 = vmatprep.subr.mxu0 0.0
    %1874 = vmatpush1.msra.mxu0 0.0
    %1875 = vmatprep.subr.mxu0 0.0
    %1876 = vmatpush1.msra.mxu0 0.0
    %1877 = vmatprep.subr.mxu0 0.0
    %1878 = vmatpush1.msra.mxu0 0.0
    %1879 = vmatprep.subr.mxu0 0.0
    %1880 = vmatpush1.msra.mxu0 0.0
    %1881 = vmatprep.subr.mxu0 0.0
    %1882 = vmatpush1.msra.mxu0 0.0
    %1883 = vmatprep.subr.mxu0 0.0
    %1884 = vmatpush1.msra.mxu0 0.0
    %1885 = vmatprep.subr.mxu0 0.0
    %1886 = vmatpush1.msra.mxu0 0.0
    %1887 = vmatprep.mubr.f32.mxu0 0.0
    %v1888 = vand.u32 %v1025, 4294901760
    %1889 = vmatmul.mubr.f32.gmra.mrb[0].mxu0 %v1888
    %v1890 = vpop.f32.mrb[0].mxu0
    %v1891 = vadd.f32 %v1813, %v1890
    %v1892 = vpop.f32.mrb[0].mxu0
    %v1893 = vadd.f32 %v1815, %v1892
    %1894 = vdwg.mxu0
    %v1895 = vand.u32 %v1037, 4294901760
    %1896 = vmatprep.subr.mxu0 %v1895
    %v1897 = vand.u32 %v1034, 4294901760
    %1898 = vmatpush1.msra.mxu0 %v1897
    %1899 = vmatprep.subr.mxu0 0.0
    %1900 = vmatpush1.msra.mxu0 0.0
    %1901 = vmatprep.subr.mxu0 0.0
    %1902 = vmatpush1.msra.mxu0 0.0
    %1903 = vmatprep.subr.mxu0 0.0
    %1904 = vmatpush1.msra.mxu0 0.0
    %1905 = vmatprep.subr.mxu0 0.0
    %1906 = vmatpush1.msra.mxu0 0.0
    %1907 = vmatprep.subr.mxu0 0.0
    %1908 = vmatpush1.msra.mxu0 0.0
    %1909 = vmatprep.subr.mxu0 0.0
    %1910 = vmatpush1.msra.mxu0 0.0
    %1911 = vmatprep.subr.mxu0 0.0
    %1912 = vmatpush1.msra.mxu0 0.0
    %1913 = vmatprep.subr.mxu0 0.0
    %1914 = vmatpush1.msra.mxu0 0.0
    %1915 = vmatprep.subr.mxu0 0.0
    %1916 = vmatpush1.msra.mxu0 0.0
    %1917 = vmatprep.subr.mxu0 0.0
    %1918 = vmatpush1.msra.mxu0 0.0
    %1919 = vmatprep.subr.mxu0 0.0
    %1920 = vmatpush1.msra.mxu0 0.0
    %1921 = vmatprep.subr.mxu0 0.0
    %1922 = vmatpush1.msra.mxu0 0.0
    %1923 = vmatprep.subr.mxu0 0.0
    %1924 = vmatpush1.msra.mxu0 0.0
    %1925 = vmatprep.subr.mxu0 0.0
    %1926 = vmatpush1.msra.mxu0 0.0
    %1927 = vmatprep.subr.mxu0 0.0
    %1928 = vmatpush1.msra.mxu0 0.0
    %1929 = vmatprep.subr.mxu0 0.0
    %1930 = vmatpush1.msra.mxu0 0.0
    %1931 = vmatprep.subr.mxu0 0.0
    %1932 = vmatpush1.msra.mxu0 0.0
    %1933 = vmatprep.subr.mxu0 0.0
    %1934 = vmatpush1.msra.mxu0 0.0
    %1935 = vmatprep.subr.mxu0 0.0
    %1936 = vmatpush1.msra.mxu0 0.0
    %1937 = vmatprep.subr.mxu0 0.0
    %1938 = vmatpush1.msra.mxu0 0.0
    %1939 = vmatprep.subr.mxu0 0.0
    %1940 = vmatpush1.msra.mxu0 0.0
    %1941 = vmatprep.subr.mxu0 0.0
    %1942 = vmatpush1.msra.mxu0 0.0
    %1943 = vmatprep.subr.mxu0 0.0
    %1944 = vmatpush1.msra.mxu0 0.0
    %1945 = vmatprep.subr.mxu0 0.0
    %1946 = vmatpush1.msra.mxu0 0.0
    %1947 = vmatprep.subr.mxu0 0.0
    %1948 = vmatpush1.msra.mxu0 0.0
    %1949 = vmatprep.subr.mxu0 0.0
    %1950 = vmatpush1.msra.mxu0 0.0
    %1951 = vmatprep.subr.mxu0 0.0
    %1952 = vmatpush1.msra.mxu0 0.0
    %1953 = vmatprep.subr.mxu0 0.0
    %1954 = vmatpush1.msra.mxu0 0.0
    %1955 = vmatprep.subr.mxu0 0.0
    %1956 = vmatpush1.msra.mxu0 0.0
    %1957 = vmatprep.subr.mxu0 0.0
    %1958 = vmatpush1.msra.mxu0 0.0
    %1959 = vmatprep.subr.mxu0 0.0
    %1960 = vmatpush1.msra.mxu0 0.0
    %1961 = vmatprep.mubr.f32.mxu0 0.0
    %v1962 = vand.u32 %v1025, 4294901760
    %1963 = vmatmul.mubr.f32.gmra.mrb[0].mxu0 %v1962
    %v1964 = vpop.f32.mrb[0].mxu0
    %v1965 = vadd.f32 %v1891, %v1964
    %v1966 = vpop.f32.mrb[0].mxu0
    %v1967 = vadd.f32 %v1893, %v1966
    %1968 = vdwg.mxu0
    %vm1969 = vmand %vm33, %vm41
    %vm1970 = vmand %vm34, %vm42
    %vm1971 = vmand %vm35, %vm43
    %vm1972 = vmand %vm36, %vm44
    %v1973 = vld [vmem:[#allocation2] sm:$0xff]
    %v1974 = vld [vmem:[#allocation2 + $0x8] sm:$0xff]
    %v1975 = vsel %vm1969, 1, 0
    %v1976 = vsel %vm1970, 1, 0
    %v1977 = vsel %vm1971, 1, 0
    %v1978 = vsel %vm1972, 1, 0
    %vm1979 = vcmp.eq.s32.totalorder %v1975, 1
    %vm1980 = vcmp.eq.s32.totalorder %v1976, 1
    %vm1981 = vcmp.eq.s32.totalorder %v1977, 1
    %vm1982 = vcmp.eq.s32.totalorder %v1978, 1
    %v1983 = vsel %vm1979, %v1500, 0.0
    %v1984 = vsel %vm1980, %v1502, 0.0
    %v1985 = vsel %vm1981, %v1965, 0.0
    %v1986 = vsel %vm1982, %v1967, 0.0
    %v1991 = vcombine.low %v1983, %v1984
    %v1992 = vcombine.low %v1985, %v1986
    %v1995 = vadd.f32 %v1973, %v1991
    %v1996 = vadd.f32 %v1974, %v1992
    %1997 = vst [vmem:[#allocation2] sm:$0xff] %v1995
    %1998 = vst [vmem:[#allocation2 + $0x8] sm:$0xff] %v1996
    %1999 = vrot.lane.b32.xlu0 %v18, 16
    %v2000 = vpop.permute.xlu0 %1999
    %2001 = vrot.lane.b32.xlu0 %v53, 16
    %v2002 = vpop.permute.xlu0 %2001
    %2003 = vrot.lane.b32.xlu0 %v19, 16
    %v2004 = vpop.permute.xlu0 %2003
    %2005 = vrot.lane.b32.xlu0 %v54, 16
    %v2006 = vpop.permute.xlu0 %2005
    %vm2007 = vcmp.lt.s32.totalorder %v21, 16
    %v2008 = vsel %vm2007, %v2004, %v2006
    %v2009 = vsel %vm2007, %v2002, %v2004
    %v2010 = vsel %vm2007, %v2000, %v2002
    %v2011 = vsel %vm2007, %v2006, %v2000
    %s2012 = scalar_lea.vmem %s1, 4
    %v2013 = vld [vmem:[%s2012] sm:$0xf]
    %v2015 = vsel %vm55, %v2013, 0
    %v2018 = vsel %vm59, %v2011, 0
    %v2021 = vsel %vm59, %v2010, 0
    %v2024 = vsel %vm59, %v2009, 0
    %v2027 = vsel %vm59, %v2008, 0
    %v2029 = vand.u32 %v2021, 4294901760
    %2030 = vmatprep.subr.mxu0 %v2029
    %v2031 = vand.u32 %v2018, 4294901760
    %2032 = vmatpush1.msra.mxu0 %v2031
    %2033 = vmatprep.subr.mxu0 0.0
    %2034 = vmatpush1.msra.mxu0 0.0
    %2035 = vmatprep.subr.mxu0 0.0
    %2036 = vmatpush1.msra.mxu0 0.0
    %2037 = vmatprep.subr.mxu0 0.0
    %2038 = vmatpush1.msra.mxu0 0.0
    %2039 = vmatprep.subr.mxu0 0.0
    %2040 = vmatpush1.msra.mxu0 0.0
    %2041 = vmatprep.subr.mxu0 0.0
    %2042 = vmatpush1.msra.mxu0 0.0
    %2043 = vmatprep.subr.mxu0 0.0
    %2044 = vmatpush1.msra.mxu0 0.0
    %2045 = vmatprep.subr.mxu0 0.0
    %2046 = vmatpush1.msra.mxu0 0.0
    %2047 = vmatprep.subr.mxu0 0.0
    %2048 = vmatpush1.msra.mxu0 0.0
    %2049 = vmatprep.subr.mxu0 0.0
    %2050 = vmatpush1.msra.mxu0 0.0
    %2051 = vmatprep.subr.mxu0 0.0
    %2052 = vmatpush1.msra.mxu0 0.0
    %2053 = vmatprep.subr.mxu0 0.0
    %2054 = vmatpush1.msra.mxu0 0.0
    %2055 = vmatprep.subr.mxu0 0.0
    %2056 = vmatpush1.msra.mxu0 0.0
    %2057 = vmatprep.subr.mxu0 0.0
    %2058 = vmatpush1.msra.mxu0 0.0
    %2059 = vmatprep.subr.mxu0 0.0
    %2060 = vmatpush1.msra.mxu0 0.0
    %2061 = vmatprep.subr.mxu0 0.0
    %2062 = vmatpush1.msra.mxu0 0.0
    %2063 = vmatprep.subr.mxu0 0.0
    %2064 = vmatpush1.msra.mxu0 0.0
    %2065 = vmatprep.subr.mxu0 0.0
    %2066 = vmatpush1.msra.mxu0 0.0
    %2067 = vmatprep.subr.mxu0 0.0
    %2068 = vmatpush1.msra.mxu0 0.0
    %2069 = vmatprep.subr.mxu0 0.0
    %2070 = vmatpush1.msra.mxu0 0.0
    %2071 = vmatprep.subr.mxu0 0.0
    %2072 = vmatpush1.msra.mxu0 0.0
    %2073 = vmatprep.subr.mxu0 0.0
    %2074 = vmatpush1.msra.mxu0 0.0
    %2075 = vmatprep.subr.mxu0 0.0
    %2076 = vmatpush1.msra.mxu0 0.0
    %2077 = vmatprep.subr.mxu0 0.0
    %2078 = vmatpush1.msra.mxu0 0.0
    %2079 = vmatprep.subr.mxu0 0.0
    %2080 = vmatpush1.msra.mxu0 0.0
    %2081 = vmatprep.subr.mxu0 0.0
    %2082 = vmatpush1.msra.mxu0 0.0
    %2083 = vmatprep.subr.mxu0 0.0
    %2084 = vmatpush1.msra.mxu0 0.0
    %2085 = vmatprep.subr.mxu0 0.0
    %2086 = vmatpush1.msra.mxu0 0.0
    %2087 = vmatprep.subr.mxu0 0.0
    %2088 = vmatpush1.msra.mxu0 0.0
    %2089 = vmatprep.subr.mxu0 0.0
    %2090 = vmatpush1.msra.mxu0 0.0
    %2091 = vmatprep.subr.mxu0 0.0
    %2092 = vmatpush1.msra.mxu0 0.0
    %2093 = vmatprep.subr.mxu0 0.0
    %2094 = vmatpush1.msra.mxu0 0.0
    %2095 = vmatprep.mubr.f32.mxu0 0.0
    %v2096 = vand.u32 %v2015, 4294901760
    %v2097 = vsub.f32 %v2015, %v2096
    %v2098 = vand.u32 %v2097, 4294901760
    %v2099 = vsub.f32 %v2097, %v2098
    %v2100 = vand.u32 %v2099, 4294901760
    %2101 = vmatmul.mubr.f32.gmra.mrb[0].mxu0 %v2100
    %v2102 = vpop.f32.mrb[0].mxu0
    %v2103 = vadd.f32 0.0, %v2102
    %v2104 = vpop.f32.mrb[0].mxu0
    %v2105 = vadd.f32 0.0, %v2104
    %2106 = vdwg.mxu0
    %v2107 = vand.u32 %v2021, 4294901760
    %v2108 = vsub.f32 %v2021, %v2107
    %v2109 = vand.u32 %v2108, 4294901760
    %v2110 = vsub.f32 %v2108, %v2109
    %v2111 = vand.u32 %v2110, 4294901760
    %2112 = vmatprep.subr.mxu0 %v2111
    %v2113 = vand.u32 %v2018, 4294901760
    %v2114 = vsub.f32 %v2018, %v2113
    %v2115 = vand.u32 %v2114, 4294901760
    %v2116 = vsub.f32 %v2114, %v2115
    %v2117 = vand.u32 %v2116, 4294901760
    %2118 = vmatpush1.msra.mxu0 %v2117
    %2119 = vmatprep.subr.mxu0 0.0
    %2120 = vmatpush1.msra.mxu0 0.0
    %2121 = vmatprep.subr.mxu0 0.0
    %2122 = vmatpush1.msra.mxu0 0.0
    %2123 = vmatprep.subr.mxu0 0.0
    %2124 = vmatpush1.msra.mxu0 0.0
    %2125 = vmatprep.subr.mxu0 0.0
    %2126 = vmatpush1.msra.mxu0 0.0
    %2127 = vmatprep.subr.mxu0 0.0
    %2128 = vmatpush1.msra.mxu0 0.0
    %2129 = vmatprep.subr.mxu0 0.0
    %2130 = vmatpush1.msra.mxu0 0.0
    %2131 = vmatprep.subr.mxu0 0.0
    %2132 = vmatpush1.msra.mxu0 0.0
    %2133 = vmatprep.subr.mxu0 0.0
    %2134 = vmatpush1.msra.mxu0 0.0
    %2135 = vmatprep.subr.mxu0 0.0
    %2136 = vmatpush1.msra.mxu0 0.0
    %2137 = vmatprep.subr.mxu0 0.0
    %2138 = vmatpush1.msra.mxu0 0.0
    %2139 = vmatprep.subr.mxu0 0.0
    %2140 = vmatpush1.msra.mxu0 0.0
    %2141 = vmatprep.subr.mxu0 0.0
    %2142 = vmatpush1.msra.mxu0 0.0
    %2143 = vmatprep.subr.mxu0 0.0
    %2144 = vmatpush1.msra.mxu0 0.0
    %2145 = vmatprep.subr.mxu0 0.0
    %2146 = vmatpush1.msra.mxu0 0.0
    %2147 = vmatprep.subr.mxu0 0.0
    %2148 = vmatpush1.msra.mxu0 0.0
    %2149 = vmatprep.subr.mxu0 0.0
    %2150 = vmatpush1.msra.mxu0 0.0
    %2151 = vmatprep.subr.mxu0 0.0
    %2152 = vmatpush1.msra.mxu0 0.0
    %2153 = vmatprep.subr.mxu0 0.0
    %2154 = vmatpush1.msra.mxu0 0.0
    %2155 = vmatprep.subr.mxu0 0.0
    %2156 = vmatpush1.msra.mxu0 0.0
    %2157 = vmatprep.subr.mxu0 0.0
    %2158 = vmatpush1.msra.mxu0 0.0
    %2159 = vmatprep.subr.mxu0 0.0
    %2160 = vmatpush1.msra.mxu0 0.0
    %2161 = vmatprep.subr.mxu0 0.0
    %2162 = vmatpush1.msra.mxu0 0.0
    %2163 = vmatprep.subr.mxu0 0.0
    %2164 = vmatpush1.msra.mxu0 0.0
    %2165 = vmatprep.subr.mxu0 0.0
    %2166 = vmatpush1.msra.mxu0 0.0
    %2167 = vmatprep.subr.mxu0 0.0
    %2168 = vmatpush1.msra.mxu0 0.0
    %2169 = vmatprep.subr.mxu0 0.0
    %2170 = vmatpush1.msra.mxu0 0.0
    %2171 = vmatprep.subr.mxu0 0.0
    %2172 = vmatpush1.msra.mxu0 0.0
    %2173 = vmatprep.subr.mxu0 0.0
    %2174 = vmatpush1.msra.mxu0 0.0
    %2175 = vmatprep.subr.mxu0 0.0
    %2176 = vmatpush1.msra.mxu0 0.0
    %2177 = vmatprep.subr.mxu0 0.0
    %2178 = vmatpush1.msra.mxu0 0.0
    %2179 = vmatprep.subr.mxu0 0.0
    %2180 = vmatpush1.msra.mxu0 0.0
    %2181 = vmatprep.mubr.f32.mxu0 0.0
    %v2182 = vand.u32 %v2015, 4294901760
    %2183 = vmatmul.mubr.f32.gmra.mrb[0].mxu0 %v2182
    %v2184 = vpop.f32.mrb[0].mxu0
    %v2185 = vadd.f32 %v2103, %v2184
    %v2186 = vpop.f32.mrb[0].mxu0
    %v2187 = vadd.f32 %v2105, %v2186
    %2188 = vdwg.mxu0
    %v2189 = vand.u32 %v2021, 4294901760
    %v2190 = vsub.f32 %v2021, %v2189
    %2191 = vmatprep.subr.mxu0 %v2190
    %v2192 = vand.u32 %v2018, 4294901760
    %v2193 = vsub.f32 %v2018, %v2192
    %2194 = vmatpush1.msra.mxu0 %v2193
    %2195 = vmatprep.subr.mxu0 0.0
    %2196 = vmatpush1.msra.mxu0 0.0
    %2197 = vmatprep.subr.mxu0 0.0
    %2198 = vmatpush1.msra.mxu0 0.0
    %2199 = vmatprep.subr.mxu0 0.0
    %2200 = vmatpush1.msra.mxu0 0.0
    %2201 = vmatprep.subr.mxu0 0.0
    %2202 = vmatpush1.msra.mxu0 0.0
    %2203 = vmatprep.subr.mxu0 0.0
    %2204 = vmatpush1.msra.mxu0 0.0
    %2205 = vmatprep.subr.mxu0 0.0
    %2206 = vmatpush1.msra.mxu0 0.0
    %2207 = vmatprep.subr.mxu0 0.0
    %2208 = vmatpush1.msra.mxu0 0.0
    %2209 = vmatprep.subr.mxu0 0.0
    %2210 = vmatpush1.msra.mxu0 0.0
    %2211 = vmatprep.subr.mxu0 0.0
    %2212 = vmatpush1.msra.mxu0 0.0
    %2213 = vmatprep.subr.mxu0 0.0
    %2214 = vmatpush1.msra.mxu0 0.0
    %2215 = vmatprep.subr.mxu0 0.0
    %2216 = vmatpush1.msra.mxu0 0.0
    %2217 = vmatprep.subr.mxu0 0.0
    %2218 = vmatpush1.msra.mxu0 0.0
    %2219 = vmatprep.subr.mxu0 0.0
    %2220 = vmatpush1.msra.mxu0 0.0
    %2221 = vmatprep.subr.mxu0 0.0
    %2222 = vmatpush1.msra.mxu0 0.0
    %2223 = vmatprep.subr.mxu0 0.0
    %2224 = vmatpush1.msra.mxu0 0.0
    %2225 = vmatprep.subr.mxu0 0.0
    %2226 = vmatpush1.msra.mxu0 0.0
    %2227 = vmatprep.subr.mxu0 0.0
    %2228 = vmatpush1.msra.mxu0 0.0
    %2229 = vmatprep.subr.mxu0 0.0
    %2230 = vmatpush1.msra.mxu0 0.0
    %2231 = vmatprep.subr.mxu0 0.0
    %2232 = vmatpush1.msra.mxu0 0.0
    %2233 = vmatprep.subr.mxu0 0.0
    %2234 = vmatpush1.msra.mxu0 0.0
    %2235 = vmatprep.subr.mxu0 0.0
    %2236 = vmatpush1.msra.mxu0 0.0
    %2237 = vmatprep.subr.mxu0 0.0
    %2238 = vmatpush1.msra.mxu0 0.0
    %2239 = vmatprep.subr.mxu0 0.0
    %2240 = vmatpush1.msra.mxu0 0.0
    %2241 = vmatprep.subr.mxu0 0.0
    %2242 = vmatpush1.msra.mxu0 0.0
    %2243 = vmatprep.subr.mxu0 0.0
    %2244 = vmatpush1.msra.mxu0 0.0
    %2245 = vmatprep.subr.mxu0 0.0
    %2246 = vmatpush1.msra.mxu0 0.0
    %2247 = vmatprep.subr.mxu0 0.0
    %2248 = vmatpush1.msra.mxu0 0.0
    %2249 = vmatprep.subr.mxu0 0.0
    %2250 = vmatpush1.msra.mxu0 0.0
    %2251 = vmatprep.subr.mxu0 0.0
    %2252 = vmatpush1.msra.mxu0 0.0
    %2253 = vmatprep.subr.mxu0 0.0
    %2254 = vmatpush1.msra.mxu0 0.0
    %2255 = vmatprep.subr.mxu0 0.0
    %2256 = vmatpush1.msra.mxu0 0.0
    %2257 = vmatprep.mubr.f32.mxu0 0.0
    %v2258 = vand.u32 %v2015, 4294901760
    %v2259 = vsub.f32 %v2015, %v2258
    %2260 = vmatmul.mubr.f32.gmra.mrb[0].mxu0 %v2259
    %v2261 = vpop.f32.mrb[0].mxu0
    %v2262 = vadd.f32 %v2185, %v2261
    %v2263 = vpop.f32.mrb[0].mxu0
    %v2264 = vadd.f32 %v2187, %v2263
    %2265 = vdwg.mxu0
    %v2266 = vand.u32 %v2021, 4294901760
    %2267 = vmatprep.subr.mxu0 %v2266
    %v2268 = vand.u32 %v2018, 4294901760
    %2269 = vmatpush1.msra.mxu0 %v2268
    %2270 = vmatprep.subr.mxu0 0.0
    %2271 = vmatpush1.msra.mxu0 0.0
    %2272 = vmatprep.subr.mxu0 0.0
    %2273 = vmatpush1.msra.mxu0 0.0
    %2274 = vmatprep.subr.mxu0 0.0
    %2275 = vmatpush1.msra.mxu0 0.0
    %2276 = vmatprep.subr.mxu0 0.0
    %2277 = vmatpush1.msra.mxu0 0.0
    %2278 = vmatprep.subr.mxu0 0.0
    %2279 = vmatpush1.msra.mxu0 0.0
    %2280 = vmatprep.subr.mxu0 0.0
    %2281 = vmatpush1.msra.mxu0 0.0
    %2282 = vmatprep.subr.mxu0 0.0
    %2283 = vmatpush1.msra.mxu0 0.0
    %2284 = vmatprep.subr.mxu0 0.0
    %2285 = vmatpush1.msra.mxu0 0.0
    %2286 = vmatprep.subr.mxu0 0.0
    %2287 = vmatpush1.msra.mxu0 0.0
    %2288 = vmatprep.subr.mxu0 0.0
    %2289 = vmatpush1.msra.mxu0 0.0
    %2290 = vmatprep.subr.mxu0 0.0
    %2291 = vmatpush1.msra.mxu0 0.0
    %2292 = vmatprep.subr.mxu0 0.0
    %2293 = vmatpush1.msra.mxu0 0.0
    %2294 = vmatprep.subr.mxu0 0.0
    %2295 = vmatpush1.msra.mxu0 0.0
    %2296 = vmatprep.subr.mxu0 0.0
    %2297 = vmatpush1.msra.mxu0 0.0
    %2298 = vmatprep.subr.mxu0 0.0
    %2299 = vmatpush1.msra.mxu0 0.0
    %2300 = vmatprep.subr.mxu0 0.0
    %2301 = vmatpush1.msra.mxu0 0.0
    %2302 = vmatprep.subr.mxu0 0.0
    %2303 = vmatpush1.msra.mxu0 0.0
    %2304 = vmatprep.subr.mxu0 0.0
    %2305 = vmatpush1.msra.mxu0 0.0
    %2306 = vmatprep.subr.mxu0 0.0
    %2307 = vmatpush1.msra.mxu0 0.0
    %2308 = vmatprep.subr.mxu0 0.0
    %2309 = vmatpush1.msra.mxu0 0.0
    %2310 = vmatprep.subr.mxu0 0.0
    %2311 = vmatpush1.msra.mxu0 0.0
    %2312 = vmatprep.subr.mxu0 0.0
    %2313 = vmatpush1.msra.mxu0 0.0
    %2314 = vmatprep.subr.mxu0 0.0
    %2315 = vmatpush1.msra.mxu0 0.0
    %2316 = vmatprep.subr.mxu0 0.0
    %2317 = vmatpush1.msra.mxu0 0.0
    %2318 = vmatprep.subr.mxu0 0.0
    %2319 = vmatpush1.msra.mxu0 0.0
    %2320 = vmatprep.subr.mxu0 0.0
    %2321 = vmatpush1.msra.mxu0 0.0
    %2322 = vmatprep.subr.mxu0 0.0
    %2323 = vmatpush1.msra.mxu0 0.0
    %2324 = vmatprep.subr.mxu0 0.0
    %2325 = vmatpush1.msra.mxu0 0.0
    %2326 = vmatprep.subr.mxu0 0.0
    %2327 = vmatpush1.msra.mxu0 0.0
    %2328 = vmatprep.subr.mxu0 0.0
    %2329 = vmatpush1.msra.mxu0 0.0
    %2330 = vmatprep.subr.mxu0 0.0
    %2331 = vmatpush1.msra.mxu0 0.0
    %2332 = vmatprep.mubr.f32.mxu0 0.0
    %v2333 = vand.u32 %v2015, 4294901760
    %v2334 = vsub.f32 %v2015, %v2333
    %v2335 = vand.u32 %v2334, 4294901760
    %2336 = vmatmul.mubr.f32.gmra.mrb[0].mxu0 %v2335
    %v2337 = vpop.f32.mrb[0].mxu0
    %v2338 = vadd.f32 %v2262, %v2337
    %v2339 = vpop.f32.mrb[0].mxu0
    %v2340 = vadd.f32 %v2264, %v2339
    %2341 = vdwg.mxu0
    %v2342 = vand.u32 %v2021, 4294901760
    %v2343 = vsub.f32 %v2021, %v2342
    %v2344 = vand.u32 %v2343, 4294901760
    %2345 = vmatprep.subr.mxu0 %v2344
    %v2346 = vand.u32 %v2018, 4294901760
    %v2347 = vsub.f32 %v2018, %v2346
    %v2348 = vand.u32 %v2347, 4294901760
    %2349 = vmatpush1.msra.mxu0 %v2348
    %2350 = vmatprep.subr.mxu0 0.0
    %2351 = vmatpush1.msra.mxu0 0.0
    %2352 = vmatprep.subr.mxu0 0.0
    %2353 = vmatpush1.msra.mxu0 0.0
    %2354 = vmatprep.subr.mxu0 0.0
    %2355 = vmatpush1.msra.mxu0 0.0
    %2356 = vmatprep.subr.mxu0 0.0
    %2357 = vmatpush1.msra.mxu0 0.0
    %2358 = vmatprep.subr.mxu0 0.0
    %2359 = vmatpush1.msra.mxu0 0.0
    %2360 = vmatprep.subr.mxu0 0.0
    %2361 = vmatpush1.msra.mxu0 0.0
    %2362 = vmatprep.subr.mxu0 0.0
    %2363 = vmatpush1.msra.mxu0 0.0
    %2364 = vmatprep.subr.mxu0 0.0
    %2365 = vmatpush1.msra.mxu0 0.0
    %2366 = vmatprep.subr.mxu0 0.0
    %2367 = vmatpush1.msra.mxu0 0.0
    %2368 = vmatprep.subr.mxu0 0.0
    %2369 = vmatpush1.msra.mxu0 0.0
    %2370 = vmatprep.subr.mxu0 0.0
    %2371 = vmatpush1.msra.mxu0 0.0
    %2372 = vmatprep.subr.mxu0 0.0
    %2373 = vmatpush1.msra.mxu0 0.0
    %2374 = vmatprep.subr.mxu0 0.0
    %2375 = vmatpush1.msra.mxu0 0.0
    %2376 = vmatprep.subr.mxu0 0.0
    %2377 = vmatpush1.msra.mxu0 0.0
    %2378 = vmatprep.subr.mxu0 0.0
    %2379 = vmatpush1.msra.mxu0 0.0
    %2380 = vmatprep.subr.mxu0 0.0
    %2381 = vmatpush1.msra.mxu0 0.0
    %2382 = vmatprep.subr.mxu0 0.0
    %2383 = vmatpush1.msra.mxu0 0.0
    %2384 = vmatprep.subr.mxu0 0.0
    %2385 = vmatpush1.msra.mxu0 0.0
    %2386 = vmatprep.subr.mxu0 0.0
    %2387 = vmatpush1.msra.mxu0 0.0
    %2388 = vmatprep.subr.mxu0 0.0
    %2389 = vmatpush1.msra.mxu0 0.0
    %2390 = vmatprep.subr.mxu0 0.0
    %2391 = vmatpush1.msra.mxu0 0.0
    %2392 = vmatprep.subr.mxu0 0.0
    %2393 = vmatpush1.msra.mxu0 0.0
    %2394 = vmatprep.subr.mxu0 0.0
    %2395 = vmatpush1.msra.mxu0 0.0
    %2396 = vmatprep.subr.mxu0 0.0
    %2397 = vmatpush1.msra.mxu0 0.0
    %2398 = vmatprep.subr.mxu0 0.0
    %2399 = vmatpush1.msra.mxu0 0.0
    %2400 = vmatprep.subr.mxu0 0.0
    %2401 = vmatpush1.msra.mxu0 0.0
    %2402 = vmatprep.subr.mxu0 0.0
    %2403 = vmatpush1.msra.mxu0 0.0
    %2404 = vmatprep.subr.mxu0 0.0
    %2405 = vmatpush1.msra.mxu0 0.0
    %2406 = vmatprep.subr.mxu0 0.0
    %2407 = vmatpush1.msra.mxu0 0.0
    %2408 = vmatprep.subr.mxu0 0.0
    %2409 = vmatpush1.msra.mxu0 0.0
    %2410 = vmatprep.subr.mxu0 0.0
    %2411 = vmatpush1.msra.mxu0 0.0
    %2412 = vmatprep.mubr.f32.mxu0 0.0
    %v2413 = vand.u32 %v2015, 4294901760
    %2414 = vmatmul.mubr.f32.gmra.mrb[0].mxu0 %v2413
    %v2415 = vpop.f32.mrb[0].mxu0
    %v2416 = vadd.f32 %v2338, %v2415
    %v2417 = vpop.f32.mrb[0].mxu0
    %v2418 = vadd.f32 %v2340, %v2417
    %2419 = vdwg.mxu0
    %v2420 = vand.u32 %v2021, 4294901760
    %2421 = vmatprep.subr.mxu0 %v2420
    %v2422 = vand.u32 %v2018, 4294901760
    %2423 = vmatpush1.msra.mxu0 %v2422
    %2424 = vmatprep.subr.mxu0 0.0
    %2425 = vmatpush1.msra.mxu0 0.0
    %2426 = vmatprep.subr.mxu0 0.0
    %2427 = vmatpush1.msra.mxu0 0.0
    %2428 = vmatprep.subr.mxu0 0.0
    %2429 = vmatpush1.msra.mxu0 0.0
    %2430 = vmatprep.subr.mxu0 0.0
    %2431 = vmatpush1.msra.mxu0 0.0
    %2432 = vmatprep.subr.mxu0 0.0
    %2433 = vmatpush1.msra.mxu0 0.0
    %2434 = vmatprep.subr.mxu0 0.0
    %2435 = vmatpush1.msra.mxu0 0.0
    %2436 = vmatprep.subr.mxu0 0.0
    %2437 = vmatpush1.msra.mxu0 0.0
    %2438 = vmatprep.subr.mxu0 0.0
    %2439 = vmatpush1.msra.mxu0 0.0
    %2440 = vmatprep.subr.mxu0 0.0
    %2441 = vmatpush1.msra.mxu0 0.0
    %2442 = vmatprep.subr.mxu0 0.0
    %2443 = vmatpush1.msra.mxu0 0.0
    %2444 = vmatprep.subr.mxu0 0.0
    %2445 = vmatpush1.msra.mxu0 0.0
    %2446 = vmatprep.subr.mxu0 0.0
    %2447 = vmatpush1.msra.mxu0 0.0
    %2448 = vmatprep.subr.mxu0 0.0
    %2449 = vmatpush1.msra.mxu0 0.0
    %2450 = vmatprep.subr.mxu0 0.0
    %2451 = vmatpush1.msra.mxu0 0.0
    %2452 = vmatprep.subr.mxu0 0.0
    %2453 = vmatpush1.msra.mxu0 0.0
    %2454 = vmatprep.subr.mxu0 0.0
    %2455 = vmatpush1.msra.mxu0 0.0
    %2456 = vmatprep.subr.mxu0 0.0
    %2457 = vmatpush1.msra.mxu0 0.0
    %2458 = vmatprep.subr.mxu0 0.0
    %2459 = vmatpush1.msra.mxu0 0.0
    %2460 = vmatprep.subr.mxu0 0.0
    %2461 = vmatpush1.msra.mxu0 0.0
    %2462 = vmatprep.subr.mxu0 0.0
    %2463 = vmatpush1.msra.mxu0 0.0
    %2464 = vmatprep.subr.mxu0 0.0
    %2465 = vmatpush1.msra.mxu0 0.0
    %2466 = vmatprep.subr.mxu0 0.0
    %2467 = vmatpush1.msra.mxu0 0.0
    %2468 = vmatprep.subr.mxu0 0.0
    %2469 = vmatpush1.msra.mxu0 0.0
    %2470 = vmatprep.subr.mxu0 0.0
    %2471 = vmatpush1.msra.mxu0 0.0
    %2472 = vmatprep.subr.mxu0 0.0
    %2473 = vmatpush1.msra.mxu0 0.0
    %2474 = vmatprep.subr.mxu0 0.0
    %2475 = vmatpush1.msra.mxu0 0.0
    %2476 = vmatprep.subr.mxu0 0.0
    %2477 = vmatpush1.msra.mxu0 0.0
    %2478 = vmatprep.subr.mxu0 0.0
    %2479 = vmatpush1.msra.mxu0 0.0
    %2480 = vmatprep.subr.mxu0 0.0
    %2481 = vmatpush1.msra.mxu0 0.0
    %2482 = vmatprep.subr.mxu0 0.0
    %2483 = vmatpush1.msra.mxu0 0.0
    %2484 = vmatprep.subr.mxu0 0.0
    %2485 = vmatpush1.msra.mxu0 0.0
    %2486 = vmatprep.mubr.f32.mxu0 0.0
    %v2487 = vand.u32 %v2015, 4294901760
    %2488 = vmatmul.mubr.f32.gmra.mrb[0].mxu0 %v2487
    %v2489 = vpop.f32.mrb[0].mxu0
    %v2490 = vadd.f32 %v2416, %v2489
    %v2491 = vpop.f32.mrb[0].mxu0
    %v2492 = vadd.f32 %v2418, %v2491
    %2493 = vdwg.mxu0
    %v2494 = vand.u32 %v2027, 4294901760
    %2495 = vmatprep.subr.mxu0 %v2494
    %v2496 = vand.u32 %v2024, 4294901760
    %2497 = vmatpush1.msra.mxu0 %v2496
    %2498 = vmatprep.subr.mxu0 0.0
    %2499 = vmatpush1.msra.mxu0 0.0
    %2500 = vmatprep.subr.mxu0 0.0
    %2501 = vmatpush1.msra.mxu0 0.0
    %2502 = vmatprep.subr.mxu0 0.0
    %2503 = vmatpush1.msra.mxu0 0.0
    %2504 = vmatprep.subr.mxu0 0.0
    %2505 = vmatpush1.msra.mxu0 0.0
    %2506 = vmatprep.subr.mxu0 0.0
    %2507 = vmatpush1.msra.mxu0 0.0
    %2508 = vmatprep.subr.mxu0 0.0
    %2509 = vmatpush1.msra.mxu0 0.0
    %2510 = vmatprep.subr.mxu0 0.0
    %2511 = vmatpush1.msra.mxu0 0.0
    %2512 = vmatprep.subr.mxu0 0.0
    %2513 = vmatpush1.msra.mxu0 0.0
    %2514 = vmatprep.subr.mxu0 0.0
    %2515 = vmatpush1.msra.mxu0 0.0
    %2516 = vmatprep.subr.mxu0 0.0
    %2517 = vmatpush1.msra.mxu0 0.0
    %2518 = vmatprep.subr.mxu0 0.0
    %2519 = vmatpush1.msra.mxu0 0.0
    %2520 = vmatprep.subr.mxu0 0.0
    %2521 = vmatpush1.msra.mxu0 0.0
    %2522 = vmatprep.subr.mxu0 0.0
    %2523 = vmatpush1.msra.mxu0 0.0
    %2524 = vmatprep.subr.mxu0 0.0
    %2525 = vmatpush1.msra.mxu0 0.0
    %2526 = vmatprep.subr.mxu0 0.0
    %2527 = vmatpush1.msra.mxu0 0.0
    %2528 = vmatprep.subr.mxu0 0.0
    %2529 = vmatpush1.msra.mxu0 0.0
    %2530 = vmatprep.subr.mxu0 0.0
    %2531 = vmatpush1.msra.mxu0 0.0
    %2532 = vmatprep.subr.mxu0 0.0
    %2533 = vmatpush1.msra.mxu0 0.0
    %2534 = vmatprep.subr.mxu0 0.0
    %2535 = vmatpush1.msra.mxu0 0.0
    %2536 = vmatprep.subr.mxu0 0.0
    %2537 = vmatpush1.msra.mxu0 0.0
    %2538 = vmatprep.subr.mxu0 0.0
    %2539 = vmatpush1.msra.mxu0 0.0
    %2540 = vmatprep.subr.mxu0 0.0
    %2541 = vmatpush1.msra.mxu0 0.0
    %2542 = vmatprep.subr.mxu0 0.0
    %2543 = vmatpush1.msra.mxu0 0.0
    %2544 = vmatprep.subr.mxu0 0.0
    %2545 = vmatpush1.msra.mxu0 0.0
    %2546 = vmatprep.subr.mxu0 0.0
    %2547 = vmatpush1.msra.mxu0 0.0
    %2548 = vmatprep.subr.mxu0 0.0
    %2549 = vmatpush1.msra.mxu0 0.0
    %2550 = vmatprep.subr.mxu0 0.0
    %2551 = vmatpush1.msra.mxu0 0.0
    %2552 = vmatprep.subr.mxu0 0.0
    %2553 = vmatpush1.msra.mxu0 0.0
    %2554 = vmatprep.subr.mxu0 0.0
    %2555 = vmatpush1.msra.mxu0 0.0
    %2556 = vmatprep.subr.mxu0 0.0
    %2557 = vmatpush1.msra.mxu0 0.0
    %2558 = vmatprep.subr.mxu0 0.0
    %2559 = vmatpush1.msra.mxu0 0.0
    %2560 = vmatprep.mubr.f32.mxu0 0.0
    %v2561 = vand.u32 %v2015, 4294901760
    %v2562 = vsub.f32 %v2015, %v2561
    %v2563 = vand.u32 %v2562, 4294901760
    %v2564 = vsub.f32 %v2562, %v2563
    %v2565 = vand.u32 %v2564, 4294901760
    %2566 = vmatmul.mubr.f32.gmra.mrb[0].mxu0 %v2565
    %v2567 = vpop.f32.mrb[0].mxu0
    %v2568 = vadd.f32 0.0, %v2567
    %v2569 = vpop.f32.mrb[0].mxu0
    %v2570 = vadd.f32 0.0, %v2569
    %2571 = vdwg.mxu0
    %v2572 = vand.u32 %v2027, 4294901760
    %v2573 = vsub.f32 %v2027, %v2572
    %v2574 = vand.u32 %v2573, 4294901760
    %v2575 = vsub.f32 %v2573, %v2574
    %v2576 = vand.u32 %v2575, 4294901760
    %2577 = vmatprep.subr.mxu0 %v2576
    %v2578 = vand.u32 %v2024, 4294901760
    %v2579 = vsub.f32 %v2024, %v2578
    %v2580 = vand.u32 %v2579, 4294901760
    %v2581 = vsub.f32 %v2579, %v2580
    %v2582 = vand.u32 %v2581, 4294901760
    %2583 = vmatpush1.msra.mxu0 %v2582
    %2584 = vmatprep.subr.mxu0 0.0
    %2585 = vmatpush1.msra.mxu0 0.0
    %2586 = vmatprep.subr.mxu0 0.0
    %2587 = vmatpush1.msra.mxu0 0.0
    %2588 = vmatprep.subr.mxu0 0.0
    %2589 = vmatpush1.msra.mxu0 0.0
    %2590 = vmatprep.subr.mxu0 0.0
    %2591 = vmatpush1.msra.mxu0 0.0
    %2592 = vmatprep.subr.mxu0 0.0
    %2593 = vmatpush1.msra.mxu0 0.0
    %2594 = vmatprep.subr.mxu0 0.0
    %2595 = vmatpush1.msra.mxu0 0.0
    %2596 = vmatprep.subr.mxu0 0.0
    %2597 = vmatpush1.msra.mxu0 0.0
    %2598 = vmatprep.subr.mxu0 0.0
    %2599 = vmatpush1.msra.mxu0 0.0
    %2600 = vmatprep.subr.mxu0 0.0
    %2601 = vmatpush1.msra.mxu0 0.0
    %2602 = vmatprep.subr.mxu0 0.0
    %2603 = vmatpush1.msra.mxu0 0.0
    %2604 = vmatprep.subr.mxu0 0.0
    %2605 = vmatpush1.msra.mxu0 0.0
    %2606 = vmatprep.subr.mxu0 0.0
    %2607 = vmatpush1.msra.mxu0 0.0
    %2608 = vmatprep.subr.mxu0 0.0
    %2609 = vmatpush1.msra.mxu0 0.0
    %2610 = vmatprep.subr.mxu0 0.0
    %2611 = vmatpush1.msra.mxu0 0.0
    %2612 = vmatprep.subr.mxu0 0.0
    %2613 = vmatpush1.msra.mxu0 0.0
    %2614 = vmatprep.subr.mxu0 0.0
    %2615 = vmatpush1.msra.mxu0 0.0
    %2616 = vmatprep.subr.mxu0 0.0
    %2617 = vmatpush1.msra.mxu0 0.0
    %2618 = vmatprep.subr.mxu0 0.0
    %2619 = vmatpush1.msra.mxu0 0.0
    %2620 = vmatprep.subr.mxu0 0.0
    %2621 = vmatpush1.msra.mxu0 0.0
    %2622 = vmatprep.subr.mxu0 0.0
    %2623 = vmatpush1.msra.mxu0 0.0
    %2624 = vmatprep.subr.mxu0 0.0
    %2625 = vmatpush1.msra.mxu0 0.0
    %2626 = vmatprep.subr.mxu0 0.0
    %2627 = vmatpush1.msra.mxu0 0.0
    %2628 = vmatprep.subr.mxu0 0.0
    %2629 = vmatpush1.msra.mxu0 0.0
    %2630 = vmatprep.subr.mxu0 0.0
    %2631 = vmatpush1.msra.mxu0 0.0
    %2632 = vmatprep.subr.mxu0 0.0
    %2633 = vmatpush1.msra.mxu0 0.0
    %2634 = vmatprep.subr.mxu0 0.0
    %2635 = vmatpush1.msra.mxu0 0.0
    %2636 = vmatprep.subr.mxu0 0.0
    %2637 = vmatpush1.msra.mxu0 0.0
    %2638 = vmatprep.subr.mxu0 0.0
    %2639 = vmatpush1.msra.mxu0 0.0
    %2640 = vmatprep.subr.mxu0 0.0
    %2641 = vmatpush1.msra.mxu0 0.0
    %2642 = vmatprep.subr.mxu0 0.0
    %2643 = vmatpush1.msra.mxu0 0.0
    %2644 = vmatprep.subr.mxu0 0.0
    %2645 = vmatpush1.msra.mxu0 0.0
    %2646 = vmatprep.mubr.f32.mxu0 0.0
    %v2647 = vand.u32 %v2015, 4294901760
    %2648 = vmatmul.mubr.f32.gmra.mrb[0].mxu0 %v2647
    %v2649 = vpop.f32.mrb[0].mxu0
    %v2650 = vadd.f32 %v2568, %v2649
    %v2651 = vpop.f32.mrb[0].mxu0
    %v2652 = vadd.f32 %v2570, %v2651
    %2653 = vdwg.mxu0
    %v2654 = vand.u32 %v2027, 4294901760
    %v2655 = vsub.f32 %v2027, %v2654
    %2656 = vmatprep.subr.mxu0 %v2655
    %v2657 = vand.u32 %v2024, 4294901760
    %v2658 = vsub.f32 %v2024, %v2657
    %2659 = vmatpush1.msra.mxu0 %v2658
    %2660 = vmatprep.subr.mxu0 0.0
    %2661 = vmatpush1.msra.mxu0 0.0
    %2662 = vmatprep.subr.mxu0 0.0
    %2663 = vmatpush1.msra.mxu0 0.0
    %2664 = vmatprep.subr.mxu0 0.0
    %2665 = vmatpush1.msra.mxu0 0.0
    %2666 = vmatprep.subr.mxu0 0.0
    %2667 = vmatpush1.msra.mxu0 0.0
    %2668 = vmatprep.subr.mxu0 0.0
    %2669 = vmatpush1.msra.mxu0 0.0
    %2670 = vmatprep.subr.mxu0 0.0
    %2671 = vmatpush1.msra.mxu0 0.0
    %2672 = vmatprep.subr.mxu0 0.0
    %2673 = vmatpush1.msra.mxu0 0.0
    %2674 = vmatprep.subr.mxu0 0.0
    %2675 = vmatpush1.msra.mxu0 0.0
    %2676 = vmatprep.subr.mxu0 0.0
    %2677 = vmatpush1.msra.mxu0 0.0
    %2678 = vmatprep.subr.mxu0 0.0
    %2679 = vmatpush1.msra.mxu0 0.0
    %2680 = vmatprep.subr.mxu0 0.0
    %2681 = vmatpush1.msra.mxu0 0.0
    %2682 = vmatprep.subr.mxu0 0.0
    %2683 = vmatpush1.msra.mxu0 0.0
    %2684 = vmatprep.subr.mxu0 0.0
    %2685 = vmatpush1.msra.mxu0 0.0
    %2686 = vmatprep.subr.mxu0 0.0
    %2687 = vmatpush1.msra.mxu0 0.0
    %2688 = vmatprep.subr.mxu0 0.0
    %2689 = vmatpush1.msra.mxu0 0.0
    %2690 = vmatprep.subr.mxu0 0.0
    %2691 = vmatpush1.msra.mxu0 0.0
    %2692 = vmatprep.subr.mxu0 0.0
    %2693 = vmatpush1.msra.mxu0 0.0
    %2694 = vmatprep.subr.mxu0 0.0
    %2695 = vmatpush1.msra.mxu0 0.0
    %2696 = vmatprep.subr.mxu0 0.0
    %2697 = vmatpush1.msra.mxu0 0.0
    %2698 = vmatprep.subr.mxu0 0.0
    %2699 = vmatpush1.msra.mxu0 0.0
    %2700 = vmatprep.subr.mxu0 0.0
    %2701 = vmatpush1.msra.mxu0 0.0
    %2702 = vmatprep.subr.mxu0 0.0
    %2703 = vmatpush1.msra.mxu0 0.0
    %2704 = vmatprep.subr.mxu0 0.0
    %2705 = vmatpush1.msra.mxu0 0.0
    %2706 = vmatprep.subr.mxu0 0.0
    %2707 = vmatpush1.msra.mxu0 0.0
    %2708 = vmatprep.subr.mxu0 0.0
    %2709 = vmatpush1.msra.mxu0 0.0
    %2710 = vmatprep.subr.mxu0 0.0
    %2711 = vmatpush1.msra.mxu0 0.0
    %2712 = vmatprep.subr.mxu0 0.0
    %2713 = vmatpush1.msra.mxu0 0.0
    %2714 = vmatprep.subr.mxu0 0.0
    %2715 = vmatpush1.msra.mxu0 0.0
    %2716 = vmatprep.subr.mxu0 0.0
    %2717 = vmatpush1.msra.mxu0 0.0
    %2718 = vmatprep.subr.mxu0 0.0
    %2719 = vmatpush1.msra.mxu0 0.0
    %2720 = vmatprep.subr.mxu0 0.0
    %2721 = vmatpush1.msra.mxu0 0.0
    %2722 = vmatprep.mubr.f32.mxu0 0.0
    %v2723 = vand.u32 %v2015, 4294901760
    %v2724 = vsub.f32 %v2015, %v2723
    %2725 = vmatmul.mubr.f32.gmra.mrb[0].mxu0 %v2724
    %v2726 = vpop.f32.mrb[0].mxu0
    %v2727 = vadd.f32 %v2650, %v2726
    %v2728 = vpop.f32.mrb[0].mxu0
    %v2729 = vadd.f32 %v2652, %v2728
    %2730 = vdwg.mxu0
    %v2731 = vand.u32 %v2027, 4294901760
    %2732 = vmatprep.subr.mxu0 %v2731
    %v2733 = vand.u32 %v2024, 4294901760
    %2734 = vmatpush1.msra.mxu0 %v2733
    %2735 = vmatprep.subr.mxu0 0.0
    %2736 = vmatpush1.msra.mxu0 0.0
    %2737 = vmatprep.subr.mxu0 0.0
    %2738 = vmatpush1.msra.mxu0 0.0
    %2739 = vmatprep.subr.mxu0 0.0
    %2740 = vmatpush1.msra.mxu0 0.0
    %2741 = vmatprep.subr.mxu0 0.0
    %2742 = vmatpush1.msra.mxu0 0.0
    %2743 = vmatprep.subr.mxu0 0.0
    %2744 = vmatpush1.msra.mxu0 0.0
    %2745 = vmatprep.subr.mxu0 0.0
    %2746 = vmatpush1.msra.mxu0 0.0
    %2747 = vmatprep.subr.mxu0 0.0
    %2748 = vmatpush1.msra.mxu0 0.0
    %2749 = vmatprep.subr.mxu0 0.0
    %2750 = vmatpush1.msra.mxu0 0.0
    %2751 = vmatprep.subr.mxu0 0.0
    %2752 = vmatpush1.msra.mxu0 0.0
    %2753 = vmatprep.subr.mxu0 0.0
    %2754 = vmatpush1.msra.mxu0 0.0
    %2755 = vmatprep.subr.mxu0 0.0
    %2756 = vmatpush1.msra.mxu0 0.0
    %2757 = vmatprep.subr.mxu0 0.0
    %2758 = vmatpush1.msra.mxu0 0.0
    %2759 = vmatprep.subr.mxu0 0.0
    %2760 = vmatpush1.msra.mxu0 0.0
    %2761 = vmatprep.subr.mxu0 0.0
    %2762 = vmatpush1.msra.mxu0 0.0
    %2763 = vmatprep.subr.mxu0 0.0
    %2764 = vmatpush1.msra.mxu0 0.0
    %2765 = vmatprep.subr.mxu0 0.0
    %2766 = vmatpush1.msra.mxu0 0.0
    %2767 = vmatprep.subr.mxu0 0.0
    %2768 = vmatpush1.msra.mxu0 0.0
    %2769 = vmatprep.subr.mxu0 0.0
    %2770 = vmatpush1.msra.mxu0 0.0
    %2771 = vmatprep.subr.mxu0 0.0
    %2772 = vmatpush1.msra.mxu0 0.0
    %2773 = vmatprep.subr.mxu0 0.0
    %2774 = vmatpush1.msra.mxu0 0.0
    %2775 = vmatprep.subr.mxu0 0.0
    %2776 = vmatpush1.msra.mxu0 0.0
    %2777 = vmatprep.subr.mxu0 0.0
    %2778 = vmatpush1.msra.mxu0 0.0
    %2779 = vmatprep.subr.mxu0 0.0
    %2780 = vmatpush1.msra.mxu0 0.0
    %2781 = vmatprep.subr.mxu0 0.0
    %2782 = vmatpush1.msra.mxu0 0.0
    %2783 = vmatprep.subr.mxu0 0.0
    %2784 = vmatpush1.msra.mxu0 0.0
    %2785 = vmatprep.subr.mxu0 0.0
    %2786 = vmatpush1.msra.mxu0 0.0
    %2787 = vmatprep.subr.mxu0 0.0
    %2788 = vmatpush1.msra.mxu0 0.0
    %2789 = vmatprep.subr.mxu0 0.0
    %2790 = vmatpush1.msra.mxu0 0.0
    %2791 = vmatprep.subr.mxu0 0.0
    %2792 = vmatpush1.msra.mxu0 0.0
    %2793 = vmatprep.subr.mxu0 0.0
    %2794 = vmatpush1.msra.mxu0 0.0
    %2795 = vmatprep.subr.mxu0 0.0
    %2796 = vmatpush1.msra.mxu0 0.0
    %2797 = vmatprep.mubr.f32.mxu0 0.0
    %v2798 = vand.u32 %v2015, 4294901760
    %v2799 = vsub.f32 %v2015, %v2798
    %v2800 = vand.u32 %v2799, 4294901760
    %2801 = vmatmul.mubr.f32.gmra.mrb[0].mxu0 %v2800
    %v2802 = vpop.f32.mrb[0].mxu0
    %v2803 = vadd.f32 %v2727, %v2802
    %v2804 = vpop.f32.mrb[0].mxu0
    %v2805 = vadd.f32 %v2729, %v2804
    %2806 = vdwg.mxu0
    %v2807 = vand.u32 %v2027, 4294901760
    %v2808 = vsub.f32 %v2027, %v2807
    %v2809 = vand.u32 %v2808, 4294901760
    %2810 = vmatprep.subr.mxu0 %v2809
    %v2811 = vand.u32 %v2024, 4294901760
    %v2812 = vsub.f32 %v2024, %v2811
    %v2813 = vand.u32 %v2812, 4294901760
    %2814 = vmatpush1.msra.mxu0 %v2813
    %2815 = vmatprep.subr.mxu0 0.0
    %2816 = vmatpush1.msra.mxu0 0.0
    %2817 = vmatprep.subr.mxu0 0.0
    %2818 = vmatpush1.msra.mxu0 0.0
    %2819 = vmatprep.subr.mxu0 0.0
    %2820 = vmatpush1.msra.mxu0 0.0
    %2821 = vmatprep.subr.mxu0 0.0
    %2822 = vmatpush1.msra.mxu0 0.0
    %2823 = vmatprep.subr.mxu0 0.0
    %2824 = vmatpush1.msra.mxu0 0.0
    %2825 = vmatprep.subr.mxu0 0.0
    %2826 = vmatpush1.msra.mxu0 0.0
    %2827 = vmatprep.subr.mxu0 0.0
    %2828 = vmatpush1.msra.mxu0 0.0
    %2829 = vmatprep.subr.mxu0 0.0
    %2830 = vmatpush1.msra.mxu0 0.0
    %2831 = vmatprep.subr.mxu0 0.0
    %2832 = vmatpush1.msra.mxu0 0.0
    %2833 = vmatprep.subr.mxu0 0.0
    %2834 = vmatpush1.msra.mxu0 0.0
    %2835 = vmatprep.subr.mxu0 0.0
    %2836 = vmatpush1.msra.mxu0 0.0
    %2837 = vmatprep.subr.mxu0 0.0
    %2838 = vmatpush1.msra.mxu0 0.0
    %2839 = vmatprep.subr.mxu0 0.0
    %2840 = vmatpush1.msra.mxu0 0.0
    %2841 = vmatprep.subr.mxu0 0.0
    %2842 = vmatpush1.msra.mxu0 0.0
    %2843 = vmatprep.subr.mxu0 0.0
    %2844 = vmatpush1.msra.mxu0 0.0
    %2845 = vmatprep.subr.mxu0 0.0
    %2846 = vmatpush1.msra.mxu0 0.0
    %2847 = vmatprep.subr.mxu0 0.0
    %2848 = vmatpush1.msra.mxu0 0.0
    %2849 = vmatprep.subr.mxu0 0.0
    %2850 = vmatpush1.msra.mxu0 0.0
    %2851 = vmatprep.subr.mxu0 0.0
    %2852 = vmatpush1.msra.mxu0 0.0
    %2853 = vmatprep.subr.mxu0 0.0
    %2854 = vmatpush1.msra.mxu0 0.0
    %2855 = vmatprep.subr.mxu0 0.0
    %2856 = vmatpush1.msra.mxu0 0.0
    %2857 = vmatprep.subr.mxu0 0.0
    %2858 = vmatpush1.msra.mxu0 0.0
    %2859 = vmatprep.subr.mxu0 0.0
    %2860 = vmatpush1.msra.mxu0 0.0
    %2861 = vmatprep.subr.mxu0 0.0
    %2862 = vmatpush1.msra.mxu0 0.0
    %2863 = vmatprep.subr.mxu0 0.0
    %2864 = vmatpush1.msra.mxu0 0.0
    %2865 = vmatprep.subr.mxu0 0.0
    %2866 = vmatpush1.msra.mxu0 0.0
    %2867 = vmatprep.subr.mxu0 0.0
    %2868 = vmatpush1.msra.mxu0 0.0
    %2869 = vmatprep.subr.mxu0 0.0
    %2870 = vmatpush1.msra.mxu0 0.0
    %2871 = vmatprep.subr.mxu0 0.0
    %2872 = vmatpush1.msra.mxu0 0.0
    %2873 = vmatprep.subr.mxu0 0.0
    %2874 = vmatpush1.msra.mxu0 0.0
    %2875 = vmatprep.subr.mxu0 0.0
    %2876 = vmatpush1.msra.mxu0 0.0
    %2877 = vmatprep.mubr.f32.mxu0 0.0
    %v2878 = vand.u32 %v2015, 4294901760
    %2879 = vmatmul.mubr.f32.gmra.mrb[0].mxu0 %v2878
    %v2880 = vpop.f32.mrb[0].mxu0
    %v2881 = vadd.f32 %v2803, %v2880
    %v2882 = vpop.f32.mrb[0].mxu0
    %v2883 = vadd.f32 %v2805, %v2882
    %2884 = vdwg.mxu0
    %v2885 = vand.u32 %v2027, 4294901760
    %2886 = vmatprep.subr.mxu0 %v2885
    %v2887 = vand.u32 %v2024, 4294901760
    %2888 = vmatpush1.msra.mxu0 %v2887
    %2889 = vmatprep.subr.mxu0 0.0
    %2890 = vmatpush1.msra.mxu0 0.0
    %2891 = vmatprep.subr.mxu0 0.0
    %2892 = vmatpush1.msra.mxu0 0.0
    %2893 = vmatprep.subr.mxu0 0.0
    %2894 = vmatpush1.msra.mxu0 0.0
    %2895 = vmatprep.subr.mxu0 0.0
    %2896 = vmatpush1.msra.mxu0 0.0
    %2897 = vmatprep.subr.mxu0 0.0
    %2898 = vmatpush1.msra.mxu0 0.0
    %2899 = vmatprep.subr.mxu0 0.0
    %2900 = vmatpush1.msra.mxu0 0.0
    %2901 = vmatprep.subr.mxu0 0.0
    %2902 = vmatpush1.msra.mxu0 0.0
    %2903 = vmatprep.subr.mxu0 0.0
    %2904 = vmatpush1.msra.mxu0 0.0
    %2905 = vmatprep.subr.mxu0 0.0
    %2906 = vmatpush1.msra.mxu0 0.0
    %2907 = vmatprep.subr.mxu0 0.0
    %2908 = vmatpush1.msra.mxu0 0.0
    %2909 = vmatprep.subr.mxu0 0.0
    %2910 = vmatpush1.msra.mxu0 0.0
    %2911 = vmatprep.subr.mxu0 0.0
    %2912 = vmatpush1.msra.mxu0 0.0
    %2913 = vmatprep.subr.mxu0 0.0
    %2914 = vmatpush1.msra.mxu0 0.0
    %2915 = vmatprep.subr.mxu0 0.0
    %2916 = vmatpush1.msra.mxu0 0.0
    %2917 = vmatprep.subr.mxu0 0.0
    %2918 = vmatpush1.msra.mxu0 0.0
    %2919 = vmatprep.subr.mxu0 0.0
    %2920 = vmatpush1.msra.mxu0 0.0
    %2921 = vmatprep.subr.mxu0 0.0
    %2922 = vmatpush1.msra.mxu0 0.0
    %2923 = vmatprep.subr.mxu0 0.0
    %2924 = vmatpush1.msra.mxu0 0.0
    %2925 = vmatprep.subr.mxu0 0.0
    %2926 = vmatpush1.msra.mxu0 0.0
    %2927 = vmatprep.subr.mxu0 0.0
    %2928 = vmatpush1.msra.mxu0 0.0
    %2929 = vmatprep.subr.mxu0 0.0
    %2930 = vmatpush1.msra.mxu0 0.0
    %2931 = vmatprep.subr.mxu0 0.0
    %2932 = vmatpush1.msra.mxu0 0.0
    %2933 = vmatprep.subr.mxu0 0.0
    %2934 = vmatpush1.msra.mxu0 0.0
    %2935 = vmatprep.subr.mxu0 0.0
    %2936 = vmatpush1.msra.mxu0 0.0
    %2937 = vmatprep.subr.mxu0 0.0
    %2938 = vmatpush1.msra.mxu0 0.0
    %2939 = vmatprep.subr.mxu0 0.0
    %2940 = vmatpush1.msra.mxu0 0.0
    %2941 = vmatprep.subr.mxu0 0.0
    %2942 = vmatpush1.msra.mxu0 0.0
    %2943 = vmatprep.subr.mxu0 0.0
    %2944 = vmatpush1.msra.mxu0 0.0
    %2945 = vmatprep.subr.mxu0 0.0
    %2946 = vmatpush1.msra.mxu0 0.0
    %2947 = vmatprep.subr.mxu0 0.0
    %2948 = vmatpush1.msra.mxu0 0.0
    %2949 = vmatprep.subr.mxu0 0.0
    %2950 = vmatpush1.msra.mxu0 0.0
    %2951 = vmatprep.mubr.f32.mxu0 0.0
    %v2952 = vand.u32 %v2015, 4294901760
    %2953 = vmatmul.mubr.f32.gmra.mrb[0].mxu0 %v2952
    %v2954 = vpop.f32.mrb[0].mxu0
    %v2955 = vadd.f32 %v2881, %v2954
    %v2956 = vpop.f32.mrb[0].mxu0
    %v2957 = vadd.f32 %v2883, %v2956
    %2958 = vdwg.mxu0
    %v2959 = vld [vmem:[#allocation2] sm:$0xff]
    %v2960 = vld [vmem:[#allocation2 + $0x8] sm:$0xff]
    %v2961 = vsel %vm33, 1, 0
    %v2962 = vsel %vm34, 1, 0
    %v2963 = vsel %vm35, 1, 0
    %v2964 = vsel %vm36, 1, 0
    %vm2965 = vcmp.eq.s32.totalorder %v2961, 1
    %vm2966 = vcmp.eq.s32.totalorder %v2962, 1
    %vm2967 = vcmp.eq.s32.totalorder %v2963, 1
    %vm2968 = vcmp.eq.s32.totalorder %v2964, 1
    %v2969 = vsel %vm2965, %v2490, 0.0
    %v2970 = vsel %vm2966, %v2492, 0.0
    %v2971 = vsel %vm2967, %v2955, 0.0
    %v2972 = vsel %vm2968, %v2957, 0.0
    %v2977 = vcombine.low %v2969, %v2970
    %v2978 = vcombine.low %v2971, %v2972
    %v2981 = vadd.f32 %v2959, %v2977
    %v2982 = vadd.f32 %v2960, %v2978
    %2983 = vst [vmem:[#allocation2] sm:$0xff] %v2981
    %2984 = vst [vmem:[#allocation2 + $0x8] sm:$0xff] %v2982
    %2985 = vrot.lane.b32.xlu0 %v18, 15
    %v2986 = vpop.permute.xlu0 %2985
    %2987 = vrot.lane.b32.xlu0 %v53, 15
    %v2988 = vpop.permute.xlu0 %2987
    %2989 = vrot.lane.b32.xlu0 %v19, 15
    %v2990 = vpop.permute.xlu0 %2989
    %2991 = vrot.lane.b32.xlu0 %v54, 15
    %v2992 = vpop.permute.xlu0 %2991
    %vm2993 = vcmp.lt.s32.totalorder %v21, 15
    %v2994 = vsel %vm2993, %v2990, %v2992
    %v2995 = vsel %vm2993, %v2988, %v2990
    %v2996 = vsel %vm2993, %v2986, %v2988
    %v2997 = vsel %vm2993, %v2992, %v2986
    %s2998 = scalar_lea.vmem %s1, 8
    %v2999 = vld [vmem:[%s2998] sm:$0xf]
    %v3001 = vsel %vm55, %v2999, 0
    %v3004 = vsel %vm59, %v2997, 0
    %v3007 = vsel %vm59, %v2996, 0
    %v3010 = vsel %vm59, %v2995, 0
    %v3013 = vsel %vm59, %v2994, 0
    %v3015 = vand.u32 %v3007, 4294901760
    %3016 = vmatprep.subr.mxu0 %v3015
    %v3017 = vand.u32 %v3004, 4294901760
    %3018 = vmatpush1.msra.mxu0 %v3017
    %3019 = vmatprep.subr.mxu0 0.0
    %3020 = vmatpush1.msra.mxu0 0.0
    %3021 = vmatprep.subr.mxu0 0.0
    %3022 = vmatpush1.msra.mxu0 0.0
    %3023 = vmatprep.subr.mxu0 0.0
    %3024 = vmatpush1.msra.mxu0 0.0
    %3025 = vmatprep.subr.mxu0 0.0
    %3026 = vmatpush1.msra.mxu0 0.0
    %3027 = vmatprep.subr.mxu0 0.0
    %3028 = vmatpush1.msra.mxu0 0.0
    %3029 = vmatprep.subr.mxu0 0.0
    %3030 = vmatpush1.msra.mxu0 0.0
    %3031 = vmatprep.subr.mxu0 0.0
    %3032 = vmatpush1.msra.mxu0 0.0
    %3033 = vmatprep.subr.mxu0 0.0
    %3034 = vmatpush1.msra.mxu0 0.0
    %3035 = vmatprep.subr.mxu0 0.0
    %3036 = vmatpush1.msra.mxu0 0.0
    %3037 = vmatprep.subr.mxu0 0.0
    %3038 = vmatpush1.msra.mxu0 0.0
    %3039 = vmatprep.subr.mxu0 0.0
    %3040 = vmatpush1.msra.mxu0 0.0
    %3041 = vmatprep.subr.mxu0 0.0
    %3042 = vmatpush1.msra.mxu0 0.0
    %3043 = vmatprep.subr.mxu0 0.0
    %3044 = vmatpush1.msra.mxu0 0.0
    %3045 = vmatprep.subr.mxu0 0.0
    %3046 = vmatpush1.msra.mxu0 0.0
    %3047 = vmatprep.subr.mxu0 0.0
    %3048 = vmatpush1.msra.mxu0 0.0
    %3049 = vmatprep.subr.mxu0 0.0
    %3050 = vmatpush1.msra.mxu0 0.0
    %3051 = vmatprep.subr.mxu0 0.0
    %3052 = vmatpush1.msra.mxu0 0.0
    %3053 = vmatprep.subr.mxu0 0.0
    %3054 = vmatpush1.msra.mxu0 0.0
    %3055 = vmatprep.subr.mxu0 0.0
    %3056 = vmatpush1.msra.mxu0 0.0
    %3057 = vmatprep.subr.mxu0 0.0
    %3058 = vmatpush1.msra.mxu0 0.0
    %3059 = vmatprep.subr.mxu0 0.0
    %3060 = vmatpush1.msra.mxu0 0.0
    %3061 = vmatprep.subr.mxu0 0.0
    %3062 = vmatpush1.msra.mxu0 0.0
    %3063 = vmatprep.subr.mxu0 0.0
    %3064 = vmatpush1.msra.mxu0 0.0
    %3065 = vmatprep.subr.mxu0 0.0
    %3066 = vmatpush1.msra.mxu0 0.0
    %3067 = vmatprep.subr.mxu0 0.0
    %3068 = vmatpush1.msra.mxu0 0.0
    %3069 = vmatprep.subr.mxu0 0.0
    %3070 = vmatpush1.msra.mxu0 0.0
    %3071 = vmatprep.subr.mxu0 0.0
    %3072 = vmatpush1.msra.mxu0 0.0
    %3073 = vmatprep.subr.mxu0 0.0
    %3074 = vmatpush1.msra.mxu0 0.0
    %3075 = vmatprep.subr.mxu0 0.0
    %3076 = vmatpush1.msra.mxu0 0.0
    %3077 = vmatprep.subr.mxu0 0.0
    %3078 = vmatpush1.msra.mxu0 0.0
    %3079 = vmatprep.subr.mxu0 0.0
    %3080 = vmatpush1.msra.mxu0 0.0
    %3081 = vmatprep.mubr.f32.mxu0 0.0
    %v3082 = vand.u32 %v3001, 4294901760
    %v3083 = vsub.f32 %v3001, %v3082
    %v3084 = vand.u32 %v3083, 4294901760
    %v3085 = vsub.f32 %v3083, %v3084
    %v3086 = vand.u32 %v3085, 4294901760
    %3087 = vmatmul.mubr.f32.gmra.mrb[0].mxu0 %v3086
    %v3088 = vpop.f32.mrb[0].mxu0
    %v3089 = vadd.f32 0.0, %v3088
    %v3090 = vpop.f32.mrb[0].mxu0
    %v3091 = vadd.f32 0.0, %v3090
    %3092 = vdwg.mxu0
    %v3093 = vand.u32 %v3007, 4294901760
    %v3094 = vsub.f32 %v3007, %v3093
    %v3095 = vand.u32 %v3094, 4294901760
    %v3096 = vsub.f32 %v3094, %v3095
    %v3097 = vand.u32 %v3096, 4294901760
    %3098 = vmatprep.subr.mxu0 %v3097
    %v3099 = vand.u32 %v3004, 4294901760
    %v3100 = vsub.f32 %v3004, %v3099
    %v3101 = vand.u32 %v3100, 4294901760
    %v3102 = vsub.f32 %v3100, %v3101
    %v3103 = vand.u32 %v3102, 4294901760
    %3104 = vmatpush1.msra.mxu0 %v3103
    %3105 = vmatprep.subr.mxu0 0.0
    %3106 = vmatpush1.msra.mxu0 0.0
    %3107 = vmatprep.subr.mxu0 0.0
    %3108 = vmatpush1.msra.mxu0 0.0
    %3109 = vmatprep.subr.mxu0 0.0
    %3110 = vmatpush1.msra.mxu0 0.0
    %3111 = vmatprep.subr.mxu0 0.0
    %3112 = vmatpush1.msra.mxu0 0.0
    %3113 = vmatprep.subr.mxu0 0.0
    %3114 = vmatpush1.msra.mxu0 0.0
    %3115 = vmatprep.subr.mxu0 0.0
    %3116 = vmatpush1.msra.mxu0 0.0
    %3117 = vmatprep.subr.mxu0 0.0
    %3118 = vmatpush1.msra.mxu0 0.0
    %3119 = vmatprep.subr.mxu0 0.0
    %3120 = vmatpush1.msra.mxu0 0.0
    %3121 = vmatprep.subr.mxu0 0.0
    %3122 = vmatpush1.msra.mxu0 0.0
    %3123 = vmatprep.subr.mxu0 0.0
    %3124 = vmatpush1.msra.mxu0 0.0
    %3125 = vmatprep.subr.mxu0 0.0
    %3126 = vmatpush1.msra.mxu0 0.0
    %3127 = vmatprep.subr.mxu0 0.0
    %3128 = vmatpush1.msra.mxu0 0.0
    %3129 = vmatprep.subr.mxu0 0.0
    %3130 = vmatpush1.msra.mxu0 0.0
    %3131 = vmatprep.subr.mxu0 0.0
    %3132 = vmatpush1.msra.mxu0 0.0
    %3133 = vmatprep.subr.mxu0 0.0
    %3134 = vmatpush1.msra.mxu0 0.0
    %3135 = vmatprep.subr.mxu0 0.0
    %3136 = vmatpush1.msra.mxu0 0.0
    %3137 = vmatprep.subr.mxu0 0.0
    %3138 = vmatpush1.msra.mxu0 0.0
    %3139 = vmatprep.subr.mxu0 0.0
    %3140 = vmatpush1.msra.mxu0 0.0
    %3141 = vmatprep.subr.mxu0 0.0
    %3142 = vmatpush1.msra.mxu0 0.0
    %3143 = vmatprep.subr.mxu0 0.0
    %3144 = vmatpush1.msra.mxu0 0.0
    %3145 = vmatprep.subr.mxu0 0.0
    %3146 = vmatpush1.msra.mxu0 0.0
    %3147 = vmatprep.subr.mxu0 0.0
    %3148 = vmatpush1.msra.mxu0 0.0
    %3149 = vmatprep.subr.mxu0 0.0
    %3150 = vmatpush1.msra.mxu0 0.0
    %3151 = vmatprep.subr.mxu0 0.0
    %3152 = vmatpush1.msra.mxu0 0.0
    %3153 = vmatprep.subr.mxu0 0.0
    %3154 = vmatpush1.msra.mxu0 0.0
    %3155 = vmatprep.subr.mxu0 0.0
    %3156 = vmatpush1.msra.mxu0 0.0
    %3157 = vmatprep.subr.mxu0 0.0
    %3158 = vmatpush1.msra.mxu0 0.0
    %3159 = vmatprep.subr.mxu0 0.0
    %3160 = vmatpush1.msra.mxu0 0.0
    %3161 = vmatprep.subr.mxu0 0.0
    %3162 = vmatpush1.msra.mxu0 0.0
    %3163 = vmatprep.subr.mxu0 0.0
    %3164 = vmatpush1.msra.mxu0 0.0
    %3165 = vmatprep.subr.mxu0 0.0
    %3166 = vmatpush1.msra.mxu0 0.0
    %3167 = vmatprep.mubr.f32.mxu0 0.0
    %v3168 = vand.u32 %v3001, 4294901760
    %3169 = vmatmul.mubr.f32.gmra.mrb[0].mxu0 %v3168
    %v3170 = vpop.f32.mrb[0].mxu0
    %v3171 = vadd.f32 %v3089, %v3170
    %v3172 = vpop.f32.mrb[0].mxu0
    %v3173 = vadd.f32 %v3091, %v3172
    %3174 = vdwg.mxu0
    %v3175 = vand.u32 %v3007, 4294901760
    %v3176 = vsub.f32 %v3007, %v3175
    %3177 = vmatprep.subr.mxu0 %v3176
    %v3178 = vand.u32 %v3004, 4294901760
    %v3179 = vsub.f32 %v3004, %v3178
    %3180 = vmatpush1.msra.mxu0 %v3179
    %3181 = vmatprep.subr.mxu0 0.0
    %3182 = vmatpush1.msra.mxu0 0.0
    %3183 = vmatprep.subr.mxu0 0.0
    %3184 = vmatpush1.msra.mxu0 0.0
    %3185 = vmatprep.subr.mxu0 0.0
    %3186 = vmatpush1.msra.mxu0 0.0
    %3187 = vmatprep.subr.mxu0 0.0
    %3188 = vmatpush1.msra.mxu0 0.0
    %3189 = vmatprep.subr.mxu0 0.0
    %3190 = vmatpush1.msra.mxu0 0.0
    %3191 = vmatprep.subr.mxu0 0.0
    %3192 = vmatpush1.msra.mxu0 0.0
    %3193 = vmatprep.subr.mxu0 0.0
    %3194 = vmatpush1.msra.mxu0 0.0
    %3195 = vmatprep.subr.mxu0 0.0
    %3196 = vmatpush1.msra.mxu0 0.0
    %3197 = vmatprep.subr.mxu0 0.0
    %3198 = vmatpush1.msra.mxu0 0.0
    %3199 = vmatprep.subr.mxu0 0.0
    %3200 = vmatpush1.msra.mxu0 0.0
    %3201 = vmatprep.subr.mxu0 0.0
    %3202 = vmatpush1.msra.mxu0 0.0
    %3203 = vmatprep.subr.mxu0 0.0
    %3204 = vmatpush1.msra.mxu0 0.0
    %3205 = vmatprep.subr.mxu0 0.0
    %3206 = vmatpush1.msra.mxu0 0.0
    %3207 = vmatprep.subr.mxu0 0.0
    %3208 = vmatpush1.msra.mxu0 0.0
    %3209 = vmatprep.subr.mxu0 0.0
    %3210 = vmatpush1.msra.mxu0 0.0
    %3211 = vmatprep.subr.mxu0 0.0
    %3212 = vmatpush1.msra.mxu0 0.0
    %3213 = vmatprep.subr.mxu0 0.0
    %3214 = vmatpush1.msra.mxu0 0.0
    %3215 = vmatprep.subr.mxu0 0.0
    %3216 = vmatpush1.msra.mxu0 0.0
    %3217 = vmatprep.subr.mxu0 0.0
    %3218 = vmatpush1.msra.mxu0 0.0
    %3219 = vmatprep.subr.mxu0 0.0
    %3220 = vmatpush1.msra.mxu0 0.0
    %3221 = vmatprep.subr.mxu0 0.0
    %3222 = vmatpush1.msra.mxu0 0.0
    %3223 = vmatprep.subr.mxu0 0.0
    %3224 = vmatpush1.msra.mxu0 0.0
    %3225 = vmatprep.subr.mxu0 0.0
    %3226 = vmatpush1.msra.mxu0 0.0
    %3227 = vmatprep.subr.mxu0 0.0
    %3228 = vmatpush1.msra.mxu0 0.0
    %3229 = vmatprep.subr.mxu0 0.0
    %3230 = vmatpush1.msra.mxu0 0.0
    %3231 = vmatprep.subr.mxu0 0.0
    %3232 = vmatpush1.msra.mxu0 0.0
    %3233 = vmatprep.subr.mxu0 0.0
    %3234 = vmatpush1.msra.mxu0 0.0
    %3235 = vmatprep.subr.mxu0 0.0
    %3236 = vmatpush1.msra.mxu0 0.0
    %3237 = vmatprep.subr.mxu0 0.0
    %3238 = vmatpush1.msra.mxu0 0.0
    %3239 = vmatprep.subr.mxu0 0.0
    %3240 = vmatpush1.msra.mxu0 0.0
    %3241 = vmatprep.subr.mxu0 0.0
    %3242 = vmatpush1.msra.mxu0 0.0
    %3243 = vmatprep.mubr.f32.mxu0 0.0
    %v3244 = vand.u32 %v3001, 4294901760
    %v3245 = vsub.f32 %v3001, %v3244
    %3246 = vmatmul.mubr.f32.gmra.mrb[0].mxu0 %v3245
    %v3247 = vpop.f32.mrb[0].mxu0
    %v3248 = vadd.f32 %v3171, %v3247
    %v3249 = vpop.f32.mrb[0].mxu0
    %v3250 = vadd.f32 %v3173, %v3249
    %3251 = vdwg.mxu0
    %v3252 = vand.u32 %v3007, 4294901760
    %3253 = vmatprep.subr.mxu0 %v3252
    %v3254 = vand.u32 %v3004, 4294901760
    %3255 = vmatpush1.msra.mxu0 %v3254
    %3256 = vmatprep.subr.mxu0 0.0
    %3257 = vmatpush1.msra.mxu0 0.0
    %3258 = vmatprep.subr.mxu0 0.0
    %3259 = vmatpush1.msra.mxu0 0.0
    %3260 = vmatprep.subr.mxu0 0.0
    %3261 = vmatpush1.msra.mxu0 0.0
    %3262 = vmatprep.subr.mxu0 0.0
    %3263 = vmatpush1.msra.mxu0 0.0
    %3264 = vmatprep.subr.mxu0 0.0
    %3265 = vmatpush1.msra.mxu0 0.0
    %3266 = vmatprep.subr.mxu0 0.0
    %3267 = vmatpush1.msra.mxu0 0.0
    %3268 = vmatprep.subr.mxu0 0.0
    %3269 = vmatpush1.msra.mxu0 0.0
    %3270 = vmatprep.subr.mxu0 0.0
    %3271 = vmatpush1.msra.mxu0 0.0
    %3272 = vmatprep.subr.mxu0 0.0
    %3273 = vmatpush1.msra.mxu0 0.0
    %3274 = vmatprep.subr.mxu0 0.0
    %3275 = vmatpush1.msra.mxu0 0.0
    %3276 = vmatprep.subr.mxu0 0.0
    %3277 = vmatpush1.msra.mxu0 0.0
    %3278 = vmatprep.subr.mxu0 0.0
    %3279 = vmatpush1.msra.mxu0 0.0
    %3280 = vmatprep.subr.mxu0 0.0
    %3281 = vmatpush1.msra.mxu0 0.0
    %3282 = vmatprep.subr.mxu0 0.0
    %3283 = vmatpush1.msra.mxu0 0.0
    %3284 = vmatprep.subr.mxu0 0.0
    %3285 = vmatpush1.msra.mxu0 0.0
    %3286 = vmatprep.subr.mxu0 0.0
    %3287 = vmatpush1.msra.mxu0 0.0
    %3288 = vmatprep.subr.mxu0 0.0
    %3289 = vmatpush1.msra.mxu0 0.0
    %3290 = vmatprep.subr.mxu0 0.0
    %3291 = vmatpush1.msra.mxu0 0.0
    %3292 = vmatprep.subr.mxu0 0.0
    %3293 = vmatpush1.msra.mxu0 0.0
    %3294 = vmatprep.subr.mxu0 0.0
    %3295 = vmatpush1.msra.mxu0 0.0
    %3296 = vmatprep.subr.mxu0 0.0
    %3297 = vmatpush1.msra.mxu0 0.0
    %3298 = vmatprep.subr.mxu0 0.0
    %3299 = vmatpush1.msra.mxu0 0.0
    %3300 = vmatprep.subr.mxu0 0.0
    %3301 = vmatpush1.msra.mxu0 0.0
    %3302 = vmatprep.subr.mxu0 0.0
    %3303 = vmatpush1.msra.mxu0 0.0
    %3304 = vmatprep.subr.mxu0 0.0
    %3305 = vmatpush1.msra.mxu0 0.0
    %3306 = vmatprep.subr.mxu0 0.0
    %3307 = vmatpush1.msra.mxu0 0.0
    %3308 = vmatprep.subr.mxu0 0.0
    %3309 = vmatpush1.msra.mxu0 0.0
    %3310 = vmatprep.subr.mxu0 0.0
    %3311 = vmatpush1.msra.mxu0 0.0
    %3312 = vmatprep.subr.mxu0 0.0
    %3313 = vmatpush1.msra.mxu0 0.0
    %3314 = vmatprep.subr.mxu0 0.0
    %3315 = vmatpush1.msra.mxu0 0.0
    %3316 = vmatprep.subr.mxu0 0.0
    %3317 = vmatpush1.msra.mxu0 0.0
    %3318 = vmatprep.mubr.f32.mxu0 0.0
    %v3319 = vand.u32 %v3001, 4294901760
    %v3320 = vsub.f32 %v3001, %v3319
    %v3321 = vand.u32 %v3320, 4294901760
    %3322 = vmatmul.mubr.f32.gmra.mrb[0].mxu0 %v3321
    %v3323 = vpop.f32.mrb[0].mxu0
    %v3324 = vadd.f32 %v3248, %v3323
    %v3325 = vpop.f32.mrb[0].mxu0
    %v3326 = vadd.f32 %v3250, %v3325
    %3327 = vdwg.mxu0
    %v3328 = vand.u32 %v3007, 4294901760
    %v3329 = vsub.f32 %v3007, %v3328
    %v3330 = vand.u32 %v3329, 4294901760
    %3331 = vmatprep.subr.mxu0 %v3330
    %v3332 = vand.u32 %v3004, 4294901760
    %v3333 = vsub.f32 %v3004, %v3332
    %v3334 = vand.u32 %v3333, 4294901760
    %3335 = vmatpush1.msra.mxu0 %v3334
    %3336 = vmatprep.subr.mxu0 0.0
    %3337 = vmatpush1.msra.mxu0 0.0
    %3338 = vmatprep.subr.mxu0 0.0
    %3339 = vmatpush1.msra.mxu0 0.0
    %3340 = vmatprep.subr.mxu0 0.0
    %3341 = vmatpush1.msra.mxu0 0.0
    %3342 = vmatprep.subr.mxu0 0.0
    %3343 = vmatpush1.msra.mxu0 0.0
    %3344 = vmatprep.subr.mxu0 0.0
    %3345 = vmatpush1.msra.mxu0 0.0
    %3346 = vmatprep.subr.mxu0 0.0
    %3347 = vmatpush1.msra.mxu0 0.0
    %3348 = vmatprep.subr.mxu0 0.0
    %3349 = vmatpush1.msra.mxu0 0.0
    %3350 = vmatprep.subr.mxu0 0.0
    %3351 = vmatpush1.msra.mxu0 0.0
    %3352 = vmatprep.subr.mxu0 0.0
    %3353 = vmatpush1.msra.mxu0 0.0
    %3354 = vmatprep.subr.mxu0 0.0
    %3355 = vmatpush1.msra.mxu0 0.0
    %3356 = vmatprep.subr.mxu0 0.0
    %3357 = vmatpush1.msra.mxu0 0.0
    %3358 = vmatprep.subr.mxu0 0.0
    %3359 = vmatpush1.msra.mxu0 0.0
    %3360 = vmatprep.subr.mxu0 0.0
    %3361 = vmatpush1.msra.mxu0 0.0
    %3362 = vmatprep.subr.mxu0 0.0
    %3363 = vmatpush1.msra.mxu0 0.0
    %3364 = vmatprep.subr.mxu0 0.0
    %3365 = vmatpush1.msra.mxu0 0.0
    %3366 = vmatprep.subr.mxu0 0.0
    %3367 = vmatpush1.msra.mxu0 0.0
    %3368 = vmatprep.subr.mxu0 0.0
    %3369 = vmatpush1.msra.mxu0 0.0
    %3370 = vmatprep.subr.mxu0 0.0
    %3371 = vmatpush1.msra.mxu0 0.0
    %3372 = vmatprep.subr.mxu0 0.0
    %3373 = vmatpush1.msra.mxu0 0.0
    %3374 = vmatprep.subr.mxu0 0.0
    %3375 = vmatpush1.msra.mxu0 0.0
    %3376 = vmatprep.subr.mxu0 0.0
    %3377 = vmatpush1.msra.mxu0 0.0
    %3378 = vmatprep.subr.mxu0 0.0
    %3379 = vmatpush1.msra.mxu0 0.0
    %3380 = vmatprep.subr.mxu0 0.0
    %3381 = vmatpush1.msra.mxu0 0.0
    %3382 = vmatprep.subr.mxu0 0.0
    %3383 = vmatpush1.msra.mxu0 0.0
    %3384 = vmatprep.subr.mxu0 0.0
    %3385 = vmatpush1.msra.mxu0 0.0
    %3386 = vmatprep.subr.mxu0 0.0
    %3387 = vmatpush1.msra.mxu0 0.0
    %3388 = vmatprep.subr.mxu0 0.0
    %3389 = vmatpush1.msra.mxu0 0.0
    %3390 = vmatprep.subr.mxu0 0.0
    %3391 = vmatpush1.msra.mxu0 0.0
    %3392 = vmatprep.subr.mxu0 0.0
    %3393 = vmatpush1.msra.mxu0 0.0
    %3394 = vmatprep.subr.mxu0 0.0
    %3395 = vmatpush1.msra.mxu0 0.0
    %3396 = vmatprep.subr.mxu0 0.0
    %3397 = vmatpush1.msra.mxu0 0.0
    %3398 = vmatprep.mubr.f32.mxu0 0.0
    %v3399 = vand.u32 %v3001, 4294901760
    %3400 = vmatmul.mubr.f32.gmra.mrb[0].mxu0 %v3399
    %v3401 = vpop.f32.mrb[0].mxu0
    %v3402 = vadd.f32 %v3324, %v3401
    %v3403 = vpop.f32.mrb[0].mxu0
    %v3404 = vadd.f32 %v3326, %v3403
    %3405 = vdwg.mxu0
    %v3406 = vand.u32 %v3007, 4294901760
    %3407 = vmatprep.subr.mxu0 %v3406
    %v3408 = vand.u32 %v3004, 4294901760
    %3409 = vmatpush1.msra.mxu0 %v3408
    %3410 = vmatprep.subr.mxu0 0.0
    %3411 = vmatpush1.msra.mxu0 0.0
    %3412 = vmatprep.subr.mxu0 0.0
    %3413 = vmatpush1.msra.mxu0 0.0
    %3414 = vmatprep.subr.mxu0 0.0
    %3415 = vmatpush1.msra.mxu0 0.0
    %3416 = vmatprep.subr.mxu0 0.0
    %3417 = vmatpush1.msra.mxu0 0.0
    %3418 = vmatprep.subr.mxu0 0.0
    %3419 = vmatpush1.msra.mxu0 0.0
    %3420 = vmatprep.subr.mxu0 0.0
    %3421 = vmatpush1.msra.mxu0 0.0
    %3422 = vmatprep.subr.mxu0 0.0
    %3423 = vmatpush1.msra.mxu0 0.0
    %3424 = vmatprep.subr.mxu0 0.0
    %3425 = vmatpush1.msra.mxu0 0.0
    %3426 = vmatprep.subr.mxu0 0.0
    %3427 = vmatpush1.msra.mxu0 0.0
    %3428 = vmatprep.subr.mxu0 0.0
    %3429 = vmatpush1.msra.mxu0 0.0
    %3430 = vmatprep.subr.mxu0 0.0
    %3431 = vmatpush1.msra.mxu0 0.0
    %3432 = vmatprep.subr.mxu0 0.0
    %3433 = vmatpush1.msra.mxu0 0.0
    %3434 = vmatprep.subr.mxu0 0.0
    %3435 = vmatpush1.msra.mxu0 0.0
    %3436 = vmatprep.subr.mxu0 0.0
    %3437 = vmatpush1.msra.mxu0 0.0
    %3438 = vmatprep.subr.mxu0 0.0
    %3439 = vmatpush1.msra.mxu0 0.0
    %3440 = vmatprep.subr.mxu0 0.0
    %3441 = vmatpush1.msra.mxu0 0.0
    %3442 = vmatprep.subr.mxu0 0.0
    %3443 = vmatpush1.msra.mxu0 0.0
    %3444 = vmatprep.subr.mxu0 0.0
    %3445 = vmatpush1.msra.mxu0 0.0
    %3446 = vmatprep.subr.mxu0 0.0
    %3447 = vmatpush1.msra.mxu0 0.0
    %3448 = vmatprep.subr.mxu0 0.0
    %3449 = vmatpush1.msra.mxu0 0.0
    %3450 = vmatprep.subr.mxu0 0.0
    %3451 = vmatpush1.msra.mxu0 0.0
    %3452 = vmatprep.subr.mxu0 0.0
    %3453 = vmatpush1.msra.mxu0 0.0
    %3454 = vmatprep.subr.mxu0 0.0
    %3455 = vmatpush1.msra.mxu0 0.0
    %3456 = vmatprep.subr.mxu0 0.0
    %3457 = vmatpush1.msra.mxu0 0.0
    %3458 = vmatprep.subr.mxu0 0.0
    %3459 = vmatpush1.msra.mxu0 0.0
    %3460 = vmatprep.subr.mxu0 0.0
    %3461 = vmatpush1.msra.mxu0 0.0
    %3462 = vmatprep.subr.mxu0 0.0
    %3463 = vmatpush1.msra.mxu0 0.0
    %3464 = vmatprep.subr.mxu0 0.0
    %3465 = vmatpush1.msra.mxu0 0.0
    %3466 = vmatprep.subr.mxu0 0.0
    %3467 = vmatpush1.msra.mxu0 0.0
    %3468 = vmatprep.subr.mxu0 0.0
    %3469 = vmatpush1.msra.mxu0 0.0
    %3470 = vmatprep.subr.mxu0 0.0
    %3471 = vmatpush1.msra.mxu0 0.0
    %3472 = vmatprep.mubr.f32.mxu0 0.0
    %v3473 = vand.u32 %v3001, 4294901760
    %3474 = vmatmul.mubr.f32.gmra.mrb[0].mxu0 %v3473
    %v3475 = vpop.f32.mrb[0].mxu0
    %v3476 = vadd.f32 %v3402, %v3475
    %v3477 = vpop.f32.mrb[0].mxu0
    %v3478 = vadd.f32 %v3404, %v3477
    %3479 = vdwg.mxu0
    %v3480 = vand.u32 %v3013, 4294901760
    %3481 = vmatprep.subr.mxu0 %v3480
    %v3482 = vand.u32 %v3010, 4294901760
    %3483 = vmatpush1.msra.mxu0 %v3482
    %3484 = vmatprep.subr.mxu0 0.0
    %3485 = vmatpush1.msra.mxu0 0.0
    %3486 = vmatprep.subr.mxu0 0.0
    %3487 = vmatpush1.msra.mxu0 0.0
    %3488 = vmatprep.subr.mxu0 0.0
    %3489 = vmatpush1.msra.mxu0 0.0
    %3490 = vmatprep.subr.mxu0 0.0
    %3491 = vmatpush1.msra.mxu0 0.0
    %3492 = vmatprep.subr.mxu0 0.0
    %3493 = vmatpush1.msra.mxu0 0.0
    %3494 = vmatprep.subr.mxu0 0.0
    %3495 = vmatpush1.msra.mxu0 0.0
    %3496 = vmatprep.subr.mxu0 0.0
    %3497 = vmatpush1.msra.mxu0 0.0
    %3498 = vmatprep.subr.mxu0 0.0
    %3499 = vmatpush1.msra.mxu0 0.0
    %3500 = vmatprep.subr.mxu0 0.0
    %3501 = vmatpush1.msra.mxu0 0.0
    %3502 = vmatprep.subr.mxu0 0.0
    %3503 = vmatpush1.msra.mxu0 0.0
    %3504 = vmatprep.subr.mxu0 0.0
    %3505 = vmatpush1.msra.mxu0 0.0
    %3506 = vmatprep.subr.mxu0 0.0
    %3507 = vmatpush1.msra.mxu0 0.0
    %3508 = vmatprep.subr.mxu0 0.0
    %3509 = vmatpush1.msra.mxu0 0.0
    %3510 = vmatprep.subr.mxu0 0.0
    %3511 = vmatpush1.msra.mxu0 0.0
    %3512 = vmatprep.subr.mxu0 0.0
    %3513 = vmatpush1.msra.mxu0 0.0
    %3514 = vmatprep.subr.mxu0 0.0
    %3515 = vmatpush1.msra.mxu0 0.0
    %3516 = vmatprep.subr.mxu0 0.0
    %3517 = vmatpush1.msra.mxu0 0.0
    %3518 = vmatprep.subr.mxu0 0.0
    %3519 = vmatpush1.msra.mxu0 0.0
    %3520 = vmatprep.subr.mxu0 0.0
    %3521 = vmatpush1.msra.mxu0 0.0
    %3522 = vmatprep.subr.mxu0 0.0
    %3523 = vmatpush1.msra.mxu0 0.0
    %3524 = vmatprep.subr.mxu0 0.0
    %3525 = vmatpush1.msra.mxu0 0.0
    %3526 = vmatprep.subr.mxu0 0.0
    %3527 = vmatpush1.msra.mxu0 0.0
    %3528 = vmatprep.subr.mxu0 0.0
    %3529 = vmatpush1.msra.mxu0 0.0
    %3530 = vmatprep.subr.mxu0 0.0
    %3531 = vmatpush1.msra.mxu0 0.0
    %3532 = vmatprep.subr.mxu0 0.0
    %3533 = vmatpush1.msra.mxu0 0.0
    %3534 = vmatprep.subr.mxu0 0.0
    %3535 = vmatpush1.msra.mxu0 0.0
    %3536 = vmatprep.subr.mxu0 0.0
    %3537 = vmatpush1.msra.mxu0 0.0
    %3538 = vmatprep.subr.mxu0 0.0
    %3539 = vmatpush1.msra.mxu0 0.0
    %3540 = vmatprep.subr.mxu0 0.0
    %3541 = vmatpush1.msra.mxu0 0.0
    %3542 = vmatprep.subr.mxu0 0.0
    %3543 = vmatpush1.msra.mxu0 0.0
    %3544 = vmatprep.subr.mxu0 0.0
    %3545 = vmatpush1.msra.mxu0 0.0
    %3546 = vmatprep.mubr.f32.mxu0 0.0
    %v3547 = vand.u32 %v3001, 4294901760
    %v3548 = vsub.f32 %v3001, %v3547
    %v3549 = vand.u32 %v3548, 4294901760
    %v3550 = vsub.f32 %v3548, %v3549
    %v3551 = vand.u32 %v3550, 4294901760
    %3552 = vmatmul.mubr.f32.gmra.mrb[0].mxu0 %v3551
    %v3553 = vpop.f32.mrb[0].mxu0
    %v3554 = vadd.f32 0.0, %v3553
    %v3555 = vpop.f32.mrb[0].mxu0
    %v3556 = vadd.f32 0.0, %v3555
    %3557 = vdwg.mxu0
    %v3558 = vand.u32 %v3013, 4294901760
    %v3559 = vsub.f32 %v3013, %v3558
    %v3560 = vand.u32 %v3559, 4294901760
    %v3561 = vsub.f32 %v3559, %v3560
    %v3562 = vand.u32 %v3561, 4294901760
    %3563 = vmatprep.subr.mxu0 %v3562
    %v3564 = vand.u32 %v3010, 4294901760
    %v3565 = vsub.f32 %v3010, %v3564
    %v3566 = vand.u32 %v3565, 4294901760
    %v3567 = vsub.f32 %v3565, %v3566
    %v3568 = vand.u32 %v3567, 4294901760
    %3569 = vmatpush1.msra.mxu0 %v3568
    %3570 = vmatprep.subr.mxu0 0.0
    %3571 = vmatpush1.msra.mxu0 0.0
    %3572 = vmatprep.subr.mxu0 0.0
    %3573 = vmatpush1.msra.mxu0 0.0
    %3574 = vmatprep.subr.mxu0 0.0
    %3575 = vmatpush1.msra.mxu0 0.0
    %3576 = vmatprep.subr.mxu0 0.0
    %3577 = vmatpush1.msra.mxu0 0.0
    %3578 = vmatprep.subr.mxu0 0.0
    %3579 = vmatpush1.msra.mxu0 0.0
    %3580 = vmatprep.subr.mxu0 0.0
    %3581 = vmatpush1.msra.mxu0 0.0
    %3582 = vmatprep.subr.mxu0 0.0
    %3583 = vmatpush1.msra.mxu0 0.0
    %3584 = vmatprep.subr.mxu0 0.0
    %3585 = vmatpush1.msra.mxu0 0.0
    %3586 = vmatprep.subr.mxu0 0.0
    %3587 = vmatpush1.msra.mxu0 0.0
    %3588 = vmatprep.subr.mxu0 0.0
    %3589 = vmatpush1.msra.mxu0 0.0
    %3590 = vmatprep.subr.mxu0 0.0
    %3591 = vmatpush1.msra.mxu0 0.0
    %3592 = vmatprep.subr.mxu0 0.0
    %3593 = vmatpush1.msra.mxu0 0.0
    %3594 = vmatprep.subr.mxu0 0.0
    %3595 = vmatpush1.msra.mxu0 0.0
    %3596 = vmatprep.subr.mxu0 0.0
    %3597 = vmatpush1.msra.mxu0 0.0
    %3598 = vmatprep.subr.mxu0 0.0
    %3599 = vmatpush1.msra.mxu0 0.0
    %3600 = vmatprep.subr.mxu0 0.0
    %3601 = vmatpush1.msra.mxu0 0.0
    %3602 = vmatprep.subr.mxu0 0.0
    %3603 = vmatpush1.msra.mxu0 0.0
    %3604 = vmatprep.subr.mxu0 0.0
    %3605 = vmatpush1.msra.mxu0 0.0
    %3606 = vmatprep.subr.mxu0 0.0
    %3607 = vmatpush1.msra.mxu0 0.0
    %3608 = vmatprep.subr.mxu0 0.0
    %3609 = vmatpush1.msra.mxu0 0.0
    %3610 = vmatprep.subr.mxu0 0.0
    %3611 = vmatpush1.msra.mxu0 0.0
    %3612 = vmatprep.subr.mxu0 0.0
    %3613 = vmatpush1.msra.mxu0 0.0
    %3614 = vmatprep.subr.mxu0 0.0
    %3615 = vmatpush1.msra.mxu0 0.0
    %3616 = vmatprep.subr.mxu0 0.0
    %3617 = vmatpush1.msra.mxu0 0.0
    %3618 = vmatprep.subr.mxu0 0.0
    %3619 = vmatpush1.msra.mxu0 0.0
    %3620 = vmatprep.subr.mxu0 0.0
    %3621 = vmatpush1.msra.mxu0 0.0
    %3622 = vmatprep.subr.mxu0 0.0
    %3623 = vmatpush1.msra.mxu0 0.0
    %3624 = vmatprep.subr.mxu0 0.0
    %3625 = vmatpush1.msra.mxu0 0.0
    %3626 = vmatprep.subr.mxu0 0.0
    %3627 = vmatpush1.msra.mxu0 0.0
    %3628 = vmatprep.subr.mxu0 0.0
    %3629 = vmatpush1.msra.mxu0 0.0
    %3630 = vmatprep.subr.mxu0 0.0
    %3631 = vmatpush1.msra.mxu0 0.0
    %3632 = vmatprep.mubr.f32.mxu0 0.0
    %v3633 = vand.u32 %v3001, 4294901760
    %3634 = vmatmul.mubr.f32.gmra.mrb[0].mxu0 %v3633
    %v3635 = vpop.f32.mrb[0].mxu0
    %v3636 = vadd.f32 %v3554, %v3635
    %v3637 = vpop.f32.mrb[0].mxu0
    %v3638 = vadd.f32 %v3556, %v3637
    %3639 = vdwg.mxu0
    %v3640 = vand.u32 %v3013, 4294901760
    %v3641 = vsub.f32 %v3013, %v3640
    %3642 = vmatprep.subr.mxu0 %v3641
    %v3643 = vand.u32 %v3010, 4294901760
    %v3644 = vsub.f32 %v3010, %v3643
    %3645 = vmatpush1.msra.mxu0 %v3644
    %3646 = vmatprep.subr.mxu0 0.0
    %3647 = vmatpush1.msra.mxu0 0.0
    %3648 = vmatprep.subr.mxu0 0.0
    %3649 = vmatpush1.msra.mxu0 0.0
    %3650 = vmatprep.subr.mxu0 0.0
    %3651 = vmatpush1.msra.mxu0 0.0
    %3652 = vmatprep.subr.mxu0 0.0
    %3653 = vmatpush1.msra.mxu0 0.0
    %3654 = vmatprep.subr.mxu0 0.0
    %3655 = vmatpush1.msra.mxu0 0.0
    %3656 = vmatprep.subr.mxu0 0.0
    %3657 = vmatpush1.msra.mxu0 0.0
    %3658 = vmatprep.subr.mxu0 0.0
    %3659 = vmatpush1.msra.mxu0 0.0
    %3660 = vmatprep.subr.mxu0 0.0
    %3661 = vmatpush1.msra.mxu0 0.0
    %3662 = vmatprep.subr.mxu0 0.0
    %3663 = vmatpush1.msra.mxu0 0.0
    %3664 = vmatprep.subr.mxu0 0.0
    %3665 = vmatpush1.msra.mxu0 0.0
    %3666 = vmatprep.subr.mxu0 0.0
    %3667 = vmatpush1.msra.mxu0 0.0
    %3668 = vmatprep.subr.mxu0 0.0
    %3669 = vmatpush1.msra.mxu0 0.0
    %3670 = vmatprep.subr.mxu0 0.0
    %3671 = vmatpush1.msra.mxu0 0.0
    %3672 = vmatprep.subr.mxu0 0.0
    %3673 = vmatpush1.msra.mxu0 0.0
    %3674 = vmatprep.subr.mxu0 0.0
    %3675 = vmatpush1.msra.mxu0 0.0
    %3676 = vmatprep.subr.mxu0 0.0
    %3677 = vmatpush1.msra.mxu0 0.0
    %3678 = vmatprep.subr.mxu0 0.0
    %3679 = vmatpush1.msra.mxu0 0.0
    %3680 = vmatprep.subr.mxu0 0.0
    %3681 = vmatpush1.msra.mxu0 0.0
    %3682 = vmatprep.subr.mxu0 0.0
    %3683 = vmatpush1.msra.mxu0 0.0
    %3684 = vmatprep.subr.mxu0 0.0
    %3685 = vmatpush1.msra.mxu0 0.0
    %3686 = vmatprep.subr.mxu0 0.0
    %3687 = vmatpush1.msra.mxu0 0.0
    %3688 = vmatprep.subr.mxu0 0.0
    %3689 = vmatpush1.msra.mxu0 0.0
    %3690 = vmatprep.subr.mxu0 0.0
    %3691 = vmatpush1.msra.mxu0 0.0
    %3692 = vmatprep.subr.mxu0 0.0
    %3693 = vmatpush1.msra.mxu0 0.0
    %3694 = vmatprep.subr.mxu0 0.0
    %3695 = vmatpush1.msra.mxu0 0.0
    %3696 = vmatprep.subr.mxu0 0.0
    %3697 = vmatpush1.msra.mxu0 0.0
    %3698 = vmatprep.subr.mxu0 0.0
    %3699 = vmatpush1.msra.mxu0 0.0
    %3700 = vmatprep.subr.mxu0 0.0
    %3701 = vmatpush1.msra.mxu0 0.0
    %3702 = vmatprep.subr.mxu0 0.0
    %3703 = vmatpush1.msra.mxu0 0.0
    %3704 = vmatprep.subr.mxu0 0.0
    %3705 = vmatpush1.msra.mxu0 0.0
    %3706 = vmatprep.subr.mxu0 0.0
    %3707 = vmatpush1.msra.mxu0 0.0
    %3708 = vmatprep.mubr.f32.mxu0 0.0
    %v3709 = vand.u32 %v3001, 4294901760
    %v3710 = vsub.f32 %v3001, %v3709
    %3711 = vmatmul.mubr.f32.gmra.mrb[0].mxu0 %v3710
    %v3712 = vpop.f32.mrb[0].mxu0
    %v3713 = vadd.f32 %v3636, %v3712
    %v3714 = vpop.f32.mrb[0].mxu0
    %v3715 = vadd.f32 %v3638, %v3714
    %3716 = vdwg.mxu0
    %v3717 = vand.u32 %v3013, 4294901760
    %3718 = vmatprep.subr.mxu0 %v3717
    %v3719 = vand.u32 %v3010, 4294901760
    %3720 = vmatpush1.msra.mxu0 %v3719
    %3721 = vmatprep.subr.mxu0 0.0
    %3722 = vmatpush1.msra.mxu0 0.0
    %3723 = vmatprep.subr.mxu0 0.0
    %3724 = vmatpush1.msra.mxu0 0.0
    %3725 = vmatprep.subr.mxu0 0.0
    %3726 = vmatpush1.msra.mxu0 0.0
    %3727 = vmatprep.subr.mxu0 0.0
    %3728 = vmatpush1.msra.mxu0 0.0
    %3729 = vmatprep.subr.mxu0 0.0
    %3730 = vmatpush1.msra.mxu0 0.0
    %3731 = vmatprep.subr.mxu0 0.0
    %3732 = vmatpush1.msra.mxu0 0.0
    %3733 = vmatprep.subr.mxu0 0.0
    %3734 = vmatpush1.msra.mxu0 0.0
    %3735 = vmatprep.subr.mxu0 0.0
    %3736 = vmatpush1.msra.mxu0 0.0
    %3737 = vmatprep.subr.mxu0 0.0
    %3738 = vmatpush1.msra.mxu0 0.0
    %3739 = vmatprep.subr.mxu0 0.0
    %3740 = vmatpush1.msra.mxu0 0.0
    %3741 = vmatprep.subr.mxu0 0.0
    %3742 = vmatpush1.msra.mxu0 0.0
    %3743 = vmatprep.subr.mxu0 0.0
    %3744 = vmatpush1.msra.mxu0 0.0
    %3745 = vmatprep.subr.mxu0 0.0
    %3746 = vmatpush1.msra.mxu0 0.0
    %3747 = vmatprep.subr.mxu0 0.0
    %3748 = vmatpush1.msra.mxu0 0.0
    %3749 = vmatprep.subr.mxu0 0.0
    %3750 = vmatpush1.msra.mxu0 0.0
    %3751 = vmatprep.subr.mxu0 0.0
    %3752 = vmatpush1.msra.mxu0 0.0
    %3753 = vmatprep.subr.mxu0 0.0
    %3754 = vmatpush1.msra.mxu0 0.0
    %3755 = vmatprep.subr.mxu0 0.0
    %3756 = vmatpush1.msra.mxu0 0.0
    %3757 = vmatprep.subr.mxu0 0.0
    %3758 = vmatpush1.msra.mxu0 0.0
    %3759 = vmatprep.subr.mxu0 0.0
    %3760 = vmatpush1.msra.mxu0 0.0
    %3761 = vmatprep.subr.mxu0 0.0
    %3762 = vmatpush1.msra.mxu0 0.0
    %3763 = vmatprep.subr.mxu0 0.0
    %3764 = vmatpush1.msra.mxu0 0.0
    %3765 = vmatprep.subr.mxu0 0.0
    %3766 = vmatpush1.msra.mxu0 0.0
    %3767 = vmatprep.subr.mxu0 0.0
    %3768 = vmatpush1.msra.mxu0 0.0
    %3769 = vmatprep.subr.mxu0 0.0
    %3770 = vmatpush1.msra.mxu0 0.0
    %3771 = vmatprep.subr.mxu0 0.0
    %3772 = vmatpush1.msra.mxu0 0.0
    %3773 = vmatprep.subr.mxu0 0.0
    %3774 = vmatpush1.msra.mxu0 0.0
    %3775 = vmatprep.subr.mxu0 0.0
    %3776 = vmatpush1.msra.mxu0 0.0
    %3777 = vmatprep.subr.mxu0 0.0
    %3778 = vmatpush1.msra.mxu0 0.0
    %3779 = vmatprep.subr.mxu0 0.0
    %3780 = vmatpush1.msra.mxu0 0.0
    %3781 = vmatprep.subr.mxu0 0.0
    %3782 = vmatpush1.msra.mxu0 0.0
    %3783 = vmatprep.mubr.f32.mxu0 0.0
    %v3784 = vand.u32 %v3001, 4294901760
    %v3785 = vsub.f32 %v3001, %v3784
    %v3786 = vand.u32 %v3785, 4294901760
    %3787 = vmatmul.mubr.f32.gmra.mrb[0].mxu0 %v3786
    %v3788 = vpop.f32.mrb[0].mxu0
    %v3789 = vadd.f32 %v3713, %v3788
    %v3790 = vpop.f32.mrb[0].mxu0
    %v3791 = vadd.f32 %v3715, %v3790
    %3792 = vdwg.mxu0
    %v3793 = vand.u32 %v3013, 4294901760
    %v3794 = vsub.f32 %v3013, %v3793
    %v3795 = vand.u32 %v3794, 4294901760
    %3796 = vmatprep.subr.mxu0 %v3795
    %v3797 = vand.u32 %v3010, 4294901760
    %v3798 = vsub.f32 %v3010, %v3797
    %v3799 = vand.u32 %v3798, 4294901760
    %3800 = vmatpush1.msra.mxu0 %v3799
    %3801 = vmatprep.subr.mxu0 0.0
    %3802 = vmatpush1.msra.mxu0 0.0
    %3803 = vmatprep.subr.mxu0 0.0
    %3804 = vmatpush1.msra.mxu0 0.0
    %3805 = vmatprep.subr.mxu0 0.0
    %3806 = vmatpush1.msra.mxu0 0.0
    %3807 = vmatprep.subr.mxu0 0.0
    %3808 = vmatpush1.msra.mxu0 0.0
    %3809 = vmatprep.subr.mxu0 0.0
    %3810 = vmatpush1.msra.mxu0 0.0
    %3811 = vmatprep.subr.mxu0 0.0
    %3812 = vmatpush1.msra.mxu0 0.0
    %3813 = vmatprep.subr.mxu0 0.0
    %3814 = vmatpush1.msra.mxu0 0.0
    %3815 = vmatprep.subr.mxu0 0.0
    %3816 = vmatpush1.msra.mxu0 0.0
    %3817 = vmatprep.subr.mxu0 0.0
    %3818 = vmatpush1.msra.mxu0 0.0
    %3819 = vmatprep.subr.mxu0 0.0
    %3820 = vmatpush1.msra.mxu0 0.0
    %3821 = vmatprep.subr.mxu0 0.0
    %3822 = vmatpush1.msra.mxu0 0.0
    %3823 = vmatprep.subr.mxu0 0.0
    %3824 = vmatpush1.msra.mxu0 0.0
    %3825 = vmatprep.subr.mxu0 0.0
    %3826 = vmatpush1.msra.mxu0 0.0
    %3827 = vmatprep.subr.mxu0 0.0
    %3828 = vmatpush1.msra.mxu0 0.0
    %3829 = vmatprep.subr.mxu0 0.0
    %3830 = vmatpush1.msra.mxu0 0.0
    %3831 = vmatprep.subr.mxu0 0.0
    %3832 = vmatpush1.msra.mxu0 0.0
    %3833 = vmatprep.subr.mxu0 0.0
    %3834 = vmatpush1.msra.mxu0 0.0
    %3835 = vmatprep.subr.mxu0 0.0
    %3836 = vmatpush1.msra.mxu0 0.0
    %3837 = vmatprep.subr.mxu0 0.0
    %3838 = vmatpush1.msra.mxu0 0.0
    %3839 = vmatprep.subr.mxu0 0.0
    %3840 = vmatpush1.msra.mxu0 0.0
    %3841 = vmatprep.subr.mxu0 0.0
    %3842 = vmatpush1.msra.mxu0 0.0
    %3843 = vmatprep.subr.mxu0 0.0
    %3844 = vmatpush1.msra.mxu0 0.0
    %3845 = vmatprep.subr.mxu0 0.0
    %3846 = vmatpush1.msra.mxu0 0.0
    %3847 = vmatprep.subr.mxu0 0.0
    %3848 = vmatpush1.msra.mxu0 0.0
    %3849 = vmatprep.subr.mxu0 0.0
    %3850 = vmatpush1.msra.mxu0 0.0
    %3851 = vmatprep.subr.mxu0 0.0
    %3852 = vmatpush1.msra.mxu0 0.0
    %3853 = vmatprep.subr.mxu0 0.0
    %3854 = vmatpush1.msra.mxu0 0.0
    %3855 = vmatprep.subr.mxu0 0.0
    %3856 = vmatpush1.msra.mxu0 0.0
    %3857 = vmatprep.subr.mxu0 0.0
    %3858 = vmatpush1.msra.mxu0 0.0
    %3859 = vmatprep.subr.mxu0 0.0
    %3860 = vmatpush1.msra.mxu0 0.0
    %3861 = vmatprep.subr.mxu0 0.0
    %3862 = vmatpush1.msra.mxu0 0.0
    %3863 = vmatprep.mubr.f32.mxu0 0.0
    %v3864 = vand.u32 %v3001, 4294901760
    %3865 = vmatmul.mubr.f32.gmra.mrb[0].mxu0 %v3864
    %v3866 = vpop.f32.mrb[0].mxu0
    %v3867 = vadd.f32 %v3789, %v3866
    %v3868 = vpop.f32.mrb[0].mxu0
    %v3869 = vadd.f32 %v3791, %v3868
    %3870 = vdwg.mxu0
    %v3871 = vand.u32 %v3013, 4294901760
    %3872 = vmatprep.subr.mxu0 %v3871
    %v3873 = vand.u32 %v3010, 4294901760
    %3874 = vmatpush1.msra.mxu0 %v3873
    %3875 = vmatprep.subr.mxu0 0.0
    %3876 = vmatpush1.msra.mxu0 0.0
    %3877 = vmatprep.subr.mxu0 0.0
    %3878 = vmatpush1.msra.mxu0 0.0
    %3879 = vmatprep.subr.mxu0 0.0
    %3880 = vmatpush1.msra.mxu0 0.0
    %3881 = vmatprep.subr.mxu0 0.0
    %3882 = vmatpush1.msra.mxu0 0.0
    %3883 = vmatprep.subr.mxu0 0.0
    %3884 = vmatpush1.msra.mxu0 0.0
    %3885 = vmatprep.subr.mxu0 0.0
    %3886 = vmatpush1.msra.mxu0 0.0
    %3887 = vmatprep.subr.mxu0 0.0
    %3888 = vmatpush1.msra.mxu0 0.0
    %3889 = vmatprep.subr.mxu0 0.0
    %3890 = vmatpush1.msra.mxu0 0.0
    %3891 = vmatprep.subr.mxu0 0.0
    %3892 = vmatpush1.msra.mxu0 0.0
    %3893 = vmatprep.subr.mxu0 0.0
    %3894 = vmatpush1.msra.mxu0 0.0
    %3895 = vmatprep.subr.mxu0 0.0
    %3896 = vmatpush1.msra.mxu0 0.0
    %3897 = vmatprep.subr.mxu0 0.0
    %3898 = vmatpush1.msra.mxu0 0.0
    %3899 = vmatprep.subr.mxu0 0.0
    %3900 = vmatpush1.msra.mxu0 0.0
    %3901 = vmatprep.subr.mxu0 0.0
    %3902 = vmatpush1.msra.mxu0 0.0
    %3903 = vmatprep.subr.mxu0 0.0
    %3904 = vmatpush1.msra.mxu0 0.0
    %3905 = vmatprep.subr.mxu0 0.0
    %3906 = vmatpush1.msra.mxu0 0.0
    %3907 = vmatprep.subr.mxu0 0.0
    %3908 = vmatpush1.msra.mxu0 0.0
    %3909 = vmatprep.subr.mxu0 0.0
    %3910 = vmatpush1.msra.mxu0 0.0
    %3911 = vmatprep.subr.mxu0 0.0
    %3912 = vmatpush1.msra.mxu0 0.0
    %3913 = vmatprep.subr.mxu0 0.0
    %3914 = vmatpush1.msra.mxu0 0.0
    %3915 = vmatprep.subr.mxu0 0.0
    %3916 = vmatpush1.msra.mxu0 0.0
    %3917 = vmatprep.subr.mxu0 0.0
    %3918 = vmatpush1.msra.mxu0 0.0
    %3919 = vmatprep.subr.mxu0 0.0
    %3920 = vmatpush1.msra.mxu0 0.0
    %3921 = vmatprep.subr.mxu0 0.0
    %3922 = vmatpush1.msra.mxu0 0.0
    %3923 = vmatprep.subr.mxu0 0.0
    %3924 = vmatpush1.msra.mxu0 0.0
    %3925 = vmatprep.subr.mxu0 0.0
    %3926 = vmatpush1.msra.mxu0 0.0
    %3927 = vmatprep.subr.mxu0 0.0
    %3928 = vmatpush1.msra.mxu0 0.0
    %3929 = vmatprep.subr.mxu0 0.0
    %3930 = vmatpush1.msra.mxu0 0.0
    %3931 = vmatprep.subr.mxu0 0.0
    %3932 = vmatpush1.msra.mxu0 0.0
    %3933 = vmatprep.subr.mxu0 0.0
    %3934 = vmatpush1.msra.mxu0 0.0
    %3935 = vmatprep.subr.mxu0 0.0
    %3936 = vmatpush1.msra.mxu0 0.0
    %3937 = vmatprep.mubr.f32.mxu0 0.0
    %v3938 = vand.u32 %v3001, 4294901760
    %3939 = vmatmul.mubr.f32.gmra.mrb[0].mxu0 %v3938
    %v3940 = vpop.f32.mrb[0].mxu0
    %v3941 = vadd.f32 %v3867, %v3940
    %v3942 = vpop.f32.mrb[0].mxu0
    %v3943 = vadd.f32 %v3869, %v3942
    %3944 = vdwg.mxu0
    %vm3945 = vmand %vm33, %vm45
    %vm3946 = vmand %vm34, %vm46
    %vm3947 = vmand %vm35, %vm47
    %vm3948 = vmand %vm36, %vm48
    %v3949 = vld [vmem:[#allocation2] sm:$0xff]
    %v3950 = vld [vmem:[#allocation2 + $0x8] sm:$0xff]
    %v3951 = vsel %vm3945, 1, 0
    %v3952 = vsel %vm3946, 1, 0
    %v3953 = vsel %vm3947, 1, 0
    %v3954 = vsel %vm3948, 1, 0
    %vm3955 = vcmp.eq.s32.totalorder %v3951, 1
    %vm3956 = vcmp.eq.s32.totalorder %v3952, 1
    %vm3957 = vcmp.eq.s32.totalorder %v3953, 1
    %vm3958 = vcmp.eq.s32.totalorder %v3954, 1
    %v3959 = vsel %vm3955, %v3476, 0.0
    %v3960 = vsel %vm3956, %v3478, 0.0
    %v3961 = vsel %vm3957, %v3941, 0.0
    %v3962 = vsel %vm3958, %v3943, 0.0
    %v3967 = vcombine.low %v3959, %v3960
    %v3968 = vcombine.low %v3961, %v3962
    %v3971 = vadd.f32 %v3949, %v3967
    %v3972 = vadd.f32 %v3950, %v3968
    %3973 = vst [vmem:[#allocation2] sm:$0xff] %v3971
    %3974 = vst [vmem:[#allocation2 + $0x8] sm:$0xff] %v3972
    %3975 = vrot.lane.b32.xlu0 %v18, 1
    %v3976 = vpop.permute.xlu0 %3975
    %3977 = vrot.lane.b32.xlu0 %v53, 1
    %v3978 = vpop.permute.xlu0 %3977
    %3979 = vrot.lane.b32.xlu0 %v19, 1
    %v3980 = vpop.permute.xlu0 %3979
    %3981 = vrot.lane.b32.xlu0 %v54, 1
    %v3982 = vpop.permute.xlu0 %3981
    %vm3983 = vcmp.lt.s32.totalorder %v21, 1
    %v3984 = vsel %vm3983, %v3980, %v3982
    %v3985 = vsel %vm3983, %v3978, %v3980
    %v3986 = vsel %vm3983, %v3976, %v3978
    %v3987 = vsel %vm3983, %v3982, %v3976
    %s3988 = scalar_lea.vmem %s1, 12
    %v3989 = vld [vmem:[%s3988] sm:$0xf]
    %v3991 = vsel %vm55, %v3989, 0
    %v3994 = vsel %vm59, %v3987, 0
    %v3997 = vsel %vm59, %v3986, 0
    %v4000 = vsel %vm59, %v3985, 0
    %v4003 = vsel %vm59, %v3984, 0
    %v4005 = vand.u32 %v3997, 4294901760
    %4006 = vmatprep.subr.mxu0 %v4005
    %v4007 = vand.u32 %v3994, 4294901760
    %4008 = vmatpush1.msra.mxu0 %v4007
    %4009 = vmatprep.subr.mxu0 0.0
    %4010 = vmatpush1.msra.mxu0 0.0
    %4011 = vmatprep.subr.mxu0 0.0
    %4012 = vmatpush1.msra.mxu0 0.0
    %4013 = vmatprep.subr.mxu0 0.0
    %4014 = vmatpush1.msra.mxu0 0.0
    %4015 = vmatprep.subr.mxu0 0.0
    %4016 = vmatpush1.msra.mxu0 0.0
    %4017 = vmatprep.subr.mxu0 0.0
    %4018 = vmatpush1.msra.mxu0 0.0
    %4019 = vmatprep.subr.mxu0 0.0
    %4020 = vmatpush1.msra.mxu0 0.0
    %4021 = vmatprep.subr.mxu0 0.0
    %4022 = vmatpush1.msra.mxu0 0.0
    %4023 = vmatprep.subr.mxu0 0.0
    %4024 = vmatpush1.msra.mxu0 0.0
    %4025 = vmatprep.subr.mxu0 0.0
    %4026 = vmatpush1.msra.mxu0 0.0
    %4027 = vmatprep.subr.mxu0 0.0
    %4028 = vmatpush1.msra.mxu0 0.0
    %4029 = vmatprep.subr.mxu0 0.0
    %4030 = vmatpush1.msra.mxu0 0.0
    %4031 = vmatprep.subr.mxu0 0.0
    %4032 = vmatpush1.msra.mxu0 0.0
    %4033 = vmatprep.subr.mxu0 0.0
    %4034 = vmatpush1.msra.mxu0 0.0
    %4035 = vmatprep.subr.mxu0 0.0
    %4036 = vmatpush1.msra.mxu0 0.0
    %4037 = vmatprep.subr.mxu0 0.0
    %4038 = vmatpush1.msra.mxu0 0.0
    %4039 = vmatprep.subr.mxu0 0.0
    %4040 = vmatpush1.msra.mxu0 0.0
    %4041 = vmatprep.subr.mxu0 0.0
    %4042 = vmatpush1.msra.mxu0 0.0
    %4043 = vmatprep.subr.mxu0 0.0
    %4044 = vmatpush1.msra.mxu0 0.0
    %4045 = vmatprep.subr.mxu0 0.0
    %4046 = vmatpush1.msra.mxu0 0.0
    %4047 = vmatprep.subr.mxu0 0.0
    %4048 = vmatpush1.msra.mxu0 0.0
    %4049 = vmatprep.subr.mxu0 0.0
    %4050 = vmatpush1.msra.mxu0 0.0
    %4051 = vmatprep.subr.mxu0 0.0
    %4052 = vmatpush1.msra.mxu0 0.0
    %4053 = vmatprep.subr.mxu0 0.0
    %4054 = vmatpush1.msra.mxu0 0.0
    %4055 = vmatprep.subr.mxu0 0.0
    %4056 = vmatpush1.msra.mxu0 0.0
    %4057 = vmatprep.subr.mxu0 0.0
    %4058 = vmatpush1.msra.mxu0 0.0
    %4059 = vmatprep.subr.mxu0 0.0
    %4060 = vmatpush1.msra.mxu0 0.0
    %4061 = vmatprep.subr.mxu0 0.0
    %4062 = vmatpush1.msra.mxu0 0.0
    %4063 = vmatprep.subr.mxu0 0.0
    %4064 = vmatpush1.msra.mxu0 0.0
    %4065 = vmatprep.subr.mxu0 0.0
    %4066 = vmatpush1.msra.mxu0 0.0
    %4067 = vmatprep.subr.mxu0 0.0
    %4068 = vmatpush1.msra.mxu0 0.0
    %4069 = vmatprep.subr.mxu0 0.0
    %4070 = vmatpush1.msra.mxu0 0.0
    %4071 = vmatprep.mubr.f32.mxu0 0.0
    %v4072 = vand.u32 %v3991, 4294901760
    %v4073 = vsub.f32 %v3991, %v4072
    %v4074 = vand.u32 %v4073, 4294901760
    %v4075 = vsub.f32 %v4073, %v4074
    %v4076 = vand.u32 %v4075, 4294901760
    %4077 = vmatmul.mubr.f32.gmra.mrb[0].mxu0 %v4076
    %v4078 = vpop.f32.mrb[0].mxu0
    %v4079 = vadd.f32 0.0, %v4078
    %v4080 = vpop.f32.mrb[0].mxu0
    %v4081 = vadd.f32 0.0, %v4080
    %4082 = vdwg.mxu0
    %v4083 = vand.u32 %v3997, 4294901760
    %v4084 = vsub.f32 %v3997, %v4083
    %v4085 = vand.u32 %v4084, 4294901760
    %v4086 = vsub.f32 %v4084, %v4085
    %v4087 = vand.u32 %v4086, 4294901760
    %4088 = vmatprep.subr.mxu0 %v4087
    %v4089 = vand.u32 %v3994, 4294901760
    %v4090 = vsub.f32 %v3994, %v4089
    %v4091 = vand.u32 %v4090, 4294901760
    %v4092 = vsub.f32 %v4090, %v4091
    %v4093 = vand.u32 %v4092, 4294901760
    %4094 = vmatpush1.msra.mxu0 %v4093
    %4095 = vmatprep.subr.mxu0 0.0
    %4096 = vmatpush1.msra.mxu0 0.0
    %4097 = vmatprep.subr.mxu0 0.0
    %4098 = vmatpush1.msra.mxu0 0.0
    %4099 = vmatprep.subr.mxu0 0.0
    %4100 = vmatpush1.msra.mxu0 0.0
    %4101 = vmatprep.subr.mxu0 0.0
    %4102 = vmatpush1.msra.mxu0 0.0
    %4103 = vmatprep.subr.mxu0 0.0
    %4104 = vmatpush1.msra.mxu0 0.0
    %4105 = vmatprep.subr.mxu0 0.0
    %4106 = vmatpush1.msra.mxu0 0.0
    %4107 = vmatprep.subr.mxu0 0.0
    %4108 = vmatpush1.msra.mxu0 0.0
    %4109 = vmatprep.subr.mxu0 0.0
    %4110 = vmatpush1.msra.mxu0 0.0
    %4111 = vmatprep.subr.mxu0 0.0
    %4112 = vmatpush1.msra.mxu0 0.0
    %4113 = vmatprep.subr.mxu0 0.0
    %4114 = vmatpush1.msra.mxu0 0.0
    %4115 = vmatprep.subr.mxu0 0.0
    %4116 = vmatpush1.msra.mxu0 0.0
    %4117 = vmatprep.subr.mxu0 0.0
    %4118 = vmatpush1.msra.mxu0 0.0
    %4119 = vmatprep.subr.mxu0 0.0
    %4120 = vmatpush1.msra.mxu0 0.0
    %4121 = vmatprep.subr.mxu0 0.0
    %4122 = vmatpush1.msra.mxu0 0.0
    %4123 = vmatprep.subr.mxu0 0.0
    %4124 = vmatpush1.msra.mxu0 0.0
    %4125 = vmatprep.subr.mxu0 0.0
    %4126 = vmatpush1.msra.mxu0 0.0
    %4127 = vmatprep.subr.mxu0 0.0
    %4128 = vmatpush1.msra.mxu0 0.0
    %4129 = vmatprep.subr.mxu0 0.0
    %4130 = vmatpush1.msra.mxu0 0.0
    %4131 = vmatprep.subr.mxu0 0.0
    %4132 = vmatpush1.msra.mxu0 0.0
    %4133 = vmatprep.subr.mxu0 0.0
    %4134 = vmatpush1.msra.mxu0 0.0
    %4135 = vmatprep.subr.mxu0 0.0
    %4136 = vmatpush1.msra.mxu0 0.0
    %4137 = vmatprep.subr.mxu0 0.0
    %4138 = vmatpush1.msra.mxu0 0.0
    %4139 = vmatprep.subr.mxu0 0.0
    %4140 = vmatpush1.msra.mxu0 0.0
    %4141 = vmatprep.subr.mxu0 0.0
    %4142 = vmatpush1.msra.mxu0 0.0
    %4143 = vmatprep.subr.mxu0 0.0
    %4144 = vmatpush1.msra.mxu0 0.0
    %4145 = vmatprep.subr.mxu0 0.0
    %4146 = vmatpush1.msra.mxu0 0.0
    %4147 = vmatprep.subr.mxu0 0.0
    %4148 = vmatpush1.msra.mxu0 0.0
    %4149 = vmatprep.subr.mxu0 0.0
    %4150 = vmatpush1.msra.mxu0 0.0
    %4151 = vmatprep.subr.mxu0 0.0
    %4152 = vmatpush1.msra.mxu0 0.0
    %4153 = vmatprep.subr.mxu0 0.0
    %4154 = vmatpush1.msra.mxu0 0.0
    %4155 = vmatprep.subr.mxu0 0.0
    %4156 = vmatpush1.msra.mxu0 0.0
    %4157 = vmatprep.mubr.f32.mxu0 0.0
    %v4158 = vand.u32 %v3991, 4294901760
    %4159 = vmatmul.mubr.f32.gmra.mrb[0].mxu0 %v4158
    %v4160 = vpop.f32.mrb[0].mxu0
    %v4161 = vadd.f32 %v4079, %v4160
    %v4162 = vpop.f32.mrb[0].mxu0
    %v4163 = vadd.f32 %v4081, %v4162
    %4164 = vdwg.mxu0
    %v4165 = vand.u32 %v3997, 4294901760
    %v4166 = vsub.f32 %v3997, %v4165
    %4167 = vmatprep.subr.mxu0 %v4166
    %v4168 = vand.u32 %v3994, 4294901760
    %v4169 = vsub.f32 %v3994, %v4168
    %4170 = vmatpush1.msra.mxu0 %v4169
    %4171 = vmatprep.subr.mxu0 0.0
    %4172 = vmatpush1.msra.mxu0 0.0
    %4173 = vmatprep.subr.mxu0 0.0
    %4174 = vmatpush1.msra.mxu0 0.0
    %4175 = vmatprep.subr.mxu0 0.0
    %4176 = vmatpush1.msra.mxu0 0.0
    %4177 = vmatprep.subr.mxu0 0.0
    %4178 = vmatpush1.msra.mxu0 0.0
    %4179 = vmatprep.subr.mxu0 0.0
    %4180 = vmatpush1.msra.mxu0 0.0
    %4181 = vmatprep.subr.mxu0 0.0
    %4182 = vmatpush1.msra.mxu0 0.0
    %4183 = vmatprep.subr.mxu0 0.0
    %4184 = vmatpush1.msra.mxu0 0.0
    %4185 = vmatprep.subr.mxu0 0.0
    %4186 = vmatpush1.msra.mxu0 0.0
    %4187 = vmatprep.subr.mxu0 0.0
    %4188 = vmatpush1.msra.mxu0 0.0
    %4189 = vmatprep.subr.mxu0 0.0
    %4190 = vmatpush1.msra.mxu0 0.0
    %4191 = vmatprep.subr.mxu0 0.0
    %4192 = vmatpush1.msra.mxu0 0.0
    %4193 = vmatprep.subr.mxu0 0.0
    %4194 = vmatpush1.msra.mxu0 0.0
    %4195 = vmatprep.subr.mxu0 0.0
    %4196 = vmatpush1.msra.mxu0 0.0
    %4197 = vmatprep.subr.mxu0 0.0
    %4198 = vmatpush1.msra.mxu0 0.0
    %4199 = vmatprep.subr.mxu0 0.0
    %4200 = vmatpush1.msra.mxu0 0.0
    %4201 = vmatprep.subr.mxu0 0.0
    %4202 = vmatpush1.msra.mxu0 0.0
    %4203 = vmatprep.subr.mxu0 0.0
    %4204 = vmatpush1.msra.mxu0 0.0
    %4205 = vmatprep.subr.mxu0 0.0
    %4206 = vmatpush1.msra.mxu0 0.0
    %4207 = vmatprep.subr.mxu0 0.0
    %4208 = vmatpush1.msra.mxu0 0.0
    %4209 = vmatprep.subr.mxu0 0.0
    %4210 = vmatpush1.msra.mxu0 0.0
    %4211 = vmatprep.subr.mxu0 0.0
    %4212 = vmatpush1.msra.mxu0 0.0
    %4213 = vmatprep.subr.mxu0 0.0
    %4214 = vmatpush1.msra.mxu0 0.0
    %4215 = vmatprep.subr.mxu0 0.0
    %4216 = vmatpush1.msra.mxu0 0.0
    %4217 = vmatprep.subr.mxu0 0.0
    %4218 = vmatpush1.msra.mxu0 0.0
    %4219 = vmatprep.subr.mxu0 0.0
    %4220 = vmatpush1.msra.mxu0 0.0
    %4221 = vmatprep.subr.mxu0 0.0
    %4222 = vmatpush1.msra.mxu0 0.0
    %4223 = vmatprep.subr.mxu0 0.0
    %4224 = vmatpush1.msra.mxu0 0.0
    %4225 = vmatprep.subr.mxu0 0.0
    %4226 = vmatpush1.msra.mxu0 0.0
    %4227 = vmatprep.subr.mxu0 0.0
    %4228 = vmatpush1.msra.mxu0 0.0
    %4229 = vmatprep.subr.mxu0 0.0
    %4230 = vmatpush1.msra.mxu0 0.0
    %4231 = vmatprep.subr.mxu0 0.0
    %4232 = vmatpush1.msra.mxu0 0.0
    %4233 = vmatprep.mubr.f32.mxu0 0.0
    %v4234 = vand.u32 %v3991, 4294901760
    %v4235 = vsub.f32 %v3991, %v4234
    %4236 = vmatmul.mubr.f32.gmra.mrb[0].mxu0 %v4235
    %v4237 = vpop.f32.mrb[0].mxu0
    %v4238 = vadd.f32 %v4161, %v4237
    %v4239 = vpop.f32.mrb[0].mxu0
    %v4240 = vadd.f32 %v4163, %v4239
    %4241 = vdwg.mxu0
    %v4242 = vand.u32 %v3997, 4294901760
    %4243 = vmatprep.subr.mxu0 %v4242
    %v4244 = vand.u32 %v3994, 4294901760
    %4245 = vmatpush1.msra.mxu0 %v4244
    %4246 = vmatprep.subr.mxu0 0.0
    %4247 = vmatpush1.msra.mxu0 0.0
    %4248 = vmatprep.subr.mxu0 0.0
    %4249 = vmatpush1.msra.mxu0 0.0
    %4250 = vmatprep.subr.mxu0 0.0
    %4251 = vmatpush1.msra.mxu0 0.0
    %4252 = vmatprep.subr.mxu0 0.0
    %4253 = vmatpush1.msra.mxu0 0.0
    %4254 = vmatprep.subr.mxu0 0.0
    %4255 = vmatpush1.msra.mxu0 0.0
    %4256 = vmatprep.subr.mxu0 0.0
    %4257 = vmatpush1.msra.mxu0 0.0
    %4258 = vmatprep.subr.mxu0 0.0
    %4259 = vmatpush1.msra.mxu0 0.0
    %4260 = vmatprep.subr.mxu0 0.0
    %4261 = vmatpush1.msra.mxu0 0.0
    %4262 = vmatprep.subr.mxu0 0.0
    %4263 = vmatpush1.msra.mxu0 0.0
    %4264 = vmatprep.subr.mxu0 0.0
    %4265 = vmatpush1.msra.mxu0 0.0
    %4266 = vmatprep.subr.mxu0 0.0
    %4267 = vmatpush1.msra.mxu0 0.0
    %4268 = vmatprep.subr.mxu0 0.0
    %4269 = vmatpush1.msra.mxu0 0.0
    %4270 = vmatprep.subr.mxu0 0.0
    %4271 = vmatpush1.msra.mxu0 0.0
    %4272 = vmatprep.subr.mxu0 0.0
    %4273 = vmatpush1.msra.mxu0 0.0
    %4274 = vmatprep.subr.mxu0 0.0
    %4275 = vmatpush1.msra.mxu0 0.0
    %4276 = vmatprep.subr.mxu0 0.0
    %4277 = vmatpush1.msra.mxu0 0.0
    %4278 = vmatprep.subr.mxu0 0.0
    %4279 = vmatpush1.msra.mxu0 0.0
    %4280 = vmatprep.subr.mxu0 0.0
    %4281 = vmatpush1.msra.mxu0 0.0
    %4282 = vmatprep.subr.mxu0 0.0
    %4283 = vmatpush1.msra.mxu0 0.0
    %4284 = vmatprep.subr.mxu0 0.0
    %4285 = vmatpush1.msra.mxu0 0.0
    %4286 = vmatprep.subr.mxu0 0.0
    %4287 = vmatpush1.msra.mxu0 0.0
    %4288 = vmatprep.subr.mxu0 0.0
    %4289 = vmatpush1.msra.mxu0 0.0
    %4290 = vmatprep.subr.mxu0 0.0
    %4291 = vmatpush1.msra.mxu0 0.0
    %4292 = vmatprep.subr.mxu0 0.0
    %4293 = vmatpush1.msra.mxu0 0.0
    %4294 = vmatprep.subr.mxu0 0.0
    %4295 = vmatpush1.msra.mxu0 0.0
    %4296 = vmatprep.subr.mxu0 0.0
    %4297 = vmatpush1.msra.mxu0 0.0
    %4298 = vmatprep.subr.mxu0 0.0
    %4299 = vmatpush1.msra.mxu0 0.0
    %4300 = vmatprep.subr.mxu0 0.0
    %4301 = vmatpush1.msra.mxu0 0.0
    %4302 = vmatprep.subr.mxu0 0.0
    %4303 = vmatpush1.msra.mxu0 0.0
    %4304 = vmatprep.subr.mxu0 0.0
    %4305 = vmatpush1.msra.mxu0 0.0
    %4306 = vmatprep.subr.mxu0 0.0
    %4307 = vmatpush1.msra.mxu0 0.0
    %4308 = vmatprep.mubr.f32.mxu0 0.0
    %v4309 = vand.u32 %v3991, 4294901760
    %v4310 = vsub.f32 %v3991, %v4309
    %v4311 = vand.u32 %v4310, 4294901760
    %4312 = vmatmul.mubr.f32.gmra.mrb[0].mxu0 %v4311
    %v4313 = vpop.f32.mrb[0].mxu0
    %v4314 = vadd.f32 %v4238, %v4313
    %v4315 = vpop.f32.mrb[0].mxu0
    %v4316 = vadd.f32 %v4240, %v4315
    %4317 = vdwg.mxu0
    %v4318 = vand.u32 %v3997, 4294901760
    %v4319 = vsub.f32 %v3997, %v4318
    %v4320 = vand.u32 %v4319, 4294901760
    %4321 = vmatprep.subr.mxu0 %v4320
    %v4322 = vand.u32 %v3994, 4294901760
    %v4323 = vsub.f32 %v3994, %v4322
    %v4324 = vand.u32 %v4323, 4294901760
    %4325 = vmatpush1.msra.mxu0 %v4324
    %4326 = vmatprep.subr.mxu0 0.0
    %4327 = vmatpush1.msra.mxu0 0.0
    %4328 = vmatprep.subr.mxu0 0.0
    %4329 = vmatpush1.msra.mxu0 0.0
    %4330 = vmatprep.subr.mxu0 0.0
    %4331 = vmatpush1.msra.mxu0 0.0
    %4332 = vmatprep.subr.mxu0 0.0
    %4333 = vmatpush1.msra.mxu0 0.0
    %4334 = vmatprep.subr.mxu0 0.0
    %4335 = vmatpush1.msra.mxu0 0.0
    %4336 = vmatprep.subr.mxu0 0.0
    %4337 = vmatpush1.msra.mxu0 0.0
    %4338 = vmatprep.subr.mxu0 0.0
    %4339 = vmatpush1.msra.mxu0 0.0
    %4340 = vmatprep.subr.mxu0 0.0
    %4341 = vmatpush1.msra.mxu0 0.0
    %4342 = vmatprep.subr.mxu0 0.0
    %4343 = vmatpush1.msra.mxu0 0.0
    %4344 = vmatprep.subr.mxu0 0.0
    %4345 = vmatpush1.msra.mxu0 0.0
    %4346 = vmatprep.subr.mxu0 0.0
    %4347 = vmatpush1.msra.mxu0 0.0
    %4348 = vmatprep.subr.mxu0 0.0
    %4349 = vmatpush1.msra.mxu0 0.0
    %4350 = vmatprep.subr.mxu0 0.0
    %4351 = vmatpush1.msra.mxu0 0.0
    %4352 = vmatprep.subr.mxu0 0.0
    %4353 = vmatpush1.msra.mxu0 0.0
    %4354 = vmatprep.subr.mxu0 0.0
    %4355 = vmatpush1.msra.mxu0 0.0
    %4356 = vmatprep.subr.mxu0 0.0
    %4357 = vmatpush1.msra.mxu0 0.0
    %4358 = vmatprep.subr.mxu0 0.0
    %4359 = vmatpush1.msra.mxu0 0.0
    %4360 = vmatprep.subr.mxu0 0.0
    %4361 = vmatpush1.msra.mxu0 0.0
    %4362 = vmatprep.subr.mxu0 0.0
    %4363 = vmatpush1.msra.mxu0 0.0
    %4364 = vmatprep.subr.mxu0 0.0
    %4365 = vmatpush1.msra.mxu0 0.0
    %4366 = vmatprep.subr.mxu0 0.0
    %4367 = vmatpush1.msra.mxu0 0.0
    %4368 = vmatprep.subr.mxu0 0.0
    %4369 = vmatpush1.msra.mxu0 0.0
    %4370 = vmatprep.subr.mxu0 0.0
    %4371 = vmatpush1.msra.mxu0 0.0
    %4372 = vmatprep.subr.mxu0 0.0
    %4373 = vmatpush1.msra.mxu0 0.0
    %4374 = vmatprep.subr.mxu0 0.0
    %4375 = vmatpush1.msra.mxu0 0.0
    %4376 = vmatprep.subr.mxu0 0.0
    %4377 = vmatpush1.msra.mxu0 0.0
    %4378 = vmatprep.subr.mxu0 0.0
    %4379 = vmatpush1.msra.mxu0 0.0
    %4380 = vmatprep.subr.mxu0 0.0
    %4381 = vmatpush1.msra.mxu0 0.0
    %4382 = vmatprep.subr.mxu0 0.0
    %4383 = vmatpush1.msra.mxu0 0.0
    %4384 = vmatprep.subr.mxu0 0.0
    %4385 = vmatpush1.msra.mxu0 0.0
    %4386 = vmatprep.subr.mxu0 0.0
    %4387 = vmatpush1.msra.mxu0 0.0
    %4388 = vmatprep.mubr.f32.mxu0 0.0
    %v4389 = vand.u32 %v3991, 4294901760
    %4390 = vmatmul.mubr.f32.gmra.mrb[0].mxu0 %v4389
    %v4391 = vpop.f32.mrb[0].mxu0
    %v4392 = vadd.f32 %v4314, %v4391
    %v4393 = vpop.f32.mrb[0].mxu0
    %v4394 = vadd.f32 %v4316, %v4393
    %4395 = vdwg.mxu0
    %v4396 = vand.u32 %v3997, 4294901760
    %4397 = vmatprep.subr.mxu0 %v4396
    %v4398 = vand.u32 %v3994, 4294901760
    %4399 = vmatpush1.msra.mxu0 %v4398
    %4400 = vmatprep.subr.mxu0 0.0
    %4401 = vmatpush1.msra.mxu0 0.0
    %4402 = vmatprep.subr.mxu0 0.0
    %4403 = vmatpush1.msra.mxu0 0.0
    %4404 = vmatprep.subr.mxu0 0.0
    %4405 = vmatpush1.msra.mxu0 0.0
    %4406 = vmatprep.subr.mxu0 0.0
    %4407 = vmatpush1.msra.mxu0 0.0
    %4408 = vmatprep.subr.mxu0 0.0
    %4409 = vmatpush1.msra.mxu0 0.0
    %4410 = vmatprep.subr.mxu0 0.0
    %4411 = vmatpush1.msra.mxu0 0.0
    %4412 = vmatprep.subr.mxu0 0.0
    %4413 = vmatpush1.msra.mxu0 0.0
    %4414 = vmatprep.subr.mxu0 0.0
    %4415 = vmatpush1.msra.mxu0 0.0
    %4416 = vmatprep.subr.mxu0 0.0
    %4417 = vmatpush1.msra.mxu0 0.0
    %4418 = vmatprep.subr.mxu0 0.0
    %4419 = vmatpush1.msra.mxu0 0.0
    %4420 = vmatprep.subr.mxu0 0.0
    %4421 = vmatpush1.msra.mxu0 0.0
    %4422 = vmatprep.subr.mxu0 0.0
    %4423 = vmatpush1.msra.mxu0 0.0
    %4424 = vmatprep.subr.mxu0 0.0
    %4425 = vmatpush1.msra.mxu0 0.0
    %4426 = vmatprep.subr.mxu0 0.0
    %4427 = vmatpush1.msra.mxu0 0.0
    %4428 = vmatprep.subr.mxu0 0.0
    %4429 = vmatpush1.msra.mxu0 0.0
    %4430 = vmatprep.subr.mxu0 0.0
    %4431 = vmatpush1.msra.mxu0 0.0
    %4432 = vmatprep.subr.mxu0 0.0
    %4433 = vmatpush1.msra.mxu0 0.0
    %4434 = vmatprep.subr.mxu0 0.0
    %4435 = vmatpush1.msra.mxu0 0.0
    %4436 = vmatprep.subr.mxu0 0.0
    %4437 = vmatpush1.msra.mxu0 0.0
    %4438 = vmatprep.subr.mxu0 0.0
    %4439 = vmatpush1.msra.mxu0 0.0
    %4440 = vmatprep.subr.mxu0 0.0
    %4441 = vmatpush1.msra.mxu0 0.0
    %4442 = vmatprep.subr.mxu0 0.0
    %4443 = vmatpush1.msra.mxu0 0.0
    %4444 = vmatprep.subr.mxu0 0.0
    %4445 = vmatpush1.msra.mxu0 0.0
    %4446 = vmatprep.subr.mxu0 0.0
    %4447 = vmatpush1.msra.mxu0 0.0
    %4448 = vmatprep.subr.mxu0 0.0
    %4449 = vmatpush1.msra.mxu0 0.0
    %4450 = vmatprep.subr.mxu0 0.0
    %4451 = vmatpush1.msra.mxu0 0.0
    %4452 = vmatprep.subr.mxu0 0.0
    %4453 = vmatpush1.msra.mxu0 0.0
    %4454 = vmatprep.subr.mxu0 0.0
    %4455 = vmatpush1.msra.mxu0 0.0
    %4456 = vmatprep.subr.mxu0 0.0
    %4457 = vmatpush1.msra.mxu0 0.0
    %4458 = vmatprep.subr.mxu0 0.0
    %4459 = vmatpush1.msra.mxu0 0.0
    %4460 = vmatprep.subr.mxu0 0.0
    %4461 = vmatpush1.msra.mxu0 0.0
    %4462 = vmatprep.mubr.f32.mxu0 0.0
    %v4463 = vand.u32 %v3991, 4294901760
    %4464 = vmatmul.mubr.f32.gmra.mrb[0].mxu0 %v4463
    %v4465 = vpop.f32.mrb[0].mxu0
    %v4466 = vadd.f32 %v4392, %v4465
    %v4467 = vpop.f32.mrb[0].mxu0
    %v4468 = vadd.f32 %v4394, %v4467
    %4469 = vdwg.mxu0
    %v4470 = vand.u32 %v4003, 4294901760
    %4471 = vmatprep.subr.mxu0 %v4470
    %v4472 = vand.u32 %v4000, 4294901760
    %4473 = vmatpush1.msra.mxu0 %v4472
    %4474 = vmatprep.subr.mxu0 0.0
    %4475 = vmatpush1.msra.mxu0 0.0
    %4476 = vmatprep.subr.mxu0 0.0
    %4477 = vmatpush1.msra.mxu0 0.0
    %4478 = vmatprep.subr.mxu0 0.0
    %4479 = vmatpush1.msra.mxu0 0.0
    %4480 = vmatprep.subr.mxu0 0.0
    %4481 = vmatpush1.msra.mxu0 0.0
    %4482 = vmatprep.subr.mxu0 0.0
    %4483 = vmatpush1.msra.mxu0 0.0
    %4484 = vmatprep.subr.mxu0 0.0
    %4485 = vmatpush1.msra.mxu0 0.0
    %4486 = vmatprep.subr.mxu0 0.0
    %4487 = vmatpush1.msra.mxu0 0.0
    %4488 = vmatprep.subr.mxu0 0.0
    %4489 = vmatpush1.msra.mxu0 0.0
    %4490 = vmatprep.subr.mxu0 0.0
    %4491 = vmatpush1.msra.mxu0 0.0
    %4492 = vmatprep.subr.mxu0 0.0
    %4493 = vmatpush1.msra.mxu0 0.0
    %4494 = vmatprep.subr.mxu0 0.0
    %4495 = vmatpush1.msra.mxu0 0.0
    %4496 = vmatprep.subr.mxu0 0.0
    %4497 = vmatpush1.msra.mxu0 0.0
    %4498 = vmatprep.subr.mxu0 0.0
    %4499 = vmatpush1.msra.mxu0 0.0
    %4500 = vmatprep.subr.mxu0 0.0
    %4501 = vmatpush1.msra.mxu0 0.0
    %4502 = vmatprep.subr.mxu0 0.0
    %4503 = vmatpush1.msra.mxu0 0.0
    %4504 = vmatprep.subr.mxu0 0.0
    %4505 = vmatpush1.msra.mxu0 0.0
    %4506 = vmatprep.subr.mxu0 0.0
    %4507 = vmatpush1.msra.mxu0 0.0
    %4508 = vmatprep.subr.mxu0 0.0
    %4509 = vmatpush1.msra.mxu0 0.0
    %4510 = vmatprep.subr.mxu0 0.0
    %4511 = vmatpush1.msra.mxu0 0.0
    %4512 = vmatprep.subr.mxu0 0.0
    %4513 = vmatpush1.msra.mxu0 0.0
    %4514 = vmatprep.subr.mxu0 0.0
    %4515 = vmatpush1.msra.mxu0 0.0
    %4516 = vmatprep.subr.mxu0 0.0
    %4517 = vmatpush1.msra.mxu0 0.0
    %4518 = vmatprep.subr.mxu0 0.0
    %4519 = vmatpush1.msra.mxu0 0.0
    %4520 = vmatprep.subr.mxu0 0.0
    %4521 = vmatpush1.msra.mxu0 0.0
    %4522 = vmatprep.subr.mxu0 0.0
    %4523 = vmatpush1.msra.mxu0 0.0
    %4524 = vmatprep.subr.mxu0 0.0
    %4525 = vmatpush1.msra.mxu0 0.0
    %4526 = vmatprep.subr.mxu0 0.0
    %4527 = vmatpush1.msra.mxu0 0.0
    %4528 = vmatprep.subr.mxu0 0.0
    %4529 = vmatpush1.msra.mxu0 0.0
    %4530 = vmatprep.subr.mxu0 0.0
    %4531 = vmatpush1.msra.mxu0 0.0
    %4532 = vmatprep.subr.mxu0 0.0
    %4533 = vmatpush1.msra.mxu0 0.0
    %4534 = vmatprep.subr.mxu0 0.0
    %4535 = vmatpush1.msra.mxu0 0.0
    %4536 = vmatprep.mubr.f32.mxu0 0.0
    %v4537 = vand.u32 %v3991, 4294901760
    %v4538 = vsub.f32 %v3991, %v4537
    %v4539 = vand.u32 %v4538, 4294901760
    %v4540 = vsub.f32 %v4538, %v4539
    %v4541 = vand.u32 %v4540, 4294901760
    %4542 = vmatmul.mubr.f32.gmra.mrb[0].mxu0 %v4541
    %v4543 = vpop.f32.mrb[0].mxu0
    %v4544 = vadd.f32 0.0, %v4543
    %v4545 = vpop.f32.mrb[0].mxu0
    %v4546 = vadd.f32 0.0, %v4545
    %4547 = vdwg.mxu0
    %v4548 = vand.u32 %v4003, 4294901760
    %v4549 = vsub.f32 %v4003, %v4548
    %v4550 = vand.u32 %v4549, 4294901760
    %v4551 = vsub.f32 %v4549, %v4550
    %v4552 = vand.u32 %v4551, 4294901760
    %4553 = vmatprep.subr.mxu0 %v4552
    %v4554 = vand.u32 %v4000, 4294901760
    %v4555 = vsub.f32 %v4000, %v4554
    %v4556 = vand.u32 %v4555, 4294901760
    %v4557 = vsub.f32 %v4555, %v4556
    %v4558 = vand.u32 %v4557, 4294901760
    %4559 = vmatpush1.msra.mxu0 %v4558
    %4560 = vmatprep.subr.mxu0 0.0
    %4561 = vmatpush1.msra.mxu0 0.0
    %4562 = vmatprep.subr.mxu0 0.0
    %4563 = vmatpush1.msra.mxu0 0.0
    %4564 = vmatprep.subr.mxu0 0.0
    %4565 = vmatpush1.msra.mxu0 0.0
    %4566 = vmatprep.subr.mxu0 0.0
    %4567 = vmatpush1.msra.mxu0 0.0
    %4568 = vmatprep.subr.mxu0 0.0
    %4569 = vmatpush1.msra.mxu0 0.0
    %4570 = vmatprep.subr.mxu0 0.0
    %4571 = vmatpush1.msra.mxu0 0.0
    %4572 = vmatprep.subr.mxu0 0.0
    %4573 = vmatpush1.msra.mxu0 0.0
    %4574 = vmatprep.subr.mxu0 0.0
    %4575 = vmatpush1.msra.mxu0 0.0
    %4576 = vmatprep.subr.mxu0 0.0
    %4577 = vmatpush1.msra.mxu0 0.0
    %4578 = vmatprep.subr.mxu0 0.0
    %4579 = vmatpush1.msra.mxu0 0.0
    %4580 = vmatprep.subr.mxu0 0.0
    %4581 = vmatpush1.msra.mxu0 0.0
    %4582 = vmatprep.subr.mxu0 0.0
    %4583 = vmatpush1.msra.mxu0 0.0
    %4584 = vmatprep.subr.mxu0 0.0
    %4585 = vmatpush1.msra.mxu0 0.0
    %4586 = vmatprep.subr.mxu0 0.0
    %4587 = vmatpush1.msra.mxu0 0.0
    %4588 = vmatprep.subr.mxu0 0.0
    %4589 = vmatpush1.msra.mxu0 0.0
    %4590 = vmatprep.subr.mxu0 0.0
    %4591 = vmatpush1.msra.mxu0 0.0
    %4592 = vmatprep.subr.mxu0 0.0
    %4593 = vmatpush1.msra.mxu0 0.0
    %4594 = vmatprep.subr.mxu0 0.0
    %4595 = vmatpush1.msra.mxu0 0.0
    %4596 = vmatprep.subr.mxu0 0.0
    %4597 = vmatpush1.msra.mxu0 0.0
    %4598 = vmatprep.subr.mxu0 0.0
    %4599 = vmatpush1.msra.mxu0 0.0
    %4600 = vmatprep.subr.mxu0 0.0
    %4601 = vmatpush1.msra.mxu0 0.0
    %4602 = vmatprep.subr.mxu0 0.0
    %4603 = vmatpush1.msra.mxu0 0.0
    %4604 = vmatprep.subr.mxu0 0.0
    %4605 = vmatpush1.msra.mxu0 0.0
    %4606 = vmatprep.subr.mxu0 0.0
    %4607 = vmatpush1.msra.mxu0 0.0
    %4608 = vmatprep.subr.mxu0 0.0
    %4609 = vmatpush1.msra.mxu0 0.0
    %4610 = vmatprep.subr.mxu0 0.0
    %4611 = vmatpush1.msra.mxu0 0.0
    %4612 = vmatprep.subr.mxu0 0.0
    %4613 = vmatpush1.msra.mxu0 0.0
    %4614 = vmatprep.subr.mxu0 0.0
    %4615 = vmatpush1.msra.mxu0 0.0
    %4616 = vmatprep.subr.mxu0 0.0
    %4617 = vmatpush1.msra.mxu0 0.0
    %4618 = vmatprep.subr.mxu0 0.0
    %4619 = vmatpush1.msra.mxu0 0.0
    %4620 = vmatprep.subr.mxu0 0.0
    %4621 = vmatpush1.msra.mxu0 0.0
    %4622 = vmatprep.mubr.f32.mxu0 0.0
    %v4623 = vand.u32 %v3991, 4294901760
    %4624 = vmatmul.mubr.f32.gmra.mrb[0].mxu0 %v4623
    %v4625 = vpop.f32.mrb[0].mxu0
    %v4626 = vadd.f32 %v4544, %v4625
    %v4627 = vpop.f32.mrb[0].mxu0
    %v4628 = vadd.f32 %v4546, %v4627
    %4629 = vdwg.mxu0
    %v4630 = vand.u32 %v4003, 4294901760
    %v4631 = vsub.f32 %v4003, %v4630
    %4632 = vmatprep.subr.mxu0 %v4631
    %v4633 = vand.u32 %v4000, 4294901760
    %v4634 = vsub.f32 %v4000, %v4633
    %4635 = vmatpush1.msra.mxu0 %v4634
    %4636 = vmatprep.subr.mxu0 0.0
    %4637 = vmatpush1.msra.mxu0 0.0
    %4638 = vmatprep.subr.mxu0 0.0
    %4639 = vmatpush1.msra.mxu0 0.0
    %4640 = vmatprep.subr.mxu0 0.0
    %4641 = vmatpush1.msra.mxu0 0.0
    %4642 = vmatprep.subr.mxu0 0.0
    %4643 = vmatpush1.msra.mxu0 0.0
    %4644 = vmatprep.subr.mxu0 0.0
    %4645 = vmatpush1.msra.mxu0 0.0
    %4646 = vmatprep.subr.mxu0 0.0
    %4647 = vmatpush1.msra.mxu0 0.0
    %4648 = vmatprep.subr.mxu0 0.0
    %4649 = vmatpush1.msra.mxu0 0.0
    %4650 = vmatprep.subr.mxu0 0.0
    %4651 = vmatpush1.msra.mxu0 0.0
    %4652 = vmatprep.subr.mxu0 0.0
    %4653 = vmatpush1.msra.mxu0 0.0
    %4654 = vmatprep.subr.mxu0 0.0
    %4655 = vmatpush1.msra.mxu0 0.0
    %4656 = vmatprep.subr.mxu0 0.0
    %4657 = vmatpush1.msra.mxu0 0.0
    %4658 = vmatprep.subr.mxu0 0.0
    %4659 = vmatpush1.msra.mxu0 0.0
    %4660 = vmatprep.subr.mxu0 0.0
    %4661 = vmatpush1.msra.mxu0 0.0
    %4662 = vmatprep.subr.mxu0 0.0
    %4663 = vmatpush1.msra.mxu0 0.0
    %4664 = vmatprep.subr.mxu0 0.0
    %4665 = vmatpush1.msra.mxu0 0.0
    %4666 = vmatprep.subr.mxu0 0.0
    %4667 = vmatpush1.msra.mxu0 0.0
    %4668 = vmatprep.subr.mxu0 0.0
    %4669 = vmatpush1.msra.mxu0 0.0
    %4670 = vmatprep.subr.mxu0 0.0
    %4671 = vmatpush1.msra.mxu0 0.0
    %4672 = vmatprep.subr.mxu0 0.0
    %4673 = vmatpush1.msra.mxu0 0.0
    %4674 = vmatprep.subr.mxu0 0.0
    %4675 = vmatpush1.msra.mxu0 0.0
    %4676 = vmatprep.subr.mxu0 0.0
    %4677 = vmatpush1.msra.mxu0 0.0
    %4678 = vmatprep.subr.mxu0 0.0
    %4679 = vmatpush1.msra.mxu0 0.0
    %4680 = vmatprep.subr.mxu0 0.0
    %4681 = vmatpush1.msra.mxu0 0.0
    %4682 = vmatprep.subr.mxu0 0.0
    %4683 = vmatpush1.msra.mxu0 0.0
    %4684 = vmatprep.subr.mxu0 0.0
    %4685 = vmatpush1.msra.mxu0 0.0
    %4686 = vmatprep.subr.mxu0 0.0
    %4687 = vmatpush1.msra.mxu0 0.0
    %4688 = vmatprep.subr.mxu0 0.0
    %4689 = vmatpush1.msra.mxu0 0.0
    %4690 = vmatprep.subr.mxu0 0.0
    %4691 = vmatpush1.msra.mxu0 0.0
    %4692 = vmatprep.subr.mxu0 0.0
    %4693 = vmatpush1.msra.mxu0 0.0
    %4694 = vmatprep.subr.mxu0 0.0
    %4695 = vmatpush1.msra.mxu0 0.0
    %4696 = vmatprep.subr.mxu0 0.0
    %4697 = vmatpush1.msra.mxu0 0.0
    %4698 = vmatprep.mubr.f32.mxu0 0.0
    %v4699 = vand.u32 %v3991, 4294901760
    %v4700 = vsub.f32 %v3991, %v4699
    %4701 = vmatmul.mubr.f32.gmra.mrb[0].mxu0 %v4700
    %v4702 = vpop.f32.mrb[0].mxu0
    %v4703 = vadd.f32 %v4626, %v4702
    %v4704 = vpop.f32.mrb[0].mxu0
    %v4705 = vadd.f32 %v4628, %v4704
    %4706 = vdwg.mxu0
    %v4707 = vand.u32 %v4003, 4294901760
    %4708 = vmatprep.subr.mxu0 %v4707
    %v4709 = vand.u32 %v4000, 4294901760
    %4710 = vmatpush1.msra.mxu0 %v4709
    %4711 = vmatprep.subr.mxu0 0.0
    %4712 = vmatpush1.msra.mxu0 0.0
    %4713 = vmatprep.subr.mxu0 0.0
    %4714 = vmatpush1.msra.mxu0 0.0
    %4715 = vmatprep.subr.mxu0 0.0
    %4716 = vmatpush1.msra.mxu0 0.0
    %4717 = vmatprep.subr.mxu0 0.0
    %4718 = vmatpush1.msra.mxu0 0.0
    %4719 = vmatprep.subr.mxu0 0.0
    %4720 = vmatpush1.msra.mxu0 0.0
    %4721 = vmatprep.subr.mxu0 0.0
    %4722 = vmatpush1.msra.mxu0 0.0
    %4723 = vmatprep.subr.mxu0 0.0
    %4724 = vmatpush1.msra.mxu0 0.0
    %4725 = vmatprep.subr.mxu0 0.0
    %4726 = vmatpush1.msra.mxu0 0.0
    %4727 = vmatprep.subr.mxu0 0.0
    %4728 = vmatpush1.msra.mxu0 0.0
    %4729 = vmatprep.subr.mxu0 0.0
    %4730 = vmatpush1.msra.mxu0 0.0
    %4731 = vmatprep.subr.mxu0 0.0
    %4732 = vmatpush1.msra.mxu0 0.0
    %4733 = vmatprep.subr.mxu0 0.0
    %4734 = vmatpush1.msra.mxu0 0.0
    %4735 = vmatprep.subr.mxu0 0.0
    %4736 = vmatpush1.msra.mxu0 0.0
    %4737 = vmatprep.subr.mxu0 0.0
    %4738 = vmatpush1.msra.mxu0 0.0
    %4739 = vmatprep.subr.mxu0 0.0
    %4740 = vmatpush1.msra.mxu0 0.0
    %4741 = vmatprep.subr.mxu0 0.0
    %4742 = vmatpush1.msra.mxu0 0.0
    %4743 = vmatprep.subr.mxu0 0.0
    %4744 = vmatpush1.msra.mxu0 0.0
    %4745 = vmatprep.subr.mxu0 0.0
    %4746 = vmatpush1.msra.mxu0 0.0
    %4747 = vmatprep.subr.mxu0 0.0
    %4748 = vmatpush1.msra.mxu0 0.0
    %4749 = vmatprep.subr.mxu0 0.0
    %4750 = vmatpush1.msra.mxu0 0.0
    %4751 = vmatprep.subr.mxu0 0.0
    %4752 = vmatpush1.msra.mxu0 0.0
    %4753 = vmatprep.subr.mxu0 0.0
    %4754 = vmatpush1.msra.mxu0 0.0
    %4755 = vmatprep.subr.mxu0 0.0
    %4756 = vmatpush1.msra.mxu0 0.0
    %4757 = vmatprep.subr.mxu0 0.0
    %4758 = vmatpush1.msra.mxu0 0.0
    %4759 = vmatprep.subr.mxu0 0.0
    %4760 = vmatpush1.msra.mxu0 0.0
    %4761 = vmatprep.subr.mxu0 0.0
    %4762 = vmatpush1.msra.mxu0 0.0
    %4763 = vmatprep.subr.mxu0 0.0
    %4764 = vmatpush1.msra.mxu0 0.0
    %4765 = vmatprep.subr.mxu0 0.0
    %4766 = vmatpush1.msra.mxu0 0.0
    %4767 = vmatprep.subr.mxu0 0.0
    %4768 = vmatpush1.msra.mxu0 0.0
    %4769 = vmatprep.subr.mxu0 0.0
    %4770 = vmatpush1.msra.mxu0 0.0
    %4771 = vmatprep.subr.mxu0 0.0
    %4772 = vmatpush1.msra.mxu0 0.0
    %4773 = vmatprep.mubr.f32.mxu0 0.0
    %v4774 = vand.u32 %v3991, 4294901760
    %v4775 = vsub.f32 %v3991, %v4774
    %v4776 = vand.u32 %v4775, 4294901760
    %4777 = vmatmul.mubr.f32.gmra.mrb[0].mxu0 %v4776
    %v4778 = vpop.f32.mrb[0].mxu0
    %v4779 = vadd.f32 %v4703, %v4778
    %v4780 = vpop.f32.mrb[0].mxu0
    %v4781 = vadd.f32 %v4705, %v4780
    %4782 = vdwg.mxu0
    %v4783 = vand.u32 %v4003, 4294901760
    %v4784 = vsub.f32 %v4003, %v4783
    %v4785 = vand.u32 %v4784, 4294901760
    %4786 = vmatprep.subr.mxu0 %v4785
    %v4787 = vand.u32 %v4000, 4294901760
    %v4788 = vsub.f32 %v4000, %v4787
    %v4789 = vand.u32 %v4788, 4294901760
    %4790 = vmatpush1.msra.mxu0 %v4789
    %4791 = vmatprep.subr.mxu0 0.0
    %4792 = vmatpush1.msra.mxu0 0.0
    %4793 = vmatprep.subr.mxu0 0.0
    %4794 = vmatpush1.msra.mxu0 0.0
    %4795 = vmatprep.subr.mxu0 0.0
    %4796 = vmatpush1.msra.mxu0 0.0
    %4797 = vmatprep.subr.mxu0 0.0
    %4798 = vmatpush1.msra.mxu0 0.0
    %4799 = vmatprep.subr.mxu0 0.0
    %4800 = vmatpush1.msra.mxu0 0.0
    %4801 = vmatprep.subr.mxu0 0.0
    %4802 = vmatpush1.msra.mxu0 0.0
    %4803 = vmatprep.subr.mxu0 0.0
    %4804 = vmatpush1.msra.mxu0 0.0
    %4805 = vmatprep.subr.mxu0 0.0
    %4806 = vmatpush1.msra.mxu0 0.0
    %4807 = vmatprep.subr.mxu0 0.0
    %4808 = vmatpush1.msra.mxu0 0.0
    %4809 = vmatprep.subr.mxu0 0.0
    %4810 = vmatpush1.msra.mxu0 0.0
    %4811 = vmatprep.subr.mxu0 0.0
    %4812 = vmatpush1.msra.mxu0 0.0
    %4813 = vmatprep.subr.mxu0 0.0
    %4814 = vmatpush1.msra.mxu0 0.0
    %4815 = vmatprep.subr.mxu0 0.0
    %4816 = vmatpush1.msra.mxu0 0.0
    %4817 = vmatprep.subr.mxu0 0.0
    %4818 = vmatpush1.msra.mxu0 0.0
    %4819 = vmatprep.subr.mxu0 0.0
    %4820 = vmatpush1.msra.mxu0 0.0
    %4821 = vmatprep.subr.mxu0 0.0
    %4822 = vmatpush1.msra.mxu0 0.0
    %4823 = vmatprep.subr.mxu0 0.0
    %4824 = vmatpush1.msra.mxu0 0.0
    %4825 = vmatprep.subr.mxu0 0.0
    %4826 = vmatpush1.msra.mxu0 0.0
    %4827 = vmatprep.subr.mxu0 0.0
    %4828 = vmatpush1.msra.mxu0 0.0
    %4829 = vmatprep.subr.mxu0 0.0
    %4830 = vmatpush1.msra.mxu0 0.0
    %4831 = vmatprep.subr.mxu0 0.0
    %4832 = vmatpush1.msra.mxu0 0.0
    %4833 = vmatprep.subr.mxu0 0.0
    %4834 = vmatpush1.msra.mxu0 0.0
    %4835 = vmatprep.subr.mxu0 0.0
    %4836 = vmatpush1.msra.mxu0 0.0
    %4837 = vmatprep.subr.mxu0 0.0
    %4838 = vmatpush1.msra.mxu0 0.0
    %4839 = vmatprep.subr.mxu0 0.0
    %4840 = vmatpush1.msra.mxu0 0.0
    %4841 = vmatprep.subr.mxu0 0.0
    %4842 = vmatpush1.msra.mxu0 0.0
    %4843 = vmatprep.subr.mxu0 0.0
    %4844 = vmatpush1.msra.mxu0 0.0
    %4845 = vmatprep.subr.mxu0 0.0
    %4846 = vmatpush1.msra.mxu0 0.0
    %4847 = vmatprep.subr.mxu0 0.0
    %4848 = vmatpush1.msra.mxu0 0.0
    %4849 = vmatprep.subr.mxu0 0.0
    %4850 = vmatpush1.msra.mxu0 0.0
    %4851 = vmatprep.subr.mxu0 0.0
    %4852 = vmatpush1.msra.mxu0 0.0
    %4853 = vmatprep.mubr.f32.mxu0 0.0
    %v4854 = vand.u32 %v3991, 4294901760
    %4855 = vmatmul.mubr.f32.gmra.mrb[0].mxu0 %v4854
    %v4856 = vpop.f32.mrb[0].mxu0
    %v4857 = vadd.f32 %v4779, %v4856
    %v4858 = vpop.f32.mrb[0].mxu0
    %v4859 = vadd.f32 %v4781, %v4858
    %4860 = vdwg.mxu0
    %v4861 = vand.u32 %v4003, 4294901760
    %4862 = vmatprep.subr.mxu0 %v4861
    %v4863 = vand.u32 %v4000, 4294901760
    %4864 = vmatpush1.msra.mxu0 %v4863
    %4865 = vmatprep.subr.mxu0 0.0
    %4866 = vmatpush1.msra.mxu0 0.0
    %4867 = vmatprep.subr.mxu0 0.0
    %4868 = vmatpush1.msra.mxu0 0.0
    %4869 = vmatprep.subr.mxu0 0.0
    %4870 = vmatpush1.msra.mxu0 0.0
    %4871 = vmatprep.subr.mxu0 0.0
    %4872 = vmatpush1.msra.mxu0 0.0
    %4873 = vmatprep.subr.mxu0 0.0
    %4874 = vmatpush1.msra.mxu0 0.0
    %4875 = vmatprep.subr.mxu0 0.0
    %4876 = vmatpush1.msra.mxu0 0.0
    %4877 = vmatprep.subr.mxu0 0.0
    %4878 = vmatpush1.msra.mxu0 0.0
    %4879 = vmatprep.subr.mxu0 0.0
    %4880 = vmatpush1.msra.mxu0 0.0
    %4881 = vmatprep.subr.mxu0 0.0
    %4882 = vmatpush1.msra.mxu0 0.0
    %4883 = vmatprep.subr.mxu0 0.0
    %4884 = vmatpush1.msra.mxu0 0.0
    %4885 = vmatprep.subr.mxu0 0.0
    %4886 = vmatpush1.msra.mxu0 0.0
    %4887 = vmatprep.subr.mxu0 0.0
    %4888 = vmatpush1.msra.mxu0 0.0
    %4889 = vmatprep.subr.mxu0 0.0
    %4890 = vmatpush1.msra.mxu0 0.0
    %4891 = vmatprep.subr.mxu0 0.0
    %4892 = vmatpush1.msra.mxu0 0.0
    %4893 = vmatprep.subr.mxu0 0.0
    %4894 = vmatpush1.msra.mxu0 0.0
    %4895 = vmatprep.subr.mxu0 0.0
    %4896 = vmatpush1.msra.mxu0 0.0
    %4897 = vmatprep.subr.mxu0 0.0
    %4898 = vmatpush1.msra.mxu0 0.0
    %4899 = vmatprep.subr.mxu0 0.0
    %4900 = vmatpush1.msra.mxu0 0.0
    %4901 = vmatprep.subr.mxu0 0.0
    %4902 = vmatpush1.msra.mxu0 0.0
    %4903 = vmatprep.subr.mxu0 0.0
    %4904 = vmatpush1.msra.mxu0 0.0
    %4905 = vmatprep.subr.mxu0 0.0
    %4906 = vmatpush1.msra.mxu0 0.0
    %4907 = vmatprep.subr.mxu0 0.0
    %4908 = vmatpush1.msra.mxu0 0.0
    %4909 = vmatprep.subr.mxu0 0.0
    %4910 = vmatpush1.msra.mxu0 0.0
    %4911 = vmatprep.subr.mxu0 0.0
    %4912 = vmatpush1.msra.mxu0 0.0
    %4913 = vmatprep.subr.mxu0 0.0
    %4914 = vmatpush1.msra.mxu0 0.0
    %4915 = vmatprep.subr.mxu0 0.0
    %4916 = vmatpush1.msra.mxu0 0.0
    %4917 = vmatprep.subr.mxu0 0.0
    %4918 = vmatpush1.msra.mxu0 0.0
    %4919 = vmatprep.subr.mxu0 0.0
    %4920 = vmatpush1.msra.mxu0 0.0
    %4921 = vmatprep.subr.mxu0 0.0
    %4922 = vmatpush1.msra.mxu0 0.0
    %4923 = vmatprep.subr.mxu0 0.0
    %4924 = vmatpush1.msra.mxu0 0.0
    %4925 = vmatprep.subr.mxu0 0.0
    %4926 = vmatpush1.msra.mxu0 0.0
    %4927 = vmatprep.mubr.f32.mxu0 0.0
    %v4928 = vand.u32 %v3991, 4294901760
    %4929 = vmatmul.mubr.f32.gmra.mrb[0].mxu0 %v4928
    %v4930 = vpop.f32.mrb[0].mxu0
    %v4931 = vadd.f32 %v4857, %v4930
    %v4932 = vpop.f32.mrb[0].mxu0
    %v4933 = vadd.f32 %v4859, %v4932
    %4934 = vdwg.mxu0
    %v4935 = vld [vmem:[#allocation2] sm:$0xff]
    %v4936 = vld [vmem:[#allocation2 + $0x8] sm:$0xff]
    %v4937 = vsel %vm41, 1, 0
    %v4938 = vsel %vm42, 1, 0
    %v4939 = vsel %vm43, 1, 0
    %v4940 = vsel %vm44, 1, 0
    %vm4941 = vcmp.eq.s32.totalorder %v4937, 1
    %vm4942 = vcmp.eq.s32.totalorder %v4938, 1
    %vm4943 = vcmp.eq.s32.totalorder %v4939, 1
    %vm4944 = vcmp.eq.s32.totalorder %v4940, 1
    %v4945 = vsel %vm4941, %v4466, 0.0
    %v4946 = vsel %vm4942, %v4468, 0.0
    %v4947 = vsel %vm4943, %v4931, 0.0
    %v4948 = vsel %vm4944, %v4933, 0.0
    %v4953 = vcombine.low %v4945, %v4946
    %v4954 = vcombine.low %v4947, %v4948
    %v4957 = vadd.f32 %v4935, %v4953
    %v4958 = vadd.f32 %v4936, %v4954
    %4959 = vst [vmem:[#allocation2] sm:$0xff] %v4957
    %4960 = vst [vmem:[#allocation2 + $0x8] sm:$0xff] %v4958
    %4961 = vrot.lane.b32.xlu0 %v18, 127
    %v4962 = vpop.permute.xlu0 %4961
    %4963 = vrot.lane.b32.xlu0 %v53, 127
    %v4964 = vpop.permute.xlu0 %4963
    %4965 = vrot.lane.b32.xlu0 %v19, 127
    %v4966 = vpop.permute.xlu0 %4965
    %4967 = vrot.lane.b32.xlu0 %v54, 127
    %v4968 = vpop.permute.xlu0 %4967
    %vm4969 = vcmp.lt.s32.totalorder %v21, 127
    %v4970 = vsel %vm4969, %v4966, %v4968
    %v4971 = vsel %vm4969, %v4964, %v4966
    %v4972 = vsel %vm4969, %v4962, %v4964
    %v4973 = vsel %vm4969, %v4968, %v4962
    %s4974 = scalar_lea.vmem %s1, 20
    %v4975 = vld [vmem:[%s4974] sm:$0xf]
    %v4977 = vsel %vm55, %v4975, 0
    %v4980 = vsel %vm59, %v4972, 0
    %v4983 = vsel %vm59, %v4971, 0
    %v4986 = vsel %vm59, %v4970, 0
    %v4989 = vsel %vm59, %v4973, 0
    %v4991 = vand.u32 %v4983, 4294901760
    %4992 = vmatprep.subr.mxu0 %v4991
    %v4993 = vand.u32 %v4980, 4294901760
    %4994 = vmatpush1.msra.mxu0 %v4993
    %4995 = vmatprep.subr.mxu0 0.0
    %4996 = vmatpush1.msra.mxu0 0.0
    %4997 = vmatprep.subr.mxu0 0.0
    %4998 = vmatpush1.msra.mxu0 0.0
    %4999 = vmatprep.subr.mxu0 0.0
    %5000 = vmatpush1.msra.mxu0 0.0
    %5001 = vmatprep.subr.mxu0 0.0
    %5002 = vmatpush1.msra.mxu0 0.0
    %5003 = vmatprep.subr.mxu0 0.0
    %5004 = vmatpush1.msra.mxu0 0.0
    %5005 = vmatprep.subr.mxu0 0.0
    %5006 = vmatpush1.msra.mxu0 0.0
    %5007 = vmatprep.subr.mxu0 0.0
    %5008 = vmatpush1.msra.mxu0 0.0
    %5009 = vmatprep.subr.mxu0 0.0
    %5010 = vmatpush1.msra.mxu0 0.0
    %5011 = vmatprep.subr.mxu0 0.0
    %5012 = vmatpush1.msra.mxu0 0.0
    %5013 = vmatprep.subr.mxu0 0.0
    %5014 = vmatpush1.msra.mxu0 0.0
    %5015 = vmatprep.subr.mxu0 0.0
    %5016 = vmatpush1.msra.mxu0 0.0
    %5017 = vmatprep.subr.mxu0 0.0
    %5018 = vmatpush1.msra.mxu0 0.0
    %5019 = vmatprep.subr.mxu0 0.0
    %5020 = vmatpush1.msra.mxu0 0.0
    %5021 = vmatprep.subr.mxu0 0.0
    %5022 = vmatpush1.msra.mxu0 0.0
    %5023 = vmatprep.subr.mxu0 0.0
    %5024 = vmatpush1.msra.mxu0 0.0
    %5025 = vmatprep.subr.mxu0 0.0
    %5026 = vmatpush1.msra.mxu0 0.0
    %5027 = vmatprep.subr.mxu0 0.0
    %5028 = vmatpush1.msra.mxu0 0.0
    %5029 = vmatprep.subr.mxu0 0.0
    %5030 = vmatpush1.msra.mxu0 0.0
    %5031 = vmatprep.subr.mxu0 0.0
    %5032 = vmatpush1.msra.mxu0 0.0
    %5033 = vmatprep.subr.mxu0 0.0
    %5034 = vmatpush1.msra.mxu0 0.0
    %5035 = vmatprep.subr.mxu0 0.0
    %5036 = vmatpush1.msra.mxu0 0.0
    %5037 = vmatprep.subr.mxu0 0.0
    %5038 = vmatpush1.msra.mxu0 0.0
    %5039 = vmatprep.subr.mxu0 0.0
    %5040 = vmatpush1.msra.mxu0 0.0
    %5041 = vmatprep.subr.mxu0 0.0
    %5042 = vmatpush1.msra.mxu0 0.0
    %5043 = vmatprep.subr.mxu0 0.0
    %5044 = vmatpush1.msra.mxu0 0.0
    %5045 = vmatprep.subr.mxu0 0.0
    %5046 = vmatpush1.msra.mxu0 0.0
    %5047 = vmatprep.subr.mxu0 0.0
    %5048 = vmatpush1.msra.mxu0 0.0
    %5049 = vmatprep.subr.mxu0 0.0
    %5050 = vmatpush1.msra.mxu0 0.0
    %5051 = vmatprep.subr.mxu0 0.0
    %5052 = vmatpush1.msra.mxu0 0.0
    %5053 = vmatprep.subr.mxu0 0.0
    %5054 = vmatpush1.msra.mxu0 0.0
    %5055 = vmatprep.subr.mxu0 0.0
    %5056 = vmatpush1.msra.mxu0 0.0
    %5057 = vmatprep.mubr.f32.mxu0 0.0
    %v5058 = vand.u32 %v4977, 4294901760
    %v5059 = vsub.f32 %v4977, %v5058
    %v5060 = vand.u32 %v5059, 4294901760
    %v5061 = vsub.f32 %v5059, %v5060
    %v5062 = vand.u32 %v5061, 4294901760
    %5063 = vmatmul.mubr.f32.gmra.mrb[0].mxu0 %v5062
    %v5064 = vpop.f32.mrb[0].mxu0
    %v5065 = vadd.f32 0.0, %v5064
    %v5066 = vpop.f32.mrb[0].mxu0
    %v5067 = vadd.f32 0.0, %v5066
    %5068 = vdwg.mxu0
    %v5069 = vand.u32 %v4983, 4294901760
    %v5070 = vsub.f32 %v4983, %v5069
    %v5071 = vand.u32 %v5070, 4294901760
    %v5072 = vsub.f32 %v5070, %v5071
    %v5073 = vand.u32 %v5072, 4294901760
    %5074 = vmatprep.subr.mxu0 %v5073
    %v5075 = vand.u32 %v4980, 4294901760
    %v5076 = vsub.f32 %v4980, %v5075
    %v5077 = vand.u32 %v5076, 4294901760
    %v5078 = vsub.f32 %v5076, %v5077
    %v5079 = vand.u32 %v5078, 4294901760
    %5080 = vmatpush1.msra.mxu0 %v5079
    %5081 = vmatprep.subr.mxu0 0.0
    %5082 = vmatpush1.msra.mxu0 0.0
    %5083 = vmatprep.subr.mxu0 0.0
    %5084 = vmatpush1.msra.mxu0 0.0
    %5085 = vmatprep.subr.mxu0 0.0
    %5086 = vmatpush1.msra.mxu0 0.0
    %5087 = vmatprep.subr.mxu0 0.0
    %5088 = vmatpush1.msra.mxu0 0.0
    %5089 = vmatprep.subr.mxu0 0.0
    %5090 = vmatpush1.msra.mxu0 0.0
    %5091 = vmatprep.subr.mxu0 0.0
    %5092 = vmatpush1.msra.mxu0 0.0
    %5093 = vmatprep.subr.mxu0 0.0
    %5094 = vmatpush1.msra.mxu0 0.0
    %5095 = vmatprep.subr.mxu0 0.0
    %5096 = vmatpush1.msra.mxu0 0.0
    %5097 = vmatprep.subr.mxu0 0.0
    %5098 = vmatpush1.msra.mxu0 0.0
    %5099 = vmatprep.subr.mxu0 0.0
    %5100 = vmatpush1.msra.mxu0 0.0
    %5101 = vmatprep.subr.mxu0 0.0
    %5102 = vmatpush1.msra.mxu0 0.0
    %5103 = vmatprep.subr.mxu0 0.0
    %5104 = vmatpush1.msra.mxu0 0.0
    %5105 = vmatprep.subr.mxu0 0.0
    %5106 = vmatpush1.msra.mxu0 0.0
    %5107 = vmatprep.subr.mxu0 0.0
    %5108 = vmatpush1.msra.mxu0 0.0
    %5109 = vmatprep.subr.mxu0 0.0
    %5110 = vmatpush1.msra.mxu0 0.0
    %5111 = vmatprep.subr.mxu0 0.0
    %5112 = vmatpush1.msra.mxu0 0.0
    %5113 = vmatprep.subr.mxu0 0.0
    %5114 = vmatpush1.msra.mxu0 0.0
    %5115 = vmatprep.subr.mxu0 0.0
    %5116 = vmatpush1.msra.mxu0 0.0
    %5117 = vmatprep.subr.mxu0 0.0
    %5118 = vmatpush1.msra.mxu0 0.0
    %5119 = vmatprep.subr.mxu0 0.0
    %5120 = vmatpush1.msra.mxu0 0.0
    %5121 = vmatprep.subr.mxu0 0.0
    %5122 = vmatpush1.msra.mxu0 0.0
    %5123 = vmatprep.subr.mxu0 0.0
    %5124 = vmatpush1.msra.mxu0 0.0
    %5125 = vmatprep.subr.mxu0 0.0
    %5126 = vmatpush1.msra.mxu0 0.0
    %5127 = vmatprep.subr.mxu0 0.0
    %5128 = vmatpush1.msra.mxu0 0.0
    %5129 = vmatprep.subr.mxu0 0.0
    %5130 = vmatpush1.msra.mxu0 0.0
    %5131 = vmatprep.subr.mxu0 0.0
    %5132 = vmatpush1.msra.mxu0 0.0
    %5133 = vmatprep.subr.mxu0 0.0
    %5134 = vmatpush1.msra.mxu0 0.0
    %5135 = vmatprep.subr.mxu0 0.0
    %5136 = vmatpush1.msra.mxu0 0.0
    %5137 = vmatprep.subr.mxu0 0.0
    %5138 = vmatpush1.msra.mxu0 0.0
    %5139 = vmatprep.subr.mxu0 0.0
    %5140 = vmatpush1.msra.mxu0 0.0
    %5141 = vmatprep.subr.mxu0 0.0
    %5142 = vmatpush1.msra.mxu0 0.0
    %5143 = vmatprep.mubr.f32.mxu0 0.0
    %v5144 = vand.u32 %v4977, 4294901760
    %5145 = vmatmul.mubr.f32.gmra.mrb[0].mxu0 %v5144
    %v5146 = vpop.f32.mrb[0].mxu0
    %v5147 = vadd.f32 %v5065, %v5146
    %v5148 = vpop.f32.mrb[0].mxu0
    %v5149 = vadd.f32 %v5067, %v5148
    %5150 = vdwg.mxu0
    %v5151 = vand.u32 %v4983, 4294901760
    %v5152 = vsub.f32 %v4983, %v5151
    %5153 = vmatprep.subr.mxu0 %v5152
    %v5154 = vand.u32 %v4980, 4294901760
    %v5155 = vsub.f32 %v4980, %v5154
    %5156 = vmatpush1.msra.mxu0 %v5155
    %5157 = vmatprep.subr.mxu0 0.0
    %5158 = vmatpush1.msra.mxu0 0.0
    %5159 = vmatprep.subr.mxu0 0.0
    %5160 = vmatpush1.msra.mxu0 0.0
    %5161 = vmatprep.subr.mxu0 0.0
    %5162 = vmatpush1.msra.mxu0 0.0
    %5163 = vmatprep.subr.mxu0 0.0
    %5164 = vmatpush1.msra.mxu0 0.0
    %5165 = vmatprep.subr.mxu0 0.0
    %5166 = vmatpush1.msra.mxu0 0.0
    %5167 = vmatprep.subr.mxu0 0.0
    %5168 = vmatpush1.msra.mxu0 0.0
    %5169 = vmatprep.subr.mxu0 0.0
    %5170 = vmatpush1.msra.mxu0 0.0
    %5171 = vmatprep.subr.mxu0 0.0
    %5172 = vmatpush1.msra.mxu0 0.0
    %5173 = vmatprep.subr.mxu0 0.0
    %5174 = vmatpush1.msra.mxu0 0.0
    %5175 = vmatprep.subr.mxu0 0.0
    %5176 = vmatpush1.msra.mxu0 0.0
    %5177 = vmatprep.subr.mxu0 0.0
    %5178 = vmatpush1.msra.mxu0 0.0
    %5179 = vmatprep.subr.mxu0 0.0
    %5180 = vmatpush1.msra.mxu0 0.0
    %5181 = vmatprep.subr.mxu0 0.0
    %5182 = vmatpush1.msra.mxu0 0.0
    %5183 = vmatprep.subr.mxu0 0.0
    %5184 = vmatpush1.msra.mxu0 0.0
    %5185 = vmatprep.subr.mxu0 0.0
    %5186 = vmatpush1.msra.mxu0 0.0
    %5187 = vmatprep.subr.mxu0 0.0
    %5188 = vmatpush1.msra.mxu0 0.0
    %5189 = vmatprep.subr.mxu0 0.0
    %5190 = vmatpush1.msra.mxu0 0.0
    %5191 = vmatprep.subr.mxu0 0.0
    %5192 = vmatpush1.msra.mxu0 0.0
    %5193 = vmatprep.subr.mxu0 0.0
    %5194 = vmatpush1.msra.mxu0 0.0
    %5195 = vmatprep.subr.mxu0 0.0
    %5196 = vmatpush1.msra.mxu0 0.0
    %5197 = vmatprep.subr.mxu0 0.0
    %5198 = vmatpush1.msra.mxu0 0.0
    %5199 = vmatprep.subr.mxu0 0.0
    %5200 = vmatpush1.msra.mxu0 0.0
    %5201 = vmatprep.subr.mxu0 0.0
    %5202 = vmatpush1.msra.mxu0 0.0
    %5203 = vmatprep.subr.mxu0 0.0
    %5204 = vmatpush1.msra.mxu0 0.0
    %5205 = vmatprep.subr.mxu0 0.0
    %5206 = vmatpush1.msra.mxu0 0.0
    %5207 = vmatprep.subr.mxu0 0.0
    %5208 = vmatpush1.msra.mxu0 0.0
    %5209 = vmatprep.subr.mxu0 0.0
    %5210 = vmatpush1.msra.mxu0 0.0
    %5211 = vmatprep.subr.mxu0 0.0
    %5212 = vmatpush1.msra.mxu0 0.0
    %5213 = vmatprep.subr.mxu0 0.0
    %5214 = vmatpush1.msra.mxu0 0.0
    %5215 = vmatprep.subr.mxu0 0.0
    %5216 = vmatpush1.msra.mxu0 0.0
    %5217 = vmatprep.subr.mxu0 0.0
    %5218 = vmatpush1.msra.mxu0 0.0
    %5219 = vmatprep.mubr.f32.mxu0 0.0
    %v5220 = vand.u32 %v4977, 4294901760
    %v5221 = vsub.f32 %v4977, %v5220
    %5222 = vmatmul.mubr.f32.gmra.mrb[0].mxu0 %v5221
    %v5223 = vpop.f32.mrb[0].mxu0
    %v5224 = vadd.f32 %v5147, %v5223
    %v5225 = vpop.f32.mrb[0].mxu0
    %v5226 = vadd.f32 %v5149, %v5225
    %5227 = vdwg.mxu0
    %v5228 = vand.u32 %v4983, 4294901760
    %5229 = vmatprep.subr.mxu0 %v5228
    %v5230 = vand.u32 %v4980, 4294901760
    %5231 = vmatpush1.msra.mxu0 %v5230
    %5232 = vmatprep.subr.mxu0 0.0
    %5233 = vmatpush1.msra.mxu0 0.0
    %5234 = vmatprep.subr.mxu0 0.0
    %5235 = vmatpush1.msra.mxu0 0.0
    %5236 = vmatprep.subr.mxu0 0.0
    %5237 = vmatpush1.msra.mxu0 0.0
    %5238 = vmatprep.subr.mxu0 0.0
    %5239 = vmatpush1.msra.mxu0 0.0
    %5240 = vmatprep.subr.mxu0 0.0
    %5241 = vmatpush1.msra.mxu0 0.0
    %5242 = vmatprep.subr.mxu0 0.0
    %5243 = vmatpush1.msra.mxu0 0.0
    %5244 = vmatprep.subr.mxu0 0.0
    %5245 = vmatpush1.msra.mxu0 0.0
    %5246 = vmatprep.subr.mxu0 0.0
    %5247 = vmatpush1.msra.mxu0 0.0
    %5248 = vmatprep.subr.mxu0 0.0
    %5249 = vmatpush1.msra.mxu0 0.0
    %5250 = vmatprep.subr.mxu0 0.0
    %5251 = vmatpush1.msra.mxu0 0.0
    %5252 = vmatprep.subr.mxu0 0.0
    %5253 = vmatpush1.msra.mxu0 0.0
    %5254 = vmatprep.subr.mxu0 0.0
    %5255 = vmatpush1.msra.mxu0 0.0
    %5256 = vmatprep.subr.mxu0 0.0
    %5257 = vmatpush1.msra.mxu0 0.0
    %5258 = vmatprep.subr.mxu0 0.0
    %5259 = vmatpush1.msra.mxu0 0.0
    %5260 = vmatprep.subr.mxu0 0.0
    %5261 = vmatpush1.msra.mxu0 0.0
    %5262 = vmatprep.subr.mxu0 0.0
    %5263 = vmatpush1.msra.mxu0 0.0
    %5264 = vmatprep.subr.mxu0 0.0
    %5265 = vmatpush1.msra.mxu0 0.0
    %5266 = vmatprep.subr.mxu0 0.0
    %5267 = vmatpush1.msra.mxu0 0.0
    %5268 = vmatprep.subr.mxu0 0.0
    %5269 = vmatpush1.msra.mxu0 0.0
    %5270 = vmatprep.subr.mxu0 0.0
    %5271 = vmatpush1.msra.mxu0 0.0
    %5272 = vmatprep.subr.mxu0 0.0
    %5273 = vmatpush1.msra.mxu0 0.0
    %5274 = vmatprep.subr.mxu0 0.0
    %5275 = vmatpush1.msra.mxu0 0.0
    %5276 = vmatprep.subr.mxu0 0.0
    %5277 = vmatpush1.msra.mxu0 0.0
    %5278 = vmatprep.subr.mxu0 0.0
    %5279 = vmatpush1.msra.mxu0 0.0
    %5280 = vmatprep.subr.mxu0 0.0
    %5281 = vmatpush1.msra.mxu0 0.0
    %5282 = vmatprep.subr.mxu0 0.0
    %5283 = vmatpush1.msra.mxu0 0.0
    %5284 = vmatprep.subr.mxu0 0.0
    %5285 = vmatpush1.msra.mxu0 0.0
    %5286 = vmatprep.subr.mxu0 0.0
    %5287 = vmatpush1.msra.mxu0 0.0
    %5288 = vmatprep.subr.mxu0 0.0
    %5289 = vmatpush1.msra.mxu0 0.0
    %5290 = vmatprep.subr.mxu0 0.0
    %5291 = vmatpush1.msra.mxu0 0.0
    %5292 = vmatprep.subr.mxu0 0.0
    %5293 = vmatpush1.msra.mxu0 0.0
    %5294 = vmatprep.mubr.f32.mxu0 0.0
    %v5295 = vand.u32 %v4977, 4294901760
    %v5296 = vsub.f32 %v4977, %v5295
    %v5297 = vand.u32 %v5296, 4294901760
    %5298 = vmatmul.mubr.f32.gmra.mrb[0].mxu0 %v5297
    %v5299 = vpop.f32.mrb[0].mxu0
    %v5300 = vadd.f32 %v5224, %v5299
    %v5301 = vpop.f32.mrb[0].mxu0
    %v5302 = vadd.f32 %v5226, %v5301
    %5303 = vdwg.mxu0
    %v5304 = vand.u32 %v4983, 4294901760
    %v5305 = vsub.f32 %v4983, %v5304
    %v5306 = vand.u32 %v5305, 4294901760
    %5307 = vmatprep.subr.mxu0 %v5306
    %v5308 = vand.u32 %v4980, 4294901760
    %v5309 = vsub.f32 %v4980, %v5308
    %v5310 = vand.u32 %v5309, 4294901760
    %5311 = vmatpush1.msra.mxu0 %v5310
    %5312 = vmatprep.subr.mxu0 0.0
    %5313 = vmatpush1.msra.mxu0 0.0
    %5314 = vmatprep.subr.mxu0 0.0
    %5315 = vmatpush1.msra.mxu0 0.0
    %5316 = vmatprep.subr.mxu0 0.0
    %5317 = vmatpush1.msra.mxu0 0.0
    %5318 = vmatprep.subr.mxu0 0.0
    %5319 = vmatpush1.msra.mxu0 0.0
    %5320 = vmatprep.subr.mxu0 0.0
    %5321 = vmatpush1.msra.mxu0 0.0
    %5322 = vmatprep.subr.mxu0 0.0
    %5323 = vmatpush1.msra.mxu0 0.0
    %5324 = vmatprep.subr.mxu0 0.0
    %5325 = vmatpush1.msra.mxu0 0.0
    %5326 = vmatprep.subr.mxu0 0.0
    %5327 = vmatpush1.msra.mxu0 0.0
    %5328 = vmatprep.subr.mxu0 0.0
    %5329 = vmatpush1.msra.mxu0 0.0
    %5330 = vmatprep.subr.mxu0 0.0
    %5331 = vmatpush1.msra.mxu0 0.0
    %5332 = vmatprep.subr.mxu0 0.0
    %5333 = vmatpush1.msra.mxu0 0.0
    %5334 = vmatprep.subr.mxu0 0.0
    %5335 = vmatpush1.msra.mxu0 0.0
    %5336 = vmatprep.subr.mxu0 0.0
    %5337 = vmatpush1.msra.mxu0 0.0
    %5338 = vmatprep.subr.mxu0 0.0
    %5339 = vmatpush1.msra.mxu0 0.0
    %5340 = vmatprep.subr.mxu0 0.0
    %5341 = vmatpush1.msra.mxu0 0.0
    %5342 = vmatprep.subr.mxu0 0.0
    %5343 = vmatpush1.msra.mxu0 0.0
    %5344 = vmatprep.subr.mxu0 0.0
    %5345 = vmatpush1.msra.mxu0 0.0
    %5346 = vmatprep.subr.mxu0 0.0
    %5347 = vmatpush1.msra.mxu0 0.0
    %5348 = vmatprep.subr.mxu0 0.0
    %5349 = vmatpush1.msra.mxu0 0.0
    %5350 = vmatprep.subr.mxu0 0.0
    %5351 = vmatpush1.msra.mxu0 0.0
    %5352 = vmatprep.subr.mxu0 0.0
    %5353 = vmatpush1.msra.mxu0 0.0
    %5354 = vmatprep.subr.mxu0 0.0
    %5355 = vmatpush1.msra.mxu0 0.0
    %5356 = vmatprep.subr.mxu0 0.0
    %5357 = vmatpush1.msra.mxu0 0.0
    %5358 = vmatprep.subr.mxu0 0.0
    %5359 = vmatpush1.msra.mxu0 0.0
    %5360 = vmatprep.subr.mxu0 0.0
    %5361 = vmatpush1.msra.mxu0 0.0
    %5362 = vmatprep.subr.mxu0 0.0
    %5363 = vmatpush1.msra.mxu0 0.0
    %5364 = vmatprep.subr.mxu0 0.0
    %5365 = vmatpush1.msra.mxu0 0.0
    %5366 = vmatprep.subr.mxu0 0.0
    %5367 = vmatpush1.msra.mxu0 0.0
    %5368 = vmatprep.subr.mxu0 0.0
    %5369 = vmatpush1.msra.mxu0 0.0
    %5370 = vmatprep.subr.mxu0 0.0
    %5371 = vmatpush1.msra.mxu0 0.0
    %5372 = vmatprep.subr.mxu0 0.0
    %5373 = vmatpush1.msra.mxu0 0.0
    %5374 = vmatprep.mubr.f32.mxu0 0.0
    %v5375 = vand.u32 %v4977, 4294901760
    %5376 = vmatmul.mubr.f32.gmra.mrb[0].mxu0 %v5375
    %v5377 = vpop.f32.mrb[0].mxu0
    %v5378 = vadd.f32 %v5300, %v5377
    %v5379 = vpop.f32.mrb[0].mxu0
    %v5380 = vadd.f32 %v5302, %v5379
    %5381 = vdwg.mxu0
    %v5382 = vand.u32 %v4983, 4294901760
    %5383 = vmatprep.subr.mxu0 %v5382
    %v5384 = vand.u32 %v4980, 4294901760
    %5385 = vmatpush1.msra.mxu0 %v5384
    %5386 = vmatprep.subr.mxu0 0.0
    %5387 = vmatpush1.msra.mxu0 0.0
    %5388 = vmatprep.subr.mxu0 0.0
    %5389 = vmatpush1.msra.mxu0 0.0
    %5390 = vmatprep.subr.mxu0 0.0
    %5391 = vmatpush1.msra.mxu0 0.0
    %5392 = vmatprep.subr.mxu0 0.0
    %5393 = vmatpush1.msra.mxu0 0.0
    %5394 = vmatprep.subr.mxu0 0.0
    %5395 = vmatpush1.msra.mxu0 0.0
    %5396 = vmatprep.subr.mxu0 0.0
    %5397 = vmatpush1.msra.mxu0 0.0
    %5398 = vmatprep.subr.mxu0 0.0
    %5399 = vmatpush1.msra.mxu0 0.0
    %5400 = vmatprep.subr.mxu0 0.0
    %5401 = vmatpush1.msra.mxu0 0.0
    %5402 = vmatprep.subr.mxu0 0.0
    %5403 = vmatpush1.msra.mxu0 0.0
    %5404 = vmatprep.subr.mxu0 0.0
    %5405 = vmatpush1.msra.mxu0 0.0
    %5406 = vmatprep.subr.mxu0 0.0
    %5407 = vmatpush1.msra.mxu0 0.0
    %5408 = vmatprep.subr.mxu0 0.0
    %5409 = vmatpush1.msra.mxu0 0.0
    %5410 = vmatprep.subr.mxu0 0.0
    %5411 = vmatpush1.msra.mxu0 0.0
    %5412 = vmatprep.subr.mxu0 0.0
    %5413 = vmatpush1.msra.mxu0 0.0
    %5414 = vmatprep.subr.mxu0 0.0
    %5415 = vmatpush1.msra.mxu0 0.0
    %5416 = vmatprep.subr.mxu0 0.0
    %5417 = vmatpush1.msra.mxu0 0.0
    %5418 = vmatprep.subr.mxu0 0.0
    %5419 = vmatpush1.msra.mxu0 0.0
    %5420 = vmatprep.subr.mxu0 0.0
    %5421 = vmatpush1.msra.mxu0 0.0
    %5422 = vmatprep.subr.mxu0 0.0
    %5423 = vmatpush1.msra.mxu0 0.0
    %5424 = vmatprep.subr.mxu0 0.0
    %5425 = vmatpush1.msra.mxu0 0.0
    %5426 = vmatprep.subr.mxu0 0.0
    %5427 = vmatpush1.msra.mxu0 0.0
    %5428 = vmatprep.subr.mxu0 0.0
    %5429 = vmatpush1.msra.mxu0 0.0
    %5430 = vmatprep.subr.mxu0 0.0
    %5431 = vmatpush1.msra.mxu0 0.0
    %5432 = vmatprep.subr.mxu0 0.0
    %5433 = vmatpush1.msra.mxu0 0.0
    %5434 = vmatprep.subr.mxu0 0.0
    %5435 = vmatpush1.msra.mxu0 0.0
    %5436 = vmatprep.subr.mxu0 0.0
    %5437 = vmatpush1.msra.mxu0 0.0
    %5438 = vmatprep.subr.mxu0 0.0
    %5439 = vmatpush1.msra.mxu0 0.0
    %5440 = vmatprep.subr.mxu0 0.0
    %5441 = vmatpush1.msra.mxu0 0.0
    %5442 = vmatprep.subr.mxu0 0.0
    %5443 = vmatpush1.msra.mxu0 0.0
    %5444 = vmatprep.subr.mxu0 0.0
    %5445 = vmatpush1.msra.mxu0 0.0
    %5446 = vmatprep.subr.mxu0 0.0
    %5447 = vmatpush1.msra.mxu0 0.0
    %5448 = vmatprep.mubr.f32.mxu0 0.0
    %v5449 = vand.u32 %v4977, 4294901760
    %5450 = vmatmul.mubr.f32.gmra.mrb[0].mxu0 %v5449
    %v5451 = vpop.f32.mrb[0].mxu0
    %v5452 = vadd.f32 %v5378, %v5451
    %v5453 = vpop.f32.mrb[0].mxu0
    %v5454 = vadd.f32 %v5380, %v5453
    %5455 = vdwg.mxu0
    %v5456 = vand.u32 %v4989, 4294901760
    %5457 = vmatprep.subr.mxu0 %v5456
    %v5458 = vand.u32 %v4986, 4294901760
    %5459 = vmatpush1.msra.mxu0 %v5458
    %5460 = vmatprep.subr.mxu0 0.0
    %5461 = vmatpush1.msra.mxu0 0.0
    %5462 = vmatprep.subr.mxu0 0.0
    %5463 = vmatpush1.msra.mxu0 0.0
    %5464 = vmatprep.subr.mxu0 0.0
    %5465 = vmatpush1.msra.mxu0 0.0
    %5466 = vmatprep.subr.mxu0 0.0
    %5467 = vmatpush1.msra.mxu0 0.0
    %5468 = vmatprep.subr.mxu0 0.0
    %5469 = vmatpush1.msra.mxu0 0.0
    %5470 = vmatprep.subr.mxu0 0.0
    %5471 = vmatpush1.msra.mxu0 0.0
    %5472 = vmatprep.subr.mxu0 0.0
    %5473 = vmatpush1.msra.mxu0 0.0
    %5474 = vmatprep.subr.mxu0 0.0
    %5475 = vmatpush1.msra.mxu0 0.0
    %5476 = vmatprep.subr.mxu0 0.0
    %5477 = vmatpush1.msra.mxu0 0.0
    %5478 = vmatprep.subr.mxu0 0.0
    %5479 = vmatpush1.msra.mxu0 0.0
    %5480 = vmatprep.subr.mxu0 0.0
    %5481 = vmatpush1.msra.mxu0 0.0
    %5482 = vmatprep.subr.mxu0 0.0
    %5483 = vmatpush1.msra.mxu0 0.0
    %5484 = vmatprep.subr.mxu0 0.0
    %5485 = vmatpush1.msra.mxu0 0.0
    %5486 = vmatprep.subr.mxu0 0.0
    %5487 = vmatpush1.msra.mxu0 0.0
    %5488 = vmatprep.subr.mxu0 0.0
    %5489 = vmatpush1.msra.mxu0 0.0
    %5490 = vmatprep.subr.mxu0 0.0
    %5491 = vmatpush1.msra.mxu0 0.0
    %5492 = vmatprep.subr.mxu0 0.0
    %5493 = vmatpush1.msra.mxu0 0.0
    %5494 = vmatprep.subr.mxu0 0.0
    %5495 = vmatpush1.msra.mxu0 0.0
    %5496 = vmatprep.subr.mxu0 0.0
    %5497 = vmatpush1.msra.mxu0 0.0
    %5498 = vmatprep.subr.mxu0 0.0
    %5499 = vmatpush1.msra.mxu0 0.0
    %5500 = vmatprep.subr.mxu0 0.0
    %5501 = vmatpush1.msra.mxu0 0.0
    %5502 = vmatprep.subr.mxu0 0.0
    %5503 = vmatpush1.msra.mxu0 0.0
    %5504 = vmatprep.subr.mxu0 0.0
    %5505 = vmatpush1.msra.mxu0 0.0
    %5506 = vmatprep.subr.mxu0 0.0
    %5507 = vmatpush1.msra.mxu0 0.0
    %5508 = vmatprep.subr.mxu0 0.0
    %5509 = vmatpush1.msra.mxu0 0.0
    %5510 = vmatprep.subr.mxu0 0.0
    %5511 = vmatpush1.msra.mxu0 0.0
    %5512 = vmatprep.subr.mxu0 0.0
    %5513 = vmatpush1.msra.mxu0 0.0
    %5514 = vmatprep.subr.mxu0 0.0
    %5515 = vmatpush1.msra.mxu0 0.0
    %5516 = vmatprep.subr.mxu0 0.0
    %5517 = vmatpush1.msra.mxu0 0.0
    %5518 = vmatprep.subr.mxu0 0.0
    %5519 = vmatpush1.msra.mxu0 0.0
    %5520 = vmatprep.subr.mxu0 0.0
    %5521 = vmatpush1.msra.mxu0 0.0
    %5522 = vmatprep.mubr.f32.mxu0 0.0
    %v5523 = vand.u32 %v4977, 4294901760
    %v5524 = vsub.f32 %v4977, %v5523
    %v5525 = vand.u32 %v5524, 4294901760
    %v5526 = vsub.f32 %v5524, %v5525
    %v5527 = vand.u32 %v5526, 4294901760
    %5528 = vmatmul.mubr.f32.gmra.mrb[0].mxu0 %v5527
    %v5529 = vpop.f32.mrb[0].mxu0
    %v5530 = vadd.f32 0.0, %v5529
    %v5531 = vpop.f32.mrb[0].mxu0
    %v5532 = vadd.f32 0.0, %v5531
    %5533 = vdwg.mxu0
    %v5534 = vand.u32 %v4989, 4294901760
    %v5535 = vsub.f32 %v4989, %v5534
    %v5536 = vand.u32 %v5535, 4294901760
    %v5537 = vsub.f32 %v5535, %v5536
    %v5538 = vand.u32 %v5537, 4294901760
    %5539 = vmatprep.subr.mxu0 %v5538
    %v5540 = vand.u32 %v4986, 4294901760
    %v5541 = vsub.f32 %v4986, %v5540
    %v5542 = vand.u32 %v5541, 4294901760
    %v5543 = vsub.f32 %v5541, %v5542
    %v5544 = vand.u32 %v5543, 4294901760
    %5545 = vmatpush1.msra.mxu0 %v5544
    %5546 = vmatprep.subr.mxu0 0.0
    %5547 = vmatpush1.msra.mxu0 0.0
    %5548 = vmatprep.subr.mxu0 0.0
    %5549 = vmatpush1.msra.mxu0 0.0
    %5550 = vmatprep.subr.mxu0 0.0
    %5551 = vmatpush1.msra.mxu0 0.0
    %5552 = vmatprep.subr.mxu0 0.0
    %5553 = vmatpush1.msra.mxu0 0.0
    %5554 = vmatprep.subr.mxu0 0.0
    %5555 = vmatpush1.msra.mxu0 0.0
    %5556 = vmatprep.subr.mxu0 0.0
    %5557 = vmatpush1.msra.mxu0 0.0
    %5558 = vmatprep.subr.mxu0 0.0
    %5559 = vmatpush1.msra.mxu0 0.0
    %5560 = vmatprep.subr.mxu0 0.0
    %5561 = vmatpush1.msra.mxu0 0.0
    %5562 = vmatprep.subr.mxu0 0.0
    %5563 = vmatpush1.msra.mxu0 0.0
    %5564 = vmatprep.subr.mxu0 0.0
    %5565 = vmatpush1.msra.mxu0 0.0
    %5566 = vmatprep.subr.mxu0 0.0
    %5567 = vmatpush1.msra.mxu0 0.0
    %5568 = vmatprep.subr.mxu0 0.0
    %5569 = vmatpush1.msra.mxu0 0.0
    %5570 = vmatprep.subr.mxu0 0.0
    %5571 = vmatpush1.msra.mxu0 0.0
    %5572 = vmatprep.subr.mxu0 0.0
    %5573 = vmatpush1.msra.mxu0 0.0
    %5574 = vmatprep.subr.mxu0 0.0
    %5575 = vmatpush1.msra.mxu0 0.0
    %5576 = vmatprep.subr.mxu0 0.0
    %5577 = vmatpush1.msra.mxu0 0.0
    %5578 = vmatprep.subr.mxu0 0.0
    %5579 = vmatpush1.msra.mxu0 0.0
    %5580 = vmatprep.subr.mxu0 0.0
    %5581 = vmatpush1.msra.mxu0 0.0
    %5582 = vmatprep.subr.mxu0 0.0
    %5583 = vmatpush1.msra.mxu0 0.0
    %5584 = vmatprep.subr.mxu0 0.0
    %5585 = vmatpush1.msra.mxu0 0.0
    %5586 = vmatprep.subr.mxu0 0.0
    %5587 = vmatpush1.msra.mxu0 0.0
    %5588 = vmatprep.subr.mxu0 0.0
    %5589 = vmatpush1.msra.mxu0 0.0
    %5590 = vmatprep.subr.mxu0 0.0
    %5591 = vmatpush1.msra.mxu0 0.0
    %5592 = vmatprep.subr.mxu0 0.0
    %5593 = vmatpush1.msra.mxu0 0.0
    %5594 = vmatprep.subr.mxu0 0.0
    %5595 = vmatpush1.msra.mxu0 0.0
    %5596 = vmatprep.subr.mxu0 0.0
    %5597 = vmatpush1.msra.mxu0 0.0
    %5598 = vmatprep.subr.mxu0 0.0
    %5599 = vmatpush1.msra.mxu0 0.0
    %5600 = vmatprep.subr.mxu0 0.0
    %5601 = vmatpush1.msra.mxu0 0.0
    %5602 = vmatprep.subr.mxu0 0.0
    %5603 = vmatpush1.msra.mxu0 0.0
    %5604 = vmatprep.subr.mxu0 0.0
    %5605 = vmatpush1.msra.mxu0 0.0
    %5606 = vmatprep.subr.mxu0 0.0
    %5607 = vmatpush1.msra.mxu0 0.0
    %5608 = vmatprep.mubr.f32.mxu0 0.0
    %v5609 = vand.u32 %v4977, 4294901760
    %5610 = vmatmul.mubr.f32.gmra.mrb[0].mxu0 %v5609
    %v5611 = vpop.f32.mrb[0].mxu0
    %v5612 = vadd.f32 %v5530, %v5611
    %v5613 = vpop.f32.mrb[0].mxu0
    %v5614 = vadd.f32 %v5532, %v5613
    %5615 = vdwg.mxu0
    %v5616 = vand.u32 %v4989, 4294901760
    %v5617 = vsub.f32 %v4989, %v5616
    %5618 = vmatprep.subr.mxu0 %v5617
    %v5619 = vand.u32 %v4986, 4294901760
    %v5620 = vsub.f32 %v4986, %v5619
    %5621 = vmatpush1.msra.mxu0 %v5620
    %5622 = vmatprep.subr.mxu0 0.0
    %5623 = vmatpush1.msra.mxu0 0.0
    %5624 = vmatprep.subr.mxu0 0.0
    %5625 = vmatpush1.msra.mxu0 0.0
    %5626 = vmatprep.subr.mxu0 0.0
    %5627 = vmatpush1.msra.mxu0 0.0
    %5628 = vmatprep.subr.mxu0 0.0
    %5629 = vmatpush1.msra.mxu0 0.0
    %5630 = vmatprep.subr.mxu0 0.0
    %5631 = vmatpush1.msra.mxu0 0.0
    %5632 = vmatprep.subr.mxu0 0.0
    %5633 = vmatpush1.msra.mxu0 0.0
    %5634 = vmatprep.subr.mxu0 0.0
    %5635 = vmatpush1.msra.mxu0 0.0
    %5636 = vmatprep.subr.mxu0 0.0
    %5637 = vmatpush1.msra.mxu0 0.0
    %5638 = vmatprep.subr.mxu0 0.0
    %5639 = vmatpush1.msra.mxu0 0.0
    %5640 = vmatprep.subr.mxu0 0.0
    %5641 = vmatpush1.msra.mxu0 0.0
    %5642 = vmatprep.subr.mxu0 0.0
    %5643 = vmatpush1.msra.mxu0 0.0
    %5644 = vmatprep.subr.mxu0 0.0
    %5645 = vmatpush1.msra.mxu0 0.0
    %5646 = vmatprep.subr.mxu0 0.0
    %5647 = vmatpush1.msra.mxu0 0.0
    %5648 = vmatprep.subr.mxu0 0.0
    %5649 = vmatpush1.msra.mxu0 0.0
    %5650 = vmatprep.subr.mxu0 0.0
    %5651 = vmatpush1.msra.mxu0 0.0
    %5652 = vmatprep.subr.mxu0 0.0
    %5653 = vmatpush1.msra.mxu0 0.0
    %5654 = vmatprep.subr.mxu0 0.0
    %5655 = vmatpush1.msra.mxu0 0.0
    %5656 = vmatprep.subr.mxu0 0.0
    %5657 = vmatpush1.msra.mxu0 0.0
    %5658 = vmatprep.subr.mxu0 0.0
    %5659 = vmatpush1.msra.mxu0 0.0
    %5660 = vmatprep.subr.mxu0 0.0
    %5661 = vmatpush1.msra.mxu0 0.0
    %5662 = vmatprep.subr.mxu0 0.0
    %5663 = vmatpush1.msra.mxu0 0.0
    %5664 = vmatprep.subr.mxu0 0.0
    %5665 = vmatpush1.msra.mxu0 0.0
    %5666 = vmatprep.subr.mxu0 0.0
    %5667 = vmatpush1.msra.mxu0 0.0
    %5668 = vmatprep.subr.mxu0 0.0
    %5669 = vmatpush1.msra.mxu0 0.0
    %5670 = vmatprep.subr.mxu0 0.0
    %5671 = vmatpush1.msra.mxu0 0.0
    %5672 = vmatprep.subr.mxu0 0.0
    %5673 = vmatpush1.msra.mxu0 0.0
    %5674 = vmatprep.subr.mxu0 0.0
    %5675 = vmatpush1.msra.mxu0 0.0
    %5676 = vmatprep.subr.mxu0 0.0
    %5677 = vmatpush1.msra.mxu0 0.0
    %5678 = vmatprep.subr.mxu0 0.0
    %5679 = vmatpush1.msra.mxu0 0.0
    %5680 = vmatprep.subr.mxu0 0.0
    %5681 = vmatpush1.msra.mxu0 0.0
    %5682 = vmatprep.subr.mxu0 0.0
    %5683 = vmatpush1.msra.mxu0 0.0
    %5684 = vmatprep.mubr.f32.mxu0 0.0
    %v5685 = vand.u32 %v4977, 4294901760
    %v5686 = vsub.f32 %v4977, %v5685
    %5687 = vmatmul.mubr.f32.gmra.mrb[0].mxu0 %v5686
    %v5688 = vpop.f32.mrb[0].mxu0
    %v5689 = vadd.f32 %v5612, %v5688
    %v5690 = vpop.f32.mrb[0].mxu0
    %v5691 = vadd.f32 %v5614, %v5690
    %5692 = vdwg.mxu0
    %v5693 = vand.u32 %v4989, 4294901760
    %5694 = vmatprep.subr.mxu0 %v5693
    %v5695 = vand.u32 %v4986, 4294901760
    %5696 = vmatpush1.msra.mxu0 %v5695
    %5697 = vmatprep.subr.mxu0 0.0
    %5698 = vmatpush1.msra.mxu0 0.0
    %5699 = vmatprep.subr.mxu0 0.0
    %5700 = vmatpush1.msra.mxu0 0.0
    %5701 = vmatprep.subr.mxu0 0.0
    %5702 = vmatpush1.msra.mxu0 0.0
    %5703 = vmatprep.subr.mxu0 0.0
    %5704 = vmatpush1.msra.mxu0 0.0
    %5705 = vmatprep.subr.mxu0 0.0
    %5706 = vmatpush1.msra.mxu0 0.0
    %5707 = vmatprep.subr.mxu0 0.0
    %5708 = vmatpush1.msra.mxu0 0.0
    %5709 = vmatprep.subr.mxu0 0.0
    %5710 = vmatpush1.msra.mxu0 0.0
    %5711 = vmatprep.subr.mxu0 0.0
    %5712 = vmatpush1.msra.mxu0 0.0
    %5713 = vmatprep.subr.mxu0 0.0
    %5714 = vmatpush1.msra.mxu0 0.0
    %5715 = vmatprep.subr.mxu0 0.0
    %5716 = vmatpush1.msra.mxu0 0.0
    %5717 = vmatprep.subr.mxu0 0.0
    %5718 = vmatpush1.msra.mxu0 0.0
    %5719 = vmatprep.subr.mxu0 0.0
    %5720 = vmatpush1.msra.mxu0 0.0
    %5721 = vmatprep.subr.mxu0 0.0
    %5722 = vmatpush1.msra.mxu0 0.0
    %5723 = vmatprep.subr.mxu0 0.0
    %5724 = vmatpush1.msra.mxu0 0.0
    %5725 = vmatprep.subr.mxu0 0.0
    %5726 = vmatpush1.msra.mxu0 0.0
    %5727 = vmatprep.subr.mxu0 0.0
    %5728 = vmatpush1.msra.mxu0 0.0
    %5729 = vmatprep.subr.mxu0 0.0
    %5730 = vmatpush1.msra.mxu0 0.0
    %5731 = vmatprep.subr.mxu0 0.0
    %5732 = vmatpush1.msra.mxu0 0.0
    %5733 = vmatprep.subr.mxu0 0.0
    %5734 = vmatpush1.msra.mxu0 0.0
    %5735 = vmatprep.subr.mxu0 0.0
    %5736 = vmatpush1.msra.mxu0 0.0
    %5737 = vmatprep.subr.mxu0 0.0
    %5738 = vmatpush1.msra.mxu0 0.0
    %5739 = vmatprep.subr.mxu0 0.0
    %5740 = vmatpush1.msra.mxu0 0.0
    %5741 = vmatprep.subr.mxu0 0.0
    %5742 = vmatpush1.msra.mxu0 0.0
    %5743 = vmatprep.subr.mxu0 0.0
    %5744 = vmatpush1.msra.mxu0 0.0
    %5745 = vmatprep.subr.mxu0 0.0
    %5746 = vmatpush1.msra.mxu0 0.0
    %5747 = vmatprep.subr.mxu0 0.0
    %5748 = vmatpush1.msra.mxu0 0.0
    %5749 = vmatprep.subr.mxu0 0.0
    %5750 = vmatpush1.msra.mxu0 0.0
    %5751 = vmatprep.subr.mxu0 0.0
    %5752 = vmatpush1.msra.mxu0 0.0
    %5753 = vmatprep.subr.mxu0 0.0
    %5754 = vmatpush1.msra.mxu0 0.0
    %5755 = vmatprep.subr.mxu0 0.0
    %5756 = vmatpush1.msra.mxu0 0.0
    %5757 = vmatprep.subr.mxu0 0.0
    %5758 = vmatpush1.msra.mxu0 0.0
    %5759 = vmatprep.mubr.f32.mxu0 0.0
    %v5760 = vand.u32 %v4977, 4294901760
    %v5761 = vsub.f32 %v4977, %v5760
    %v5762 = vand.u32 %v5761, 4294901760
    %5763 = vmatmul.mubr.f32.gmra.mrb[0].mxu0 %v5762
    %v5764 = vpop.f32.mrb[0].mxu0
    %v5765 = vadd.f32 %v5689, %v5764
    %v5766 = vpop.f32.mrb[0].mxu0
    %v5767 = vadd.f32 %v5691, %v5766
    %5768 = vdwg.mxu0
    %v5769 = vand.u32 %v4989, 4294901760
    %v5770 = vsub.f32 %v4989, %v5769
    %v5771 = vand.u32 %v5770, 4294901760
    %5772 = vmatprep.subr.mxu0 %v5771
    %v5773 = vand.u32 %v4986, 4294901760
    %v5774 = vsub.f32 %v4986, %v5773
    %v5775 = vand.u32 %v5774, 4294901760
    %5776 = vmatpush1.msra.mxu0 %v5775
    %5777 = vmatprep.subr.mxu0 0.0
    %5778 = vmatpush1.msra.mxu0 0.0
    %5779 = vmatprep.subr.mxu0 0.0
    %5780 = vmatpush1.msra.mxu0 0.0
    %5781 = vmatprep.subr.mxu0 0.0
    %5782 = vmatpush1.msra.mxu0 0.0
    %5783 = vmatprep.subr.mxu0 0.0
    %5784 = vmatpush1.msra.mxu0 0.0
    %5785 = vmatprep.subr.mxu0 0.0
    %5786 = vmatpush1.msra.mxu0 0.0
    %5787 = vmatprep.subr.mxu0 0.0
    %5788 = vmatpush1.msra.mxu0 0.0
    %5789 = vmatprep.subr.mxu0 0.0
    %5790 = vmatpush1.msra.mxu0 0.0
    %5791 = vmatprep.subr.mxu0 0.0
    %5792 = vmatpush1.msra.mxu0 0.0
    %5793 = vmatprep.subr.mxu0 0.0
    %5794 = vmatpush1.msra.mxu0 0.0
    %5795 = vmatprep.subr.mxu0 0.0
    %5796 = vmatpush1.msra.mxu0 0.0
    %5797 = vmatprep.subr.mxu0 0.0
    %5798 = vmatpush1.msra.mxu0 0.0
    %5799 = vmatprep.subr.mxu0 0.0
    %5800 = vmatpush1.msra.mxu0 0.0
    %5801 = vmatprep.subr.mxu0 0.0
    %5802 = vmatpush1.msra.mxu0 0.0
    %5803 = vmatprep.subr.mxu0 0.0
    %5804 = vmatpush1.msra.mxu0 0.0
    %5805 = vmatprep.subr.mxu0 0.0
    %5806 = vmatpush1.msra.mxu0 0.0
    %5807 = vmatprep.subr.mxu0 0.0
    %5808 = vmatpush1.msra.mxu0 0.0
    %5809 = vmatprep.subr.mxu0 0.0
    %5810 = vmatpush1.msra.mxu0 0.0
    %5811 = vmatprep.subr.mxu0 0.0
    %5812 = vmatpush1.msra.mxu0 0.0
    %5813 = vmatprep.subr.mxu0 0.0
    %5814 = vmatpush1.msra.mxu0 0.0
    %5815 = vmatprep.subr.mxu0 0.0
    %5816 = vmatpush1.msra.mxu0 0.0
    %5817 = vmatprep.subr.mxu0 0.0
    %5818 = vmatpush1.msra.mxu0 0.0
    %5819 = vmatprep.subr.mxu0 0.0
    %5820 = vmatpush1.msra.mxu0 0.0
    %5821 = vmatprep.subr.mxu0 0.0
    %5822 = vmatpush1.msra.mxu0 0.0
    %5823 = vmatprep.subr.mxu0 0.0
    %5824 = vmatpush1.msra.mxu0 0.0
    %5825 = vmatprep.subr.mxu0 0.0
    %5826 = vmatpush1.msra.mxu0 0.0
    %5827 = vmatprep.subr.mxu0 0.0
    %5828 = vmatpush1.msra.mxu0 0.0
    %5829 = vmatprep.subr.mxu0 0.0
    %5830 = vmatpush1.msra.mxu0 0.0
    %5831 = vmatprep.subr.mxu0 0.0
    %5832 = vmatpush1.msra.mxu0 0.0
    %5833 = vmatprep.subr.mxu0 0.0
    %5834 = vmatpush1.msra.mxu0 0.0
    %5835 = vmatprep.subr.mxu0 0.0
    %5836 = vmatpush1.msra.mxu0 0.0
    %5837 = vmatprep.subr.mxu0 0.0
    %5838 = vmatpush1.msra.mxu0 0.0
    %5839 = vmatprep.mubr.f32.mxu0 0.0
    %v5840 = vand.u32 %v4977, 4294901760
    %5841 = vmatmul.mubr.f32.gmra.mrb[0].mxu0 %v5840
    %v5842 = vpop.f32.mrb[0].mxu0
    %v5843 = vadd.f32 %v5765, %v5842
    %v5844 = vpop.f32.mrb[0].mxu0
    %v5845 = vadd.f32 %v5767, %v5844
    %5846 = vdwg.mxu0
    %v5847 = vand.u32 %v4989, 4294901760
    %5848 = vmatprep.subr.mxu0 %v5847
    %v5849 = vand.u32 %v4986, 4294901760
    %5850 = vmatpush1.msra.mxu0 %v5849
    %5851 = vmatprep.subr.mxu0 0.0
    %5852 = vmatpush1.msra.mxu0 0.0
    %5853 = vmatprep.subr.mxu0 0.0
    %5854 = vmatpush1.msra.mxu0 0.0
    %5855 = vmatprep.subr.mxu0 0.0
    %5856 = vmatpush1.msra.mxu0 0.0
    %5857 = vmatprep.subr.mxu0 0.0
    %5858 = vmatpush1.msra.mxu0 0.0
    %5859 = vmatprep.subr.mxu0 0.0
    %5860 = vmatpush1.msra.mxu0 0.0
    %5861 = vmatprep.subr.mxu0 0.0
    %5862 = vmatpush1.msra.mxu0 0.0
    %5863 = vmatprep.subr.mxu0 0.0
    %5864 = vmatpush1.msra.mxu0 0.0
    %5865 = vmatprep.subr.mxu0 0.0
    %5866 = vmatpush1.msra.mxu0 0.0
    %5867 = vmatprep.subr.mxu0 0.0
    %5868 = vmatpush1.msra.mxu0 0.0
    %5869 = vmatprep.subr.mxu0 0.0
    %5870 = vmatpush1.msra.mxu0 0.0
    %5871 = vmatprep.subr.mxu0 0.0
    %5872 = vmatpush1.msra.mxu0 0.0
    %5873 = vmatprep.subr.mxu0 0.0
    %5874 = vmatpush1.msra.mxu0 0.0
    %5875 = vmatprep.subr.mxu0 0.0
    %5876 = vmatpush1.msra.mxu0 0.0
    %5877 = vmatprep.subr.mxu0 0.0
    %5878 = vmatpush1.msra.mxu0 0.0
    %5879 = vmatprep.subr.mxu0 0.0
    %5880 = vmatpush1.msra.mxu0 0.0
    %5881 = vmatprep.subr.mxu0 0.0
    %5882 = vmatpush1.msra.mxu0 0.0
    %5883 = vmatprep.subr.mxu0 0.0
    %5884 = vmatpush1.msra.mxu0 0.0
    %5885 = vmatprep.subr.mxu0 0.0
    %5886 = vmatpush1.msra.mxu0 0.0
    %5887 = vmatprep.subr.mxu0 0.0
    %5888 = vmatpush1.msra.mxu0 0.0
    %5889 = vmatprep.subr.mxu0 0.0
    %5890 = vmatpush1.msra.mxu0 0.0
    %5891 = vmatprep.subr.mxu0 0.0
    %5892 = vmatpush1.msra.mxu0 0.0
    %5893 = vmatprep.subr.mxu0 0.0
    %5894 = vmatpush1.msra.mxu0 0.0
    %5895 = vmatprep.subr.mxu0 0.0
    %5896 = vmatpush1.msra.mxu0 0.0
    %5897 = vmatprep.subr.mxu0 0.0
    %5898 = vmatpush1.msra.mxu0 0.0
    %5899 = vmatprep.subr.mxu0 0.0
    %5900 = vmatpush1.msra.mxu0 0.0
    %5901 = vmatprep.subr.mxu0 0.0
    %5902 = vmatpush1.msra.mxu0 0.0
    %5903 = vmatprep.subr.mxu0 0.0
    %5904 = vmatpush1.msra.mxu0 0.0
    %5905 = vmatprep.subr.mxu0 0.0
    %5906 = vmatpush1.msra.mxu0 0.0
    %5907 = vmatprep.subr.mxu0 0.0
    %5908 = vmatpush1.msra.mxu0 0.0
    %5909 = vmatprep.subr.mxu0 0.0
    %5910 = vmatpush1.msra.mxu0 0.0
    %5911 = vmatprep.subr.mxu0 0.0
    %5912 = vmatpush1.msra.mxu0 0.0
    %5913 = vmatprep.mubr.f32.mxu0 0.0
    %v5914 = vand.u32 %v4977, 4294901760
    %5915 = vmatmul.mubr.f32.gmra.mrb[0].mxu0 %v5914
    %v5916 = vpop.f32.mrb[0].mxu0
    %v5917 = vadd.f32 %v5843, %v5916
    %v5918 = vpop.f32.mrb[0].mxu0
    %v5919 = vadd.f32 %v5845, %v5918
    %5920 = vdwg.mxu0
    %v5921 = vld [vmem:[#allocation2] sm:$0xff]
    %v5922 = vld [vmem:[#allocation2 + $0x8] sm:$0xff]
    %v5923 = vsel %vm45, 1, 0
    %v5924 = vsel %vm46, 1, 0
    %v5925 = vsel %vm47, 1, 0
    %v5926 = vsel %vm48, 1, 0
    %vm5927 = vcmp.eq.s32.totalorder %v5923, 1
    %vm5928 = vcmp.eq.s32.totalorder %v5924, 1
    %vm5929 = vcmp.eq.s32.totalorder %v5925, 1
    %vm5930 = vcmp.eq.s32.totalorder %v5926, 1
    %v5931 = vsel %vm5927, %v5452, 0.0
    %v5932 = vsel %vm5928, %v5454, 0.0
    %v5933 = vsel %vm5929, %v5917, 0.0
    %v5934 = vsel %vm5930, %v5919, 0.0
    %v5939 = vcombine.low %v5931, %v5932
    %v5940 = vcombine.low %v5933, %v5934
    %v5943 = vadd.f32 %v5921, %v5939
    %v5944 = vadd.f32 %v5922, %v5940
    %5945 = vst [vmem:[#allocation2] sm:$0xff] %v5943
    %5946 = vst [vmem:[#allocation2 + $0x8] sm:$0xff] %v5944
    %5947 = vrot.lane.b32.xlu0 %v18, 113
    %v5948 = vpop.permute.xlu0 %5947
    %5949 = vrot.lane.b32.xlu0 %v53, 113
    %v5950 = vpop.permute.xlu0 %5949
    %5951 = vrot.lane.b32.xlu0 %v19, 113
    %v5952 = vpop.permute.xlu0 %5951
    %5953 = vrot.lane.b32.xlu0 %v54, 113
    %v5954 = vpop.permute.xlu0 %5953
    %vm5955 = vcmp.lt.s32.totalorder %v21, 113
    %v5956 = vsel %vm5955, %v5952, %v5954
    %v5957 = vsel %vm5955, %v5950, %v5952
    %v5958 = vsel %vm5955, %v5948, %v5950
    %v5959 = vsel %vm5955, %v5954, %v5948
    %s5960 = scalar_lea.vmem %s1, 24
    %v5961 = vld [vmem:[%s5960] sm:$0xf]
    %v5963 = vsel %vm55, %v5961, 0
    %v5966 = vsel %vm59, %v5958, 0
    %v5969 = vsel %vm59, %v5957, 0
    %v5972 = vsel %vm59, %v5956, 0
    %v5975 = vsel %vm59, %v5959, 0
    %v5977 = vand.u32 %v5969, 4294901760
    %5978 = vmatprep.subr.mxu0 %v5977
    %v5979 = vand.u32 %v5966, 4294901760
    %5980 = vmatpush1.msra.mxu0 %v5979
    %5981 = vmatprep.subr.mxu0 0.0
    %5982 = vmatpush1.msra.mxu0 0.0
    %5983 = vmatprep.subr.mxu0 0.0
    %5984 = vmatpush1.msra.mxu0 0.0
    %5985 = vmatprep.subr.mxu0 0.0
    %5986 = vmatpush1.msra.mxu0 0.0
    %5987 = vmatprep.subr.mxu0 0.0
    %5988 = vmatpush1.msra.mxu0 0.0
    %5989 = vmatprep.subr.mxu0 0.0
    %5990 = vmatpush1.msra.mxu0 0.0
    %5991 = vmatprep.subr.mxu0 0.0
    %5992 = vmatpush1.msra.mxu0 0.0
    %5993 = vmatprep.subr.mxu0 0.0
    %5994 = vmatpush1.msra.mxu0 0.0
    %5995 = vmatprep.subr.mxu0 0.0
    %5996 = vmatpush1.msra.mxu0 0.0
    %5997 = vmatprep.subr.mxu0 0.0
    %5998 = vmatpush1.msra.mxu0 0.0
    %5999 = vmatprep.subr.mxu0 0.0
    %6000 = vmatpush1.msra.mxu0 0.0
    %6001 = vmatprep.subr.mxu0 0.0
    %6002 = vmatpush1.msra.mxu0 0.0
    %6003 = vmatprep.subr.mxu0 0.0
    %6004 = vmatpush1.msra.mxu0 0.0
    %6005 = vmatprep.subr.mxu0 0.0
    %6006 = vmatpush1.msra.mxu0 0.0
    %6007 = vmatprep.subr.mxu0 0.0
    %6008 = vmatpush1.msra.mxu0 0.0
    %6009 = vmatprep.subr.mxu0 0.0
    %6010 = vmatpush1.msra.mxu0 0.0
    %6011 = vmatprep.subr.mxu0 0.0
    %6012 = vmatpush1.msra.mxu0 0.0
    %6013 = vmatprep.subr.mxu0 0.0
    %6014 = vmatpush1.msra.mxu0 0.0
    %6015 = vmatprep.subr.mxu0 0.0
    %6016 = vmatpush1.msra.mxu0 0.0
    %6017 = vmatprep.subr.mxu0 0.0
    %6018 = vmatpush1.msra.mxu0 0.0
    %6019 = vmatprep.subr.mxu0 0.0
    %6020 = vmatpush1.msra.mxu0 0.0
    %6021 = vmatprep.subr.mxu0 0.0
    %6022 = vmatpush1.msra.mxu0 0.0
    %6023 = vmatprep.subr.mxu0 0.0
    %6024 = vmatpush1.msra.mxu0 0.0
    %6025 = vmatprep.subr.mxu0 0.0
    %6026 = vmatpush1.msra.mxu0 0.0
    %6027 = vmatprep.subr.mxu0 0.0
    %6028 = vmatpush1.msra.mxu0 0.0
    %6029 = vmatprep.subr.mxu0 0.0
    %6030 = vmatpush1.msra.mxu0 0.0
    %6031 = vmatprep.subr.mxu0 0.0
    %6032 = vmatpush1.msra.mxu0 0.0
    %6033 = vmatprep.subr.mxu0 0.0
    %6034 = vmatpush1.msra.mxu0 0.0
    %6035 = vmatprep.subr.mxu0 0.0
    %6036 = vmatpush1.msra.mxu0 0.0
    %6037 = vmatprep.subr.mxu0 0.0
    %6038 = vmatpush1.msra.mxu0 0.0
    %6039 = vmatprep.subr.mxu0 0.0
    %6040 = vmatpush1.msra.mxu0 0.0
    %6041 = vmatprep.subr.mxu0 0.0
    %6042 = vmatpush1.msra.mxu0 0.0
    %6043 = vmatprep.mubr.f32.mxu0 0.0
    %v6044 = vand.u32 %v5963, 4294901760
    %v6045 = vsub.f32 %v5963, %v6044
    %v6046 = vand.u32 %v6045, 4294901760
    %v6047 = vsub.f32 %v6045, %v6046
    %v6048 = vand.u32 %v6047, 4294901760
    %6049 = vmatmul.mubr.f32.gmra.mrb[0].mxu0 %v6048
    %v6050 = vpop.f32.mrb[0].mxu0
    %v6051 = vadd.f32 0.0, %v6050
    %v6052 = vpop.f32.mrb[0].mxu0
    %v6053 = vadd.f32 0.0, %v6052
    %6054 = vdwg.mxu0
    %v6055 = vand.u32 %v5969, 4294901760
    %v6056 = vsub.f32 %v5969, %v6055
    %v6057 = vand.u32 %v6056, 4294901760
    %v6058 = vsub.f32 %v6056, %v6057
    %v6059 = vand.u32 %v6058, 4294901760
    %6060 = vmatprep.subr.mxu0 %v6059
    %v6061 = vand.u32 %v5966, 4294901760
    %v6062 = vsub.f32 %v5966, %v6061
    %v6063 = vand.u32 %v6062, 4294901760
    %v6064 = vsub.f32 %v6062, %v6063
    %v6065 = vand.u32 %v6064, 4294901760
    %6066 = vmatpush1.msra.mxu0 %v6065
    %6067 = vmatprep.subr.mxu0 0.0
    %6068 = vmatpush1.msra.mxu0 0.0
    %6069 = vmatprep.subr.mxu0 0.0
    %6070 = vmatpush1.msra.mxu0 0.0
    %6071 = vmatprep.subr.mxu0 0.0
    %6072 = vmatpush1.msra.mxu0 0.0
    %6073 = vmatprep.subr.mxu0 0.0
    %6074 = vmatpush1.msra.mxu0 0.0
    %6075 = vmatprep.subr.mxu0 0.0
    %6076 = vmatpush1.msra.mxu0 0.0
    %6077 = vmatprep.subr.mxu0 0.0
    %6078 = vmatpush1.msra.mxu0 0.0
    %6079 = vmatprep.subr.mxu0 0.0
    %6080 = vmatpush1.msra.mxu0 0.0
    %6081 = vmatprep.subr.mxu0 0.0
    %6082 = vmatpush1.msra.mxu0 0.0
    %6083 = vmatprep.subr.mxu0 0.0
    %6084 = vmatpush1.msra.mxu0 0.0
    %6085 = vmatprep.subr.mxu0 0.0
    %6086 = vmatpush1.msra.mxu0 0.0
    %6087 = vmatprep.subr.mxu0 0.0
    %6088 = vmatpush1.msra.mxu0 0.0
    %6089 = vmatprep.subr.mxu0 0.0
    %6090 = vmatpush1.msra.mxu0 0.0
    %6091 = vmatprep.subr.mxu0 0.0
    %6092 = vmatpush1.msra.mxu0 0.0
    %6093 = vmatprep.subr.mxu0 0.0
    %6094 = vmatpush1.msra.mxu0 0.0
    %6095 = vmatprep.subr.mxu0 0.0
    %6096 = vmatpush1.msra.mxu0 0.0
    %6097 = vmatprep.subr.mxu0 0.0
    %6098 = vmatpush1.msra.mxu0 0.0
    %6099 = vmatprep.subr.mxu0 0.0
    %6100 = vmatpush1.msra.mxu0 0.0
    %6101 = vmatprep.subr.mxu0 0.0
    %6102 = vmatpush1.msra.mxu0 0.0
    %6103 = vmatprep.subr.mxu0 0.0
    %6104 = vmatpush1.msra.mxu0 0.0
    %6105 = vmatprep.subr.mxu0 0.0
    %6106 = vmatpush1.msra.mxu0 0.0
    %6107 = vmatprep.subr.mxu0 0.0
    %6108 = vmatpush1.msra.mxu0 0.0
    %6109 = vmatprep.subr.mxu0 0.0
    %6110 = vmatpush1.msra.mxu0 0.0
    %6111 = vmatprep.subr.mxu0 0.0
    %6112 = vmatpush1.msra.mxu0 0.0
    %6113 = vmatprep.subr.mxu0 0.0
    %6114 = vmatpush1.msra.mxu0 0.0
    %6115 = vmatprep.subr.mxu0 0.0
    %6116 = vmatpush1.msra.mxu0 0.0
    %6117 = vmatprep.subr.mxu0 0.0
    %6118 = vmatpush1.msra.mxu0 0.0
    %6119 = vmatprep.subr.mxu0 0.0
    %6120 = vmatpush1.msra.mxu0 0.0
    %6121 = vmatprep.subr.mxu0 0.0
    %6122 = vmatpush1.msra.mxu0 0.0
    %6123 = vmatprep.subr.mxu0 0.0
    %6124 = vmatpush1.msra.mxu0 0.0
    %6125 = vmatprep.subr.mxu0 0.0
    %6126 = vmatpush1.msra.mxu0 0.0
    %6127 = vmatprep.subr.mxu0 0.0
    %6128 = vmatpush1.msra.mxu0 0.0
    %6129 = vmatprep.mubr.f32.mxu0 0.0
    %v6130 = vand.u32 %v5963, 4294901760
    %6131 = vmatmul.mubr.f32.gmra.mrb[0].mxu0 %v6130
    %v6132 = vpop.f32.mrb[0].mxu0
    %v6133 = vadd.f32 %v6051, %v6132
    %v6134 = vpop.f32.mrb[0].mxu0
    %v6135 = vadd.f32 %v6053, %v6134
    %6136 = vdwg.mxu0
    %v6137 = vand.u32 %v5969, 4294901760
    %v6138 = vsub.f32 %v5969, %v6137
    %6139 = vmatprep.subr.mxu0 %v6138
    %v6140 = vand.u32 %v5966, 4294901760
    %v6141 = vsub.f32 %v5966, %v6140
    %6142 = vmatpush1.msra.mxu0 %v6141
    %6143 = vmatprep.subr.mxu0 0.0
    %6144 = vmatpush1.msra.mxu0 0.0
    %6145 = vmatprep.subr.mxu0 0.0
    %6146 = vmatpush1.msra.mxu0 0.0
    %6147 = vmatprep.subr.mxu0 0.0
    %6148 = vmatpush1.msra.mxu0 0.0
    %6149 = vmatprep.subr.mxu0 0.0
    %6150 = vmatpush1.msra.mxu0 0.0
    %6151 = vmatprep.subr.mxu0 0.0
    %6152 = vmatpush1.msra.mxu0 0.0
    %6153 = vmatprep.subr.mxu0 0.0
    %6154 = vmatpush1.msra.mxu0 0.0
    %6155 = vmatprep.subr.mxu0 0.0
    %6156 = vmatpush1.msra.mxu0 0.0
    %6157 = vmatprep.subr.mxu0 0.0
    %6158 = vmatpush1.msra.mxu0 0.0
    %6159 = vmatprep.subr.mxu0 0.0
    %6160 = vmatpush1.msra.mxu0 0.0
    %6161 = vmatprep.subr.mxu0 0.0
    %6162 = vmatpush1.msra.mxu0 0.0
    %6163 = vmatprep.subr.mxu0 0.0
    %6164 = vmatpush1.msra.mxu0 0.0
    %6165 = vmatprep.subr.mxu0 0.0
    %6166 = vmatpush1.msra.mxu0 0.0
    %6167 = vmatprep.subr.mxu0 0.0
    %6168 = vmatpush1.msra.mxu0 0.0
    %6169 = vmatprep.subr.mxu0 0.0
    %6170 = vmatpush1.msra.mxu0 0.0
    %6171 = vmatprep.subr.mxu0 0.0
    %6172 = vmatpush1.msra.mxu0 0.0
    %6173 = vmatprep.subr.mxu0 0.0
    %6174 = vmatpush1.msra.mxu0 0.0
    %6175 = vmatprep.subr.mxu0 0.0
    %6176 = vmatpush1.msra.mxu0 0.0
    %6177 = vmatprep.subr.mxu0 0.0
    %6178 = vmatpush1.msra.mxu0 0.0
    %6179 = vmatprep.subr.mxu0 0.0
    %6180 = vmatpush1.msra.mxu0 0.0
    %6181 = vmatprep.subr.mxu0 0.0
    %6182 = vmatpush1.msra.mxu0 0.0
    %6183 = vmatprep.subr.mxu0 0.0
    %6184 = vmatpush1.msra.mxu0 0.0
    %6185 = vmatprep.subr.mxu0 0.0
    %6186 = vmatpush1.msra.mxu0 0.0
    %6187 = vmatprep.subr.mxu0 0.0
    %6188 = vmatpush1.msra.mxu0 0.0
    %6189 = vmatprep.subr.mxu0 0.0
    %6190 = vmatpush1.msra.mxu0 0.0
    %6191 = vmatprep.subr.mxu0 0.0
    %6192 = vmatpush1.msra.mxu0 0.0
    %6193 = vmatprep.subr.mxu0 0.0
    %6194 = vmatpush1.msra.mxu0 0.0
    %6195 = vmatprep.subr.mxu0 0.0
    %6196 = vmatpush1.msra.mxu0 0.0
    %6197 = vmatprep.subr.mxu0 0.0
    %6198 = vmatpush1.msra.mxu0 0.0
    %6199 = vmatprep.subr.mxu0 0.0
    %6200 = vmatpush1.msra.mxu0 0.0
    %6201 = vmatprep.subr.mxu0 0.0
    %6202 = vmatpush1.msra.mxu0 0.0
    %6203 = vmatprep.subr.mxu0 0.0
    %6204 = vmatpush1.msra.mxu0 0.0
    %6205 = vmatprep.mubr.f32.mxu0 0.0
    %v6206 = vand.u32 %v5963, 4294901760
    %v6207 = vsub.f32 %v5963, %v6206
    %6208 = vmatmul.mubr.f32.gmra.mrb[0].mxu0 %v6207
    %v6209 = vpop.f32.mrb[0].mxu0
    %v6210 = vadd.f32 %v6133, %v6209
    %v6211 = vpop.f32.mrb[0].mxu0
    %v6212 = vadd.f32 %v6135, %v6211
    %6213 = vdwg.mxu0
    %v6214 = vand.u32 %v5969, 4294901760
    %6215 = vmatprep.subr.mxu0 %v6214
    %v6216 = vand.u32 %v5966, 4294901760
    %6217 = vmatpush1.msra.mxu0 %v6216
    %6218 = vmatprep.subr.mxu0 0.0
    %6219 = vmatpush1.msra.mxu0 0.0
    %6220 = vmatprep.subr.mxu0 0.0
    %6221 = vmatpush1.msra.mxu0 0.0
    %6222 = vmatprep.subr.mxu0 0.0
    %6223 = vmatpush1.msra.mxu0 0.0
    %6224 = vmatprep.subr.mxu0 0.0
    %6225 = vmatpush1.msra.mxu0 0.0
    %6226 = vmatprep.subr.mxu0 0.0
    %6227 = vmatpush1.msra.mxu0 0.0
    %6228 = vmatprep.subr.mxu0 0.0
    %6229 = vmatpush1.msra.mxu0 0.0
    %6230 = vmatprep.subr.mxu0 0.0
    %6231 = vmatpush1.msra.mxu0 0.0
    %6232 = vmatprep.subr.mxu0 0.0
    %6233 = vmatpush1.msra.mxu0 0.0
    %6234 = vmatprep.subr.mxu0 0.0
    %6235 = vmatpush1.msra.mxu0 0.0
    %6236 = vmatprep.subr.mxu0 0.0
    %6237 = vmatpush1.msra.mxu0 0.0
    %6238 = vmatprep.subr.mxu0 0.0
    %6239 = vmatpush1.msra.mxu0 0.0
    %6240 = vmatprep.subr.mxu0 0.0
    %6241 = vmatpush1.msra.mxu0 0.0
    %6242 = vmatprep.subr.mxu0 0.0
    %6243 = vmatpush1.msra.mxu0 0.0
    %6244 = vmatprep.subr.mxu0 0.0
    %6245 = vmatpush1.msra.mxu0 0.0
    %6246 = vmatprep.subr.mxu0 0.0
    %6247 = vmatpush1.msra.mxu0 0.0
    %6248 = vmatprep.subr.mxu0 0.0
    %6249 = vmatpush1.msra.mxu0 0.0
    %6250 = vmatprep.subr.mxu0 0.0
    %6251 = vmatpush1.msra.mxu0 0.0
    %6252 = vmatprep.subr.mxu0 0.0
    %6253 = vmatpush1.msra.mxu0 0.0
    %6254 = vmatprep.subr.mxu0 0.0
    %6255 = vmatpush1.msra.mxu0 0.0
    %6256 = vmatprep.subr.mxu0 0.0
    %6257 = vmatpush1.msra.mxu0 0.0
    %6258 = vmatprep.subr.mxu0 0.0
    %6259 = vmatpush1.msra.mxu0 0.0
    %6260 = vmatprep.subr.mxu0 0.0
    %6261 = vmatpush1.msra.mxu0 0.0
    %6262 = vmatprep.subr.mxu0 0.0
    %6263 = vmatpush1.msra.mxu0 0.0
    %6264 = vmatprep.subr.mxu0 0.0
    %6265 = vmatpush1.msra.mxu0 0.0
    %6266 = vmatprep.subr.mxu0 0.0
    %6267 = vmatpush1.msra.mxu0 0.0
    %6268 = vmatprep.subr.mxu0 0.0
    %6269 = vmatpush1.msra.mxu0 0.0
    %6270 = vmatprep.subr.mxu0 0.0
    %6271 = vmatpush1.msra.mxu0 0.0
    %6272 = vmatprep.subr.mxu0 0.0
    %6273 = vmatpush1.msra.mxu0 0.0
    %6274 = vmatprep.subr.mxu0 0.0
    %6275 = vmatpush1.msra.mxu0 0.0
    %6276 = vmatprep.subr.mxu0 0.0
    %6277 = vmatpush1.msra.mxu0 0.0
    %6278 = vmatprep.subr.mxu0 0.0
    %6279 = vmatpush1.msra.mxu0 0.0
    %6280 = vmatprep.mubr.f32.mxu0 0.0
    %v6281 = vand.u32 %v5963, 4294901760
    %v6282 = vsub.f32 %v5963, %v6281
    %v6283 = vand.u32 %v6282, 4294901760
    %6284 = vmatmul.mubr.f32.gmra.mrb[0].mxu0 %v6283
    %v6285 = vpop.f32.mrb[0].mxu0
    %v6286 = vadd.f32 %v6210, %v6285
    %v6287 = vpop.f32.mrb[0].mxu0
    %v6288 = vadd.f32 %v6212, %v6287
    %6289 = vdwg.mxu0
    %v6290 = vand.u32 %v5969, 4294901760
    %v6291 = vsub.f32 %v5969, %v6290
    %v6292 = vand.u32 %v6291, 4294901760
    %6293 = vmatprep.subr.mxu0 %v6292
    %v6294 = vand.u32 %v5966, 4294901760
    %v6295 = vsub.f32 %v5966, %v6294
    %v6296 = vand.u32 %v6295, 4294901760
    %6297 = vmatpush1.msra.mxu0 %v6296
    %6298 = vmatprep.subr.mxu0 0.0
    %6299 = vmatpush1.msra.mxu0 0.0
    %6300 = vmatprep.subr.mxu0 0.0
    %6301 = vmatpush1.msra.mxu0 0.0
    %6302 = vmatprep.subr.mxu0 0.0
    %6303 = vmatpush1.msra.mxu0 0.0
    %6304 = vmatprep.subr.mxu0 0.0
    %6305 = vmatpush1.msra.mxu0 0.0
    %6306 = vmatprep.subr.mxu0 0.0
    %6307 = vmatpush1.msra.mxu0 0.0
    %6308 = vmatprep.subr.mxu0 0.0
    %6309 = vmatpush1.msra.mxu0 0.0
    %6310 = vmatprep.subr.mxu0 0.0
    %6311 = vmatpush1.msra.mxu0 0.0
    %6312 = vmatprep.subr.mxu0 0.0
    %6313 = vmatpush1.msra.mxu0 0.0
    %6314 = vmatprep.subr.mxu0 0.0
    %6315 = vmatpush1.msra.mxu0 0.0
    %6316 = vmatprep.subr.mxu0 0.0
    %6317 = vmatpush1.msra.mxu0 0.0
    %6318 = vmatprep.subr.mxu0 0.0
    %6319 = vmatpush1.msra.mxu0 0.0
    %6320 = vmatprep.subr.mxu0 0.0
    %6321 = vmatpush1.msra.mxu0 0.0
    %6322 = vmatprep.subr.mxu0 0.0
    %6323 = vmatpush1.msra.mxu0 0.0
    %6324 = vmatprep.subr.mxu0 0.0
    %6325 = vmatpush1.msra.mxu0 0.0
    %6326 = vmatprep.subr.mxu0 0.0
    %6327 = vmatpush1.msra.mxu0 0.0
    %6328 = vmatprep.subr.mxu0 0.0
    %6329 = vmatpush1.msra.mxu0 0.0
    %6330 = vmatprep.subr.mxu0 0.0
    %6331 = vmatpush1.msra.mxu0 0.0
    %6332 = vmatprep.subr.mxu0 0.0
    %6333 = vmatpush1.msra.mxu0 0.0
    %6334 = vmatprep.subr.mxu0 0.0
    %6335 = vmatpush1.msra.mxu0 0.0
    %6336 = vmatprep.subr.mxu0 0.0
    %6337 = vmatpush1.msra.mxu0 0.0
    %6338 = vmatprep.subr.mxu0 0.0
    %6339 = vmatpush1.msra.mxu0 0.0
    %6340 = vmatprep.subr.mxu0 0.0
    %6341 = vmatpush1.msra.mxu0 0.0
    %6342 = vmatprep.subr.mxu0 0.0
    %6343 = vmatpush1.msra.mxu0 0.0
    %6344 = vmatprep.subr.mxu0 0.0
    %6345 = vmatpush1.msra.mxu0 0.0
    %6346 = vmatprep.subr.mxu0 0.0
    %6347 = vmatpush1.msra.mxu0 0.0
    %6348 = vmatprep.subr.mxu0 0.0
    %6349 = vmatpush1.msra.mxu0 0.0
    %6350 = vmatprep.subr.mxu0 0.0
    %6351 = vmatpush1.msra.mxu0 0.0
    %6352 = vmatprep.subr.mxu0 0.0
    %6353 = vmatpush1.msra.mxu0 0.0
    %6354 = vmatprep.subr.mxu0 0.0
    %6355 = vmatpush1.msra.mxu0 0.0
    %6356 = vmatprep.subr.mxu0 0.0
    %6357 = vmatpush1.msra.mxu0 0.0
    %6358 = vmatprep.subr.mxu0 0.0
    %6359 = vmatpush1.msra.mxu0 0.0
    %6360 = vmatprep.mubr.f32.mxu0 0.0
    %v6361 = vand.u32 %v5963, 4294901760
    %6362 = vmatmul.mubr.f32.gmra.mrb[0].mxu0 %v6361
    %v6363 = vpop.f32.mrb[0].mxu0
    %v6364 = vadd.f32 %v6286, %v6363
    %v6365 = vpop.f32.mrb[0].mxu0
    %v6366 = vadd.f32 %v6288, %v6365
    %6367 = vdwg.mxu0
    %v6368 = vand.u32 %v5969, 4294901760
    %6369 = vmatprep.subr.mxu0 %v6368
    %v6370 = vand.u32 %v5966, 4294901760
    %6371 = vmatpush1.msra.mxu0 %v6370
    %6372 = vmatprep.subr.mxu0 0.0
    %6373 = vmatpush1.msra.mxu0 0.0
    %6374 = vmatprep.subr.mxu0 0.0
    %6375 = vmatpush1.msra.mxu0 0.0
    %6376 = vmatprep.subr.mxu0 0.0
    %6377 = vmatpush1.msra.mxu0 0.0
    %6378 = vmatprep.subr.mxu0 0.0
    %6379 = vmatpush1.msra.mxu0 0.0
    %6380 = vmatprep.subr.mxu0 0.0
    %6381 = vmatpush1.msra.mxu0 0.0
    %6382 = vmatprep.subr.mxu0 0.0
    %6383 = vmatpush1.msra.mxu0 0.0
    %6384 = vmatprep.subr.mxu0 0.0
    %6385 = vmatpush1.msra.mxu0 0.0
    %6386 = vmatprep.subr.mxu0 0.0
    %6387 = vmatpush1.msra.mxu0 0.0
    %6388 = vmatprep.subr.mxu0 0.0
    %6389 = vmatpush1.msra.mxu0 0.0
    %6390 = vmatprep.subr.mxu0 0.0
    %6391 = vmatpush1.msra.mxu0 0.0
    %6392 = vmatprep.subr.mxu0 0.0
    %6393 = vmatpush1.msra.mxu0 0.0
    %6394 = vmatprep.subr.mxu0 0.0
    %6395 = vmatpush1.msra.mxu0 0.0
    %6396 = vmatprep.subr.mxu0 0.0
    %6397 = vmatpush1.msra.mxu0 0.0
    %6398 = vmatprep.subr.mxu0 0.0
    %6399 = vmatpush1.msra.mxu0 0.0
    %6400 = vmatprep.subr.mxu0 0.0
    %6401 = vmatpush1.msra.mxu0 0.0
    %6402 = vmatprep.subr.mxu0 0.0
    %6403 = vmatpush1.msra.mxu0 0.0
    %6404 = vmatprep.subr.mxu0 0.0
    %6405 = vmatpush1.msra.mxu0 0.0
    %6406 = vmatprep.subr.mxu0 0.0
    %6407 = vmatpush1.msra.mxu0 0.0
    %6408 = vmatprep.subr.mxu0 0.0
    %6409 = vmatpush1.msra.mxu0 0.0
    %6410 = vmatprep.subr.mxu0 0.0
    %6411 = vmatpush1.msra.mxu0 0.0
    %6412 = vmatprep.subr.mxu0 0.0
    %6413 = vmatpush1.msra.mxu0 0.0
    %6414 = vmatprep.subr.mxu0 0.0
    %6415 = vmatpush1.msra.mxu0 0.0
    %6416 = vmatprep.subr.mxu0 0.0
    %6417 = vmatpush1.msra.mxu0 0.0
    %6418 = vmatprep.subr.mxu0 0.0
    %6419 = vmatpush1.msra.mxu0 0.0
    %6420 = vmatprep.subr.mxu0 0.0
    %6421 = vmatpush1.msra.mxu0 0.0
    %6422 = vmatprep.subr.mxu0 0.0
    %6423 = vmatpush1.msra.mxu0 0.0
    %6424 = vmatprep.subr.mxu0 0.0
    %6425 = vmatpush1.msra.mxu0 0.0
    %6426 = vmatprep.subr.mxu0 0.0
    %6427 = vmatpush1.msra.mxu0 0.0
    %6428 = vmatprep.subr.mxu0 0.0
    %6429 = vmatpush1.msra.mxu0 0.0
    %6430 = vmatprep.subr.mxu0 0.0
    %6431 = vmatpush1.msra.mxu0 0.0
    %6432 = vmatprep.subr.mxu0 0.0
    %6433 = vmatpush1.msra.mxu0 0.0
    %6434 = vmatprep.mubr.f32.mxu0 0.0
    %v6435 = vand.u32 %v5963, 4294901760
    %6436 = vmatmul.mubr.f32.gmra.mrb[0].mxu0 %v6435
    %v6437 = vpop.f32.mrb[0].mxu0
    %v6438 = vadd.f32 %v6364, %v6437
    %v6439 = vpop.f32.mrb[0].mxu0
    %v6440 = vadd.f32 %v6366, %v6439
    %6441 = vdwg.mxu0
    %v6442 = vand.u32 %v5975, 4294901760
    %6443 = vmatprep.subr.mxu0 %v6442
    %v6444 = vand.u32 %v5972, 4294901760
    %6445 = vmatpush1.msra.mxu0 %v6444
    %6446 = vmatprep.subr.mxu0 0.0
    %6447 = vmatpush1.msra.mxu0 0.0
    %6448 = vmatprep.subr.mxu0 0.0
    %6449 = vmatpush1.msra.mxu0 0.0
    %6450 = vmatprep.subr.mxu0 0.0
    %6451 = vmatpush1.msra.mxu0 0.0
    %6452 = vmatprep.subr.mxu0 0.0
    %6453 = vmatpush1.msra.mxu0 0.0
    %6454 = vmatprep.subr.mxu0 0.0
    %6455 = vmatpush1.msra.mxu0 0.0
    %6456 = vmatprep.subr.mxu0 0.0
    %6457 = vmatpush1.msra.mxu0 0.0
    %6458 = vmatprep.subr.mxu0 0.0
    %6459 = vmatpush1.msra.mxu0 0.0
    %6460 = vmatprep.subr.mxu0 0.0
    %6461 = vmatpush1.msra.mxu0 0.0
    %6462 = vmatprep.subr.mxu0 0.0
    %6463 = vmatpush1.msra.mxu0 0.0
    %6464 = vmatprep.subr.mxu0 0.0
    %6465 = vmatpush1.msra.mxu0 0.0
    %6466 = vmatprep.subr.mxu0 0.0
    %6467 = vmatpush1.msra.mxu0 0.0
    %6468 = vmatprep.subr.mxu0 0.0
    %6469 = vmatpush1.msra.mxu0 0.0
    %6470 = vmatprep.subr.mxu0 0.0
    %6471 = vmatpush1.msra.mxu0 0.0
    %6472 = vmatprep.subr.mxu0 0.0
    %6473 = vmatpush1.msra.mxu0 0.0
    %6474 = vmatprep.subr.mxu0 0.0
    %6475 = vmatpush1.msra.mxu0 0.0
    %6476 = vmatprep.subr.mxu0 0.0
    %6477 = vmatpush1.msra.mxu0 0.0
    %6478 = vmatprep.subr.mxu0 0.0
    %6479 = vmatpush1.msra.mxu0 0.0
    %6480 = vmatprep.subr.mxu0 0.0
    %6481 = vmatpush1.msra.mxu0 0.0
    %6482 = vmatprep.subr.mxu0 0.0
    %6483 = vmatpush1.msra.mxu0 0.0
    %6484 = vmatprep.subr.mxu0 0.0
    %6485 = vmatpush1.msra.mxu0 0.0
    %6486 = vmatprep.subr.mxu0 0.0
    %6487 = vmatpush1.msra.mxu0 0.0
    %6488 = vmatprep.subr.mxu0 0.0
    %6489 = vmatpush1.msra.mxu0 0.0
    %6490 = vmatprep.subr.mxu0 0.0
    %6491 = vmatpush1.msra.mxu0 0.0
    %6492 = vmatprep.subr.mxu0 0.0
    %6493 = vmatpush1.msra.mxu0 0.0
    %6494 = vmatprep.subr.mxu0 0.0
    %6495 = vmatpush1.msra.mxu0 0.0
    %6496 = vmatprep.subr.mxu0 0.0
    %6497 = vmatpush1.msra.mxu0 0.0
    %6498 = vmatprep.subr.mxu0 0.0
    %6499 = vmatpush1.msra.mxu0 0.0
    %6500 = vmatprep.subr.mxu0 0.0
    %6501 = vmatpush1.msra.mxu0 0.0
    %6502 = vmatprep.subr.mxu0 0.0
    %6503 = vmatpush1.msra.mxu0 0.0
    %6504 = vmatprep.subr.mxu0 0.0
    %6505 = vmatpush1.msra.mxu0 0.0
    %6506 = vmatprep.subr.mxu0 0.0
    %6507 = vmatpush1.msra.mxu0 0.0
    %6508 = vmatprep.mubr.f32.mxu0 0.0
    %v6509 = vand.u32 %v5963, 4294901760
    %v6510 = vsub.f32 %v5963, %v6509
    %v6511 = vand.u32 %v6510, 4294901760
    %v6512 = vsub.f32 %v6510, %v6511
    %v6513 = vand.u32 %v6512, 4294901760
    %6514 = vmatmul.mubr.f32.gmra.mrb[0].mxu0 %v6513
    %v6515 = vpop.f32.mrb[0].mxu0
    %v6516 = vadd.f32 0.0, %v6515
    %v6517 = vpop.f32.mrb[0].mxu0
    %v6518 = vadd.f32 0.0, %v6517
    %6519 = vdwg.mxu0
    %v6520 = vand.u32 %v5975, 4294901760
    %v6521 = vsub.f32 %v5975, %v6520
    %v6522 = vand.u32 %v6521, 4294901760
    %v6523 = vsub.f32 %v6521, %v6522
    %v6524 = vand.u32 %v6523, 4294901760
    %6525 = vmatprep.subr.mxu0 %v6524
    %v6526 = vand.u32 %v5972, 4294901760
    %v6527 = vsub.f32 %v5972, %v6526
    %v6528 = vand.u32 %v6527, 4294901760
    %v6529 = vsub.f32 %v6527, %v6528
    %v6530 = vand.u32 %v6529, 4294901760
    %6531 = vmatpush1.msra.mxu0 %v6530
    %6532 = vmatprep.subr.mxu0 0.0
    %6533 = vmatpush1.msra.mxu0 0.0
    %6534 = vmatprep.subr.mxu0 0.0
    %6535 = vmatpush1.msra.mxu0 0.0
    %6536 = vmatprep.subr.mxu0 0.0
    %6537 = vmatpush1.msra.mxu0 0.0
    %6538 = vmatprep.subr.mxu0 0.0
    %6539 = vmatpush1.msra.mxu0 0.0
    %6540 = vmatprep.subr.mxu0 0.0
    %6541 = vmatpush1.msra.mxu0 0.0
    %6542 = vmatprep.subr.mxu0 0.0
    %6543 = vmatpush1.msra.mxu0 0.0
    %6544 = vmatprep.subr.mxu0 0.0
    %6545 = vmatpush1.msra.mxu0 0.0
    %6546 = vmatprep.subr.mxu0 0.0
    %6547 = vmatpush1.msra.mxu0 0.0
    %6548 = vmatprep.subr.mxu0 0.0
    %6549 = vmatpush1.msra.mxu0 0.0
    %6550 = vmatprep.subr.mxu0 0.0
    %6551 = vmatpush1.msra.mxu0 0.0
    %6552 = vmatprep.subr.mxu0 0.0
    %6553 = vmatpush1.msra.mxu0 0.0
    %6554 = vmatprep.subr.mxu0 0.0
    %6555 = vmatpush1.msra.mxu0 0.0
    %6556 = vmatprep.subr.mxu0 0.0
    %6557 = vmatpush1.msra.mxu0 0.0
    %6558 = vmatprep.subr.mxu0 0.0
    %6559 = vmatpush1.msra.mxu0 0.0
    %6560 = vmatprep.subr.mxu0 0.0
    %6561 = vmatpush1.msra.mxu0 0.0
    %6562 = vmatprep.subr.mxu0 0.0
    %6563 = vmatpush1.msra.mxu0 0.0
    %6564 = vmatprep.subr.mxu0 0.0
    %6565 = vmatpush1.msra.mxu0 0.0
    %6566 = vmatprep.subr.mxu0 0.0
    %6567 = vmatpush1.msra.mxu0 0.0
    %6568 = vmatprep.subr.mxu0 0.0
    %6569 = vmatpush1.msra.mxu0 0.0
    %6570 = vmatprep.subr.mxu0 0.0
    %6571 = vmatpush1.msra.mxu0 0.0
    %6572 = vmatprep.subr.mxu0 0.0
    %6573 = vmatpush1.msra.mxu0 0.0
    %6574 = vmatprep.subr.mxu0 0.0
    %6575 = vmatpush1.msra.mxu0 0.0
    %6576 = vmatprep.subr.mxu0 0.0
    %6577 = vmatpush1.msra.mxu0 0.0
    %6578 = vmatprep.subr.mxu0 0.0
    %6579 = vmatpush1.msra.mxu0 0.0
    %6580 = vmatprep.subr.mxu0 0.0
    %6581 = vmatpush1.msra.mxu0 0.0
    %6582 = vmatprep.subr.mxu0 0.0
    %6583 = vmatpush1.msra.mxu0 0.0
    %6584 = vmatprep.subr.mxu0 0.0
    %6585 = vmatpush1.msra.mxu0 0.0
    %6586 = vmatprep.subr.mxu0 0.0
    %6587 = vmatpush1.msra.mxu0 0.0
    %6588 = vmatprep.subr.mxu0 0.0
    %6589 = vmatpush1.msra.mxu0 0.0
    %6590 = vmatprep.subr.mxu0 0.0
    %6591 = vmatpush1.msra.mxu0 0.0
    %6592 = vmatprep.subr.mxu0 0.0
    %6593 = vmatpush1.msra.mxu0 0.0
    %6594 = vmatprep.mubr.f32.mxu0 0.0
    %v6595 = vand.u32 %v5963, 4294901760
    %6596 = vmatmul.mubr.f32.gmra.mrb[0].mxu0 %v6595
    %v6597 = vpop.f32.mrb[0].mxu0
    %v6598 = vadd.f32 %v6516, %v6597
    %v6599 = vpop.f32.mrb[0].mxu0
    %v6600 = vadd.f32 %v6518, %v6599
    %6601 = vdwg.mxu0
    %v6602 = vand.u32 %v5975, 4294901760
    %v6603 = vsub.f32 %v5975, %v6602
    %6604 = vmatprep.subr.mxu0 %v6603
    %v6605 = vand.u32 %v5972, 4294901760
    %v6606 = vsub.f32 %v5972, %v6605
    %6607 = vmatpush1.msra.mxu0 %v6606
    %6608 = vmatprep.subr.mxu0 0.0
    %6609 = vmatpush1.msra.mxu0 0.0
    %6610 = vmatprep.subr.mxu0 0.0
    %6611 = vmatpush1.msra.mxu0 0.0
    %6612 = vmatprep.subr.mxu0 0.0
    %6613 = vmatpush1.msra.mxu0 0.0
    %6614 = vmatprep.subr.mxu0 0.0
    %6615 = vmatpush1.msra.mxu0 0.0
    %6616 = vmatprep.subr.mxu0 0.0
    %6617 = vmatpush1.msra.mxu0 0.0
    %6618 = vmatprep.subr.mxu0 0.0
    %6619 = vmatpush1.msra.mxu0 0.0
    %6620 = vmatprep.subr.mxu0 0.0
    %6621 = vmatpush1.msra.mxu0 0.0
    %6622 = vmatprep.subr.mxu0 0.0
    %6623 = vmatpush1.msra.mxu0 0.0
    %6624 = vmatprep.subr.mxu0 0.0
    %6625 = vmatpush1.msra.mxu0 0.0
    %6626 = vmatprep.subr.mxu0 0.0
    %6627 = vmatpush1.msra.mxu0 0.0
    %6628 = vmatprep.subr.mxu0 0.0
    %6629 = vmatpush1.msra.mxu0 0.0
    %6630 = vmatprep.subr.mxu0 0.0
    %6631 = vmatpush1.msra.mxu0 0.0
    %6632 = vmatprep.subr.mxu0 0.0
    %6633 = vmatpush1.msra.mxu0 0.0
    %6634 = vmatprep.subr.mxu0 0.0
    %6635 = vmatpush1.msra.mxu0 0.0
    %6636 = vmatprep.subr.mxu0 0.0
    %6637 = vmatpush1.msra.mxu0 0.0
    %6638 = vmatprep.subr.mxu0 0.0
    %6639 = vmatpush1.msra.mxu0 0.0
    %6640 = vmatprep.subr.mxu0 0.0
    %6641 = vmatpush1.msra.mxu0 0.0
    %6642 = vmatprep.subr.mxu0 0.0
    %6643 = vmatpush1.msra.mxu0 0.0
    %6644 = vmatprep.subr.mxu0 0.0
    %6645 = vmatpush1.msra.mxu0 0.0
    %6646 = vmatprep.subr.mxu0 0.0
    %6647 = vmatpush1.msra.mxu0 0.0
    %6648 = vmatprep.subr.mxu0 0.0
    %6649 = vmatpush1.msra.mxu0 0.0
    %6650 = vmatprep.subr.mxu0 0.0
    %6651 = vmatpush1.msra.mxu0 0.0
    %6652 = vmatprep.subr.mxu0 0.0
    %6653 = vmatpush1.msra.mxu0 0.0
    %6654 = vmatprep.subr.mxu0 0.0
    %6655 = vmatpush1.msra.mxu0 0.0
    %6656 = vmatprep.subr.mxu0 0.0
    %6657 = vmatpush1.msra.mxu0 0.0
    %6658 = vmatprep.subr.mxu0 0.0
    %6659 = vmatpush1.msra.mxu0 0.0
    %6660 = vmatprep.subr.mxu0 0.0
    %6661 = vmatpush1.msra.mxu0 0.0
    %6662 = vmatprep.subr.mxu0 0.0
    %6663 = vmatpush1.msra.mxu0 0.0
    %6664 = vmatprep.subr.mxu0 0.0
    %6665 = vmatpush1.msra.mxu0 0.0
    %6666 = vmatprep.subr.mxu0 0.0
    %6667 = vmatpush1.msra.mxu0 0.0
    %6668 = vmatprep.subr.mxu0 0.0
    %6669 = vmatpush1.msra.mxu0 0.0
    %6670 = vmatprep.mubr.f32.mxu0 0.0
    %v6671 = vand.u32 %v5963, 4294901760
    %v6672 = vsub.f32 %v5963, %v6671
    %6673 = vmatmul.mubr.f32.gmra.mrb[0].mxu0 %v6672
    %v6674 = vpop.f32.mrb[0].mxu0
    %v6675 = vadd.f32 %v6598, %v6674
    %v6676 = vpop.f32.mrb[0].mxu0
    %v6677 = vadd.f32 %v6600, %v6676
    %6678 = vdwg.mxu0
    %v6679 = vand.u32 %v5975, 4294901760
    %6680 = vmatprep.subr.mxu0 %v6679
    %v6681 = vand.u32 %v5972, 4294901760
    %6682 = vmatpush1.msra.mxu0 %v6681
    %6683 = vmatprep.subr.mxu0 0.0
    %6684 = vmatpush1.msra.mxu0 0.0
    %6685 = vmatprep.subr.mxu0 0.0
    %6686 = vmatpush1.msra.mxu0 0.0
    %6687 = vmatprep.subr.mxu0 0.0
    %6688 = vmatpush1.msra.mxu0 0.0
    %6689 = vmatprep.subr.mxu0 0.0
    %6690 = vmatpush1.msra.mxu0 0.0
    %6691 = vmatprep.subr.mxu0 0.0
    %6692 = vmatpush1.msra.mxu0 0.0
    %6693 = vmatprep.subr.mxu0 0.0
    %6694 = vmatpush1.msra.mxu0 0.0
    %6695 = vmatprep.subr.mxu0 0.0
    %6696 = vmatpush1.msra.mxu0 0.0
    %6697 = vmatprep.subr.mxu0 0.0
    %6698 = vmatpush1.msra.mxu0 0.0
    %6699 = vmatprep.subr.mxu0 0.0
    %6700 = vmatpush1.msra.mxu0 0.0
    %6701 = vmatprep.subr.mxu0 0.0
    %6702 = vmatpush1.msra.mxu0 0.0
    %6703 = vmatprep.subr.mxu0 0.0
    %6704 = vmatpush1.msra.mxu0 0.0
    %6705 = vmatprep.subr.mxu0 0.0
    %6706 = vmatpush1.msra.mxu0 0.0
    %6707 = vmatprep.subr.mxu0 0.0
    %6708 = vmatpush1.msra.mxu0 0.0
    %6709 = vmatprep.subr.mxu0 0.0
    %6710 = vmatpush1.msra.mxu0 0.0
    %6711 = vmatprep.subr.mxu0 0.0
    %6712 = vmatpush1.msra.mxu0 0.0
    %6713 = vmatprep.subr.mxu0 0.0
    %6714 = vmatpush1.msra.mxu0 0.0
    %6715 = vmatprep.subr.mxu0 0.0
    %6716 = vmatpush1.msra.mxu0 0.0
    %6717 = vmatprep.subr.mxu0 0.0
    %6718 = vmatpush1.msra.mxu0 0.0
    %6719 = vmatprep.subr.mxu0 0.0
    %6720 = vmatpush1.msra.mxu0 0.0
    %6721 = vmatprep.subr.mxu0 0.0
    %6722 = vmatpush1.msra.mxu0 0.0
    %6723 = vmatprep.subr.mxu0 0.0
    %6724 = vmatpush1.msra.mxu0 0.0
    %6725 = vmatprep.subr.mxu0 0.0
    %6726 = vmatpush1.msra.mxu0 0.0
    %6727 = vmatprep.subr.mxu0 0.0
    %6728 = vmatpush1.msra.mxu0 0.0
    %6729 = vmatprep.subr.mxu0 0.0
    %6730 = vmatpush1.msra.mxu0 0.0
    %6731 = vmatprep.subr.mxu0 0.0
    %6732 = vmatpush1.msra.mxu0 0.0
    %6733 = vmatprep.subr.mxu0 0.0
    %6734 = vmatpush1.msra.mxu0 0.0
    %6735 = vmatprep.subr.mxu0 0.0
    %6736 = vmatpush1.msra.mxu0 0.0
    %6737 = vmatprep.subr.mxu0 0.0
    %6738 = vmatpush1.msra.mxu0 0.0
    %6739 = vmatprep.subr.mxu0 0.0
    %6740 = vmatpush1.msra.mxu0 0.0
    %6741 = vmatprep.subr.mxu0 0.0
    %6742 = vmatpush1.msra.mxu0 0.0
    %6743 = vmatprep.subr.mxu0 0.0
    %6744 = vmatpush1.msra.mxu0 0.0
    %6745 = vmatprep.mubr.f32.mxu0 0.0
    %v6746 = vand.u32 %v5963, 4294901760
    %v6747 = vsub.f32 %v5963, %v6746
    %v6748 = vand.u32 %v6747, 4294901760
    %6749 = vmatmul.mubr.f32.gmra.mrb[0].mxu0 %v6748
    %v6750 = vpop.f32.mrb[0].mxu0
    %v6751 = vadd.f32 %v6675, %v6750
    %v6752 = vpop.f32.mrb[0].mxu0
    %v6753 = vadd.f32 %v6677, %v6752
    %6754 = vdwg.mxu0
    %v6755 = vand.u32 %v5975, 4294901760
    %v6756 = vsub.f32 %v5975, %v6755
    %v6757 = vand.u32 %v6756, 4294901760
    %6758 = vmatprep.subr.mxu0 %v6757
    %v6759 = vand.u32 %v5972, 4294901760
    %v6760 = vsub.f32 %v5972, %v6759
    %v6761 = vand.u32 %v6760, 4294901760
    %6762 = vmatpush1.msra.mxu0 %v6761
    %6763 = vmatprep.subr.mxu0 0.0
    %6764 = vmatpush1.msra.mxu0 0.0
    %6765 = vmatprep.subr.mxu0 0.0
    %6766 = vmatpush1.msra.mxu0 0.0
    %6767 = vmatprep.subr.mxu0 0.0
    %6768 = vmatpush1.msra.mxu0 0.0
    %6769 = vmatprep.subr.mxu0 0.0
    %6770 = vmatpush1.msra.mxu0 0.0
    %6771 = vmatprep.subr.mxu0 0.0
    %6772 = vmatpush1.msra.mxu0 0.0
    %6773 = vmatprep.subr.mxu0 0.0
    %6774 = vmatpush1.msra.mxu0 0.0
    %6775 = vmatprep.subr.mxu0 0.0
    %6776 = vmatpush1.msra.mxu0 0.0
    %6777 = vmatprep.subr.mxu0 0.0
    %6778 = vmatpush1.msra.mxu0 0.0
    %6779 = vmatprep.subr.mxu0 0.0
    %6780 = vmatpush1.msra.mxu0 0.0
    %6781 = vmatprep.subr.mxu0 0.0
    %6782 = vmatpush1.msra.mxu0 0.0
    %6783 = vmatprep.subr.mxu0 0.0
    %6784 = vmatpush1.msra.mxu0 0.0
    %6785 = vmatprep.subr.mxu0 0.0
    %6786 = vmatpush1.msra.mxu0 0.0
    %6787 = vmatprep.subr.mxu0 0.0
    %6788 = vmatpush1.msra.mxu0 0.0
    %6789 = vmatprep.subr.mxu0 0.0
    %6790 = vmatpush1.msra.mxu0 0.0
    %6791 = vmatprep.subr.mxu0 0.0
    %6792 = vmatpush1.msra.mxu0 0.0
    %6793 = vmatprep.subr.mxu0 0.0
    %6794 = vmatpush1.msra.mxu0 0.0
    %6795 = vmatprep.subr.mxu0 0.0
    %6796 = vmatpush1.msra.mxu0 0.0
    %6797 = vmatprep.subr.mxu0 0.0
    %6798 = vmatpush1.msra.mxu0 0.0
    %6799 = vmatprep.subr.mxu0 0.0
    %6800 = vmatpush1.msra.mxu0 0.0
    %6801 = vmatprep.subr.mxu0 0.0
    %6802 = vmatpush1.msra.mxu0 0.0
    %6803 = vmatprep.subr.mxu0 0.0
    %6804 = vmatpush1.msra.mxu0 0.0
    %6805 = vmatprep.subr.mxu0 0.0
    %6806 = vmatpush1.msra.mxu0 0.0
    %6807 = vmatprep.subr.mxu0 0.0
    %6808 = vmatpush1.msra.mxu0 0.0
    %6809 = vmatprep.subr.mxu0 0.0
    %6810 = vmatpush1.msra.mxu0 0.0
    %6811 = vmatprep.subr.mxu0 0.0
    %6812 = vmatpush1.msra.mxu0 0.0
    %6813 = vmatprep.subr.mxu0 0.0
    %6814 = vmatpush1.msra.mxu0 0.0
    %6815 = vmatprep.subr.mxu0 0.0
    %6816 = vmatpush1.msra.mxu0 0.0
    %6817 = vmatprep.subr.mxu0 0.0
    %6818 = vmatpush1.msra.mxu0 0.0
    %6819 = vmatprep.subr.mxu0 0.0
    %6820 = vmatpush1.msra.mxu0 0.0
    %6821 = vmatprep.subr.mxu0 0.0
    %6822 = vmatpush1.msra.mxu0 0.0
    %6823 = vmatprep.subr.mxu0 0.0
    %6824 = vmatpush1.msra.mxu0 0.0
    %6825 = vmatprep.mubr.f32.mxu0 0.0
    %v6826 = vand.u32 %v5963, 4294901760
    %6827 = vmatmul.mubr.f32.gmra.mrb[0].mxu0 %v6826
    %v6828 = vpop.f32.mrb[0].mxu0
    %v6829 = vadd.f32 %v6751, %v6828
    %v6830 = vpop.f32.mrb[0].mxu0
    %v6831 = vadd.f32 %v6753, %v6830
    %6832 = vdwg.mxu0
    %v6833 = vand.u32 %v5975, 4294901760
    %6834 = vmatprep.subr.mxu0 %v6833
    %v6835 = vand.u32 %v5972, 4294901760
    %6836 = vmatpush1.msra.mxu0 %v6835
    %6837 = vmatprep.subr.mxu0 0.0
    %6838 = vmatpush1.msra.mxu0 0.0
    %6839 = vmatprep.subr.mxu0 0.0
    %6840 = vmatpush1.msra.mxu0 0.0
    %6841 = vmatprep.subr.mxu0 0.0
    %6842 = vmatpush1.msra.mxu0 0.0
    %6843 = vmatprep.subr.mxu0 0.0
    %6844 = vmatpush1.msra.mxu0 0.0
    %6845 = vmatprep.subr.mxu0 0.0
    %6846 = vmatpush1.msra.mxu0 0.0
    %6847 = vmatprep.subr.mxu0 0.0
    %6848 = vmatpush1.msra.mxu0 0.0
    %6849 = vmatprep.subr.mxu0 0.0
    %6850 = vmatpush1.msra.mxu0 0.0
    %6851 = vmatprep.subr.mxu0 0.0
    %6852 = vmatpush1.msra.mxu0 0.0
    %6853 = vmatprep.subr.mxu0 0.0
    %6854 = vmatpush1.msra.mxu0 0.0
    %6855 = vmatprep.subr.mxu0 0.0
    %6856 = vmatpush1.msra.mxu0 0.0
    %6857 = vmatprep.subr.mxu0 0.0
    %6858 = vmatpush1.msra.mxu0 0.0
    %6859 = vmatprep.subr.mxu0 0.0
    %6860 = vmatpush1.msra.mxu0 0.0
    %6861 = vmatprep.subr.mxu0 0.0
    %6862 = vmatpush1.msra.mxu0 0.0
    %6863 = vmatprep.subr.mxu0 0.0
    %6864 = vmatpush1.msra.mxu0 0.0
    %6865 = vmatprep.subr.mxu0 0.0
    %6866 = vmatpush1.msra.mxu0 0.0
    %6867 = vmatprep.subr.mxu0 0.0
    %6868 = vmatpush1.msra.mxu0 0.0
    %6869 = vmatprep.subr.mxu0 0.0
    %6870 = vmatpush1.msra.mxu0 0.0
    %6871 = vmatprep.subr.mxu0 0.0
    %6872 = vmatpush1.msra.mxu0 0.0
    %6873 = vmatprep.subr.mxu0 0.0
    %6874 = vmatpush1.msra.mxu0 0.0
    %6875 = vmatprep.subr.mxu0 0.0
    %6876 = vmatpush1.msra.mxu0 0.0
    %6877 = vmatprep.subr.mxu0 0.0
    %6878 = vmatpush1.msra.mxu0 0.0
    %6879 = vmatprep.subr.mxu0 0.0
    %6880 = vmatpush1.msra.mxu0 0.0
    %6881 = vmatprep.subr.mxu0 0.0
    %6882 = vmatpush1.msra.mxu0 0.0
    %6883 = vmatprep.subr.mxu0 0.0
    %6884 = vmatpush1.msra.mxu0 0.0
    %6885 = vmatprep.subr.mxu0 0.0
    %6886 = vmatpush1.msra.mxu0 0.0
    %6887 = vmatprep.subr.mxu0 0.0
    %6888 = vmatpush1.msra.mxu0 0.0
    %6889 = vmatprep.subr.mxu0 0.0
    %6890 = vmatpush1.msra.mxu0 0.0
    %6891 = vmatprep.subr.mxu0 0.0
    %6892 = vmatpush1.msra.mxu0 0.0
    %6893 = vmatprep.subr.mxu0 0.0
    %6894 = vmatpush1.msra.mxu0 0.0
    %6895 = vmatprep.subr.mxu0 0.0
    %6896 = vmatpush1.msra.mxu0 0.0
    %6897 = vmatprep.subr.mxu0 0.0
    %6898 = vmatpush1.msra.mxu0 0.0
    %6899 = vmatprep.mubr.f32.mxu0 0.0
    %v6900 = vand.u32 %v5963, 4294901760
    %6901 = vmatmul.mubr.f32.gmra.mrb[0].mxu0 %v6900
    %v6902 = vpop.f32.mrb[0].mxu0
    %v6903 = vadd.f32 %v6829, %v6902
    %v6904 = vpop.f32.mrb[0].mxu0
    %v6905 = vadd.f32 %v6831, %v6904
    %6906 = vdwg.mxu0
    %vm6907 = vmand %vm37, %vm41
    %vm6908 = vmand %vm38, %vm42
    %vm6909 = vmand %vm39, %vm43
    %vm6910 = vmand %vm40, %vm44
    %v6911 = vld [vmem:[#allocation2] sm:$0xff]
    %v6912 = vld [vmem:[#allocation2 + $0x8] sm:$0xff]
    %v6913 = vsel %vm6907, 1, 0
    %v6914 = vsel %vm6908, 1, 0
    %v6915 = vsel %vm6909, 1, 0
    %v6916 = vsel %vm6910, 1, 0
    %vm6917 = vcmp.eq.s32.totalorder %v6913, 1
    %vm6918 = vcmp.eq.s32.totalorder %v6914, 1
    %vm6919 = vcmp.eq.s32.totalorder %v6915, 1
    %vm6920 = vcmp.eq.s32.totalorder %v6916, 1
    %v6921 = vsel %vm6917, %v6438, 0.0
    %v6922 = vsel %vm6918, %v6440, 0.0
    %v6923 = vsel %vm6919, %v6903, 0.0
    %v6924 = vsel %vm6920, %v6905, 0.0
    %v6929 = vcombine.low %v6921, %v6922
    %v6930 = vcombine.low %v6923, %v6924
    %v6933 = vadd.f32 %v6911, %v6929
    %v6934 = vadd.f32 %v6912, %v6930
    %6935 = vst [vmem:[#allocation2] sm:$0xff] %v6933
    %6936 = vst [vmem:[#allocation2 + $0x8] sm:$0xff] %v6934
    %6937 = vrot.lane.b32.xlu0 %v18, 112
    %v6938 = vpop.permute.xlu0 %6937
    %6939 = vrot.lane.b32.xlu0 %v53, 112
    %v6940 = vpop.permute.xlu0 %6939
    %6941 = vrot.lane.b32.xlu0 %v19, 112
    %v6942 = vpop.permute.xlu0 %6941
    %6943 = vrot.lane.b32.xlu0 %v54, 112
    %v6944 = vpop.permute.xlu0 %6943
    %vm6945 = vcmp.lt.s32.totalorder %v21, 112
    %v6946 = vsel %vm6945, %v6942, %v6944
    %v6947 = vsel %vm6945, %v6940, %v6942
    %v6948 = vsel %vm6945, %v6938, %v6940
    %v6949 = vsel %vm6945, %v6944, %v6938
    %s6950 = scalar_lea.vmem %s1, 28
    %v6951 = vld [vmem:[%s6950] sm:$0xf]
    %v6953 = vsel %vm55, %v6951, 0
    %v6956 = vsel %vm59, %v6948, 0
    %v6959 = vsel %vm59, %v6947, 0
    %v6962 = vsel %vm59, %v6946, 0
    %v6965 = vsel %vm59, %v6949, 0
    %v6967 = vand.u32 %v6959, 4294901760
    %6968 = vmatprep.subr.mxu0 %v6967
    %v6969 = vand.u32 %v6956, 4294901760
    %6970 = vmatpush1.msra.mxu0 %v6969
    %6971 = vmatprep.subr.mxu0 0.0
    %6972 = vmatpush1.msra.mxu0 0.0
    %6973 = vmatprep.subr.mxu0 0.0
    %6974 = vmatpush1.msra.mxu0 0.0
    %6975 = vmatprep.subr.mxu0 0.0
    %6976 = vmatpush1.msra.mxu0 0.0
    %6977 = vmatprep.subr.mxu0 0.0
    %6978 = vmatpush1.msra.mxu0 0.0
    %6979 = vmatprep.subr.mxu0 0.0
    %6980 = vmatpush1.msra.mxu0 0.0
    %6981 = vmatprep.subr.mxu0 0.0
    %6982 = vmatpush1.msra.mxu0 0.0
    %6983 = vmatprep.subr.mxu0 0.0
    %6984 = vmatpush1.msra.mxu0 0.0
    %6985 = vmatprep.subr.mxu0 0.0
    %6986 = vmatpush1.msra.mxu0 0.0
    %6987 = vmatprep.subr.mxu0 0.0
    %6988 = vmatpush1.msra.mxu0 0.0
    %6989 = vmatprep.subr.mxu0 0.0
    %6990 = vmatpush1.msra.mxu0 0.0
    %6991 = vmatprep.subr.mxu0 0.0
    %6992 = vmatpush1.msra.mxu0 0.0
    %6993 = vmatprep.subr.mxu0 0.0
    %6994 = vmatpush1.msra.mxu0 0.0
    %6995 = vmatprep.subr.mxu0 0.0
    %6996 = vmatpush1.msra.mxu0 0.0
    %6997 = vmatprep.subr.mxu0 0.0
    %6998 = vmatpush1.msra.mxu0 0.0
    %6999 = vmatprep.subr.mxu0 0.0
    %7000 = vmatpush1.msra.mxu0 0.0
    %7001 = vmatprep.subr.mxu0 0.0
    %7002 = vmatpush1.msra.mxu0 0.0
    %7003 = vmatprep.subr.mxu0 0.0
    %7004 = vmatpush1.msra.mxu0 0.0
    %7005 = vmatprep.subr.mxu0 0.0
    %7006 = vmatpush1.msra.mxu0 0.0
    %7007 = vmatprep.subr.mxu0 0.0
    %7008 = vmatpush1.msra.mxu0 0.0
    %7009 = vmatprep.subr.mxu0 0.0
    %7010 = vmatpush1.msra.mxu0 0.0
    %7011 = vmatprep.subr.mxu0 0.0
    %7012 = vmatpush1.msra.mxu0 0.0
    %7013 = vmatprep.subr.mxu0 0.0
    %7014 = vmatpush1.msra.mxu0 0.0
    %7015 = vmatprep.subr.mxu0 0.0
    %7016 = vmatpush1.msra.mxu0 0.0
    %7017 = vmatprep.subr.mxu0 0.0
    %7018 = vmatpush1.msra.mxu0 0.0
    %7019 = vmatprep.subr.mxu0 0.0
    %7020 = vmatpush1.msra.mxu0 0.0
    %7021 = vmatprep.subr.mxu0 0.0
    %7022 = vmatpush1.msra.mxu0 0.0
    %7023 = vmatprep.subr.mxu0 0.0
    %7024 = vmatpush1.msra.mxu0 0.0
    %7025 = vmatprep.subr.mxu0 0.0
    %7026 = vmatpush1.msra.mxu0 0.0
    %7027 = vmatprep.subr.mxu0 0.0
    %7028 = vmatpush1.msra.mxu0 0.0
    %7029 = vmatprep.subr.mxu0 0.0
    %7030 = vmatpush1.msra.mxu0 0.0
    %7031 = vmatprep.subr.mxu0 0.0
    %7032 = vmatpush1.msra.mxu0 0.0
    %7033 = vmatprep.mubr.f32.mxu0 0.0
    %v7034 = vand.u32 %v6953, 4294901760
    %v7035 = vsub.f32 %v6953, %v7034
    %v7036 = vand.u32 %v7035, 4294901760
    %v7037 = vsub.f32 %v7035, %v7036
    %v7038 = vand.u32 %v7037, 4294901760
    %7039 = vmatmul.mubr.f32.gmra.mrb[0].mxu0 %v7038
    %v7040 = vpop.f32.mrb[0].mxu0
    %v7041 = vadd.f32 0.0, %v7040
    %v7042 = vpop.f32.mrb[0].mxu0
    %v7043 = vadd.f32 0.0, %v7042
    %7044 = vdwg.mxu0
    %v7045 = vand.u32 %v6959, 4294901760
    %v7046 = vsub.f32 %v6959, %v7045
    %v7047 = vand.u32 %v7046, 4294901760
    %v7048 = vsub.f32 %v7046, %v7047
    %v7049 = vand.u32 %v7048, 4294901760
    %7050 = vmatprep.subr.mxu0 %v7049
    %v7051 = vand.u32 %v6956, 4294901760
    %v7052 = vsub.f32 %v6956, %v7051
    %v7053 = vand.u32 %v7052, 4294901760
    %v7054 = vsub.f32 %v7052, %v7053
    %v7055 = vand.u32 %v7054, 4294901760
    %7056 = vmatpush1.msra.mxu0 %v7055
    %7057 = vmatprep.subr.mxu0 0.0
    %7058 = vmatpush1.msra.mxu0 0.0
    %7059 = vmatprep.subr.mxu0 0.0
    %7060 = vmatpush1.msra.mxu0 0.0
    %7061 = vmatprep.subr.mxu0 0.0
    %7062 = vmatpush1.msra.mxu0 0.0
    %7063 = vmatprep.subr.mxu0 0.0
    %7064 = vmatpush1.msra.mxu0 0.0
    %7065 = vmatprep.subr.mxu0 0.0
    %7066 = vmatpush1.msra.mxu0 0.0
    %7067 = vmatprep.subr.mxu0 0.0
    %7068 = vmatpush1.msra.mxu0 0.0
    %7069 = vmatprep.subr.mxu0 0.0
    %7070 = vmatpush1.msra.mxu0 0.0
    %7071 = vmatprep.subr.mxu0 0.0
    %7072 = vmatpush1.msra.mxu0 0.0
    %7073 = vmatprep.subr.mxu0 0.0
    %7074 = vmatpush1.msra.mxu0 0.0
    %7075 = vmatprep.subr.mxu0 0.0
    %7076 = vmatpush1.msra.mxu0 0.0
    %7077 = vmatprep.subr.mxu0 0.0
    %7078 = vmatpush1.msra.mxu0 0.0
    %7079 = vmatprep.subr.mxu0 0.0
    %7080 = vmatpush1.msra.mxu0 0.0
    %7081 = vmatprep.subr.mxu0 0.0
    %7082 = vmatpush1.msra.mxu0 0.0
    %7083 = vmatprep.subr.mxu0 0.0
    %7084 = vmatpush1.msra.mxu0 0.0
    %7085 = vmatprep.subr.mxu0 0.0
    %7086 = vmatpush1.msra.mxu0 0.0
    %7087 = vmatprep.subr.mxu0 0.0
    %7088 = vmatpush1.msra.mxu0 0.0
    %7089 = vmatprep.subr.mxu0 0.0
    %7090 = vmatpush1.msra.mxu0 0.0
    %7091 = vmatprep.subr.mxu0 0.0
    %7092 = vmatpush1.msra.mxu0 0.0
    %7093 = vmatprep.subr.mxu0 0.0
    %7094 = vmatpush1.msra.mxu0 0.0
    %7095 = vmatprep.subr.mxu0 0.0
    %7096 = vmatpush1.msra.mxu0 0.0
    %7097 = vmatprep.subr.mxu0 0.0
    %7098 = vmatpush1.msra.mxu0 0.0
    %7099 = vmatprep.subr.mxu0 0.0
    %7100 = vmatpush1.msra.mxu0 0.0
    %7101 = vmatprep.subr.mxu0 0.0
    %7102 = vmatpush1.msra.mxu0 0.0
    %7103 = vmatprep.subr.mxu0 0.0
    %7104 = vmatpush1.msra.mxu0 0.0
    %7105 = vmatprep.subr.mxu0 0.0
    %7106 = vmatpush1.msra.mxu0 0.0
    %7107 = vmatprep.subr.mxu0 0.0
    %7108 = vmatpush1.msra.mxu0 0.0
    %7109 = vmatprep.subr.mxu0 0.0
    %7110 = vmatpush1.msra.mxu0 0.0
    %7111 = vmatprep.subr.mxu0 0.0
    %7112 = vmatpush1.msra.mxu0 0.0
    %7113 = vmatprep.subr.mxu0 0.0
    %7114 = vmatpush1.msra.mxu0 0.0
    %7115 = vmatprep.subr.mxu0 0.0
    %7116 = vmatpush1.msra.mxu0 0.0
    %7117 = vmatprep.subr.mxu0 0.0
    %7118 = vmatpush1.msra.mxu0 0.0
    %7119 = vmatprep.mubr.f32.mxu0 0.0
    %v7120 = vand.u32 %v6953, 4294901760
    %7121 = vmatmul.mubr.f32.gmra.mrb[0].mxu0 %v7120
    %v7122 = vpop.f32.mrb[0].mxu0
    %v7123 = vadd.f32 %v7041, %v7122
    %v7124 = vpop.f32.mrb[0].mxu0
    %v7125 = vadd.f32 %v7043, %v7124
    %7126 = vdwg.mxu0
    %v7127 = vand.u32 %v6959, 4294901760
    %v7128 = vsub.f32 %v6959, %v7127
    %7129 = vmatprep.subr.mxu0 %v7128
    %v7130 = vand.u32 %v6956, 4294901760
    %v7131 = vsub.f32 %v6956, %v7130
    %7132 = vmatpush1.msra.mxu0 %v7131
    %7133 = vmatprep.subr.mxu0 0.0
    %7134 = vmatpush1.msra.mxu0 0.0
    %7135 = vmatprep.subr.mxu0 0.0
    %7136 = vmatpush1.msra.mxu0 0.0
    %7137 = vmatprep.subr.mxu0 0.0
    %7138 = vmatpush1.msra.mxu0 0.0
    %7139 = vmatprep.subr.mxu0 0.0
    %7140 = vmatpush1.msra.mxu0 0.0
    %7141 = vmatprep.subr.mxu0 0.0
    %7142 = vmatpush1.msra.mxu0 0.0
    %7143 = vmatprep.subr.mxu0 0.0
    %7144 = vmatpush1.msra.mxu0 0.0
    %7145 = vmatprep.subr.mxu0 0.0
    %7146 = vmatpush1.msra.mxu0 0.0
    %7147 = vmatprep.subr.mxu0 0.0
    %7148 = vmatpush1.msra.mxu0 0.0
    %7149 = vmatprep.subr.mxu0 0.0
    %7150 = vmatpush1.msra.mxu0 0.0
    %7151 = vmatprep.subr.mxu0 0.0
    %7152 = vmatpush1.msra.mxu0 0.0
    %7153 = vmatprep.subr.mxu0 0.0
    %7154 = vmatpush1.msra.mxu0 0.0
    %7155 = vmatprep.subr.mxu0 0.0
    %7156 = vmatpush1.msra.mxu0 0.0
    %7157 = vmatprep.subr.mxu0 0.0
    %7158 = vmatpush1.msra.mxu0 0.0
    %7159 = vmatprep.subr.mxu0 0.0
    %7160 = vmatpush1.msra.mxu0 0.0
    %7161 = vmatprep.subr.mxu0 0.0
    %7162 = vmatpush1.msra.mxu0 0.0
    %7163 = vmatprep.subr.mxu0 0.0
    %7164 = vmatpush1.msra.mxu0 0.0
    %7165 = vmatprep.subr.mxu0 0.0
    %7166 = vmatpush1.msra.mxu0 0.0
    %7167 = vmatprep.subr.mxu0 0.0
    %7168 = vmatpush1.msra.mxu0 0.0
    %7169 = vmatprep.subr.mxu0 0.0
    %7170 = vmatpush1.msra.mxu0 0.0
    %7171 = vmatprep.subr.mxu0 0.0
    %7172 = vmatpush1.msra.mxu0 0.0
    %7173 = vmatprep.subr.mxu0 0.0
    %7174 = vmatpush1.msra.mxu0 0.0
    %7175 = vmatprep.subr.mxu0 0.0
    %7176 = vmatpush1.msra.mxu0 0.0
    %7177 = vmatprep.subr.mxu0 0.0
    %7178 = vmatpush1.msra.mxu0 0.0
    %7179 = vmatprep.subr.mxu0 0.0
    %7180 = vmatpush1.msra.mxu0 0.0
    %7181 = vmatprep.subr.mxu0 0.0
    %7182 = vmatpush1.msra.mxu0 0.0
    %7183 = vmatprep.subr.mxu0 0.0
    %7184 = vmatpush1.msra.mxu0 0.0
    %7185 = vmatprep.subr.mxu0 0.0
    %7186 = vmatpush1.msra.mxu0 0.0
    %7187 = vmatprep.subr.mxu0 0.0
    %7188 = vmatpush1.msra.mxu0 0.0
    %7189 = vmatprep.subr.mxu0 0.0
    %7190 = vmatpush1.msra.mxu0 0.0
    %7191 = vmatprep.subr.mxu0 0.0
    %7192 = vmatpush1.msra.mxu0 0.0
    %7193 = vmatprep.subr.mxu0 0.0
    %7194 = vmatpush1.msra.mxu0 0.0
    %7195 = vmatprep.mubr.f32.mxu0 0.0
    %v7196 = vand.u32 %v6953, 4294901760
    %v7197 = vsub.f32 %v6953, %v7196
    %7198 = vmatmul.mubr.f32.gmra.mrb[0].mxu0 %v7197
    %v7199 = vpop.f32.mrb[0].mxu0
    %v7200 = vadd.f32 %v7123, %v7199
    %v7201 = vpop.f32.mrb[0].mxu0
    %v7202 = vadd.f32 %v7125, %v7201
    %7203 = vdwg.mxu0
    %v7204 = vand.u32 %v6959, 4294901760
    %7205 = vmatprep.subr.mxu0 %v7204
    %v7206 = vand.u32 %v6956, 4294901760
    %7207 = vmatpush1.msra.mxu0 %v7206
    %7208 = vmatprep.subr.mxu0 0.0
    %7209 = vmatpush1.msra.mxu0 0.0
    %7210 = vmatprep.subr.mxu0 0.0
    %7211 = vmatpush1.msra.mxu0 0.0
    %7212 = vmatprep.subr.mxu0 0.0
    %7213 = vmatpush1.msra.mxu0 0.0
    %7214 = vmatprep.subr.mxu0 0.0
    %7215 = vmatpush1.msra.mxu0 0.0
    %7216 = vmatprep.subr.mxu0 0.0
    %7217 = vmatpush1.msra.mxu0 0.0
    %7218 = vmatprep.subr.mxu0 0.0
    %7219 = vmatpush1.msra.mxu0 0.0
    %7220 = vmatprep.subr.mxu0 0.0
    %7221 = vmatpush1.msra.mxu0 0.0
    %7222 = vmatprep.subr.mxu0 0.0
    %7223 = vmatpush1.msra.mxu0 0.0
    %7224 = vmatprep.subr.mxu0 0.0
    %7225 = vmatpush1.msra.mxu0 0.0
    %7226 = vmatprep.subr.mxu0 0.0
    %7227 = vmatpush1.msra.mxu0 0.0
    %7228 = vmatprep.subr.mxu0 0.0
    %7229 = vmatpush1.msra.mxu0 0.0
    %7230 = vmatprep.subr.mxu0 0.0
    %7231 = vmatpush1.msra.mxu0 0.0
    %7232 = vmatprep.subr.mxu0 0.0
    %7233 = vmatpush1.msra.mxu0 0.0
    %7234 = vmatprep.subr.mxu0 0.0
    %7235 = vmatpush1.msra.mxu0 0.0
    %7236 = vmatprep.subr.mxu0 0.0
    %7237 = vmatpush1.msra.mxu0 0.0
    %7238 = vmatprep.subr.mxu0 0.0
    %7239 = vmatpush1.msra.mxu0 0.0
    %7240 = vmatprep.subr.mxu0 0.0
    %7241 = vmatpush1.msra.mxu0 0.0
    %7242 = vmatprep.subr.mxu0 0.0
    %7243 = vmatpush1.msra.mxu0 0.0
    %7244 = vmatprep.subr.mxu0 0.0
    %7245 = vmatpush1.msra.mxu0 0.0
    %7246 = vmatprep.subr.mxu0 0.0
    %7247 = vmatpush1.msra.mxu0 0.0
    %7248 = vmatprep.subr.mxu0 0.0
    %7249 = vmatpush1.msra.mxu0 0.0
    %7250 = vmatprep.subr.mxu0 0.0
    %7251 = vmatpush1.msra.mxu0 0.0
    %7252 = vmatprep.subr.mxu0 0.0
    %7253 = vmatpush1.msra.mxu0 0.0
    %7254 = vmatprep.subr.mxu0 0.0
    %7255 = vmatpush1.msra.mxu0 0.0
    %7256 = vmatprep.subr.mxu0 0.0
    %7257 = vmatpush1.msra.mxu0 0.0
    %7258 = vmatprep.subr.mxu0 0.0
    %7259 = vmatpush1.msra.mxu0 0.0
    %7260 = vmatprep.subr.mxu0 0.0
    %7261 = vmatpush1.msra.mxu0 0.0
    %7262 = vmatprep.subr.mxu0 0.0
    %7263 = vmatpush1.msra.mxu0 0.0
    %7264 = vmatprep.subr.mxu0 0.0
    %7265 = vmatpush1.msra.mxu0 0.0
    %7266 = vmatprep.subr.mxu0 0.0
    %7267 = vmatpush1.msra.mxu0 0.0
    %7268 = vmatprep.subr.mxu0 0.0
    %7269 = vmatpush1.msra.mxu0 0.0
    %7270 = vmatprep.mubr.f32.mxu0 0.0
    %v7271 = vand.u32 %v6953, 4294901760
    %v7272 = vsub.f32 %v6953, %v7271
    %v7273 = vand.u32 %v7272, 4294901760
    %7274 = vmatmul.mubr.f32.gmra.mrb[0].mxu0 %v7273
    %v7275 = vpop.f32.mrb[0].mxu0
    %v7276 = vadd.f32 %v7200, %v7275
    %v7277 = vpop.f32.mrb[0].mxu0
    %v7278 = vadd.f32 %v7202, %v7277
    %7279 = vdwg.mxu0
    %v7280 = vand.u32 %v6959, 4294901760
    %v7281 = vsub.f32 %v6959, %v7280
    %v7282 = vand.u32 %v7281, 4294901760
    %7283 = vmatprep.subr.mxu0 %v7282
    %v7284 = vand.u32 %v6956, 4294901760
    %v7285 = vsub.f32 %v6956, %v7284
    %v7286 = vand.u32 %v7285, 4294901760
    %7287 = vmatpush1.msra.mxu0 %v7286
    %7288 = vmatprep.subr.mxu0 0.0
    %7289 = vmatpush1.msra.mxu0 0.0
    %7290 = vmatprep.subr.mxu0 0.0
    %7291 = vmatpush1.msra.mxu0 0.0
    %7292 = vmatprep.subr.mxu0 0.0
    %7293 = vmatpush1.msra.mxu0 0.0
    %7294 = vmatprep.subr.mxu0 0.0
    %7295 = vmatpush1.msra.mxu0 0.0
    %7296 = vmatprep.subr.mxu0 0.0
    %7297 = vmatpush1.msra.mxu0 0.0
    %7298 = vmatprep.subr.mxu0 0.0
    %7299 = vmatpush1.msra.mxu0 0.0
    %7300 = vmatprep.subr.mxu0 0.0
    %7301 = vmatpush1.msra.mxu0 0.0
    %7302 = vmatprep.subr.mxu0 0.0
    %7303 = vmatpush1.msra.mxu0 0.0
    %7304 = vmatprep.subr.mxu0 0.0
    %7305 = vmatpush1.msra.mxu0 0.0
    %7306 = vmatprep.subr.mxu0 0.0
    %7307 = vmatpush1.msra.mxu0 0.0
    %7308 = vmatprep.subr.mxu0 0.0
    %7309 = vmatpush1.msra.mxu0 0.0
    %7310 = vmatprep.subr.mxu0 0.0
    %7311 = vmatpush1.msra.mxu0 0.0
    %7312 = vmatprep.subr.mxu0 0.0
    %7313 = vmatpush1.msra.mxu0 0.0
    %7314 = vmatprep.subr.mxu0 0.0
    %7315 = vmatpush1.msra.mxu0 0.0
    %7316 = vmatprep.subr.mxu0 0.0
    %7317 = vmatpush1.msra.mxu0 0.0
    %7318 = vmatprep.subr.mxu0 0.0
    %7319 = vmatpush1.msra.mxu0 0.0
    %7320 = vmatprep.subr.mxu0 0.0
    %7321 = vmatpush1.msra.mxu0 0.0
    %7322 = vmatprep.subr.mxu0 0.0
    %7323 = vmatpush1.msra.mxu0 0.0
    %7324 = vmatprep.subr.mxu0 0.0
    %7325 = vmatpush1.msra.mxu0 0.0
    %7326 = vmatprep.subr.mxu0 0.0
    %7327 = vmatpush1.msra.mxu0 0.0
    %7328 = vmatprep.subr.mxu0 0.0
    %7329 = vmatpush1.msra.mxu0 0.0
    %7330 = vmatprep.subr.mxu0 0.0
    %7331 = vmatpush1.msra.mxu0 0.0
    %7332 = vmatprep.subr.mxu0 0.0
    %7333 = vmatpush1.msra.mxu0 0.0
    %7334 = vmatprep.subr.mxu0 0.0
    %7335 = vmatpush1.msra.mxu0 0.0
    %7336 = vmatprep.subr.mxu0 0.0
    %7337 = vmatpush1.msra.mxu0 0.0
    %7338 = vmatprep.subr.mxu0 0.0
    %7339 = vmatpush1.msra.mxu0 0.0
    %7340 = vmatprep.subr.mxu0 0.0
    %7341 = vmatpush1.msra.mxu0 0.0
    %7342 = vmatprep.subr.mxu0 0.0
    %7343 = vmatpush1.msra.mxu0 0.0
    %7344 = vmatprep.subr.mxu0 0.0
    %7345 = vmatpush1.msra.mxu0 0.0
    %7346 = vmatprep.subr.mxu0 0.0
    %7347 = vmatpush1.msra.mxu0 0.0
    %7348 = vmatprep.subr.mxu0 0.0
    %7349 = vmatpush1.msra.mxu0 0.0
    %7350 = vmatprep.mubr.f32.mxu0 0.0
    %v7351 = vand.u32 %v6953, 4294901760
    %7352 = vmatmul.mubr.f32.gmra.mrb[0].mxu0 %v7351
    %v7353 = vpop.f32.mrb[0].mxu0
    %v7354 = vadd.f32 %v7276, %v7353
    %v7355 = vpop.f32.mrb[0].mxu0
    %v7356 = vadd.f32 %v7278, %v7355
    %7357 = vdwg.mxu0
    %v7358 = vand.u32 %v6959, 4294901760
    %7359 = vmatprep.subr.mxu0 %v7358
    %v7360 = vand.u32 %v6956, 4294901760
    %7361 = vmatpush1.msra.mxu0 %v7360
    %7362 = vmatprep.subr.mxu0 0.0
    %7363 = vmatpush1.msra.mxu0 0.0
    %7364 = vmatprep.subr.mxu0 0.0
    %7365 = vmatpush1.msra.mxu0 0.0
    %7366 = vmatprep.subr.mxu0 0.0
    %7367 = vmatpush1.msra.mxu0 0.0
    %7368 = vmatprep.subr.mxu0 0.0
    %7369 = vmatpush1.msra.mxu0 0.0
    %7370 = vmatprep.subr.mxu0 0.0
    %7371 = vmatpush1.msra.mxu0 0.0
    %7372 = vmatprep.subr.mxu0 0.0
    %7373 = vmatpush1.msra.mxu0 0.0
    %7374 = vmatprep.subr.mxu0 0.0
    %7375 = vmatpush1.msra.mxu0 0.0
    %7376 = vmatprep.subr.mxu0 0.0
    %7377 = vmatpush1.msra.mxu0 0.0
    %7378 = vmatprep.subr.mxu0 0.0
    %7379 = vmatpush1.msra.mxu0 0.0
    %7380 = vmatprep.subr.mxu0 0.0
    %7381 = vmatpush1.msra.mxu0 0.0
    %7382 = vmatprep.subr.mxu0 0.0
    %7383 = vmatpush1.msra.mxu0 0.0
    %7384 = vmatprep.subr.mxu0 0.0
    %7385 = vmatpush1.msra.mxu0 0.0
    %7386 = vmatprep.subr.mxu0 0.0
    %7387 = vmatpush1.msra.mxu0 0.0
    %7388 = vmatprep.subr.mxu0 0.0
    %7389 = vmatpush1.msra.mxu0 0.0
    %7390 = vmatprep.subr.mxu0 0.0
    %7391 = vmatpush1.msra.mxu0 0.0
    %7392 = vmatprep.subr.mxu0 0.0
    %7393 = vmatpush1.msra.mxu0 0.0
    %7394 = vmatprep.subr.mxu0 0.0
    %7395 = vmatpush1.msra.mxu0 0.0
    %7396 = vmatprep.subr.mxu0 0.0
    %7397 = vmatpush1.msra.mxu0 0.0
    %7398 = vmatprep.subr.mxu0 0.0
    %7399 = vmatpush1.msra.mxu0 0.0
    %7400 = vmatprep.subr.mxu0 0.0
    %7401 = vmatpush1.msra.mxu0 0.0
    %7402 = vmatprep.subr.mxu0 0.0
    %7403 = vmatpush1.msra.mxu0 0.0
    %7404 = vmatprep.subr.mxu0 0.0
    %7405 = vmatpush1.msra.mxu0 0.0
    %7406 = vmatprep.subr.mxu0 0.0
    %7407 = vmatpush1.msra.mxu0 0.0
    %7408 = vmatprep.subr.mxu0 0.0
    %7409 = vmatpush1.msra.mxu0 0.0
    %7410 = vmatprep.subr.mxu0 0.0
    %7411 = vmatpush1.msra.mxu0 0.0
    %7412 = vmatprep.subr.mxu0 0.0
    %7413 = vmatpush1.msra.mxu0 0.0
    %7414 = vmatprep.subr.mxu0 0.0
    %7415 = vmatpush1.msra.mxu0 0.0
    %7416 = vmatprep.subr.mxu0 0.0
    %7417 = vmatpush1.msra.mxu0 0.0
    %7418 = vmatprep.subr.mxu0 0.0
    %7419 = vmatpush1.msra.mxu0 0.0
    %7420 = vmatprep.subr.mxu0 0.0
    %7421 = vmatpush1.msra.mxu0 0.0
    %7422 = vmatprep.subr.mxu0 0.0
    %7423 = vmatpush1.msra.mxu0 0.0
    %7424 = vmatprep.mubr.f32.mxu0 0.0
    %v7425 = vand.u32 %v6953, 4294901760
    %7426 = vmatmul.mubr.f32.gmra.mrb[0].mxu0 %v7425
    %v7427 = vpop.f32.mrb[0].mxu0
    %v7428 = vadd.f32 %v7354, %v7427
    %v7429 = vpop.f32.mrb[0].mxu0
    %v7430 = vadd.f32 %v7356, %v7429
    %7431 = vdwg.mxu0
    %v7432 = vand.u32 %v6965, 4294901760
    %7433 = vmatprep.subr.mxu0 %v7432
    %v7434 = vand.u32 %v6962, 4294901760
    %7435 = vmatpush1.msra.mxu0 %v7434
    %7436 = vmatprep.subr.mxu0 0.0
    %7437 = vmatpush1.msra.mxu0 0.0
    %7438 = vmatprep.subr.mxu0 0.0
    %7439 = vmatpush1.msra.mxu0 0.0
    %7440 = vmatprep.subr.mxu0 0.0
    %7441 = vmatpush1.msra.mxu0 0.0
    %7442 = vmatprep.subr.mxu0 0.0
    %7443 = vmatpush1.msra.mxu0 0.0
    %7444 = vmatprep.subr.mxu0 0.0
    %7445 = vmatpush1.msra.mxu0 0.0
    %7446 = vmatprep.subr.mxu0 0.0
    %7447 = vmatpush1.msra.mxu0 0.0
    %7448 = vmatprep.subr.mxu0 0.0
    %7449 = vmatpush1.msra.mxu0 0.0
    %7450 = vmatprep.subr.mxu0 0.0
    %7451 = vmatpush1.msra.mxu0 0.0
    %7452 = vmatprep.subr.mxu0 0.0
    %7453 = vmatpush1.msra.mxu0 0.0
    %7454 = vmatprep.subr.mxu0 0.0
    %7455 = vmatpush1.msra.mxu0 0.0
    %7456 = vmatprep.subr.mxu0 0.0
    %7457 = vmatpush1.msra.mxu0 0.0
    %7458 = vmatprep.subr.mxu0 0.0
    %7459 = vmatpush1.msra.mxu0 0.0
    %7460 = vmatprep.subr.mxu0 0.0
    %7461 = vmatpush1.msra.mxu0 0.0
    %7462 = vmatprep.subr.mxu0 0.0
    %7463 = vmatpush1.msra.mxu0 0.0
    %7464 = vmatprep.subr.mxu0 0.0
    %7465 = vmatpush1.msra.mxu0 0.0
    %7466 = vmatprep.subr.mxu0 0.0
    %7467 = vmatpush1.msra.mxu0 0.0
    %7468 = vmatprep.subr.mxu0 0.0
    %7469 = vmatpush1.msra.mxu0 0.0
    %7470 = vmatprep.subr.mxu0 0.0
    %7471 = vmatpush1.msra.mxu0 0.0
    %7472 = vmatprep.subr.mxu0 0.0
    %7473 = vmatpush1.msra.mxu0 0.0
    %7474 = vmatprep.subr.mxu0 0.0
    %7475 = vmatpush1.msra.mxu0 0.0
    %7476 = vmatprep.subr.mxu0 0.0
    %7477 = vmatpush1.msra.mxu0 0.0
    %7478 = vmatprep.subr.mxu0 0.0
    %7479 = vmatpush1.msra.mxu0 0.0
    %7480 = vmatprep.subr.mxu0 0.0
    %7481 = vmatpush1.msra.mxu0 0.0
    %7482 = vmatprep.subr.mxu0 0.0
    %7483 = vmatpush1.msra.mxu0 0.0
    %7484 = vmatprep.subr.mxu0 0.0
    %7485 = vmatpush1.msra.mxu0 0.0
    %7486 = vmatprep.subr.mxu0 0.0
    %7487 = vmatpush1.msra.mxu0 0.0
    %7488 = vmatprep.subr.mxu0 0.0
    %7489 = vmatpush1.msra.mxu0 0.0
    %7490 = vmatprep.subr.mxu0 0.0
    %7491 = vmatpush1.msra.mxu0 0.0
    %7492 = vmatprep.subr.mxu0 0.0
    %7493 = vmatpush1.msra.mxu0 0.0
    %7494 = vmatprep.subr.mxu0 0.0
    %7495 = vmatpush1.msra.mxu0 0.0
    %7496 = vmatprep.subr.mxu0 0.0
    %7497 = vmatpush1.msra.mxu0 0.0
    %7498 = vmatprep.mubr.f32.mxu0 0.0
    %v7499 = vand.u32 %v6953, 4294901760
    %v7500 = vsub.f32 %v6953, %v7499
    %v7501 = vand.u32 %v7500, 4294901760
    %v7502 = vsub.f32 %v7500, %v7501
    %v7503 = vand.u32 %v7502, 4294901760
    %7504 = vmatmul.mubr.f32.gmra.mrb[0].mxu0 %v7503
    %v7505 = vpop.f32.mrb[0].mxu0
    %v7506 = vadd.f32 0.0, %v7505
    %v7507 = vpop.f32.mrb[0].mxu0
    %v7508 = vadd.f32 0.0, %v7507
    %7509 = vdwg.mxu0
    %v7510 = vand.u32 %v6965, 4294901760
    %v7511 = vsub.f32 %v6965, %v7510
    %v7512 = vand.u32 %v7511, 4294901760
    %v7513 = vsub.f32 %v7511, %v7512
    %v7514 = vand.u32 %v7513, 4294901760
    %7515 = vmatprep.subr.mxu0 %v7514
    %v7516 = vand.u32 %v6962, 4294901760
    %v7517 = vsub.f32 %v6962, %v7516
    %v7518 = vand.u32 %v7517, 4294901760
    %v7519 = vsub.f32 %v7517, %v7518
    %v7520 = vand.u32 %v7519, 4294901760
    %7521 = vmatpush1.msra.mxu0 %v7520
    %7522 = vmatprep.subr.mxu0 0.0
    %7523 = vmatpush1.msra.mxu0 0.0
    %7524 = vmatprep.subr.mxu0 0.0
    %7525 = vmatpush1.msra.mxu0 0.0
    %7526 = vmatprep.subr.mxu0 0.0
    %7527 = vmatpush1.msra.mxu0 0.0
    %7528 = vmatprep.subr.mxu0 0.0
    %7529 = vmatpush1.msra.mxu0 0.0
    %7530 = vmatprep.subr.mxu0 0.0
    %7531 = vmatpush1.msra.mxu0 0.0
    %7532 = vmatprep.subr.mxu0 0.0
    %7533 = vmatpush1.msra.mxu0 0.0
    %7534 = vmatprep.subr.mxu0 0.0
    %7535 = vmatpush1.msra.mxu0 0.0
    %7536 = vmatprep.subr.mxu0 0.0
    %7537 = vmatpush1.msra.mxu0 0.0
    %7538 = vmatprep.subr.mxu0 0.0
    %7539 = vmatpush1.msra.mxu0 0.0
    %7540 = vmatprep.subr.mxu0 0.0
    %7541 = vmatpush1.msra.mxu0 0.0
    %7542 = vmatprep.subr.mxu0 0.0
    %7543 = vmatpush1.msra.mxu0 0.0
    %7544 = vmatprep.subr.mxu0 0.0
    %7545 = vmatpush1.msra.mxu0 0.0
    %7546 = vmatprep.subr.mxu0 0.0
    %7547 = vmatpush1.msra.mxu0 0.0
    %7548 = vmatprep.subr.mxu0 0.0
    %7549 = vmatpush1.msra.mxu0 0.0
    %7550 = vmatprep.subr.mxu0 0.0
    %7551 = vmatpush1.msra.mxu0 0.0
    %7552 = vmatprep.subr.mxu0 0.0
    %7553 = vmatpush1.msra.mxu0 0.0
    %7554 = vmatprep.subr.mxu0 0.0
    %7555 = vmatpush1.msra.mxu0 0.0
    %7556 = vmatprep.subr.mxu0 0.0
    %7557 = vmatpush1.msra.mxu0 0.0
    %7558 = vmatprep.subr.mxu0 0.0
    %7559 = vmatpush1.msra.mxu0 0.0
    %7560 = vmatprep.subr.mxu0 0.0
    %7561 = vmatpush1.msra.mxu0 0.0
    %7562 = vmatprep.subr.mxu0 0.0
    %7563 = vmatpush1.msra.mxu0 0.0
    %7564 = vmatprep.subr.mxu0 0.0
    %7565 = vmatpush1.msra.mxu0 0.0
    %7566 = vmatprep.subr.mxu0 0.0
    %7567 = vmatpush1.msra.mxu0 0.0
    %7568 = vmatprep.subr.mxu0 0.0
    %7569 = vmatpush1.msra.mxu0 0.0
    %7570 = vmatprep.subr.mxu0 0.0
    %7571 = vmatpush1.msra.mxu0 0.0
    %7572 = vmatprep.subr.mxu0 0.0
    %7573 = vmatpush1.msra.mxu0 0.0
    %7574 = vmatprep.subr.mxu0 0.0
    %7575 = vmatpush1.msra.mxu0 0.0
    %7576 = vmatprep.subr.mxu0 0.0
    %7577 = vmatpush1.msra.mxu0 0.0
    %7578 = vmatprep.subr.mxu0 0.0
    %7579 = vmatpush1.msra.mxu0 0.0
    %7580 = vmatprep.subr.mxu0 0.0
    %7581 = vmatpush1.msra.mxu0 0.0
    %7582 = vmatprep.subr.mxu0 0.0
    %7583 = vmatpush1.msra.mxu0 0.0
    %7584 = vmatprep.mubr.f32.mxu0 0.0
    %v7585 = vand.u32 %v6953, 4294901760
    %7586 = vmatmul.mubr.f32.gmra.mrb[0].mxu0 %v7585
    %v7587 = vpop.f32.mrb[0].mxu0
    %v7588 = vadd.f32 %v7506, %v7587
    %v7589 = vpop.f32.mrb[0].mxu0
    %v7590 = vadd.f32 %v7508, %v7589
    %7591 = vdwg.mxu0
    %v7592 = vand.u32 %v6965, 4294901760
    %v7593 = vsub.f32 %v6965, %v7592
    %7594 = vmatprep.subr.mxu0 %v7593
    %v7595 = vand.u32 %v6962, 4294901760
    %v7596 = vsub.f32 %v6962, %v7595
    %7597 = vmatpush1.msra.mxu0 %v7596
    %7598 = vmatprep.subr.mxu0 0.0
    %7599 = vmatpush1.msra.mxu0 0.0
    %7600 = vmatprep.subr.mxu0 0.0
    %7601 = vmatpush1.msra.mxu0 0.0
    %7602 = vmatprep.subr.mxu0 0.0
    %7603 = vmatpush1.msra.mxu0 0.0
    %7604 = vmatprep.subr.mxu0 0.0
    %7605 = vmatpush1.msra.mxu0 0.0
    %7606 = vmatprep.subr.mxu0 0.0
    %7607 = vmatpush1.msra.mxu0 0.0
    %7608 = vmatprep.subr.mxu0 0.0
    %7609 = vmatpush1.msra.mxu0 0.0
    %7610 = vmatprep.subr.mxu0 0.0
    %7611 = vmatpush1.msra.mxu0 0.0
    %7612 = vmatprep.subr.mxu0 0.0
    %7613 = vmatpush1.msra.mxu0 0.0
    %7614 = vmatprep.subr.mxu0 0.0
    %7615 = vmatpush1.msra.mxu0 0.0
    %7616 = vmatprep.subr.mxu0 0.0
    %7617 = vmatpush1.msra.mxu0 0.0
    %7618 = vmatprep.subr.mxu0 0.0
    %7619 = vmatpush1.msra.mxu0 0.0
    %7620 = vmatprep.subr.mxu0 0.0
    %7621 = vmatpush1.msra.mxu0 0.0
    %7622 = vmatprep.subr.mxu0 0.0
    %7623 = vmatpush1.msra.mxu0 0.0
    %7624 = vmatprep.subr.mxu0 0.0
    %7625 = vmatpush1.msra.mxu0 0.0
    %7626 = vmatprep.subr.mxu0 0.0
    %7627 = vmatpush1.msra.mxu0 0.0
    %7628 = vmatprep.subr.mxu0 0.0
    %7629 = vmatpush1.msra.mxu0 0.0
    %7630 = vmatprep.subr.mxu0 0.0
    %7631 = vmatpush1.msra.mxu0 0.0
    %7632 = vmatprep.subr.mxu0 0.0
    %7633 = vmatpush1.msra.mxu0 0.0
    %7634 = vmatprep.subr.mxu0 0.0
    %7635 = vmatpush1.msra.mxu0 0.0
    %7636 = vmatprep.subr.mxu0 0.0
    %7637 = vmatpush1.msra.mxu0 0.0
    %7638 = vmatprep.subr.mxu0 0.0
    %7639 = vmatpush1.msra.mxu0 0.0
    %7640 = vmatprep.subr.mxu0 0.0
    %7641 = vmatpush1.msra.mxu0 0.0
    %7642 = vmatprep.subr.mxu0 0.0
    %7643 = vmatpush1.msra.mxu0 0.0
    %7644 = vmatprep.subr.mxu0 0.0
    %7645 = vmatpush1.msra.mxu0 0.0
    %7646 = vmatprep.subr.mxu0 0.0
    %7647 = vmatpush1.msra.mxu0 0.0
    %7648 = vmatprep.subr.mxu0 0.0
    %7649 = vmatpush1.msra.mxu0 0.0
    %7650 = vmatprep.subr.mxu0 0.0
    %7651 = vmatpush1.msra.mxu0 0.0
    %7652 = vmatprep.subr.mxu0 0.0
    %7653 = vmatpush1.msra.mxu0 0.0
    %7654 = vmatprep.subr.mxu0 0.0
    %7655 = vmatpush1.msra.mxu0 0.0
    %7656 = vmatprep.subr.mxu0 0.0
    %7657 = vmatpush1.msra.mxu0 0.0
    %7658 = vmatprep.subr.mxu0 0.0
    %7659 = vmatpush1.msra.mxu0 0.0
    %7660 = vmatprep.mubr.f32.mxu0 0.0
    %v7661 = vand.u32 %v6953, 4294901760
    %v7662 = vsub.f32 %v6953, %v7661
    %7663 = vmatmul.mubr.f32.gmra.mrb[0].mxu0 %v7662
    %v7664 = vpop.f32.mrb[0].mxu0
    %v7665 = vadd.f32 %v7588, %v7664
    %v7666 = vpop.f32.mrb[0].mxu0
    %v7667 = vadd.f32 %v7590, %v7666
    %7668 = vdwg.mxu0
    %v7669 = vand.u32 %v6965, 4294901760
    %7670 = vmatprep.subr.mxu0 %v7669
    %v7671 = vand.u32 %v6962, 4294901760
    %7672 = vmatpush1.msra.mxu0 %v7671
    %7673 = vmatprep.subr.mxu0 0.0
    %7674 = vmatpush1.msra.mxu0 0.0
    %7675 = vmatprep.subr.mxu0 0.0
    %7676 = vmatpush1.msra.mxu0 0.0
    %7677 = vmatprep.subr.mxu0 0.0
    %7678 = vmatpush1.msra.mxu0 0.0
    %7679 = vmatprep.subr.mxu0 0.0
    %7680 = vmatpush1.msra.mxu0 0.0
    %7681 = vmatprep.subr.mxu0 0.0
    %7682 = vmatpush1.msra.mxu0 0.0
    %7683 = vmatprep.subr.mxu0 0.0
    %7684 = vmatpush1.msra.mxu0 0.0
    %7685 = vmatprep.subr.mxu0 0.0
    %7686 = vmatpush1.msra.mxu0 0.0
    %7687 = vmatprep.subr.mxu0 0.0
    %7688 = vmatpush1.msra.mxu0 0.0
    %7689 = vmatprep.subr.mxu0 0.0
    %7690 = vmatpush1.msra.mxu0 0.0
    %7691 = vmatprep.subr.mxu0 0.0
    %7692 = vmatpush1.msra.mxu0 0.0
    %7693 = vmatprep.subr.mxu0 0.0
    %7694 = vmatpush1.msra.mxu0 0.0
    %7695 = vmatprep.subr.mxu0 0.0
    %7696 = vmatpush1.msra.mxu0 0.0
    %7697 = vmatprep.subr.mxu0 0.0
    %7698 = vmatpush1.msra.mxu0 0.0
    %7699 = vmatprep.subr.mxu0 0.0
    %7700 = vmatpush1.msra.mxu0 0.0
    %7701 = vmatprep.subr.mxu0 0.0
    %7702 = vmatpush1.msra.mxu0 0.0
    %7703 = vmatprep.subr.mxu0 0.0
    %7704 = vmatpush1.msra.mxu0 0.0
    %7705 = vmatprep.subr.mxu0 0.0
    %7706 = vmatpush1.msra.mxu0 0.0
    %7707 = vmatprep.subr.mxu0 0.0
    %7708 = vmatpush1.msra.mxu0 0.0
    %7709 = vmatprep.subr.mxu0 0.0
    %7710 = vmatpush1.msra.mxu0 0.0
    %7711 = vmatprep.subr.mxu0 0.0
    %7712 = vmatpush1.msra.mxu0 0.0
    %7713 = vmatprep.subr.mxu0 0.0
    %7714 = vmatpush1.msra.mxu0 0.0
    %7715 = vmatprep.subr.mxu0 0.0
    %7716 = vmatpush1.msra.mxu0 0.0
    %7717 = vmatprep.subr.mxu0 0.0
    %7718 = vmatpush1.msra.mxu0 0.0
    %7719 = vmatprep.subr.mxu0 0.0
    %7720 = vmatpush1.msra.mxu0 0.0
    %7721 = vmatprep.subr.mxu0 0.0
    %7722 = vmatpush1.msra.mxu0 0.0
    %7723 = vmatprep.subr.mxu0 0.0
    %7724 = vmatpush1.msra.mxu0 0.0
    %7725 = vmatprep.subr.mxu0 0.0
    %7726 = vmatpush1.msra.mxu0 0.0
    %7727 = vmatprep.subr.mxu0 0.0
    %7728 = vmatpush1.msra.mxu0 0.0
    %7729 = vmatprep.subr.mxu0 0.0
    %7730 = vmatpush1.msra.mxu0 0.0
    %7731 = vmatprep.subr.mxu0 0.0
    %7732 = vmatpush1.msra.mxu0 0.0
    %7733 = vmatprep.subr.mxu0 0.0
    %7734 = vmatpush1.msra.mxu0 0.0
    %7735 = vmatprep.mubr.f32.mxu0 0.0
    %v7736 = vand.u32 %v6953, 4294901760
    %v7737 = vsub.f32 %v6953, %v7736
    %v7738 = vand.u32 %v7737, 4294901760
    %7739 = vmatmul.mubr.f32.gmra.mrb[0].mxu0 %v7738
    %v7740 = vpop.f32.mrb[0].mxu0
    %v7741 = vadd.f32 %v7665, %v7740
    %v7742 = vpop.f32.mrb[0].mxu0
    %v7743 = vadd.f32 %v7667, %v7742
    %7744 = vdwg.mxu0
    %v7745 = vand.u32 %v6965, 4294901760
    %v7746 = vsub.f32 %v6965, %v7745
    %v7747 = vand.u32 %v7746, 4294901760
    %7748 = vmatprep.subr.mxu0 %v7747
    %v7749 = vand.u32 %v6962, 4294901760
    %v7750 = vsub.f32 %v6962, %v7749
    %v7751 = vand.u32 %v7750, 4294901760
    %7752 = vmatpush1.msra.mxu0 %v7751
    %7753 = vmatprep.subr.mxu0 0.0
    %7754 = vmatpush1.msra.mxu0 0.0
    %7755 = vmatprep.subr.mxu0 0.0
    %7756 = vmatpush1.msra.mxu0 0.0
    %7757 = vmatprep.subr.mxu0 0.0
    %7758 = vmatpush1.msra.mxu0 0.0
    %7759 = vmatprep.subr.mxu0 0.0
    %7760 = vmatpush1.msra.mxu0 0.0
    %7761 = vmatprep.subr.mxu0 0.0
    %7762 = vmatpush1.msra.mxu0 0.0
    %7763 = vmatprep.subr.mxu0 0.0
    %7764 = vmatpush1.msra.mxu0 0.0
    %7765 = vmatprep.subr.mxu0 0.0
    %7766 = vmatpush1.msra.mxu0 0.0
    %7767 = vmatprep.subr.mxu0 0.0
    %7768 = vmatpush1.msra.mxu0 0.0
    %7769 = vmatprep.subr.mxu0 0.0
    %7770 = vmatpush1.msra.mxu0 0.0
    %7771 = vmatprep.subr.mxu0 0.0
    %7772 = vmatpush1.msra.mxu0 0.0
    %7773 = vmatprep.subr.mxu0 0.0
    %7774 = vmatpush1.msra.mxu0 0.0
    %7775 = vmatprep.subr.mxu0 0.0
    %7776 = vmatpush1.msra.mxu0 0.0
    %7777 = vmatprep.subr.mxu0 0.0
    %7778 = vmatpush1.msra.mxu0 0.0
    %7779 = vmatprep.subr.mxu0 0.0
    %7780 = vmatpush1.msra.mxu0 0.0
    %7781 = vmatprep.subr.mxu0 0.0
    %7782 = vmatpush1.msra.mxu0 0.0
    %7783 = vmatprep.subr.mxu0 0.0
    %7784 = vmatpush1.msra.mxu0 0.0
    %7785 = vmatprep.subr.mxu0 0.0
    %7786 = vmatpush1.msra.mxu0 0.0
    %7787 = vmatprep.subr.mxu0 0.0
    %7788 = vmatpush1.msra.mxu0 0.0
    %7789 = vmatprep.subr.mxu0 0.0
    %7790 = vmatpush1.msra.mxu0 0.0
    %7791 = vmatprep.subr.mxu0 0.0
    %7792 = vmatpush1.msra.mxu0 0.0
    %7793 = vmatprep.subr.mxu0 0.0
    %7794 = vmatpush1.msra.mxu0 0.0
    %7795 = vmatprep.subr.mxu0 0.0
    %7796 = vmatpush1.msra.mxu0 0.0
    %7797 = vmatprep.subr.mxu0 0.0
    %7798 = vmatpush1.msra.mxu0 0.0
    %7799 = vmatprep.subr.mxu0 0.0
    %7800 = vmatpush1.msra.mxu0 0.0
    %7801 = vmatprep.subr.mxu0 0.0
    %7802 = vmatpush1.msra.mxu0 0.0
    %7803 = vmatprep.subr.mxu0 0.0
    %7804 = vmatpush1.msra.mxu0 0.0
    %7805 = vmatprep.subr.mxu0 0.0
    %7806 = vmatpush1.msra.mxu0 0.0
    %7807 = vmatprep.subr.mxu0 0.0
    %7808 = vmatpush1.msra.mxu0 0.0
    %7809 = vmatprep.subr.mxu0 0.0
    %7810 = vmatpush1.msra.mxu0 0.0
    %7811 = vmatprep.subr.mxu0 0.0
    %7812 = vmatpush1.msra.mxu0 0.0
    %7813 = vmatprep.subr.mxu0 0.0
    %7814 = vmatpush1.msra.mxu0 0.0
    %7815 = vmatprep.mubr.f32.mxu0 0.0
    %v7816 = vand.u32 %v6953, 4294901760
    %7817 = vmatmul.mubr.f32.gmra.mrb[0].mxu0 %v7816
    %v7818 = vpop.f32.mrb[0].mxu0
    %v7819 = vadd.f32 %v7741, %v7818
    %v7820 = vpop.f32.mrb[0].mxu0
    %v7821 = vadd.f32 %v7743, %v7820
    %7822 = vdwg.mxu0
    %v7823 = vand.u32 %v6965, 4294901760
    %7824 = vmatprep.subr.mxu0 %v7823
    %v7825 = vand.u32 %v6962, 4294901760
    %7826 = vmatpush1.msra.mxu0 %v7825
    %7827 = vmatprep.subr.mxu0 0.0
    %7828 = vmatpush1.msra.mxu0 0.0
    %7829 = vmatprep.subr.mxu0 0.0
    %7830 = vmatpush1.msra.mxu0 0.0
    %7831 = vmatprep.subr.mxu0 0.0
    %7832 = vmatpush1.msra.mxu0 0.0
    %7833 = vmatprep.subr.mxu0 0.0
    %7834 = vmatpush1.msra.mxu0 0.0
    %7835 = vmatprep.subr.mxu0 0.0
    %7836 = vmatpush1.msra.mxu0 0.0
    %7837 = vmatprep.subr.mxu0 0.0
    %7838 = vmatpush1.msra.mxu0 0.0
    %7839 = vmatprep.subr.mxu0 0.0
    %7840 = vmatpush1.msra.mxu0 0.0
    %7841 = vmatprep.subr.mxu0 0.0
    %7842 = vmatpush1.msra.mxu0 0.0
    %7843 = vmatprep.subr.mxu0 0.0
    %7844 = vmatpush1.msra.mxu0 0.0
    %7845 = vmatprep.subr.mxu0 0.0
    %7846 = vmatpush1.msra.mxu0 0.0
    %7847 = vmatprep.subr.mxu0 0.0
    %7848 = vmatpush1.msra.mxu0 0.0
    %7849 = vmatprep.subr.mxu0 0.0
    %7850 = vmatpush1.msra.mxu0 0.0
    %7851 = vmatprep.subr.mxu0 0.0
    %7852 = vmatpush1.msra.mxu0 0.0
    %7853 = vmatprep.subr.mxu0 0.0
    %7854 = vmatpush1.msra.mxu0 0.0
    %7855 = vmatprep.subr.mxu0 0.0
    %7856 = vmatpush1.msra.mxu0 0.0
    %7857 = vmatprep.subr.mxu0 0.0
    %7858 = vmatpush1.msra.mxu0 0.0
    %7859 = vmatprep.subr.mxu0 0.0
    %7860 = vmatpush1.msra.mxu0 0.0
    %7861 = vmatprep.subr.mxu0 0.0
    %7862 = vmatpush1.msra.mxu0 0.0
    %7863 = vmatprep.subr.mxu0 0.0
    %7864 = vmatpush1.msra.mxu0 0.0
    %7865 = vmatprep.subr.mxu0 0.0
    %7866 = vmatpush1.msra.mxu0 0.0
    %7867 = vmatprep.subr.mxu0 0.0
    %7868 = vmatpush1.msra.mxu0 0.0
    %7869 = vmatprep.subr.mxu0 0.0
    %7870 = vmatpush1.msra.mxu0 0.0
    %7871 = vmatprep.subr.mxu0 0.0
    %7872 = vmatpush1.msra.mxu0 0.0
    %7873 = vmatprep.subr.mxu0 0.0
    %7874 = vmatpush1.msra.mxu0 0.0
    %7875 = vmatprep.subr.mxu0 0.0
    %7876 = vmatpush1.msra.mxu0 0.0
    %7877 = vmatprep.subr.mxu0 0.0
    %7878 = vmatpush1.msra.mxu0 0.0
    %7879 = vmatprep.subr.mxu0 0.0
    %7880 = vmatpush1.msra.mxu0 0.0
    %7881 = vmatprep.subr.mxu0 0.0
    %7882 = vmatpush1.msra.mxu0 0.0
    %7883 = vmatprep.subr.mxu0 0.0
    %7884 = vmatpush1.msra.mxu0 0.0
    %7885 = vmatprep.subr.mxu0 0.0
    %7886 = vmatpush1.msra.mxu0 0.0
    %7887 = vmatprep.subr.mxu0 0.0
    %7888 = vmatpush1.msra.mxu0 0.0
    %7889 = vmatprep.mubr.f32.mxu0 0.0
    %v7890 = vand.u32 %v6953, 4294901760
    %7891 = vmatmul.mubr.f32.gmra.mrb[0].mxu0 %v7890
    %v7892 = vpop.f32.mrb[0].mxu0
    %v7893 = vadd.f32 %v7819, %v7892
    %v7894 = vpop.f32.mrb[0].mxu0
    %v7895 = vadd.f32 %v7821, %v7894
    %7896 = vdwg.mxu0
    %v7897 = vld [vmem:[#allocation2] sm:$0xff]
    %v7898 = vld [vmem:[#allocation2 + $0x8] sm:$0xff]
    %v7899 = vsel %vm37, 1, 0
    %v7900 = vsel %vm38, 1, 0
    %v7901 = vsel %vm39, 1, 0
    %v7902 = vsel %vm40, 1, 0
    %vm7903 = vcmp.eq.s32.totalorder %v7899, 1
    %vm7904 = vcmp.eq.s32.totalorder %v7900, 1
    %vm7905 = vcmp.eq.s32.totalorder %v7901, 1
    %vm7906 = vcmp.eq.s32.totalorder %v7902, 1
    %v7907 = vsel %vm7903, %v7428, 0.0
    %v7908 = vsel %vm7904, %v7430, 0.0
    %v7909 = vsel %vm7905, %v7893, 0.0
    %v7910 = vsel %vm7906, %v7895, 0.0
    %v7915 = vcombine.low %v7907, %v7908
    %v7916 = vcombine.low %v7909, %v7910
    %v7919 = vadd.f32 %v7897, %v7915
    %v7920 = vadd.f32 %v7898, %v7916
    %7921 = vst [vmem:[#allocation2] sm:$0xff] %v7919
    %7922 = vst [vmem:[#allocation2 + $0x8] sm:$0xff] %v7920
    %7923 = vrot.lane.b32.xlu0 %v18, 111
    %v7924 = vpop.permute.xlu0 %7923
    %7925 = vrot.lane.b32.xlu0 %v53, 111
    %v7926 = vpop.permute.xlu0 %7925
    %7927 = vrot.lane.b32.xlu0 %v19, 111
    %v7928 = vpop.permute.xlu0 %7927
    %7929 = vrot.lane.b32.xlu0 %v54, 111
    %v7930 = vpop.permute.xlu0 %7929
    %vm7931 = vcmp.lt.s32.totalorder %v21, 111
    %v7932 = vsel %vm7931, %v7928, %v7930
    %v7933 = vsel %vm7931, %v7926, %v7928
    %v7934 = vsel %vm7931, %v7924, %v7926
    %v7935 = vsel %vm7931, %v7930, %v7924
    %s7936 = scalar_lea.vmem %s1, 32
    %v7937 = vld [vmem:[%s7936] sm:$0xf]
    %v7939 = vsel %vm55, %v7937, 0
    %v7942 = vsel %vm59, %v7934, 0
    %v7945 = vsel %vm59, %v7933, 0
    %v7948 = vsel %vm59, %v7932, 0
    %v7951 = vsel %vm59, %v7935, 0
    %v7953 = vand.u32 %v7945, 4294901760
    %7954 = vmatprep.subr.mxu0 %v7953
    %v7955 = vand.u32 %v7942, 4294901760
    %7956 = vmatpush1.msra.mxu0 %v7955
    %7957 = vmatprep.subr.mxu0 0.0
    %7958 = vmatpush1.msra.mxu0 0.0
    %7959 = vmatprep.subr.mxu0 0.0
    %7960 = vmatpush1.msra.mxu0 0.0
    %7961 = vmatprep.subr.mxu0 0.0
    %7962 = vmatpush1.msra.mxu0 0.0
    %7963 = vmatprep.subr.mxu0 0.0
    %7964 = vmatpush1.msra.mxu0 0.0
    %7965 = vmatprep.subr.mxu0 0.0
    %7966 = vmatpush1.msra.mxu0 0.0
    %7967 = vmatprep.subr.mxu0 0.0
    %7968 = vmatpush1.msra.mxu0 0.0
    %7969 = vmatprep.subr.mxu0 0.0
    %7970 = vmatpush1.msra.mxu0 0.0
    %7971 = vmatprep.subr.mxu0 0.0
    %7972 = vmatpush1.msra.mxu0 0.0
    %7973 = vmatprep.subr.mxu0 0.0
    %7974 = vmatpush1.msra.mxu0 0.0
    %7975 = vmatprep.subr.mxu0 0.0
    %7976 = vmatpush1.msra.mxu0 0.0
    %7977 = vmatprep.subr.mxu0 0.0
    %7978 = vmatpush1.msra.mxu0 0.0
    %7979 = vmatprep.subr.mxu0 0.0
    %7980 = vmatpush1.msra.mxu0 0.0
    %7981 = vmatprep.subr.mxu0 0.0
    %7982 = vmatpush1.msra.mxu0 0.0
    %7983 = vmatprep.subr.mxu0 0.0
    %7984 = vmatpush1.msra.mxu0 0.0
    %7985 = vmatprep.subr.mxu0 0.0
    %7986 = vmatpush1.msra.mxu0 0.0
    %7987 = vmatprep.subr.mxu0 0.0
    %7988 = vmatpush1.msra.mxu0 0.0
    %7989 = vmatprep.subr.mxu0 0.0
    %7990 = vmatpush1.msra.mxu0 0.0
    %7991 = vmatprep.subr.mxu0 0.0
    %7992 = vmatpush1.msra.mxu0 0.0
    %7993 = vmatprep.subr.mxu0 0.0
    %7994 = vmatpush1.msra.mxu0 0.0
    %7995 = vmatprep.subr.mxu0 0.0
    %7996 = vmatpush1.msra.mxu0 0.0
    %7997 = vmatprep.subr.mxu0 0.0
    %7998 = vmatpush1.msra.mxu0 0.0
    %7999 = vmatprep.subr.mxu0 0.0
    %8000 = vmatpush1.msra.mxu0 0.0
    %8001 = vmatprep.subr.mxu0 0.0
    %8002 = vmatpush1.msra.mxu0 0.0
    %8003 = vmatprep.subr.mxu0 0.0
    %8004 = vmatpush1.msra.mxu0 0.0
    %8005 = vmatprep.subr.mxu0 0.0
    %8006 = vmatpush1.msra.mxu0 0.0
    %8007 = vmatprep.subr.mxu0 0.0
    %8008 = vmatpush1.msra.mxu0 0.0
    %8009 = vmatprep.subr.mxu0 0.0
    %8010 = vmatpush1.msra.mxu0 0.0
    %8011 = vmatprep.subr.mxu0 0.0
    %8012 = vmatpush1.msra.mxu0 0.0
    %8013 = vmatprep.subr.mxu0 0.0
    %8014 = vmatpush1.msra.mxu0 0.0
    %8015 = vmatprep.subr.mxu0 0.0
    %8016 = vmatpush1.msra.mxu0 0.0
    %8017 = vmatprep.subr.mxu0 0.0
    %8018 = vmatpush1.msra.mxu0 0.0
    %8019 = vmatprep.mubr.f32.mxu0 0.0
    %v8020 = vand.u32 %v7939, 4294901760
    %v8021 = vsub.f32 %v7939, %v8020
    %v8022 = vand.u32 %v8021, 4294901760
    %v8023 = vsub.f32 %v8021, %v8022
    %v8024 = vand.u32 %v8023, 4294901760
    %8025 = vmatmul.mubr.f32.gmra.mrb[0].mxu0 %v8024
    %v8026 = vpop.f32.mrb[0].mxu0
    %v8027 = vadd.f32 0.0, %v8026
    %v8028 = vpop.f32.mrb[0].mxu0
    %v8029 = vadd.f32 0.0, %v8028
    %8030 = vdwg.mxu0
    %v8031 = vand.u32 %v7945, 4294901760
    %v8032 = vsub.f32 %v7945, %v8031
    %v8033 = vand.u32 %v8032, 4294901760
    %v8034 = vsub.f32 %v8032, %v8033
    %v8035 = vand.u32 %v8034, 4294901760
    %8036 = vmatprep.subr.mxu0 %v8035
    %v8037 = vand.u32 %v7942, 4294901760
    %v8038 = vsub.f32 %v7942, %v8037
    %v8039 = vand.u32 %v8038, 4294901760
    %v8040 = vsub.f32 %v8038, %v8039
    %v8041 = vand.u32 %v8040, 4294901760
    %8042 = vmatpush1.msra.mxu0 %v8041
    %8043 = vmatprep.subr.mxu0 0.0
    %8044 = vmatpush1.msra.mxu0 0.0
    %8045 = vmatprep.subr.mxu0 0.0
    %8046 = vmatpush1.msra.mxu0 0.0
    %8047 = vmatprep.subr.mxu0 0.0
    %8048 = vmatpush1.msra.mxu0 0.0
    %8049 = vmatprep.subr.mxu0 0.0
    %8050 = vmatpush1.msra.mxu0 0.0
    %8051 = vmatprep.subr.mxu0 0.0
    %8052 = vmatpush1.msra.mxu0 0.0
    %8053 = vmatprep.subr.mxu0 0.0
    %8054 = vmatpush1.msra.mxu0 0.0
    %8055 = vmatprep.subr.mxu0 0.0
    %8056 = vmatpush1.msra.mxu0 0.0
    %8057 = vmatprep.subr.mxu0 0.0
    %8058 = vmatpush1.msra.mxu0 0.0
    %8059 = vmatprep.subr.mxu0 0.0
    %8060 = vmatpush1.msra.mxu0 0.0
    %8061 = vmatprep.subr.mxu0 0.0
    %8062 = vmatpush1.msra.mxu0 0.0
    %8063 = vmatprep.subr.mxu0 0.0
    %8064 = vmatpush1.msra.mxu0 0.0
    %8065 = vmatprep.subr.mxu0 0.0
    %8066 = vmatpush1.msra.mxu0 0.0
    %8067 = vmatprep.subr.mxu0 0.0
    %8068 = vmatpush1.msra.mxu0 0.0
    %8069 = vmatprep.subr.mxu0 0.0
    %8070 = vmatpush1.msra.mxu0 0.0
    %8071 = vmatprep.subr.mxu0 0.0
    %8072 = vmatpush1.msra.mxu0 0.0
    %8073 = vmatprep.subr.mxu0 0.0
    %8074 = vmatpush1.msra.mxu0 0.0
    %8075 = vmatprep.subr.mxu0 0.0
    %8076 = vmatpush1.msra.mxu0 0.0
    %8077 = vmatprep.subr.mxu0 0.0
    %8078 = vmatpush1.msra.mxu0 0.0
    %8079 = vmatprep.subr.mxu0 0.0
    %8080 = vmatpush1.msra.mxu0 0.0
    %8081 = vmatprep.subr.mxu0 0.0
    %8082 = vmatpush1.msra.mxu0 0.0
    %8083 = vmatprep.subr.mxu0 0.0
    %8084 = vmatpush1.msra.mxu0 0.0
    %8085 = vmatprep.subr.mxu0 0.0
    %8086 = vmatpush1.msra.mxu0 0.0
    %8087 = vmatprep.subr.mxu0 0.0
    %8088 = vmatpush1.msra.mxu0 0.0
    %8089 = vmatprep.subr.mxu0 0.0
    %8090 = vmatpush1.msra.mxu0 0.0
    %8091 = vmatprep.subr.mxu0 0.0
    %8092 = vmatpush1.msra.mxu0 0.0
    %8093 = vmatprep.subr.mxu0 0.0
    %8094 = vmatpush1.msra.mxu0 0.0
    %8095 = vmatprep.subr.mxu0 0.0
    %8096 = vmatpush1.msra.mxu0 0.0
    %8097 = vmatprep.subr.mxu0 0.0
    %8098 = vmatpush1.msra.mxu0 0.0
    %8099 = vmatprep.subr.mxu0 0.0
    %8100 = vmatpush1.msra.mxu0 0.0
    %8101 = vmatprep.subr.mxu0 0.0
    %8102 = vmatpush1.msra.mxu0 0.0
    %8103 = vmatprep.subr.mxu0 0.0
    %8104 = vmatpush1.msra.mxu0 0.0
    %8105 = vmatprep.mubr.f32.mxu0 0.0
    %v8106 = vand.u32 %v7939, 4294901760
    %8107 = vmatmul.mubr.f32.gmra.mrb[0].mxu0 %v8106
    %v8108 = vpop.f32.mrb[0].mxu0
    %v8109 = vadd.f32 %v8027, %v8108
    %v8110 = vpop.f32.mrb[0].mxu0
    %v8111 = vadd.f32 %v8029, %v8110
    %8112 = vdwg.mxu0
    %v8113 = vand.u32 %v7945, 4294901760
    %v8114 = vsub.f32 %v7945, %v8113
    %8115 = vmatprep.subr.mxu0 %v8114
    %v8116 = vand.u32 %v7942, 4294901760
    %v8117 = vsub.f32 %v7942, %v8116
    %8118 = vmatpush1.msra.mxu0 %v8117
    %8119 = vmatprep.subr.mxu0 0.0
    %8120 = vmatpush1.msra.mxu0 0.0
    %8121 = vmatprep.subr.mxu0 0.0
    %8122 = vmatpush1.msra.mxu0 0.0
    %8123 = vmatprep.subr.mxu0 0.0
    %8124 = vmatpush1.msra.mxu0 0.0
    %8125 = vmatprep.subr.mxu0 0.0
    %8126 = vmatpush1.msra.mxu0 0.0
    %8127 = vmatprep.subr.mxu0 0.0
    %8128 = vmatpush1.msra.mxu0 0.0
    %8129 = vmatprep.subr.mxu0 0.0
    %8130 = vmatpush1.msra.mxu0 0.0
    %8131 = vmatprep.subr.mxu0 0.0
    %8132 = vmatpush1.msra.mxu0 0.0
    %8133 = vmatprep.subr.mxu0 0.0
    %8134 = vmatpush1.msra.mxu0 0.0
    %8135 = vmatprep.subr.mxu0 0.0
    %8136 = vmatpush1.msra.mxu0 0.0
    %8137 = vmatprep.subr.mxu0 0.0
    %8138 = vmatpush1.msra.mxu0 0.0
    %8139 = vmatprep.subr.mxu0 0.0
    %8140 = vmatpush1.msra.mxu0 0.0
    %8141 = vmatprep.subr.mxu0 0.0
    %8142 = vmatpush1.msra.mxu0 0.0
    %8143 = vmatprep.subr.mxu0 0.0
    %8144 = vmatpush1.msra.mxu0 0.0
    %8145 = vmatprep.subr.mxu0 0.0
    %8146 = vmatpush1.msra.mxu0 0.0
    %8147 = vmatprep.subr.mxu0 0.0
    %8148 = vmatpush1.msra.mxu0 0.0
    %8149 = vmatprep.subr.mxu0 0.0
    %8150 = vmatpush1.msra.mxu0 0.0
    %8151 = vmatprep.subr.mxu0 0.0
    %8152 = vmatpush1.msra.mxu0 0.0
    %8153 = vmatprep.subr.mxu0 0.0
    %8154 = vmatpush1.msra.mxu0 0.0
    %8155 = vmatprep.subr.mxu0 0.0
    %8156 = vmatpush1.msra.mxu0 0.0
    %8157 = vmatprep.subr.mxu0 0.0
    %8158 = vmatpush1.msra.mxu0 0.0
    %8159 = vmatprep.subr.mxu0 0.0
    %8160 = vmatpush1.msra.mxu0 0.0
    %8161 = vmatprep.subr.mxu0 0.0
    %8162 = vmatpush1.msra.mxu0 0.0
    %8163 = vmatprep.subr.mxu0 0.0
    %8164 = vmatpush1.msra.mxu0 0.0
    %8165 = vmatprep.subr.mxu0 0.0
    %8166 = vmatpush1.msra.mxu0 0.0
    %8167 = vmatprep.subr.mxu0 0.0
    %8168 = vmatpush1.msra.mxu0 0.0
    %8169 = vmatprep.subr.mxu0 0.0
    %8170 = vmatpush1.msra.mxu0 0.0
    %8171 = vmatprep.subr.mxu0 0.0
    %8172 = vmatpush1.msra.mxu0 0.0
    %8173 = vmatprep.subr.mxu0 0.0
    %8174 = vmatpush1.msra.mxu0 0.0
    %8175 = vmatprep.subr.mxu0 0.0
    %8176 = vmatpush1.msra.mxu0 0.0
    %8177 = vmatprep.subr.mxu0 0.0
    %8178 = vmatpush1.msra.mxu0 0.0
    %8179 = vmatprep.subr.mxu0 0.0
    %8180 = vmatpush1.msra.mxu0 0.0
    %8181 = vmatprep.mubr.f32.mxu0 0.0
    %v8182 = vand.u32 %v7939, 4294901760
    %v8183 = vsub.f32 %v7939, %v8182
    %8184 = vmatmul.mubr.f32.gmra.mrb[0].mxu0 %v8183
    %v8185 = vpop.f32.mrb[0].mxu0
    %v8186 = vadd.f32 %v8109, %v8185
    %v8187 = vpop.f32.mrb[0].mxu0
    %v8188 = vadd.f32 %v8111, %v8187
    %8189 = vdwg.mxu0
    %v8190 = vand.u32 %v7945, 4294901760
    %8191 = vmatprep.subr.mxu0 %v8190
    %v8192 = vand.u32 %v7942, 4294901760
    %8193 = vmatpush1.msra.mxu0 %v8192
    %8194 = vmatprep.subr.mxu0 0.0
    %8195 = vmatpush1.msra.mxu0 0.0
    %8196 = vmatprep.subr.mxu0 0.0
    %8197 = vmatpush1.msra.mxu0 0.0
    %8198 = vmatprep.subr.mxu0 0.0
    %8199 = vmatpush1.msra.mxu0 0.0
    %8200 = vmatprep.subr.mxu0 0.0
    %8201 = vmatpush1.msra.mxu0 0.0
    %8202 = vmatprep.subr.mxu0 0.0
    %8203 = vmatpush1.msra.mxu0 0.0
    %8204 = vmatprep.subr.mxu0 0.0
    %8205 = vmatpush1.msra.mxu0 0.0
    %8206 = vmatprep.subr.mxu0 0.0
    %8207 = vmatpush1.msra.mxu0 0.0
    %8208 = vmatprep.subr.mxu0 0.0
    %8209 = vmatpush1.msra.mxu0 0.0
    %8210 = vmatprep.subr.mxu0 0.0
    %8211 = vmatpush1.msra.mxu0 0.0
    %8212 = vmatprep.subr.mxu0 0.0
    %8213 = vmatpush1.msra.mxu0 0.0
    %8214 = vmatprep.subr.mxu0 0.0
    %8215 = vmatpush1.msra.mxu0 0.0
    %8216 = vmatprep.subr.mxu0 0.0
    %8217 = vmatpush1.msra.mxu0 0.0
    %8218 = vmatprep.subr.mxu0 0.0
    %8219 = vmatpush1.msra.mxu0 0.0
    %8220 = vmatprep.subr.mxu0 0.0
    %8221 = vmatpush1.msra.mxu0 0.0
    %8222 = vmatprep.subr.mxu0 0.0
    %8223 = vmatpush1.msra.mxu0 0.0
    %8224 = vmatprep.subr.mxu0 0.0
    %8225 = vmatpush1.msra.mxu0 0.0
    %8226 = vmatprep.subr.mxu0 0.0
    %8227 = vmatpush1.msra.mxu0 0.0
    %8228 = vmatprep.subr.mxu0 0.0
    %8229 = vmatpush1.msra.mxu0 0.0
    %8230 = vmatprep.subr.mxu0 0.0
    %8231 = vmatpush1.msra.mxu0 0.0
    %8232 = vmatprep.subr.mxu0 0.0
    %8233 = vmatpush1.msra.mxu0 0.0
    %8234 = vmatprep.subr.mxu0 0.0
    %8235 = vmatpush1.msra.mxu0 0.0
    %8236 = vmatprep.subr.mxu0 0.0
    %8237 = vmatpush1.msra.mxu0 0.0
    %8238 = vmatprep.subr.mxu0 0.0
    %8239 = vmatpush1.msra.mxu0 0.0
    %8240 = vmatprep.subr.mxu0 0.0
    %8241 = vmatpush1.msra.mxu0 0.0
    %8242 = vmatprep.subr.mxu0 0.0
    %8243 = vmatpush1.msra.mxu0 0.0
    %8244 = vmatprep.subr.mxu0 0.0
    %8245 = vmatpush1.msra.mxu0 0.0
    %8246 = vmatprep.subr.mxu0 0.0
    %8247 = vmatpush1.msra.mxu0 0.0
    %8248 = vmatprep.subr.mxu0 0.0
    %8249 = vmatpush1.msra.mxu0 0.0
    %8250 = vmatprep.subr.mxu0 0.0
    %8251 = vmatpush1.msra.mxu0 0.0
    %8252 = vmatprep.subr.mxu0 0.0
    %8253 = vmatpush1.msra.mxu0 0.0
    %8254 = vmatprep.subr.mxu0 0.0
    %8255 = vmatpush1.msra.mxu0 0.0
    %8256 = vmatprep.mubr.f32.mxu0 0.0
    %v8257 = vand.u32 %v7939, 4294901760
    %v8258 = vsub.f32 %v7939, %v8257
    %v8259 = vand.u32 %v8258, 4294901760
    %8260 = vmatmul.mubr.f32.gmra.mrb[0].mxu0 %v8259
    %v8261 = vpop.f32.mrb[0].mxu0
    %v8262 = vadd.f32 %v8186, %v8261
    %v8263 = vpop.f32.mrb[0].mxu0
    %v8264 = vadd.f32 %v8188, %v8263
    %8265 = vdwg.mxu0
    %v8266 = vand.u32 %v7945, 4294901760
    %v8267 = vsub.f32 %v7945, %v8266
    %v8268 = vand.u32 %v8267, 4294901760
    %8269 = vmatprep.subr.mxu0 %v8268
    %v8270 = vand.u32 %v7942, 4294901760
    %v8271 = vsub.f32 %v7942, %v8270
    %v8272 = vand.u32 %v8271, 4294901760
    %8273 = vmatpush1.msra.mxu0 %v8272
    %8274 = vmatprep.subr.mxu0 0.0
    %8275 = vmatpush1.msra.mxu0 0.0
    %8276 = vmatprep.subr.mxu0 0.0
    %8277 = vmatpush1.msra.mxu0 0.0
    %8278 = vmatprep.subr.mxu0 0.0
    %8279 = vmatpush1.msra.mxu0 0.0
    %8280 = vmatprep.subr.mxu0 0.0
    %8281 = vmatpush1.msra.mxu0 0.0
    %8282 = vmatprep.subr.mxu0 0.0
    %8283 = vmatpush1.msra.mxu0 0.0
    %8284 = vmatprep.subr.mxu0 0.0
    %8285 = vmatpush1.msra.mxu0 0.0
    %8286 = vmatprep.subr.mxu0 0.0
    %8287 = vmatpush1.msra.mxu0 0.0
    %8288 = vmatprep.subr.mxu0 0.0
    %8289 = vmatpush1.msra.mxu0 0.0
    %8290 = vmatprep.subr.mxu0 0.0
    %8291 = vmatpush1.msra.mxu0 0.0
    %8292 = vmatprep.subr.mxu0 0.0
    %8293 = vmatpush1.msra.mxu0 0.0
    %8294 = vmatprep.subr.mxu0 0.0
    %8295 = vmatpush1.msra.mxu0 0.0
    %8296 = vmatprep.subr.mxu0 0.0
    %8297 = vmatpush1.msra.mxu0 0.0
    %8298 = vmatprep.subr.mxu0 0.0
    %8299 = vmatpush1.msra.mxu0 0.0
    %8300 = vmatprep.subr.mxu0 0.0
    %8301 = vmatpush1.msra.mxu0 0.0
    %8302 = vmatprep.subr.mxu0 0.0
    %8303 = vmatpush1.msra.mxu0 0.0
    %8304 = vmatprep.subr.mxu0 0.0
    %8305 = vmatpush1.msra.mxu0 0.0
    %8306 = vmatprep.subr.mxu0 0.0
    %8307 = vmatpush1.msra.mxu0 0.0
    %8308 = vmatprep.subr.mxu0 0.0
    %8309 = vmatpush1.msra.mxu0 0.0
    %8310 = vmatprep.subr.mxu0 0.0
    %8311 = vmatpush1.msra.mxu0 0.0
    %8312 = vmatprep.subr.mxu0 0.0
    %8313 = vmatpush1.msra.mxu0 0.0
    %8314 = vmatprep.subr.mxu0 0.0
    %8315 = vmatpush1.msra.mxu0 0.0
    %8316 = vmatprep.subr.mxu0 0.0
    %8317 = vmatpush1.msra.mxu0 0.0
    %8318 = vmatprep.subr.mxu0 0.0
    %8319 = vmatpush1.msra.mxu0 0.0
    %8320 = vmatprep.subr.mxu0 0.0
    %8321 = vmatpush1.msra.mxu0 0.0
    %8322 = vmatprep.subr.mxu0 0.0
    %8323 = vmatpush1.msra.mxu0 0.0
    %8324 = vmatprep.subr.mxu0 0.0
    %8325 = vmatpush1.msra.mxu0 0.0
    %8326 = vmatprep.subr.mxu0 0.0
    %8327 = vmatpush1.msra.mxu0 0.0
    %8328 = vmatprep.subr.mxu0 0.0
    %8329 = vmatpush1.msra.mxu0 0.0
    %8330 = vmatprep.subr.mxu0 0.0
    %8331 = vmatpush1.msra.mxu0 0.0
    %8332 = vmatprep.subr.mxu0 0.0
    %8333 = vmatpush1.msra.mxu0 0.0
    %8334 = vmatprep.subr.mxu0 0.0
    %8335 = vmatpush1.msra.mxu0 0.0
    %8336 = vmatprep.mubr.f32.mxu0 0.0
    %v8337 = vand.u32 %v7939, 4294901760
    %8338 = vmatmul.mubr.f32.gmra.mrb[0].mxu0 %v8337
    %v8339 = vpop.f32.mrb[0].mxu0
    %v8340 = vadd.f32 %v8262, %v8339
    %v8341 = vpop.f32.mrb[0].mxu0
    %v8342 = vadd.f32 %v8264, %v8341
    %8343 = vdwg.mxu0
    %v8344 = vand.u32 %v7945, 4294901760
    %8345 = vmatprep.subr.mxu0 %v8344
    %v8346 = vand.u32 %v7942, 4294901760
    %8347 = vmatpush1.msra.mxu0 %v8346
    %8348 = vmatprep.subr.mxu0 0.0
    %8349 = vmatpush1.msra.mxu0 0.0
    %8350 = vmatprep.subr.mxu0 0.0
    %8351 = vmatpush1.msra.mxu0 0.0
    %8352 = vmatprep.subr.mxu0 0.0
    %8353 = vmatpush1.msra.mxu0 0.0
    %8354 = vmatprep.subr.mxu0 0.0
    %8355 = vmatpush1.msra.mxu0 0.0
    %8356 = vmatprep.subr.mxu0 0.0
    %8357 = vmatpush1.msra.mxu0 0.0
    %8358 = vmatprep.subr.mxu0 0.0
    %8359 = vmatpush1.msra.mxu0 0.0
    %8360 = vmatprep.subr.mxu0 0.0
    %8361 = vmatpush1.msra.mxu0 0.0
    %8362 = vmatprep.subr.mxu0 0.0
    %8363 = vmatpush1.msra.mxu0 0.0
    %8364 = vmatprep.subr.mxu0 0.0
    %8365 = vmatpush1.msra.mxu0 0.0
    %8366 = vmatprep.subr.mxu0 0.0
    %8367 = vmatpush1.msra.mxu0 0.0
    %8368 = vmatprep.subr.mxu0 0.0
    %8369 = vmatpush1.msra.mxu0 0.0
    %8370 = vmatprep.subr.mxu0 0.0
    %8371 = vmatpush1.msra.mxu0 0.0
    %8372 = vmatprep.subr.mxu0 0.0
    %8373 = vmatpush1.msra.mxu0 0.0
    %8374 = vmatprep.subr.mxu0 0.0
    %8375 = vmatpush1.msra.mxu0 0.0
    %8376 = vmatprep.subr.mxu0 0.0
    %8377 = vmatpush1.msra.mxu0 0.0
    %8378 = vmatprep.subr.mxu0 0.0
    %8379 = vmatpush1.msra.mxu0 0.0
    %8380 = vmatprep.subr.mxu0 0.0
    %8381 = vmatpush1.msra.mxu0 0.0
    %8382 = vmatprep.subr.mxu0 0.0
    %8383 = vmatpush1.msra.mxu0 0.0
    %8384 = vmatprep.subr.mxu0 0.0
    %8385 = vmatpush1.msra.mxu0 0.0
    %8386 = vmatprep.subr.mxu0 0.0
    %8387 = vmatpush1.msra.mxu0 0.0
    %8388 = vmatprep.subr.mxu0 0.0
    %8389 = vmatpush1.msra.mxu0 0.0
    %8390 = vmatprep.subr.mxu0 0.0
    %8391 = vmatpush1.msra.mxu0 0.0
    %8392 = vmatprep.subr.mxu0 0.0
    %8393 = vmatpush1.msra.mxu0 0.0
    %8394 = vmatprep.subr.mxu0 0.0
    %8395 = vmatpush1.msra.mxu0 0.0
    %8396 = vmatprep.subr.mxu0 0.0
    %8397 = vmatpush1.msra.mxu0 0.0
    %8398 = vmatprep.subr.mxu0 0.0
    %8399 = vmatpush1.msra.mxu0 0.0
    %8400 = vmatprep.subr.mxu0 0.0
    %8401 = vmatpush1.msra.mxu0 0.0
    %8402 = vmatprep.subr.mxu0 0.0
    %8403 = vmatpush1.msra.mxu0 0.0
    %8404 = vmatprep.subr.mxu0 0.0
    %8405 = vmatpush1.msra.mxu0 0.0
    %8406 = vmatprep.subr.mxu0 0.0
    %8407 = vmatpush1.msra.mxu0 0.0
    %8408 = vmatprep.subr.mxu0 0.0
    %8409 = vmatpush1.msra.mxu0 0.0
    %8410 = vmatprep.mubr.f32.mxu0 0.0
    %v8411 = vand.u32 %v7939, 4294901760
    %8412 = vmatmul.mubr.f32.gmra.mrb[0].mxu0 %v8411
    %v8413 = vpop.f32.mrb[0].mxu0
    %v8414 = vadd.f32 %v8340, %v8413
    %v8415 = vpop.f32.mrb[0].mxu0
    %v8416 = vadd.f32 %v8342, %v8415
    %8417 = vdwg.mxu0
    %v8418 = vand.u32 %v7951, 4294901760
    %8419 = vmatprep.subr.mxu0 %v8418
    %v8420 = vand.u32 %v7948, 4294901760
    %8421 = vmatpush1.msra.mxu0 %v8420
    %8422 = vmatprep.subr.mxu0 0.0
    %8423 = vmatpush1.msra.mxu0 0.0
    %8424 = vmatprep.subr.mxu0 0.0
    %8425 = vmatpush1.msra.mxu0 0.0
    %8426 = vmatprep.subr.mxu0 0.0
    %8427 = vmatpush1.msra.mxu0 0.0
    %8428 = vmatprep.subr.mxu0 0.0
    %8429 = vmatpush1.msra.mxu0 0.0
    %8430 = vmatprep.subr.mxu0 0.0
    %8431 = vmatpush1.msra.mxu0 0.0
    %8432 = vmatprep.subr.mxu0 0.0
    %8433 = vmatpush1.msra.mxu0 0.0
    %8434 = vmatprep.subr.mxu0 0.0
    %8435 = vmatpush1.msra.mxu0 0.0
    %8436 = vmatprep.subr.mxu0 0.0
    %8437 = vmatpush1.msra.mxu0 0.0
    %8438 = vmatprep.subr.mxu0 0.0
    %8439 = vmatpush1.msra.mxu0 0.0
    %8440 = vmatprep.subr.mxu0 0.0
    %8441 = vmatpush1.msra.mxu0 0.0
    %8442 = vmatprep.subr.mxu0 0.0
    %8443 = vmatpush1.msra.mxu0 0.0
    %8444 = vmatprep.subr.mxu0 0.0
    %8445 = vmatpush1.msra.mxu0 0.0
    %8446 = vmatprep.subr.mxu0 0.0
    %8447 = vmatpush1.msra.mxu0 0.0
    %8448 = vmatprep.subr.mxu0 0.0
    %8449 = vmatpush1.msra.mxu0 0.0
    %8450 = vmatprep.subr.mxu0 0.0
    %8451 = vmatpush1.msra.mxu0 0.0
    %8452 = vmatprep.subr.mxu0 0.0
    %8453 = vmatpush1.msra.mxu0 0.0
    %8454 = vmatprep.subr.mxu0 0.0
    %8455 = vmatpush1.msra.mxu0 0.0
    %8456 = vmatprep.subr.mxu0 0.0
    %8457 = vmatpush1.msra.mxu0 0.0
    %8458 = vmatprep.subr.mxu0 0.0
    %8459 = vmatpush1.msra.mxu0 0.0
    %8460 = vmatprep.subr.mxu0 0.0
    %8461 = vmatpush1.msra.mxu0 0.0
    %8462 = vmatprep.subr.mxu0 0.0
    %8463 = vmatpush1.msra.mxu0 0.0
    %8464 = vmatprep.subr.mxu0 0.0
    %8465 = vmatpush1.msra.mxu0 0.0
    %8466 = vmatprep.subr.mxu0 0.0
    %8467 = vmatpush1.msra.mxu0 0.0
    %8468 = vmatprep.subr.mxu0 0.0
    %8469 = vmatpush1.msra.mxu0 0.0
    %8470 = vmatprep.subr.mxu0 0.0
    %8471 = vmatpush1.msra.mxu0 0.0
    %8472 = vmatprep.subr.mxu0 0.0
    %8473 = vmatpush1.msra.mxu0 0.0
    %8474 = vmatprep.subr.mxu0 0.0
    %8475 = vmatpush1.msra.mxu0 0.0
    %8476 = vmatprep.subr.mxu0 0.0
    %8477 = vmatpush1.msra.mxu0 0.0
    %8478 = vmatprep.subr.mxu0 0.0
    %8479 = vmatpush1.msra.mxu0 0.0
    %8480 = vmatprep.subr.mxu0 0.0
    %8481 = vmatpush1.msra.mxu0 0.0
    %8482 = vmatprep.subr.mxu0 0.0
    %8483 = vmatpush1.msra.mxu0 0.0
    %8484 = vmatprep.mubr.f32.mxu0 0.0
    %v8485 = vand.u32 %v7939, 4294901760
    %v8486 = vsub.f32 %v7939, %v8485
    %v8487 = vand.u32 %v8486, 4294901760
    %v8488 = vsub.f32 %v8486, %v8487
    %v8489 = vand.u32 %v8488, 4294901760
    %8490 = vmatmul.mubr.f32.gmra.mrb[0].mxu0 %v8489
    %v8491 = vpop.f32.mrb[0].mxu0
    %v8492 = vadd.f32 0.0, %v8491
    %v8493 = vpop.f32.mrb[0].mxu0
    %v8494 = vadd.f32 0.0, %v8493
    %8495 = vdwg.mxu0
    %v8496 = vand.u32 %v7951, 4294901760
    %v8497 = vsub.f32 %v7951, %v8496
    %v8498 = vand.u32 %v8497, 4294901760
    %v8499 = vsub.f32 %v8497, %v8498
    %v8500 = vand.u32 %v8499, 4294901760
    %8501 = vmatprep.subr.mxu0 %v8500
    %v8502 = vand.u32 %v7948, 4294901760
    %v8503 = vsub.f32 %v7948, %v8502
    %v8504 = vand.u32 %v8503, 4294901760
    %v8505 = vsub.f32 %v8503, %v8504
    %v8506 = vand.u32 %v8505, 4294901760
    %8507 = vmatpush1.msra.mxu0 %v8506
    %8508 = vmatprep.subr.mxu0 0.0
    %8509 = vmatpush1.msra.mxu0 0.0
    %8510 = vmatprep.subr.mxu0 0.0
    %8511 = vmatpush1.msra.mxu0 0.0
    %8512 = vmatprep.subr.mxu0 0.0
    %8513 = vmatpush1.msra.mxu0 0.0
    %8514 = vmatprep.subr.mxu0 0.0
    %8515 = vmatpush1.msra.mxu0 0.0
    %8516 = vmatprep.subr.mxu0 0.0
    %8517 = vmatpush1.msra.mxu0 0.0
    %8518 = vmatprep.subr.mxu0 0.0
    %8519 = vmatpush1.msra.mxu0 0.0
    %8520 = vmatprep.subr.mxu0 0.0
    %8521 = vmatpush1.msra.mxu0 0.0
    %8522 = vmatprep.subr.mxu0 0.0
    %8523 = vmatpush1.msra.mxu0 0.0
    %8524 = vmatprep.subr.mxu0 0.0
    %8525 = vmatpush1.msra.mxu0 0.0
    %8526 = vmatprep.subr.mxu0 0.0
    %8527 = vmatpush1.msra.mxu0 0.0
    %8528 = vmatprep.subr.mxu0 0.0
    %8529 = vmatpush1.msra.mxu0 0.0
    %8530 = vmatprep.subr.mxu0 0.0
    %8531 = vmatpush1.msra.mxu0 0.0
    %8532 = vmatprep.subr.mxu0 0.0
    %8533 = vmatpush1.msra.mxu0 0.0
    %8534 = vmatprep.subr.mxu0 0.0
    %8535 = vmatpush1.msra.mxu0 0.0
    %8536 = vmatprep.subr.mxu0 0.0
    %8537 = vmatpush1.msra.mxu0 0.0
    %8538 = vmatprep.subr.mxu0 0.0
    %8539 = vmatpush1.msra.mxu0 0.0
    %8540 = vmatprep.subr.mxu0 0.0
    %8541 = vmatpush1.msra.mxu0 0.0
    %8542 = vmatprep.subr.mxu0 0.0
    %8543 = vmatpush1.msra.mxu0 0.0
    %8544 = vmatprep.subr.mxu0 0.0
    %8545 = vmatpush1.msra.mxu0 0.0
    %8546 = vmatprep.subr.mxu0 0.0
    %8547 = vmatpush1.msra.mxu0 0.0
    %8548 = vmatprep.subr.mxu0 0.0
    %8549 = vmatpush1.msra.mxu0 0.0
    %8550 = vmatprep.subr.mxu0 0.0
    %8551 = vmatpush1.msra.mxu0 0.0
    %8552 = vmatprep.subr.mxu0 0.0
    %8553 = vmatpush1.msra.mxu0 0.0
    %8554 = vmatprep.subr.mxu0 0.0
    %8555 = vmatpush1.msra.mxu0 0.0
    %8556 = vmatprep.subr.mxu0 0.0
    %8557 = vmatpush1.msra.mxu0 0.0
    %8558 = vmatprep.subr.mxu0 0.0
    %8559 = vmatpush1.msra.mxu0 0.0
    %8560 = vmatprep.subr.mxu0 0.0
    %8561 = vmatpush1.msra.mxu0 0.0
    %8562 = vmatprep.subr.mxu0 0.0
    %8563 = vmatpush1.msra.mxu0 0.0
    %8564 = vmatprep.subr.mxu0 0.0
    %8565 = vmatpush1.msra.mxu0 0.0
    %8566 = vmatprep.subr.mxu0 0.0
    %8567 = vmatpush1.msra.mxu0 0.0
    %8568 = vmatprep.subr.mxu0 0.0
    %8569 = vmatpush1.msra.mxu0 0.0
    %8570 = vmatprep.mubr.f32.mxu0 0.0
    %v8571 = vand.u32 %v7939, 4294901760
    %8572 = vmatmul.mubr.f32.gmra.mrb[0].mxu0 %v8571
    %v8573 = vpop.f32.mrb[0].mxu0
    %v8574 = vadd.f32 %v8492, %v8573
    %v8575 = vpop.f32.mrb[0].mxu0
    %v8576 = vadd.f32 %v8494, %v8575
    %8577 = vdwg.mxu0
    %v8578 = vand.u32 %v7951, 4294901760
    %v8579 = vsub.f32 %v7951, %v8578
    %8580 = vmatprep.subr.mxu0 %v8579
    %v8581 = vand.u32 %v7948, 4294901760
    %v8582 = vsub.f32 %v7948, %v8581
    %8583 = vmatpush1.msra.mxu0 %v8582
    %8584 = vmatprep.subr.mxu0 0.0
    %8585 = vmatpush1.msra.mxu0 0.0
    %8586 = vmatprep.subr.mxu0 0.0
    %8587 = vmatpush1.msra.mxu0 0.0
    %8588 = vmatprep.subr.mxu0 0.0
    %8589 = vmatpush1.msra.mxu0 0.0
    %8590 = vmatprep.subr.mxu0 0.0
    %8591 = vmatpush1.msra.mxu0 0.0
    %8592 = vmatprep.subr.mxu0 0.0
    %8593 = vmatpush1.msra.mxu0 0.0
    %8594 = vmatprep.subr.mxu0 0.0
    %8595 = vmatpush1.msra.mxu0 0.0
    %8596 = vmatprep.subr.mxu0 0.0
    %8597 = vmatpush1.msra.mxu0 0.0
    %8598 = vmatprep.subr.mxu0 0.0
    %8599 = vmatpush1.msra.mxu0 0.0
    %8600 = vmatprep.subr.mxu0 0.0
    %8601 = vmatpush1.msra.mxu0 0.0
    %8602 = vmatprep.subr.mxu0 0.0
    %8603 = vmatpush1.msra.mxu0 0.0
    %8604 = vmatprep.subr.mxu0 0.0
    %8605 = vmatpush1.msra.mxu0 0.0
    %8606 = vmatprep.subr.mxu0 0.0
    %8607 = vmatpush1.msra.mxu0 0.0
    %8608 = vmatprep.subr.mxu0 0.0
    %8609 = vmatpush1.msra.mxu0 0.0
    %8610 = vmatprep.subr.mxu0 0.0
    %8611 = vmatpush1.msra.mxu0 0.0
    %8612 = vmatprep.subr.mxu0 0.0
    %8613 = vmatpush1.msra.mxu0 0.0
    %8614 = vmatprep.subr.mxu0 0.0
    %8615 = vmatpush1.msra.mxu0 0.0
    %8616 = vmatprep.subr.mxu0 0.0
    %8617 = vmatpush1.msra.mxu0 0.0
    %8618 = vmatprep.subr.mxu0 0.0
    %8619 = vmatpush1.msra.mxu0 0.0
    %8620 = vmatprep.subr.mxu0 0.0
    %8621 = vmatpush1.msra.mxu0 0.0
    %8622 = vmatprep.subr.mxu0 0.0
    %8623 = vmatpush1.msra.mxu0 0.0
    %8624 = vmatprep.subr.mxu0 0.0
    %8625 = vmatpush1.msra.mxu0 0.0
    %8626 = vmatprep.subr.mxu0 0.0
    %8627 = vmatpush1.msra.mxu0 0.0
    %8628 = vmatprep.subr.mxu0 0.0
    %8629 = vmatpush1.msra.mxu0 0.0
    %8630 = vmatprep.subr.mxu0 0.0
    %8631 = vmatpush1.msra.mxu0 0.0
    %8632 = vmatprep.subr.mxu0 0.0
    %8633 = vmatpush1.msra.mxu0 0.0
    %8634 = vmatprep.subr.mxu0 0.0
    %8635 = vmatpush1.msra.mxu0 0.0
    %8636 = vmatprep.subr.mxu0 0.0
    %8637 = vmatpush1.msra.mxu0 0.0
    %8638 = vmatprep.subr.mxu0 0.0
    %8639 = vmatpush1.msra.mxu0 0.0
    %8640 = vmatprep.subr.mxu0 0.0
    %8641 = vmatpush1.msra.mxu0 0.0
    %8642 = vmatprep.subr.mxu0 0.0
    %8643 = vmatpush1.msra.mxu0 0.0
    %8644 = vmatprep.subr.mxu0 0.0
    %8645 = vmatpush1.msra.mxu0 0.0
    %8646 = vmatprep.mubr.f32.mxu0 0.0
    %v8647 = vand.u32 %v7939, 4294901760
    %v8648 = vsub.f32 %v7939, %v8647
    %8649 = vmatmul.mubr.f32.gmra.mrb[0].mxu0 %v8648
    %v8650 = vpop.f32.mrb[0].mxu0
    %v8651 = vadd.f32 %v8574, %v8650
    %v8652 = vpop.f32.mrb[0].mxu0
    %v8653 = vadd.f32 %v8576, %v8652
    %8654 = vdwg.mxu0
    %v8655 = vand.u32 %v7951, 4294901760
    %8656 = vmatprep.subr.mxu0 %v8655
    %v8657 = vand.u32 %v7948, 4294901760
    %8658 = vmatpush1.msra.mxu0 %v8657
    %8659 = vmatprep.subr.mxu0 0.0
    %8660 = vmatpush1.msra.mxu0 0.0
    %8661 = vmatprep.subr.mxu0 0.0
    %8662 = vmatpush1.msra.mxu0 0.0
    %8663 = vmatprep.subr.mxu0 0.0
    %8664 = vmatpush1.msra.mxu0 0.0
    %8665 = vmatprep.subr.mxu0 0.0
    %8666 = vmatpush1.msra.mxu0 0.0
    %8667 = vmatprep.subr.mxu0 0.0
    %8668 = vmatpush1.msra.mxu0 0.0
    %8669 = vmatprep.subr.mxu0 0.0
    %8670 = vmatpush1.msra.mxu0 0.0
    %8671 = vmatprep.subr.mxu0 0.0
    %8672 = vmatpush1.msra.mxu0 0.0
    %8673 = vmatprep.subr.mxu0 0.0
    %8674 = vmatpush1.msra.mxu0 0.0
    %8675 = vmatprep.subr.mxu0 0.0
    %8676 = vmatpush1.msra.mxu0 0.0
    %8677 = vmatprep.subr.mxu0 0.0
    %8678 = vmatpush1.msra.mxu0 0.0
    %8679 = vmatprep.subr.mxu0 0.0
    %8680 = vmatpush1.msra.mxu0 0.0
    %8681 = vmatprep.subr.mxu0 0.0
    %8682 = vmatpush1.msra.mxu0 0.0
    %8683 = vmatprep.subr.mxu0 0.0
    %8684 = vmatpush1.msra.mxu0 0.0
    %8685 = vmatprep.subr.mxu0 0.0
    %8686 = vmatpush1.msra.mxu0 0.0
    %8687 = vmatprep.subr.mxu0 0.0
    %8688 = vmatpush1.msra.mxu0 0.0
    %8689 = vmatprep.subr.mxu0 0.0
    %8690 = vmatpush1.msra.mxu0 0.0
    %8691 = vmatprep.subr.mxu0 0.0
    %8692 = vmatpush1.msra.mxu0 0.0
    %8693 = vmatprep.subr.mxu0 0.0
    %8694 = vmatpush1.msra.mxu0 0.0
    %8695 = vmatprep.subr.mxu0 0.0
    %8696 = vmatpush1.msra.mxu0 0.0
    %8697 = vmatprep.subr.mxu0 0.0
    %8698 = vmatpush1.msra.mxu0 0.0
    %8699 = vmatprep.subr.mxu0 0.0
    %8700 = vmatpush1.msra.mxu0 0.0
    %8701 = vmatprep.subr.mxu0 0.0
    %8702 = vmatpush1.msra.mxu0 0.0
    %8703 = vmatprep.subr.mxu0 0.0
    %8704 = vmatpush1.msra.mxu0 0.0
    %8705 = vmatprep.subr.mxu0 0.0
    %8706 = vmatpush1.msra.mxu0 0.0
    %8707 = vmatprep.subr.mxu0 0.0
    %8708 = vmatpush1.msra.mxu0 0.0
    %8709 = vmatprep.subr.mxu0 0.0
    %8710 = vmatpush1.msra.mxu0 0.0
    %8711 = vmatprep.subr.mxu0 0.0
    %8712 = vmatpush1.msra.mxu0 0.0
    %8713 = vmatprep.subr.mxu0 0.0
    %8714 = vmatpush1.msra.mxu0 0.0
    %8715 = vmatprep.subr.mxu0 0.0
    %8716 = vmatpush1.msra.mxu0 0.0
    %8717 = vmatprep.subr.mxu0 0.0
    %8718 = vmatpush1.msra.mxu0 0.0
    %8719 = vmatprep.subr.mxu0 0.0
    %8720 = vmatpush1.msra.mxu0 0.0
    %8721 = vmatprep.mubr.f32.mxu0 0.0
    %v8722 = vand.u32 %v7939, 4294901760
    %v8723 = vsub.f32 %v7939, %v8722
    %v8724 = vand.u32 %v8723, 4294901760
    %8725 = vmatmul.mubr.f32.gmra.mrb[0].mxu0 %v8724
    %v8726 = vpop.f32.mrb[0].mxu0
    %v8727 = vadd.f32 %v8651, %v8726
    %v8728 = vpop.f32.mrb[0].mxu0
    %v8729 = vadd.f32 %v8653, %v8728
    %8730 = vdwg.mxu0
    %v8731 = vand.u32 %v7951, 4294901760
    %v8732 = vsub.f32 %v7951, %v8731
    %v8733 = vand.u32 %v8732, 4294901760
    %8734 = vmatprep.subr.mxu0 %v8733
    %v8735 = vand.u32 %v7948, 4294901760
    %v8736 = vsub.f32 %v7948, %v8735
    %v8737 = vand.u32 %v8736, 4294901760
    %8738 = vmatpush1.msra.mxu0 %v8737
    %8739 = vmatprep.subr.mxu0 0.0
    %8740 = vmatpush1.msra.mxu0 0.0
    %8741 = vmatprep.subr.mxu0 0.0
    %8742 = vmatpush1.msra.mxu0 0.0
    %8743 = vmatprep.subr.mxu0 0.0
    %8744 = vmatpush1.msra.mxu0 0.0
    %8745 = vmatprep.subr.mxu0 0.0
    %8746 = vmatpush1.msra.mxu0 0.0
    %8747 = vmatprep.subr.mxu0 0.0
    %8748 = vmatpush1.msra.mxu0 0.0
    %8749 = vmatprep.subr.mxu0 0.0
    %8750 = vmatpush1.msra.mxu0 0.0
    %8751 = vmatprep.subr.mxu0 0.0
    %8752 = vmatpush1.msra.mxu0 0.0
    %8753 = vmatprep.subr.mxu0 0.0
    %8754 = vmatpush1.msra.mxu0 0.0
    %8755 = vmatprep.subr.mxu0 0.0
    %8756 = vmatpush1.msra.mxu0 0.0
    %8757 = vmatprep.subr.mxu0 0.0
    %8758 = vmatpush1.msra.mxu0 0.0
    %8759 = vmatprep.subr.mxu0 0.0
    %8760 = vmatpush1.msra.mxu0 0.0
    %8761 = vmatprep.subr.mxu0 0.0
    %8762 = vmatpush1.msra.mxu0 0.0
    %8763 = vmatprep.subr.mxu0 0.0
    %8764 = vmatpush1.msra.mxu0 0.0
    %8765 = vmatprep.subr.mxu0 0.0
    %8766 = vmatpush1.msra.mxu0 0.0
    %8767 = vmatprep.subr.mxu0 0.0
    %8768 = vmatpush1.msra.mxu0 0.0
    %8769 = vmatprep.subr.mxu0 0.0
    %8770 = vmatpush1.msra.mxu0 0.0
    %8771 = vmatprep.subr.mxu0 0.0
    %8772 = vmatpush1.msra.mxu0 0.0
    %8773 = vmatprep.subr.mxu0 0.0
    %8774 = vmatpush1.msra.mxu0 0.0
    %8775 = vmatprep.subr.mxu0 0.0
    %8776 = vmatpush1.msra.mxu0 0.0
    %8777 = vmatprep.subr.mxu0 0.0
    %8778 = vmatpush1.msra.mxu0 0.0
    %8779 = vmatprep.subr.mxu0 0.0
    %8780 = vmatpush1.msra.mxu0 0.0
    %8781 = vmatprep.subr.mxu0 0.0
    %8782 = vmatpush1.msra.mxu0 0.0
    %8783 = vmatprep.subr.mxu0 0.0
    %8784 = vmatpush1.msra.mxu0 0.0
    %8785 = vmatprep.subr.mxu0 0.0
    %8786 = vmatpush1.msra.mxu0 0.0
    %8787 = vmatprep.subr.mxu0 0.0
    %8788 = vmatpush1.msra.mxu0 0.0
    %8789 = vmatprep.subr.mxu0 0.0
    %8790 = vmatpush1.msra.mxu0 0.0
    %8791 = vmatprep.subr.mxu0 0.0
    %8792 = vmatpush1.msra.mxu0 0.0
    %8793 = vmatprep.subr.mxu0 0.0
    %8794 = vmatpush1.msra.mxu0 0.0
    %8795 = vmatprep.subr.mxu0 0.0
    %8796 = vmatpush1.msra.mxu0 0.0
    %8797 = vmatprep.subr.mxu0 0.0
    %8798 = vmatpush1.msra.mxu0 0.0
    %8799 = vmatprep.subr.mxu0 0.0
    %8800 = vmatpush1.msra.mxu0 0.0
    %8801 = vmatprep.mubr.f32.mxu0 0.0
    %v8802 = vand.u32 %v7939, 4294901760
    %8803 = vmatmul.mubr.f32.gmra.mrb[0].mxu0 %v8802
    %v8804 = vpop.f32.mrb[0].mxu0
    %v8805 = vadd.f32 %v8727, %v8804
    %v8806 = vpop.f32.mrb[0].mxu0
    %v8807 = vadd.f32 %v8729, %v8806
    %8808 = vdwg.mxu0
    %v8809 = vand.u32 %v7951, 4294901760
    %8810 = vmatprep.subr.mxu0 %v8809
    %v8811 = vand.u32 %v7948, 4294901760
    %8812 = vmatpush1.msra.mxu0 %v8811
    %8813 = vmatprep.subr.mxu0 0.0
    %8814 = vmatpush1.msra.mxu0 0.0
    %8815 = vmatprep.subr.mxu0 0.0
    %8816 = vmatpush1.msra.mxu0 0.0
    %8817 = vmatprep.subr.mxu0 0.0
    %8818 = vmatpush1.msra.mxu0 0.0
    %8819 = vmatprep.subr.mxu0 0.0
    %8820 = vmatpush1.msra.mxu0 0.0
    %8821 = vmatprep.subr.mxu0 0.0
    %8822 = vmatpush1.msra.mxu0 0.0
    %8823 = vmatprep.subr.mxu0 0.0
    %8824 = vmatpush1.msra.mxu0 0.0
    %8825 = vmatprep.subr.mxu0 0.0
    %8826 = vmatpush1.msra.mxu0 0.0
    %8827 = vmatprep.subr.mxu0 0.0
    %8828 = vmatpush1.msra.mxu0 0.0
    %8829 = vmatprep.subr.mxu0 0.0
    %8830 = vmatpush1.msra.mxu0 0.0
    %8831 = vmatprep.subr.mxu0 0.0
    %8832 = vmatpush1.msra.mxu0 0.0
    %8833 = vmatprep.subr.mxu0 0.0
    %8834 = vmatpush1.msra.mxu0 0.0
    %8835 = vmatprep.subr.mxu0 0.0
    %8836 = vmatpush1.msra.mxu0 0.0
    %8837 = vmatprep.subr.mxu0 0.0
    %8838 = vmatpush1.msra.mxu0 0.0
    %8839 = vmatprep.subr.mxu0 0.0
    %8840 = vmatpush1.msra.mxu0 0.0
    %8841 = vmatprep.subr.mxu0 0.0
    %8842 = vmatpush1.msra.mxu0 0.0
    %8843 = vmatprep.subr.mxu0 0.0
    %8844 = vmatpush1.msra.mxu0 0.0
    %8845 = vmatprep.subr.mxu0 0.0
    %8846 = vmatpush1.msra.mxu0 0.0
    %8847 = vmatprep.subr.mxu0 0.0
    %8848 = vmatpush1.msra.mxu0 0.0
    %8849 = vmatprep.subr.mxu0 0.0
    %8850 = vmatpush1.msra.mxu0 0.0
    %8851 = vmatprep.subr.mxu0 0.0
    %8852 = vmatpush1.msra.mxu0 0.0
    %8853 = vmatprep.subr.mxu0 0.0
    %8854 = vmatpush1.msra.mxu0 0.0
    %8855 = vmatprep.subr.mxu0 0.0
    %8856 = vmatpush1.msra.mxu0 0.0
    %8857 = vmatprep.subr.mxu0 0.0
    %8858 = vmatpush1.msra.mxu0 0.0
    %8859 = vmatprep.subr.mxu0 0.0
    %8860 = vmatpush1.msra.mxu0 0.0
    %8861 = vmatprep.subr.mxu0 0.0
    %8862 = vmatpush1.msra.mxu0 0.0
    %8863 = vmatprep.subr.mxu0 0.0
    %8864 = vmatpush1.msra.mxu0 0.0
    %8865 = vmatprep.subr.mxu0 0.0
    %8866 = vmatpush1.msra.mxu0 0.0
    %8867 = vmatprep.subr.mxu0 0.0
    %8868 = vmatpush1.msra.mxu0 0.0
    %8869 = vmatprep.subr.mxu0 0.0
    %8870 = vmatpush1.msra.mxu0 0.0
    %8871 = vmatprep.subr.mxu0 0.0
    %8872 = vmatpush1.msra.mxu0 0.0
    %8873 = vmatprep.subr.mxu0 0.0
    %8874 = vmatpush1.msra.mxu0 0.0
    %8875 = vmatprep.mubr.f32.mxu0 0.0
    %v8876 = vand.u32 %v7939, 4294901760
    %8877 = vmatmul.mubr.f32.gmra.mrb[0].mxu0 %v8876
    %v8878 = vpop.f32.mrb[0].mxu0
    %v8879 = vadd.f32 %v8805, %v8878
    %v8880 = vpop.f32.mrb[0].mxu0
    %v8881 = vadd.f32 %v8807, %v8880
    %8882 = vdwg.mxu0
    %vm8883 = vmand %vm37, %vm45
    %vm8884 = vmand %vm38, %vm46
    %vm8885 = vmand %vm39, %vm47
    %vm8886 = vmand %vm40, %vm48
    %v8887 = vld [vmem:[#allocation2] sm:$0xff]
    %v8888 = vld [vmem:[#allocation2 + $0x8] sm:$0xff]
    %v8889 = vsel %vm8883, 1, 0
    %v8890 = vsel %vm8884, 1, 0
    %v8891 = vsel %vm8885, 1, 0
    %v8892 = vsel %vm8886, 1, 0
    %vm8893 = vcmp.eq.s32.totalorder %v8889, 1
    %vm8894 = vcmp.eq.s32.totalorder %v8890, 1
    %vm8895 = vcmp.eq.s32.totalorder %v8891, 1
    %vm8896 = vcmp.eq.s32.totalorder %v8892, 1
    %v8897 = vsel %vm8893, %v8414, 0.0
    %v8898 = vsel %vm8894, %v8416, 0.0
    %v8899 = vsel %vm8895, %v8879, 0.0
    %v8900 = vsel %vm8896, %v8881, 0.0
    %v8905 = vcombine.low %v8897, %v8898
    %v8906 = vcombine.low %v8899, %v8900
    %v8909 = vadd.f32 %v8887, %v8905
    %v8910 = vadd.f32 %v8888, %v8906
    %8911 = vst [vmem:[#allocation2] sm:$0xff] %v8909
    %8912 = vst [vmem:[#allocation2 + $0x8] sm:$0xff] %v8910
    %v8913 = vld [vmem:[#allocation2] sm:$0xff]
    %v8914 = vld [vmem:[#allocation2 + $0x8] sm:$0xff]
    %v8917 = vcombine.high %v8913, %v8913
    %v8918 = vcombine.high %v8914, %v8914
    %v8921 = vsel %vm59, %v8913, 0.0
    %v8922 = vsel %vm59, %v8917, 0.0
    %v8923 = vadd.f32 %v8921, %v8922
    %v8924 = vsel %vm59, %v8914, 0.0
    %v8925 = vadd.f32 %v8923, %v8924
    %v8926 = vsel %vm59, %v8918, 0.0
    %v8927 = vadd.f32 %v8925, %v8926
    %8928 = vadd.xlane.f32.xlu0 %v8927
    %v8929 = vpop.xlane.xlu0 %8928
    %v8930 = vmul.f32 %v8929, 0.001953125
    %v8933 = vunpack.c.l.s4 839922192
    %v8934 = vunpack.c.0.s8 %v8933
    %v8935 = vlaneseq
    %v8936 = vshrl.u32 %v8935, 7
    %v8937 = vsub.s32 %v8934, %v8936
    %v8938 = vrot.slane %v8930, %v8937
    %v8940 = vsub.f32 %v8913, %v8938
    %v8941 = vsub.f32 %v8914, %v8938
    %v8942 = vmul.f32 %v8940, %v8940
    %v8943 = vmul.f32 %v8941, %v8941
    %v8946 = vcombine.high %v8942, %v8942
    %v8947 = vcombine.high %v8943, %v8943
    %v8950 = vsel %vm59, %v8942, 0.0
    %v8951 = vsel %vm59, %v8946, 0.0
    %v8952 = vadd.f32 %v8950, %v8951
    %v8953 = vsel %vm59, %v8943, 0.0
    %v8954 = vadd.f32 %v8952, %v8953
    %v8955 = vsel %vm59, %v8947, 0.0
    %v8956 = vadd.f32 %v8954, %v8955
    %8957 = vadd.xlane.f32.xlu0 %v8956
    %v8958 = vpop.xlane.xlu0 %8957
    %v8959 = vmul.f32 %v8958, 0.001953125
    %v8960 = vld [vmem:[%s2] sm:$0xf]
    %v8961 = vadd.f32 %v8959, 1e-05
    %v8962 = vrsqrt.pop %v8961
    %v8963 = vmul.f32 %v8960, %v8962
    %8965 = vset.pattern.permute.xlu0 0
    %8966 = vperm.xlu0 %8965, %v8963
    %v8967 = vpop.permute.xlu0 %8966
    %v8969 = vunpack.c.l.s4 839922192
    %v8970 = vunpack.c.0.s8 %v8969
    %v8971 = vlaneseq
    %v8972 = vshrl.u32 %v8971, 7
    %v8973 = vsub.s32 %v8970, %v8972
    %v8974 = vrot.slane %v8967, %v8973
    %v8976 = vmul.f32 %v8940, %v8974
    %v8977 = vmul.f32 %v8941, %v8974
    %v8978 = vld [vmem:[%s3] sm:$0xf]
    %8980 = vset.pattern.permute.xlu0 0
    %8981 = vperm.xlu0 %8980, %v8978
    %v8982 = vpop.permute.xlu0 %8981
    %v8984 = vunpack.c.l.s4 839922192
    %v8985 = vunpack.c.0.s8 %v8984
    %v8986 = vlaneseq
    %v8987 = vshrl.u32 %v8986, 7
    %v8988 = vsub.s32 %v8985, %v8987
    %v8989 = vrot.slane %v8982, %v8988
    %v8991 = vadd.f32 %v8976, %v8989
    %v8992 = vadd.f32 %v8977, %v8989
    %v8993 = vmul.f32 %v8991, 0.2
    %v8994 = vmul.f32 %v8992, 0.2
    %v8995 = vmax.f32 %v8991, %v8993
    %v8996 = vmax.f32 %v8992, %v8994
    %8997 = vst [vmem:[#allocation2] sm:$0xff] %v8995
    %8998 = vst [vmem:[#allocation2 + $0x8] sm:$0xff] %v8996
    // Predicated region
    $region18: #{tpu_custom_call.1} parent=1 // pred_check
      _
    $region19: #{tpu_custom_call.1} parent=1 // pred_check_branch
      %9000 = sbr.rel (0) target = $region21
    $region20: #{tpu_custom_call.1} parent=1 // pred_region
      %s9002 = ssub.s32 256, 256
      %9003 = vsyncadd [#allocation3], %s9002
      %s9005 = sshll.u32 [#allocation2], 4
      %s9006 = int_to_ptr.vmem [resolvable:$true] %s9005
      %9008 = dma.vmem_to_hbm [thread:$0]  %s9006, 256, %s4, [#allocation3]
    $region21: #{tpu_custom_call.1} parent=1 // pred_fallthru
      _
    // Predicated region
    $region22: #{tpu_custom_call.1} parent=1 // pred_check
      _
    $region23: #{tpu_custom_call.1} parent=1 // pred_check_branch
      %9010 = sbr.rel (0) target = $region25
    $region24: #{tpu_custom_call.1} parent=1 // pred_region
      %9011 = dma.done [#allocation3], 256
    $region25: #{tpu_custom_call.1} parent=1 // pred_fallthru
      _
    %9012 = vsyncpa [#allocation3], 1

</llo_original>
